<compile_context>
chip_gen: v5e
topology: v5e:2x2
jax: 0.10.0
libtpu: 0.0.40
codegen_flags: <defaults>
</compile_context>

<pallas_src>
import functools

import numpy as np
import jax
import jax.numpy as jnp
from jax.experimental import pallas as pl
from jax.experimental.pallas import tpu as pltpu

LEAKY_SLOPE = 0.01  # nn.LeakyReLU default negative_slope

# Direction convention of pltpu.roll (True => matches jnp.roll).  Detected with
# a tiny probe kernel at import time so it is always set before tracing.
_ROLL_MATCHES_JNP = True


def _detect_roll_convention():
    global _ROLL_MATCHES_JNP

    def kern(x_ref, o_ref):
        o_ref[...] = pltpu.roll(x_ref[...], 1, 1)

    try:
        x = jnp.arange(8 * 128, dtype=jnp.float32).reshape(8, 128)
        y = pl.pallas_call(
            kern, out_shape=jax.ShapeDtypeStruct((8, 128), jnp.float32))(x)
        _ROLL_MATCHES_JNP = bool(jnp.array_equal(y, jnp.roll(x, 1, axis=1)))
    except Exception:  # pragma: no cover - keep the safe default
        _ROLL_MATCHES_JNP = True


_detect_roll_convention()


# ----------------------------------------------------------------------------
# In-kernel helpers
# ----------------------------------------------------------------------------
def _leaky(x):
    return jnp.maximum(x, LEAKY_SLOPE * x)


def _apply_act(x, act):
    if act == "leaky":
        return _leaky(x)
    if act == "relu":
        return jnp.maximum(x, 0.0)
    if act == "tanh":
        return jnp.tanh(x)
    return x


def _shift_lanes(x, off):
    """y[:, m] = x[:, (m + off) % M] (wrapped entries are zeroed by the masks)."""
    m = x.shape[-1]
    off = off % m
    if off == 0:
        return x
    shift = (m - off) if _ROLL_MATCHES_JNP else off
    return pltpu.roll(x, shift, 1)


def _conv3x3_fused(x, w2d, bias, mask_ref, row_w, act):
    """Stride-1 3x3 conv on a (Cin, M) slab as ONE MXU matmul.

    x        : (Cin, M) f32, M = B*H*W lane-major.
    w2d      : (Cout, 9*Cin) bf16, column = tap*Cin + ci, tap = (di+1)*3+(dj+1).
    mask_ref : (9, >=Cin, M) f32 pre-broadcast in-bounds masks (no in-kernel
               broadcast_in_dim).
    """
    cin = x.shape[0]
    taps = []
    for t in range(9):
        di, dj = t // 3 - 1, t % 3 - 1
        xs = _shift_lanes(x, di * row_w + dj)
        if di != 0 or dj != 0:  # centre tap never wraps
            xs = xs * mask_ref[t, :cin, :]
        taps.append(xs)
    tap_buf = jnp.concatenate(taps, axis=0).astype(jnp.bfloat16)  # (9*Cin, M)
    acc = jnp.dot(w2d, tap_buf, preferred_element_type=jnp.float32)
    if bias is not None:
        acc = acc + bias
    return _apply_act(acc, act)


# ----------------------------------------------------------------------------
# Kernels
# ----------------------------------------------------------------------------
def _encoder_vq_kernel(x_ref, d0w_ref, d0b_ref, s2d2_ref, d1w_ref, d1b_ref,
                       midw_ref, midb_ref, rw1_ref, rw2_ref, ow_ref, ob_ref,
                       cb_ref, cbt_ref, c2_ref, mq_ref, mh_ref,
                       enc_ref, q_ref, loss_ref, *, beta, row_h, row_q):
    # down-conv 0 (k4,s2,p1 rewritten as 3x3/s1 on space-to-depth input) + leaky
    h = _conv3x3_fused(x_ref[...], d0w_ref[...], d0b_ref[...], mh_ref, row_h,
                       "leaky")                                   # (16, Mh)
    # in-kernel space-to-depth #2: 4 exact 0/1 lane-selection matmuls
    h = jnp.concatenate(
        [jnp.dot(h, s2d2_ref[s], preferred_element_type=jnp.float32)
         for s in range(4)], axis=0)                              # (64, Mq)
    # down-conv 1 + leaky
    h = _conv3x3_fused(h, d1w_ref[...], d1b_ref[...], mq_ref, row_q, "leaky")
    # mid 3x3 conv + leaky
    h = _conv3x3_fused(h, midw_ref[...], midb_ref[...], mq_ref, row_q, "leaky")
    # 6 residual blocks: x + conv1x1(relu(conv3x3(x))), both bias-free
    for blk in range(6):
        r = _conv3x3_fused(h, rw1_ref[blk], None, mq_ref, row_q, "relu")
        h = h + jnp.dot(rw2_ref[blk], r.astype(jnp.bfloat16),
                        preferred_element_type=jnp.float32)
    h = _leaky(h)
    # 1x1 conv -> embedding_dim + leaky
    e = _leaky(jnp.dot(ow_ref[...], h.astype(jnp.bfloat16),
                       preferred_element_type=jnp.float32) + ob_ref[...])
    enc_ref[...] = e

    # ---- vector quantizer (fused epilogue) ----
    emb = cb_ref[...]                                             # (K, D)
    k = emb.shape[0]
    cross = jnp.dot(emb, e, preferred_element_type=jnp.float32)   # (K, M)
    # ||e||^2 is constant across K -> dropped, argmin unchanged.
    dist = c2_ref[...] - 2.0 * cross
    min_d = jnp.min(dist, axis=0, keepdims=True)
    iota_k = jax.lax.broadcasted_iota(jnp.int32, dist.shape, 0).astype(jnp.float32)
    inds = jnp.min(jnp.where(dist == min_d, iota_k, float(k)),
                   axis=0, keepdims=True)                         # first-min tie-break
    one_hot = (iota_k == inds).astype(jnp.float32)                # (K, M)
    q = jnp.dot(cbt_ref[...], one_hot, preferred_element_type=jnp.float32)
    q_ref[...] = q
    diff = q - e
    d_, m_ = e.shape
    # commitment_loss * beta + embedding_loss (identical values in the forward)
    loss_ref[0, 0] = (1.0 + beta) * jnp.sum(diff * diff) / float(d_ * m_)


def _decoder_kernel(qd_ref, dinw_ref, dinb_ref, rw1_ref, rw2_ref,
                    up1w_ref, up1b_ref, d2s_ref, finw_ref, finb_ref,
                    mq_ref, mh_ref, o_ref, *, row_q, row_h):
    # decoder-in 3x3 conv + leaky
    h = _conv3x3_fused(qd_ref[...], dinw_ref[...], dinb_ref[...], mq_ref,
                       row_q, "leaky")                            # (32, Mq)
    # 6 residual blocks
    for blk in range(6):
        r = _conv3x3_fused(h, rw1_ref[blk], None, mq_ref, row_q, "relu")
        h = h + jnp.dot(rw2_ref[blk], r.astype(jnp.bfloat16),
                        preferred_element_type=jnp.float32)
    h = _leaky(h)
    # first ConvTranspose2d (k4,s2,p1) in sub-pixel form + leaky
    u = _conv3x3_fused(h, up1w_ref[...], up1b_ref[...], mq_ref, row_q, "leaky")
    cout = up1w_ref.shape[0] // 4
    mh_lanes = d2s_ref.shape[2]
    # in-kernel depth-to-space: 4 exact 0/1 lane-scatter matmuls
    g = jnp.zeros((cout, mh_lanes), jnp.float32)
    for s in range(4):
        g = g + jnp.dot(u[s * cout:(s + 1) * cout, :], d2s_ref[s],
                        preferred_element_type=jnp.float32)       # (Cout, Mh)
    # final ConvTranspose2d (sub-pixel) + tanh; last depth-to-space in wrapper
    o_ref[...] = _conv3x3_fused(g, finw_ref[...], finb_ref[...], mh_ref,
                                row_h, "tanh")                    # (12, Mh)


# ----------------------------------------------------------------------------
# pallas_call wrappers
# ----------------------------------------------------------------------------
def encoder_vq(xs, kp, beta, row_h, row_q):
    d = kp["out_w"].shape[0]
    mq = kp["mask_q"].shape[2]
    vmem = pl.BlockSpec(memory_space=pltpu.MemorySpace.VMEM)
    smem = pl.BlockSpec(memory_space=pltpu.MemorySpace.SMEM)
    return pl.pallas_call(
        functools.partial(_encoder_vq_kernel, beta=beta, row_h=row_h,
                          row_q=row_q),
        out_shape=(jax.ShapeDtypeStruct((d, mq), jnp.float32),
                   jax.ShapeDtypeStruct((d, mq), jnp.float32),
                   jax.ShapeDtypeStruct((1, 1), jnp.float32)),
        out_specs=(vmem, vmem, smem),
    )(xs, kp["d0_w"], kp["d0_b"], kp["s2d2"], kp["d1_w"], kp["d1_b"],
      kp["mid_w"], kp["mid_b"], kp["enc_res_w1"], kp["enc_res_w2"],
      kp["out_w"], kp["out_b"], kp["codebook"], kp["codebook_t"],
      kp["codebook_sq"], kp["mask_q"], kp["mask_h"])


def decoder(qd, kp, row_q, row_h):
    cout4 = kp["fin_w"].shape[0]
    mh = kp["mask_h"].shape[2]
    return pl.pallas_call(
        functools.partial(_decoder_kernel, row_q=row_q, row_h=row_h),
        out_shape=jax.ShapeDtypeStruct((cout4, mh), jnp.float32),
    )(qd, kp["din_w"], kp["din_b"], kp["dec_res_w1"], kp["dec_res_w2"],
      kp["up1_w"], kp["up1_b"], kp["d2s1"], kp["fin_w"], kp["fin_b"],
      kp["mask_q"], kp["mask_h"])


# ----------------------------------------------------------------------------
# Host-side precomputation (masks, lane-permutation matrices)
# ----------------------------------------------------------------------------
def _make_tap_masks_np(b, h, w):
    # mask[t, m] = 1 iff tap (di, dj) of flattened position m stays in the image
    m = np.arange(b * h * w)
    wo = m % w
    ho = (m // w) % h
    masks = np.zeros((9, b * h * w), np.float32)
    for t in range(9):
        di, dj = t // 3 - 1, t % 3 - 1
        ok = (ho + di >= 0) & (ho + di < h) & (wo + dj >= 0) & (wo + dj < w)
        masks[t] = ok.astype(np.float32)
    return masks


def _make_s2d_select_np(b, hb, wb):
    """(4, b*(2hb)*(2wb), b*hb*wb) 0/1 lane-selection matrices for space-to-depth."""
    big_h, big_w = 2 * hb, 2 * wb
    mats = np.zeros((4, b * big_h * big_w, b * hb * wb), np.float32)
    for si in range(2):
        for sj in range(2):
            s = si * 2 + sj
            for bi in range(b):
                for r in range(hb):
                    for c in range(wb):
                        m_in = bi * big_h * big_w + (2 * r + si) * big_w + (2 * c + sj)
                        m_out = bi * hb * wb + r * wb + c
                        mats[s, m_in, m_out] = 1.0
    return mats


# ----------------------------------------------------------------------------
# Weight transforms (PyTorch layouts -> kernel layouts), done once at prep time
# ----------------------------------------------------------------------------
def _conv3x3_w(w):
    # (Cout, Cin, 3, 3) -> (9, Cout, Cin), tap index t = i*3 + j
    cout, cin = w.shape[0], w.shape[1]
    return jnp.transpose(w, (2, 3, 0, 1)).reshape(9, cout, cin)


def _conv4s2_to_s2d_w(w4):
    # Conv2d(k=4, s=2, p=1) == 3x3/s1/p1 conv on space-to-depth input (4*Cin ch)
    w4 = np.asarray(w4)
    cout, cin = w4.shape[0], w4.shape[1]
    w3 = np.zeros((3, 3, cout, 4, cin), np.float32)
    for i in range(4):
        bi, si = (i - 1) // 2, (i - 1) % 2
        for j in range(4):
            bj, sj = (j - 1) // 2, (j - 1) % 2
            w3[bi + 1, bj + 1, :, si * 2 + sj, :] = w4[:, :, i, j]
    return jnp.asarray(w3.reshape(9, cout, 4 * cin))


def _convT4s2_to_subpixel_w(wt, bias):
    # ConvTranspose2d(k=4, s=2, p=1) == 3x3/s1/p1 conv -> 4*Cout ch + depth-to-space
    wt = np.asarray(wt)
    b = np.asarray(bias)
    cin, cout = wt.shape[0], wt.shape[1]
    w3 = np.zeros((3, 3, 4, cout, cin), np.float32)
    for sr in range(2):
        for dh in (-1, 0, 1):
            i = sr - 2 * dh + 1
            if not 0 <= i < 4:
                continue
            for sc in range(2):
                for dw in (-1, 0, 1):
                    j = sc - 2 * dw + 1
                    if not 0 <= j < 4:
                        continue
                    w3[dh + 1, dw + 1, sr * 2 + sc, :, :] = wt[:, :, i, j].T
    b4 = np.tile(b, 4).reshape(4 * cout, 1).astype(np.float32)
    return jnp.asarray(w3.reshape(9, 4 * cout, cin)), jnp.asarray(b4)


def _pack_w9(w9, pad_cin=None):
    # (9, Cout, Cin) -> (Cout, 9*Cin) bf16, column index = tap*Cin + ci
    k, cout, cin = w9.shape
    if pad_cin is not None and pad_cin > cin:
        w9 = jnp.pad(w9, ((0, 0), (0, 0), (0, pad_cin - cin)))
        cin = pad_cin
    return jnp.transpose(w9, (1, 0, 2)).reshape(cout, k * cin).astype(jnp.bfloat16)


# ----------------------------------------------------------------------------
# Parameter init (deterministic, synthetic, PyTorch layouts) + kernel prep
# ----------------------------------------------------------------------------
def init_params(key, in_channels=3, embedding_dim=8, num_embeddings=16,
                hidden_dims=(16, 32)):
    keys = iter(jax.random.split(key, 64))

    def conv_w(cout, cin, k):
        return 0.1 * jax.random.normal(next(keys), (cout, cin, k, k), jnp.float32)

    def bias(c):
        return 0.01 * jax.random.normal(next(keys), (c,), jnp.float32)

    p = {}
    cin = in_channels
    p["enc_down"] = []
    for h in hidden_dims:
        p["enc_down"].append((conv_w(h, cin, 4), bias(h)))
        cin = h
    p["enc_mid"] = (conv_w(cin, cin, 3), bias(cin))
    p["enc_res"] = [(conv_w(cin, cin, 3), conv_w(cin, cin, 1)) for _ in range(6)]
    p["enc_out"] = (conv_w(embedding_dim, cin, 1), bias(embedding_dim))

    p["codebook"] = jax.random.uniform(
        next(keys), (num_embeddings, embedding_dim), jnp.float32,
        -1.0 / num_embeddings, 1.0 / num_embeddings)

    hd = hidden_dims[-1]
    p["dec_in"] = (conv_w(hd, embedding_dim, 3), bias(hd))
    p["dec_res"] = [(conv_w(hd, hd, 3), conv_w(hd, hd, 1)) for _ in range(6)]
    rev = list(hidden_dims)[::-1]
    p["dec_up"] = []
    for i in range(len(rev) - 1):
        w = 0.1 * jax.random.normal(next(keys), (rev[i], rev[i + 1], 4, 4),
                                    jnp.float32)
        p["dec_up"].append((w, bias(rev[i + 1])))
    w_last = 0.1 * jax.random.normal(next(keys), (rev[-1], 3, 4, 4), jnp.float32)
    p["dec_final"] = (w_last, bias(3))
    return p


def prepare_params(p, batch, img_size):
    kp = {}
    (w0, b0), (w1, b1) = p["enc_down"]
    kp["d0_w"] = _pack_w9(_conv4s2_to_s2d_w(w0), pad_cin=16)   # (16, 144)
    kp["d0_b"] = b0.reshape(-1, 1)
    kp["d1_w"] = _pack_w9(_conv4s2_to_s2d_w(w1))               # (32, 576)
    kp["d1_b"] = b1.reshape(-1, 1)

    wm, bm = p["enc_mid"]
    kp["mid_w"], kp["mid_b"] = _pack_w9(_conv3x3_w(wm)), bm.reshape(-1, 1)
    kp["enc_res_w1"] = jnp.stack([_pack_w9(_conv3x3_w(a)) for a, _ in p["enc_res"]])
    kp["enc_res_w2"] = jnp.stack(
        [w[:, :, 0, 0] for _, w in p["enc_res"]]).astype(jnp.bfloat16)
    wo, bo = p["enc_out"]
    kp["out_w"] = wo[:, :, 0, 0].astype(jnp.bfloat16)
    kp["out_b"] = bo.reshape(-1, 1)

    cb = p["codebook"]
    kp["codebook"] = cb
    kp["codebook_t"] = jnp.transpose(cb)
    kp["codebook_sq"] = jnp.sum(cb * cb, axis=1, keepdims=True)   # (K, 1)

    wd, bd = p["dec_in"]
    kp["din_w"], kp["din_b"] = _pack_w9(_conv3x3_w(wd)), bd.reshape(-1, 1)
    kp["dec_res_w1"] = jnp.stack([_pack_w9(_conv3x3_w(a)) for a, _ in p["dec_res"]])
    kp["dec_res_w2"] = jnp.stack(
        [w[:, :, 0, 0] for _, w in p["dec_res"]]).astype(jnp.bfloat16)
    (wu, bu), = p["dec_up"]
    wu9, bu4 = _convT4s2_to_subpixel_w(wu, bu)
    kp["up1_w"], kp["up1_b"] = _pack_w9(wu9), bu4                 # (64, 288)
    wf, bf = p["dec_final"]
    wf9, bf4 = _convT4s2_to_subpixel_w(wf, bf)
    kp["fin_w"], kp["fin_b"] = _pack_w9(wf9), bf4                 # (12, 144)

    hq, hh = img_size // 4, img_size // 2
    mq = _make_tap_masks_np(batch, hq, hq)
    mh = _make_tap_masks_np(batch, hh, hh)
    # Pre-broadcast masks to (9, Cmax, M) so the kernels never emit broadcasts.
    kp["mask_q"] = jnp.asarray(np.ascontiguousarray(
        np.broadcast_to(mq[:, None, :], (9, 64, mq.shape[1]))))
    kp["mask_h"] = jnp.asarray(np.ascontiguousarray(
        np.broadcast_to(mh[:, None, :], (9, 16, mh.shape[1]))))
    s2d2 = _make_s2d_select_np(batch, hq, hq)                     # (4, Mh, Mq)
    kp["s2d2"] = jnp.asarray(s2d2)
    kp["d2s1"] = jnp.asarray(np.ascontiguousarray(np.transpose(s2d2, (0, 2, 1))))
    return kp


# ----------------------------------------------------------------------------
# Forward pass: returns (reconstruction, input, vq_loss, encoding)
# ----------------------------------------------------------------------------
def vqvae_forward(kp, x_nchw, beta=0.25):
    b, c0, h0, w0 = x_nchw.shape
    row_h, row_q = w0 // 2, w0 // 4
    d = kp["out_w"].shape[0]
    he = we = h0 // 4
    assert he == d, "reference VQ-bug path requires encoder spatial == embedding_dim"

    # input space-to-depth (layout plumbing) + zero channel pad 4*c0 -> 16
    cin_pad = kp["d0_w"].shape[1] // 9
    xs = x_nchw.astype(jnp.float32).reshape(b, c0, row_h, 2, row_h, 2)
    xs = jnp.transpose(xs, (3, 5, 1, 0, 2, 4)).reshape(4 * c0, b * row_h * row_h)
    xs = jnp.pad(xs, ((0, cin_pad - 4 * c0), (0, 0)))

    # fused encoder (down-convs + mid + 6 res blocks + 1x1) + vector quantizer
    enc, q, loss = encoder_vq(xs, kp, beta, row_h, row_q)

    # Faithful to the reference: the NHWC quantized tensor is consumed as NCHW,
    # i.e. decoder "channels" = He, spatial = (We, D).
    qd = q.reshape(d, b, he, we).transpose(2, 1, 3, 0).reshape(he, b * we * d)

    # fused decoder (3x3 conv + 6 res blocks + both transposed convs)
    f4 = decoder(qd, kp, row_q, row_h)                    # (12, B*2We*2D)

    # final depth-to-space (output layout plumbing)
    hf, wf = 2 * we, 2 * d
    out = f4.reshape(2, 2, 3, b, hf, wf).transpose(2, 3, 4, 0, 5, 1)
    out = out.reshape(3, b, 2 * hf, 2 * wf)
    result = jnp.transpose(out, (1, 0, 2, 3))
    encoding = enc.reshape(d, b, he, we).transpose(1, 0, 2, 3)
    return result, x_nchw, loss[0, 0], encoding


if __name__ == "__main__":
    key = jax.random.PRNGKey(0)
    k_param, k_x = jax.random.split(key)

    # img_size=32, hidden_dims=(16, 32) -> encoder spatial 8x8 == embedding_dim=8
    # (a requirement implied by the reference forward pass; see NOTE above).
    B, IMG = 2, 32
    params = init_params(k_param, in_channels=3, embedding_dim=8,
                         num_embeddings=16, hidden_dims=(16, 32))
    kp = prepare_params(params, batch=B, img_size=IMG)
    x = jax.random.normal(k_x, (B, 3, IMG, IMG), jnp.float32)

    fwd = jax.jit(functools.partial(vqvae_forward, beta=0.25))
    result, inp, vq_loss, encoding = fwd(kp, x)
    jax.block_until_ready((result, vq_loss, encoding))

    assert result.shape == (B, 3, IMG, IMG)
    assert encoding.shape == (B, 8, IMG // 4, IMG // 4)
    assert vq_loss.shape == ()
    print("KERNEL_OK")
</pallas_src>

<mosaic_0001>
module attributes {stable_mosaic.version = 11 : i64} {
  func.func @kern(%arg0: memref<8x128xf32, #tpu.memory_space<vmem>>, %arg1: memref<8x128xf32, #tpu.memory_space<vmem>>) attributes {dimension_semantics = [], scalar_prefetch = 0 : i64, scratch_operands = 0 : i64, tpu.core_type = #tpu.core_type<tc>} {
    %c0 = arith.constant 0 : index
    %c0_0 = arith.constant 0 : index
    %0 = vector.load %arg0[%c0, %c0_0] : memref<8x128xf32, #tpu.memory_space<vmem>>, vector<8x128xf32>
    %c1_i32 = arith.constant 1 : i32
    %1 = tpu.dynamic_rotate %0 by %c1_i32 dim 1 : vector<8x128xf32>, i32 -> vector<8x128xf32>
    %c0_1 = arith.constant 0 : index
    %c0_2 = arith.constant 0 : index
    %2 = vector.load %arg1[%c0_1, %c0_2] : memref<8x128xf32, #tpu.memory_space<vmem>>, vector<8x128xf32>
    tpu.vector_store %arg1[%c0_1, %c0_2], %1 {strides = array<i32>} : memref<8x128xf32, #tpu.memory_space<vmem>>, vector<8x128xf32>,
    return
  }
}

module attributes {stable_mosaic.version = 11 : i64} {
  func.func @_encoder_vq_kernel(%arg0: memref<16x512xf32, #tpu.memory_space<vmem>>, %arg1: memref<16x144xbf16, #tpu.memory_space<vmem>>, %arg2: memref<16x1xf32, #tpu.memory_space<vmem>>, %arg3: memref<4x512x128xf32, #tpu.memory_space<vmem>>, %arg4: memref<32x576xbf16, #tpu.memory_space<vmem>>, %arg5: memref<32x1xf32, #tpu.memory_space<vmem>>, %arg6: memref<32x288xbf16, #tpu.memory_space<vmem>>, %arg7: memref<32x1xf32, #tpu.memory_space<vmem>>, %arg8: memref<6x32x288xbf16, #tpu.memory_space<vmem>>, %arg9: memref<6x32x32xbf16, #tpu.memory_space<vmem>>, %arg10: memref<8x32xbf16, #tpu.memory_space<vmem>>, %arg11: memref<8x1xf32, #tpu.memory_space<vmem>>, %arg12: memref<16x8xf32, #tpu.memory_space<vmem>>, %arg13: memref<8x16xf32, #tpu.memory_space<vmem>>, %arg14: memref<16x1xf32, #tpu.memory_space<vmem>>, %arg15: memref<9x64x128xf32, #tpu.memory_space<vmem>>, %arg16: memref<9x16x512xf32, #tpu.memory_space<vmem>>, %arg17: memref<8x128xf32, #tpu.memory_space<vmem>>, %arg18: memref<8x128xf32, #tpu.memory_space<vmem>>, %arg19: memref<1x1xf32, #tpu.memory_space<smem>>) attributes {dimension_semantics = [], scalar_prefetch = 0 : i64, scratch_operands = 0 : i64, tpu.core_type = #tpu.core_type<tc>} {
    %c0 = arith.constant 0 : index
    %c0_0 = arith.constant 0 : index
    %0 = vector.load %arg0[%c0, %c0_0] : memref<16x512xf32, #tpu.memory_space<vmem>>, vector<16x512xf32>
    %c0_1 = arith.constant 0 : index
    %c0_2 = arith.constant 0 : index
    %1 = vector.load %arg1[%c0_1, %c0_2] : memref<16x144xbf16, #tpu.memory_space<vmem>>, vector<16x144xbf16>
    %c0_3 = arith.constant 0 : index
    %c0_4 = arith.constant 0 : index
    %2 = vector.load %arg2[%c0_3, %c0_4] : memref<16x1xf32, #tpu.memory_space<vmem>>, vector<16x1xf32>
    %c17_i32 = arith.constant 17 : i32
    %3 = tpu.dynamic_rotate %0 by %c17_i32 dim 1 : vector<16x512xf32>, i32 -> vector<16x512xf32>
    %c0_5 = arith.constant 0 : index
    %c0_6 = arith.constant 0 : index
    %c0_7 = arith.constant 0 : index
    %4 = vector.load %arg16[%c0_5, %c0_6, %c0_7] : memref<9x16x512xf32, #tpu.memory_space<vmem>>, vector<1x16x512xf32>
    %5 = vector.shape_cast %4 : vector<1x16x512xf32> to vector<16x512xf32>
    %6 = arith.mulf %3, %5 : vector<16x512xf32>
    %c16_i32 = arith.constant 16 : i32
    %7 = tpu.dynamic_rotate %0 by %c16_i32 dim 1 : vector<16x512xf32>, i32 -> vector<16x512xf32>
    %c1 = arith.constant 1 : index
    %c0_8 = arith.constant 0 : index
    %c0_9 = arith.constant 0 : index
    %8 = vector.load %arg16[%c1, %c0_8, %c0_9] : memref<9x16x512xf32, #tpu.memory_space<vmem>>, vector<1x16x512xf32>
    %9 = vector.shape_cast %8 : vector<1x16x512xf32> to vector<16x512xf32>
    %10 = arith.mulf %7, %9 : vector<16x512xf32>
    %c15_i32 = arith.constant 15 : i32
    %11 = tpu.dynamic_rotate %0 by %c15_i32 dim 1 : vector<16x512xf32>, i32 -> vector<16x512xf32>
    %c2 = arith.constant 2 : index
    %c0_10 = arith.constant 0 : index
    %c0_11 = arith.constant 0 : index
    %12 = vector.load %arg16[%c2, %c0_10, %c0_11] : memref<9x16x512xf32, #tpu.memory_space<vmem>>, vector<1x16x512xf32>
    %13 = vector.shape_cast %12 : vector<1x16x512xf32> to vector<16x512xf32>
    %14 = arith.mulf %11, %13 : vector<16x512xf32>
    %c1_i32 = arith.constant 1 : i32
    %15 = tpu.dynamic_rotate %0 by %c1_i32 dim 1 : vector<16x512xf32>, i32 -> vector<16x512xf32>
    %c3 = arith.constant 3 : index
    %c0_12 = arith.constant 0 : index
    %c0_13 = arith.constant 0 : index
    %16 = vector.load %arg16[%c3, %c0_12, %c0_13] : memref<9x16x512xf32, #tpu.memory_space<vmem>>, vector<1x16x512xf32>
    %17 = vector.shape_cast %16 : vector<1x16x512xf32> to vector<16x512xf32>
    %18 = arith.mulf %15, %17 : vector<16x512xf32>
    %c511_i32 = arith.constant 511 : i32
    %19 = tpu.dynamic_rotate %0 by %c511_i32 dim 1 : vector<16x512xf32>, i32 -> vector<16x512xf32>
    %c5 = arith.constant 5 : index
    %c0_14 = arith.constant 0 : index
    %c0_15 = arith.constant 0 : index
    %20 = vector.load %arg16[%c5, %c0_14, %c0_15] : memref<9x16x512xf32, #tpu.memory_space<vmem>>, vector<1x16x512xf32>
    %21 = vector.shape_cast %20 : vector<1x16x512xf32> to vector<16x512xf32>
    %22 = arith.mulf %19, %21 : vector<16x512xf32>
    %c497_i32 = arith.constant 497 : i32
    %23 = tpu.dynamic_rotate %0 by %c497_i32 dim 1 : vector<16x512xf32>, i32 -> vector<16x512xf32>
    %c6 = arith.constant 6 : index
    %c0_16 = arith.constant 0 : index
    %c0_17 = arith.constant 0 : index
    %24 = vector.load %arg16[%c6, %c0_16, %c0_17] : memref<9x16x512xf32, #tpu.memory_space<vmem>>, vector<1x16x512xf32>
    %25 = vector.shape_cast %24 : vector<1x16x512xf32> to vector<16x512xf32>
    %26 = arith.mulf %23, %25 : vector<16x512xf32>
    %c496_i32 = arith.constant 496 : i32
    %27 = tpu.dynamic_rotate %0 by %c496_i32 dim 1 : vector<16x512xf32>, i32 -> vector<16x512xf32>
    %c7 = arith.constant 7 : index
    %c0_18 = arith.constant 0 : index
    %c0_19 = arith.constant 0 : index
    %28 = vector.load %arg16[%c7, %c0_18, %c0_19] : memref<9x16x512xf32, #tpu.memory_space<vmem>>, vector<1x16x512xf32>
    %29 = vector.shape_cast %28 : vector<1x16x512xf32> to vector<16x512xf32>
    %30 = arith.mulf %27, %29 : vector<16x512xf32>
    %c495_i32 = arith.constant 495 : i32
    %31 = tpu.dynamic_rotate %0 by %c495_i32 dim 1 : vector<16x512xf32>, i32 -> vector<16x512xf32>
    %c8 = arith.constant 8 : index
    %c0_20 = arith.constant 0 : index
    %c0_21 = arith.constant 0 : index
    %32 = vector.load %arg16[%c8, %c0_20, %c0_21] : memref<9x16x512xf32, #tpu.memory_space<vmem>>, vector<1x16x512xf32>
    %33 = vector.shape_cast %32 : vector<1x16x512xf32> to vector<16x512xf32>
    %34 = arith.mulf %31, %33 : vector<16x512xf32>
    %35 = tpu.concatenate %6, %10, %14, %18, %0, %22, %26, %30, %34 in 0 : vector<16x512xf32>, vector<16x512xf32>, vector<16x512xf32>, vector<16x512xf32>, vector<16x512xf32>, vector<16x512xf32>, vector<16x512xf32>, vector<16x512xf32>, vector<16x512xf32> -> vector<144x512xf32>
    %36 = arith.truncf %35 : vector<144x512xf32> to vector<144x512xbf16>
    %cst = arith.constant dense<0.000000e+00> : vector<16x512xf32>
    %37 = tpu.matmul %1, %36, %cst {dimension_numbers = #tpu.dot_dimension_numbers<[1], [0], [0], [1], [0, 0, 1, 1], [], []>} : vector<16x144xbf16>, vector<144x512xbf16>, vector<16x512xf32> -> vector<16x512xf32>
    %38 = vector.broadcast %2 : vector<16x1xf32> to vector<16x512xf32>
    %39 = arith.addf %37, %38 : vector<16x512xf32>
    %cst_22 = arith.constant 0.00999999977 : f32
    %40 = vector.broadcast %cst_22 : f32 to vector<16x512xf32>
    %41 = arith.mulf %40, %39 : vector<16x512xf32>
    %42 = arith.maximumf %39, %41 : vector<16x512xf32>
    %c0_23 = arith.constant 0 : index
    %c0_24 = arith.constant 0 : index
    %c0_25 = arith.constant 0 : index
    %43 = vector.load %arg3[%c0_23, %c0_24, %c0_25] : memref<4x512x128xf32, #tpu.memory_space<vmem>>, vector<1x512x128xf32>
    %44 = vector.shape_cast %43 : vector<1x512x128xf32> to vector<512x128xf32>
    %cst_26 = arith.constant dense<0.000000e+00> : vector<16x128xf32>
    %45 = tpu.matmul %42, %44, %cst_26 {dimension_numbers = #tpu.dot_dimension_numbers<[1], [0], [0], [1], [0, 0, 1, 1], [], []>} : vector<16x512xf32>, vector<512x128xf32>, vector<16x128xf32> -> vector<16x128xf32>
    %c1_27 = arith.constant 1 : index
    %c0_28 = arith.constant 0 : index
    %c0_29 = arith.constant 0 : index
    %46 = vector.load %arg3[%c1_27, %c0_28, %c0_29] : memref<4x512x128xf32, #tpu.memory_space<vmem>>, vector<1x512x128xf32>
    %47 = vector.shape_cast %46 : vector<1x512x128xf32> to vector<512x128xf32>
    %cst_30 = arith.constant dense<0.000000e+00> : vector<16x128xf32>
    %48 = tpu.matmul %42, %47, %cst_30 {dimension_numbers = #tpu.dot_dimension_numbers<[1], [0], [0], [1], [0, 0, 1, 1], [], []>} : vector<16x512xf32>, vector<512x128xf32>, vector<16x128xf32> -> vector<16x128xf32>
    %c2_31 = arith.constant 2 : index
    %c0_32 = arith.constant 0 : index
    %c0_33 = arith.constant 0 : index
    %49 = vector.load %arg3[%c2_31, %c0_32, %c0_33] : memref<4x512x128xf32, #tpu.memory_space<vmem>>, vector<1x512x128xf32>
    %50 = vector.shape_cast %49 : vector<1x512x128xf32> to vector<512x128xf32>
    %cst_34 = arith.constant dense<0.000000e+00> : vector<16x128xf32>
    %51 = tpu.matmul %42, %50, %cst_34 {dimension_numbers = #tpu.dot_dimension_numbers<[1], [0], [0], [1], [0, 0, 1, 1], [], []>} : vector<16x512xf32>, vector<512x128xf32>, vector<16x128xf32> -> vector<16x128xf32>
    %c3_35 = arith.constant 3 : index
    %c0_36 = arith.constant 0 : index
    %c0_37 = arith.constant 0 : index
    %52 = vector.load %arg3[%c3_35, %c0_36, %c0_37] : memref<4x512x128xf32, #tpu.memory_space<vmem>>, vector<1x512x128xf32>
    %53 = vector.shape_cast %52 : vector<1x512x128xf32> to vector<512x128xf32>
    %cst_38 = arith.constant dense<0.000000e+00> : vector<16x128xf32>
    %54 = tpu.matmul %42, %53, %cst_38 {dimension_numbers = #tpu.dot_dimension_numbers<[1], [0], [0], [1], [0, 0, 1, 1], [], []>} : vector<16x512xf32>, vector<512x128xf32>, vector<16x128xf32> -> vector<16x128xf32>
    %55 = tpu.concatenate %45, %48, %51, %54 in 0 : vector<16x128xf32>, vector<16x128xf32>, vector<16x128xf32>, vector<16x128xf32> -> vector<64x128xf32>
    %c0_39 = arith.constant 0 : index
    %c0_40 = arith.constant 0 : index
    %56 = vector.load %arg4[%c0_39, %c0_40] : memref<32x576xbf16, #tpu.memory_space<vmem>>, vector<32x576xbf16>
    %c0_41 = arith.constant 0 : index
    %c0_42 = arith.constant 0 : index
    %57 = vector.load %arg5[%c0_41, %c0_42] : memref<32x1xf32, #tpu.memory_space<vmem>>, vector<32x1xf32>
    %c9_i32 = arith.constant 9 : i32
    %58 = tpu.dynamic_rotate %55 by %c9_i32 dim 1 : vector<64x128xf32>, i32 -> vector<64x128xf32>
    %c0_43 = arith.constant 0 : index
    %c0_44 = arith.constant 0 : index
    %c0_45 = arith.constant 0 : index
    %59 = vector.load %arg15[%c0_43, %c0_44, %c0_45] : memref<9x64x128xf32, #tpu.memory_space<vmem>>, vector<1x64x128xf32>
    %60 = vector.shape_cast %59 : vector<1x64x128xf32> to vector<64x128xf32>
    %61 = arith.mulf %58, %60 : vector<64x128xf32>
    %c8_i32 = arith.constant 8 : i32
    %62 = tpu.dynamic_rotate %55 by %c8_i32 dim 1 : vector<64x128xf32>, i32 -> vector<64x128xf32>
    %c1_46 = arith.constant 1 : index
    %c0_47 = arith.constant 0 : index
    %c0_48 = arith.constant 0 : index
    %63 = vector.load %arg15[%c1_46, %c0_47, %c0_48] : memref<9x64x128xf32, #tpu.memory_space<vmem>>, vector<1x64x128xf32>
    %64 = vector.shape_cast %63 : vector<1x64x128xf32> to vector<64x128xf32>
    %65 = arith.mulf %62, %64 : vector<64x128xf32>
    %c7_i32 = arith.constant 7 : i32
    %66 = tpu.dynamic_rotate %55 by %c7_i32 dim 1 : vector<64x128xf32>, i32 -> vector<64x128xf32>
    %c2_49 = arith.constant 2 : index
    %c0_50 = arith.constant 0 : index
    %c0_51 = arith.constant 0 : index
    %67 = vector.load %arg15[%c2_49, %c0_50, %c0_51] : memref<9x64x128xf32, #tpu.memory_space<vmem>>, vector<1x64x128xf32>
    %68 = vector.shape_cast %67 : vector<1x64x128xf32> to vector<64x128xf32>
    %69 = arith.mulf %66, %68 : vector<64x128xf32>
    %c1_i32_52 = arith.constant 1 : i32
    %70 = tpu.dynamic_rotate %55 by %c1_i32_52 dim 1 : vector<64x128xf32>, i32 -> vector<64x128xf32>
    %c3_53 = arith.constant 3 : index
    %c0_54 = arith.constant 0 : index
    %c0_55 = arith.constant 0 : index
    %71 = vector.load %arg15[%c3_53, %c0_54, %c0_55] : memref<9x64x128xf32, #tpu.memory_space<vmem>>, vector<1x64x128xf32>
    %72 = vector.shape_cast %71 : vector<1x64x128xf32> to vector<64x128xf32>
    %73 = arith.mulf %70, %72 : vector<64x128xf32>
    %c127_i32 = arith.constant 127 : i32
    %74 = tpu.dynamic_rotate %55 by %c127_i32 dim 1 : vector<64x128xf32>, i32 -> vector<64x128xf32>
    %c5_56 = arith.constant 5 : index
    %c0_57 = arith.constant 0 : index
    %c0_58 = arith.constant 0 : index
    %75 = vector.load %arg15[%c5_56, %c0_57, %c0_58] : memref<9x64x128xf32, #tpu.memory_space<vmem>>, vector<1x64x128xf32>
    %76 = vector.shape_cast %75 : vector<1x64x128xf32> to vector<64x128xf32>
    %77 = arith.mulf %74, %76 : vector<64x128xf32>
    %c121_i32 = arith.constant 121 : i32
    %78 = tpu.dynamic_rotate %55 by %c121_i32 dim 1 : vector<64x128xf32>, i32 -> vector<64x128xf32>
    %c6_59 = arith.constant 6 : index
    %c0_60 = arith.constant 0 : index
    %c0_61 = arith.constant 0 : index
    %79 = vector.load %arg15[%c6_59, %c0_60, %c0_61] : memref<9x64x128xf32, #tpu.memory_space<vmem>>, vector<1x64x128xf32>
    %80 = vector.shape_cast %79 : vector<1x64x128xf32> to vector<64x128xf32>
    %81 = arith.mulf %78, %80 : vector<64x128xf32>
    %c120_i32 = arith.constant 120 : i32
    %82 = tpu.dynamic_rotate %55 by %c120_i32 dim 1 : vector<64x128xf32>, i32 -> vector<64x128xf32>
    %c7_62 = arith.constant 7 : index
    %c0_63 = arith.constant 0 : index
    %c0_64 = arith.constant 0 : index
    %83 = vector.load %arg15[%c7_62, %c0_63, %c0_64] : memref<9x64x128xf32, #tpu.memory_space<vmem>>, vector<1x64x128xf32>
    %84 = vector.shape_cast %83 : vector<1x64x128xf32> to vector<64x128xf32>
    %85 = arith.mulf %82, %84 : vector<64x128xf32>
    %c119_i32 = arith.constant 119 : i32
    %86 = tpu.dynamic_rotate %55 by %c119_i32 dim 1 : vector<64x128xf32>, i32 -> vector<64x128xf32>
    %c8_65 = arith.constant 8 : index
    %c0_66 = arith.constant 0 : index
    %c0_67 = arith.constant 0 : index
    %87 = vector.load %arg15[%c8_65, %c0_66, %c0_67] : memref<9x64x128xf32, #tpu.memory_space<vmem>>, vector<1x64x128xf32>
    %88 = vector.shape_cast %87 : vector<1x64x128xf32> to vector<64x128xf32>
    %89 = arith.mulf %86, %88 : vector<64x128xf32>
    %90 = tpu.concatenate %61, %65, %69, %73, %55, %77, %81, %85, %89 in 0 : vector<64x128xf32>, vector<64x128xf32>, vector<64x128xf32>, vector<64x128xf32>, vector<64x128xf32>, vector<64x128xf32>, vector<64x128xf32>, vector<64x128xf32>, vector<64x128xf32> -> vector<576x128xf32>
    %91 = arith.truncf %90 : vector<576x128xf32> to vector<576x128xbf16>
    %cst_68 = arith.constant dense<0.000000e+00> : vector<32x128xf32>
    %92 = tpu.matmul %56, %91, %cst_68 {dimension_numbers = #tpu.dot_dimension_numbers<[1], [0], [0], [1], [0, 0, 1, 1], [], []>} : vector<32x576xbf16>, vector<576x128xbf16>, vector<32x128xf32> -> vector<32x128xf32>
    %93 = vector.broadcast %57 : vector<32x1xf32> to vector<32x128xf32>
    %94 = arith.addf %92, %93 : vector<32x128xf32>
    %cst_69 = arith.constant 0.00999999977 : f32
    %95 = vector.broadcast %cst_69 : f32 to vector<32x128xf32>
    %96 = arith.mulf %95, %94 : vector<32x128xf32>
    %97 = arith.maximumf %94, %96 : vector<32x128xf32>
    %c0_70 = arith.constant 0 : index
    %c0_71 = arith.constant 0 : index
    %98 = vector.load %arg6[%c0_70, %c0_71] : memref<32x288xbf16, #tpu.memory_space<vmem>>, vector<32x288xbf16>
    %c0_72 = arith.constant 0 : index
    %c0_73 = arith.constant 0 : index
    %99 = vector.load %arg7[%c0_72, %c0_73] : memref<32x1xf32, #tpu.memory_space<vmem>>, vector<32x1xf32>
    %c9_i32_74 = arith.constant 9 : i32
    %100 = tpu.dynamic_rotate %97 by %c9_i32_74 dim 1 : vector<32x128xf32>, i32 -> vector<32x128xf32>
    %c0_75 = arith.constant 0 : index
    %c0_76 = arith.constant 0 : index
    %c0_77 = arith.constant 0 : index
    %101 = vector.load %arg15[%c0_75, %c0_76, %c0_77] : memref<9x64x128xf32, #tpu.memory_space<vmem>>, vector<1x32x128xf32>
    %102 = vector.shape_cast %101 : vector<1x32x128xf32> to vector<32x128xf32>
    %103 = arith.mulf %100, %102 : vector<32x128xf32>
    %c8_i32_78 = arith.constant 8 : i32
    %104 = tpu.dynamic_rotate %97 by %c8_i32_78 dim 1 : vector<32x128xf32>, i32 -> vector<32x128xf32>
    %c1_79 = arith.constant 1 : index
    %c0_80 = arith.constant 0 : index
    %c0_81 = arith.constant 0 : index
    %105 = vector.load %arg15[%c1_79, %c0_80, %c0_81] : memref<9x64x128xf32, #tpu.memory_space<vmem>>, vector<1x32x128xf32>
    %106 = vector.shape_cast %105 : vector<1x32x128xf32> to vector<32x128xf32>
    %107 = arith.mulf %104, %106 : vector<32x128xf32>
    %c7_i32_82 = arith.constant 7 : i32
    %108 = tpu.dynamic_rotate %97 by %c7_i32_82 dim 1 : vector<32x128xf32>, i32 -> vector<32x128xf32>
    %c2_83 = arith.constant 2 : index
    %c0_84 = arith.constant 0 : index
    %c0_85 = arith.constant 0 : index
    %109 = vector.load %arg15[%c2_83, %c0_84, %c0_85] : memref<9x64x128xf32, #tpu.memory_space<vmem>>, vector<1x32x128xf32>
    %110 = vector.shape_cast %109 : vector<1x32x128xf32> to vector<32x128xf32>
    %111 = arith.mulf %108, %110 : vector<32x128xf32>
    %c1_i32_86 = arith.constant 1 : i32
    %112 = tpu.dynamic_rotate %97 by %c1_i32_86 dim 1 : vector<32x128xf32>, i32 -> vector<32x128xf32>
    %c3_87 = arith.constant 3 : index
    %c0_88 = arith.constant 0 : index
    %c0_89 = arith.constant 0 : index
    %113 = vector.load %arg15[%c3_87, %c0_88, %c0_89] : memref<9x64x128xf32, #tpu.memory_space<vmem>>, vector<1x32x128xf32>
    %114 = vector.shape_cast %113 : vector<1x32x128xf32> to vector<32x128xf32>
    %115 = arith.mulf %112, %114 : vector<32x128xf32>
    %c127_i32_90 = arith.constant 127 : i32
    %116 = tpu.dynamic_rotate %97 by %c127_i32_90 dim 1 : vector<32x128xf32>, i32 -> vector<32x128xf32>
    %c5_91 = arith.constant 5 : index
    %c0_92 = arith.constant 0 : index
    %c0_93 = arith.constant 0 : index
    %117 = vector.load %arg15[%c5_91, %c0_92, %c0_93] : memref<9x64x128xf32, #tpu.memory_space<vmem>>, vector<1x32x128xf32>
    %118 = vector.shape_cast %117 : vector<1x32x128xf32> to vector<32x128xf32>
    %119 = arith.mulf %116, %118 : vector<32x128xf32>
    %c121_i32_94 = arith.constant 121 : i32
    %120 = tpu.dynamic_rotate %97 by %c121_i32_94 dim 1 : vector<32x128xf32>, i32 -> vector<32x128xf32>
    %c6_95 = arith.constant 6 : index
    %c0_96 = arith.constant 0 : index
    %c0_97 = arith.constant 0 : index
    %121 = vector.load %arg15[%c6_95, %c0_96, %c0_97] : memref<9x64x128xf32, #tpu.memory_space<vmem>>, vector<1x32x128xf32>
    %122 = vector.shape_cast %121 : vector<1x32x128xf32> to vector<32x128xf32>
    %123 = arith.mulf %120, %122 : vector<32x128xf32>
    %c120_i32_98 = arith.constant 120 : i32
    %124 = tpu.dynamic_rotate %97 by %c120_i32_98 dim 1 : vector<32x128xf32>, i32 -> vector<32x128xf32>
    %c7_99 = arith.constant 7 : index
    %c0_100 = arith.constant 0 : index
    %c0_101 = arith.constant 0 : index
    %125 = vector.load %arg15[%c7_99, %c0_100, %c0_101] : memref<9x64x128xf32, #tpu.memory_space<vmem>>, vector<1x32x128xf32>
    %126 = vector.shape_cast %125 : vector<1x32x128xf32> to vector<32x128xf32>
    %127 = arith.mulf %124, %126 : vector<32x128xf32>
    %c119_i32_102 = arith.constant 119 : i32
    %128 = tpu.dynamic_rotate %97 by %c119_i32_102 dim 1 : vector<32x128xf32>, i32 -> vector<32x128xf32>
    %c8_103 = arith.constant 8 : index
    %c0_104 = arith.constant 0 : index
    %c0_105 = arith.constant 0 : index
    %129 = vector.load %arg15[%c8_103, %c0_104, %c0_105] : memref<9x64x128xf32, #tpu.memory_space<vmem>>, vector<1x32x128xf32>
    %130 = vector.shape_cast %129 : vector<1x32x128xf32> to vector<32x128xf32>
    %131 = arith.mulf %128, %130 : vector<32x128xf32>
    %132 = tpu.concatenate %103, %107, %111, %115, %97, %119, %123, %127, %131 in 0 : vector<32x128xf32>, vector<32x128xf32>, vector<32x128xf32>, vector<32x128xf32>, vector<32x128xf32>, vector<32x128xf32>, vector<32x128xf32>, vector<32x128xf32>, vector<32x128xf32> -> vector<288x128xf32>
    %133 = arith.truncf %132 : vector<288x128xf32> to vector<288x128xbf16>
    %cst_106 = arith.constant dense<0.000000e+00> : vector<32x128xf32>
    %134 = tpu.matmul %98, %133, %cst_106 {dimension_numbers = #tpu.dot_dimension_numbers<[1], [0], [0], [1], [0, 0, 1, 1], [], []>} : vector<32x288xbf16>, vector<288x128xbf16>, vector<32x128xf32> -> vector<32x128xf32>
    %135 = vector.broadcast %99 : vector<32x1xf32> to vector<32x128xf32>
    %136 = arith.addf %134, %135 : vector<32x128xf32>
    %cst_107 = arith.constant 0.00999999977 : f32
    %137 = vector.broadcast %cst_107 : f32 to vector<32x128xf32>
    %138 = arith.mulf %137, %136 : vector<32x128xf32>
    %139 = arith.maximumf %136, %138 : vector<32x128xf32>
    %c0_108 = arith.constant 0 : index
    %c0_109 = arith.constant 0 : index
    %c0_110 = arith.constant 0 : index
    %140 = vector.load %arg8[%c0_108, %c0_109, %c0_110] : memref<6x32x288xbf16, #tpu.memory_space<vmem>>, vector<1x32x288xbf16>
    %141 = vector.shape_cast %140 : vector<1x32x288xbf16> to vector<32x288xbf16>
    %c9_i32_111 = arith.constant 9 : i32
    %142 = tpu.dynamic_rotate %139 by %c9_i32_111 dim 1 : vector<32x128xf32>, i32 -> vector<32x128xf32>
    %c0_112 = arith.constant 0 : index
    %c0_113 = arith.constant 0 : index
    %c0_114 = arith.constant 0 : index
    %143 = vector.load %arg15[%c0_112, %c0_113, %c0_114] : memref<9x64x128xf32, #tpu.memory_space<vmem>>, vector<1x32x128xf32>
    %144 = vector.shape_cast %143 : vector<1x32x128xf32> to vector<32x128xf32>
    %145 = arith.mulf %142, %144 : vector<32x128xf32>
    %c8_i32_115 = arith.constant 8 : i32
    %146 = tpu.dynamic_rotate %139 by %c8_i32_115 dim 1 : vector<32x128xf32>, i32 -> vector<32x128xf32>
    %c1_116 = arith.constant 1 : index
    %c0_117 = arith.constant 0 : index
    %c0_118 = arith.constant 0 : index
    %147 = vector.load %arg15[%c1_116, %c0_117, %c0_118] : memref<9x64x128xf32, #tpu.memory_space<vmem>>, vector<1x32x128xf32>
    %148 = vector.shape_cast %147 : vector<1x32x128xf32> to vector<32x128xf32>
    %149 = arith.mulf %146, %148 : vector<32x128xf32>
    %c7_i32_119 = arith.constant 7 : i32
    %150 = tpu.dynamic_rotate %139 by %c7_i32_119 dim 1 : vector<32x128xf32>, i32 -> vector<32x128xf32>
    %c2_120 = arith.constant 2 : index
    %c0_121 = arith.constant 0 : index
    %c0_122 = arith.constant 0 : index
    %151 = vector.load %arg15[%c2_120, %c0_121, %c0_122] : memref<9x64x128xf32, #tpu.memory_space<vmem>>, vector<1x32x128xf32>
    %152 = vector.shape_cast %151 : vector<1x32x128xf32> to vector<32x128xf32>
    %153 = arith.mulf %150, %152 : vector<32x128xf32>
    %c1_i32_123 = arith.constant 1 : i32
    %154 = tpu.dynamic_rotate %139 by %c1_i32_123 dim 1 : vector<32x128xf32>, i32 -> vector<32x128xf32>
    %c3_124 = arith.constant 3 : index
    %c0_125 = arith.constant 0 : index
    %c0_126 = arith.constant 0 : index
    %155 = vector.load %arg15[%c3_124, %c0_125, %c0_126] : memref<9x64x128xf32, #tpu.memory_space<vmem>>, vector<1x32x128xf32>
    %156 = vector.shape_cast %155 : vector<1x32x128xf32> to vector<32x128xf32>
    %157 = arith.mulf %154, %156 : vector<32x128xf32>
    %c127_i32_127 = arith.constant 127 : i32
    %158 = tpu.dynamic_rotate %139 by %c127_i32_127 dim 1 : vector<32x128xf32>, i32 -> vector<32x128xf32>
    %c5_128 = arith.constant 5 : index
    %c0_129 = arith.constant 0 : index
    %c0_130 = arith.constant 0 : index
    %159 = vector.load %arg15[%c5_128, %c0_129, %c0_130] : memref<9x64x128xf32, #tpu.memory_space<vmem>>, vector<1x32x128xf32>
    %160 = vector.shape_cast %159 : vector<1x32x128xf32> to vector<32x128xf32>
    %161 = arith.mulf %158, %160 : vector<32x128xf32>
    %c121_i32_131 = arith.constant 121 : i32
    %162 = tpu.dynamic_rotate %139 by %c121_i32_131 dim 1 : vector<32x128xf32>, i32 -> vector<32x128xf32>
    %c6_132 = arith.constant 6 : index
    %c0_133 = arith.constant 0 : index
    %c0_134 = arith.constant 0 : index
    %163 = vector.load %arg15[%c6_132, %c0_133, %c0_134] : memref<9x64x128xf32, #tpu.memory_space<vmem>>, vector<1x32x128xf32>
    %164 = vector.shape_cast %163 : vector<1x32x128xf32> to vector<32x128xf32>
    %165 = arith.mulf %162, %164 : vector<32x128xf32>
    %c120_i32_135 = arith.constant 120 : i32
    %166 = tpu.dynamic_rotate %139 by %c120_i32_135 dim 1 : vector<32x128xf32>, i32 -> vector<32x128xf32>
    %c7_136 = arith.constant 7 : index
    %c0_137 = arith.constant 0 : index
    %c0_138 = arith.constant 0 : index
    %167 = vector.load %arg15[%c7_136, %c0_137, %c0_138] : memref<9x64x128xf32, #tpu.memory_space<vmem>>, vector<1x32x128xf32>
    %168 = vector.shape_cast %167 : vector<1x32x128xf32> to vector<32x128xf32>
    %169 = arith.mulf %166, %168 : vector<32x128xf32>
    %c119_i32_139 = arith.constant 119 : i32
    %170 = tpu.dynamic_rotate %139 by %c119_i32_139 dim 1 : vector<32x128xf32>, i32 -> vector<32x128xf32>
    %c8_140 = arith.constant 8 : index
    %c0_141 = arith.constant 0 : index
    %c0_142 = arith.constant 0 : index
    %171 = vector.load %arg15[%c8_140, %c0_141, %c0_142] : memref<9x64x128xf32, #tpu.memory_space<vmem>>, vector<1x32x128xf32>
    %172 = vector.shape_cast %171 : vector<1x32x128xf32> to vector<32x128xf32>
    %173 = arith.mulf %170, %172 : vector<32x128xf32>
    %174 = tpu.concatenate %145, %149, %153, %157, %139, %161, %165, %169, %173 in 0 : vector<32x128xf32>, vector<32x128xf32>, vector<32x128xf32>, vector<32x128xf32>, vector<32x128xf32>, vector<32x128xf32>, vector<32x128xf32>, vector<32x128xf32>, vector<32x128xf32> -> vector<288x128xf32>
    %175 = arith.truncf %174 : vector<288x128xf32> to vector<288x128xbf16>
    %cst_143 = arith.constant dense<0.000000e+00> : vector<32x128xf32>
    %176 = tpu.matmul %141, %175, %cst_143 {dimension_numbers = #tpu.dot_dimension_numbers<[1], [0], [0], [1], [0, 0, 1, 1], [], []>} : vector<32x288xbf16>, vector<288x128xbf16>, vector<32x128xf32> -> vector<32x128xf32>
    %cst_144 = arith.constant 0.000000e+00 : f32
    %177 = vector.broadcast %cst_144 : f32 to vector<32x128xf32>
    %178 = arith.maximumf %176, %177 : vector<32x128xf32>
    %c0_145 = arith.constant 0 : index
    %c0_146 = arith.constant 0 : index
    %c0_147 = arith.constant 0 : index
    %179 = vector.load %arg9[%c0_145, %c0_146, %c0_147] : memref<6x32x32xbf16, #tpu.memory_space<vmem>>, vector<1x32x32xbf16>
    %180 = vector.shape_cast %179 : vector<1x32x32xbf16> to vector<32x32xbf16>
    %181 = arith.truncf %178 : vector<32x128xf32> to vector<32x128xbf16>
    %cst_148 = arith.constant dense<0.000000e+00> : vector<32x128xf32>
    %182 = tpu.matmul %180, %181, %cst_148 {dimension_numbers = #tpu.dot_dimension_numbers<[1], [0], [0], [1], [0, 0, 1, 1], [], []>} : vector<32x32xbf16>, vector<32x128xbf16>, vector<32x128xf32> -> vector<32x128xf32>
    %183 = arith.addf %139, %182 : vector<32x128xf32>
    %c1_149 = arith.constant 1 : index
    %c0_150 = arith.constant 0 : index
    %c0_151 = arith.constant 0 : index
    %184 = vector.load %arg8[%c1_149, %c0_150, %c0_151] : memref<6x32x288xbf16, #tpu.memory_space<vmem>>, vector<1x32x288xbf16>
    %185 = vector.shape_cast %184 : vector<1x32x288xbf16> to vector<32x288xbf16>
    %c9_i32_152 = arith.constant 9 : i32
    %186 = tpu.dynamic_rotate %183 by %c9_i32_152 dim 1 : vector<32x128xf32>, i32 -> vector<32x128xf32>
    %c0_153 = arith.constant 0 : index
    %c0_154 = arith.constant 0 : index
    %c0_155 = arith.constant 0 : index
    %187 = vector.load %arg15[%c0_153, %c0_154, %c0_155] : memref<9x64x128xf32, #tpu.memory_space<vmem>>, vector<1x32x128xf32>
    %188 = vector.shape_cast %187 : vector<1x32x128xf32> to vector<32x128xf32>
    %189 = arith.mulf %186, %188 : vector<32x128xf32>
    %c8_i32_156 = arith.constant 8 : i32
    %190 = tpu.dynamic_rotate %183 by %c8_i32_156 dim 1 : vector<32x128xf32>, i32 -> vector<32x128xf32>
    %c1_157 = arith.constant 1 : index
    %c0_158 = arith.constant 0 : index
    %c0_159 = arith.constant 0 : index
    %191 = vector.load %arg15[%c1_157, %c0_158, %c0_159] : memref<9x64x128xf32, #tpu.memory_space<vmem>>, vector<1x32x128xf32>
    %192 = vector.shape_cast %191 : vector<1x32x128xf32> to vector<32x128xf32>
    %193 = arith.mulf %190, %192 : vector<32x128xf32>
    %c7_i32_160 = arith.constant 7 : i32
    %194 = tpu.dynamic_rotate %183 by %c7_i32_160 dim 1 : vector<32x128xf32>, i32 -> vector<32x128xf32>
    %c2_161 = arith.constant 2 : index
    %c0_162 = arith.constant 0 : index
    %c0_163 = arith.constant 0 : index
    %195 = vector.load %arg15[%c2_161, %c0_162, %c0_163] : memref<9x64x128xf32, #tpu.memory_space<vmem>>, vector<1x32x128xf32>
    %196 = vector.shape_cast %195 : vector<1x32x128xf32> to vector<32x128xf32>
    %197 = arith.mulf %194, %196 : vector<32x128xf32>
    %c1_i32_164 = arith.constant 1 : i32
    %198 = tpu.dynamic_rotate %183 by %c1_i32_164 dim 1 : vector<32x128xf32>, i32 -> vector<32x128xf32>
    %c3_165 = arith.constant 3 : index
    %c0_166 = arith.constant 0 : index
    %c0_167 = arith.constant 0 : index
    %199 = vector.load %arg15[%c3_165, %c0_166, %c0_167] : memref<9x64x128xf32, #tpu.memory_space<vmem>>, vector<1x32x128xf32>
    %200 = vector.shape_cast %199 : vector<1x32x128xf32> to vector<32x128xf32>
    %201 = arith.mulf %198, %200 : vector<32x128xf32>
    %c127_i32_168 = arith.constant 127 : i32
    %202 = tpu.dynamic_rotate %183 by %c127_i32_168 dim 1 : vector<32x128xf32>, i32 -> vector<32x128xf32>
    %c5_169 = arith.constant 5 : index
    %c0_170 = arith.constant 0 : index
    %c0_171 = arith.constant 0 : index
    %203 = vector.load %arg15[%c5_169, %c0_170, %c0_171] : memref<9x64x128xf32, #tpu.memory_space<vmem>>, vector<1x32x128xf32>
    %204 = vector.shape_cast %203 : vector<1x32x128xf32> to vector<32x128xf32>
    %205 = arith.mulf %202, %204 : vector<32x128xf32>
    %c121_i32_172 = arith.constant 121 : i32
    %206 = tpu.dynamic_rotate %183 by %c121_i32_172 dim 1 : vector<32x128xf32>, i32 -> vector<32x128xf32>
    %c6_173 = arith.constant 6 : index
    %c0_174 = arith.constant 0 : index
    %c0_175 = arith.constant 0 : index
    %207 = vector.load %arg15[%c6_173, %c0_174, %c0_175] : memref<9x64x128xf32, #tpu.memory_space<vmem>>, vector<1x32x128xf32>
    %208 = vector.shape_cast %207 : vector<1x32x128xf32> to vector<32x128xf32>
    %209 = arith.mulf %206, %208 : vector<32x128xf32>
    %c120_i32_176 = arith.constant 120 : i32
    %210 = tpu.dynamic_rotate %183 by %c120_i32_176 dim 1 : vector<32x128xf32>, i32 -> vector<32x128xf32>
    %c7_177 = arith.constant 7 : index
    %c0_178 = arith.constant 0 : index
    %c0_179 = arith.constant 0 : index
    %211 = vector.load %arg15[%c7_177, %c0_178, %c0_179] : memref<9x64x128xf32, #tpu.memory_space<vmem>>, vector<1x32x128xf32>
    %212 = vector.shape_cast %211 : vector<1x32x128xf32> to vector<32x128xf32>
    %213 = arith.mulf %210, %212 : vector<32x128xf32>
    %c119_i32_180 = arith.constant 119 : i32
    %214 = tpu.dynamic_rotate %183 by %c119_i32_180 dim 1 : vector<32x128xf32>, i32 -> vector<32x128xf32>
    %c8_181 = arith.constant 8 : index
    %c0_182 = arith.constant 0 : index
    %c0_183 = arith.constant 0 : index
    %215 = vector.load %arg15[%c8_181, %c0_182, %c0_183] : memref<9x64x128xf32, #tpu.memory_space<vmem>>, vector<1x32x128xf32>
    %216 = vector.shape_cast %215 : vector<1x32x128xf32> to vector<32x128xf32>
    %217 = arith.mulf %214, %216 : vector<32x128xf32>
    %218 = tpu.concatenate %189, %193, %197, %201, %183, %205, %209, %213, %217 in 0 : vector<32x128xf32>, vector<32x128xf32>, vector<32x128xf32>, vector<32x128xf32>, vector<32x128xf32>, vector<32x128xf32>, vector<32x128xf32>, vector<32x128xf32>, vector<32x128xf32> -> vector<288x128xf32>
    %219 = arith.truncf %218 : vector<288x128xf32> to vector<288x128xbf16>
    %cst_184 = arith.constant dense<0.000000e+00> : vector<32x128xf32>
    %220 = tpu.matmul %185, %219, %cst_184 {dimension_numbers = #tpu.dot_dimension_numbers<[1], [0], [0], [1], [0, 0, 1, 1], [], []>} : vector<32x288xbf16>, vector<288x128xbf16>, vector<32x128xf32> -> vector<32x128xf32>
    %cst_185 = arith.constant 0.000000e+00 : f32
    %221 = vector.broadcast %cst_185 : f32 to vector<32x128xf32>
    %222 = arith.maximumf %220, %221 : vector<32x128xf32>
    %c1_186 = arith.constant 1 : index
    %c0_187 = arith.constant 0 : index
    %c0_188 = arith.constant 0 : index
    %223 = vector.load %arg9[%c1_186, %c0_187, %c0_188] : memref<6x32x32xbf16, #tpu.memory_space<vmem>>, vector<1x32x32xbf16>
    %224 = vector.shape_cast %223 : vector<1x32x32xbf16> to vector<32x32xbf16>
    %225 = arith.truncf %222 : vector<32x128xf32> to vector<32x128xbf16>
    %cst_189 = arith.constant dense<0.000000e+00> : vector<32x128xf32>
    %226 = tpu.matmul %224, %225, %cst_189 {dimension_numbers = #tpu.dot_dimension_numbers<[1], [0], [0], [1], [0, 0, 1, 1], [], []>} : vector<32x32xbf16>, vector<32x128xbf16>, vector<32x128xf32> -> vector<32x128xf32>
    %227 = arith.addf %183, %226 : vector<32x128xf32>
    %c2_190 = arith.constant 2 : index
    %c0_191 = arith.constant 0 : index
    %c0_192 = arith.constant 0 : index
    %228 = vector.load %arg8[%c2_190, %c0_191, %c0_192] : memref<6x32x288xbf16, #tpu.memory_space<vmem>>, vector<1x32x288xbf16>
    %229 = vector.shape_cast %228 : vector<1x32x288xbf16> to vector<32x288xbf16>
    %c9_i32_193 = arith.constant 9 : i32
    %230 = tpu.dynamic_rotate %227 by %c9_i32_193 dim 1 : vector<32x128xf32>, i32 -> vector<32x128xf32>
    %c0_194 = arith.constant 0 : index
    %c0_195 = arith.constant 0 : index
    %c0_196 = arith.constant 0 : index
    %231 = vector.load %arg15[%c0_194, %c0_195, %c0_196] : memref<9x64x128xf32, #tpu.memory_space<vmem>>, vector<1x32x128xf32>
    %232 = vector.shape_cast %231 : vector<1x32x128xf32> to vector<32x128xf32>
    %233 = arith.mulf %230, %232 : vector<32x128xf32>
    %c8_i32_197 = arith.constant 8 : i32
    %234 = tpu.dynamic_rotate %227 by %c8_i32_197 dim 1 : vector<32x128xf32>, i32 -> vector<32x128xf32>
    %c1_198 = arith.constant 1 : index
    %c0_199 = arith.constant 0 : index
    %c0_200 = arith.constant 0 : index
    %235 = vector.load %arg15[%c1_198, %c0_199, %c0_200] : memref<9x64x128xf32, #tpu.memory_space<vmem>>, vector<1x32x128xf32>
    %236 = vector.shape_cast %235 : vector<1x32x128xf32> to vector<32x128xf32>
    %237 = arith.mulf %234, %236 : vector<32x128xf32>
    %c7_i32_201 = arith.constant 7 : i32
    %238 = tpu.dynamic_rotate %227 by %c7_i32_201 dim 1 : vector<32x128xf32>, i32 -> vector<32x128xf32>
    %c2_202 = arith.constant 2 : index
    %c0_203 = arith.constant 0 : index
    %c0_204 = arith.constant 0 : index
    %239 = vector.load %arg15[%c2_202, %c0_203, %c0_204] : memref<9x64x128xf32, #tpu.memory_space<vmem>>, vector<1x32x128xf32>
    %240 = vector.shape_cast %239 : vector<1x32x128xf32> to vector<32x128xf32>
    %241 = arith.mulf %238, %240 : vector<32x128xf32>
    %c1_i32_205 = arith.constant 1 : i32
    %242 = tpu.dynamic_rotate %227 by %c1_i32_205 dim 1 : vector<32x128xf32>, i32 -> vector<32x128xf32>
    %c3_206 = arith.constant 3 : index
    %c0_207 = arith.constant 0 : index
    %c0_208 = arith.constant 0 : index
    %243 = vector.load %arg15[%c3_206, %c0_207, %c0_208] : memref<9x64x128xf32, #tpu.memory_space<vmem>>, vector<1x32x128xf32>
    %244 = vector.shape_cast %243 : vector<1x32x128xf32> to vector<32x128xf32>
    %245 = arith.mulf %242, %244 : vector<32x128xf32>
    %c127_i32_209 = arith.constant 127 : i32
    %246 = tpu.dynamic_rotate %227 by %c127_i32_209 dim 1 : vector<32x128xf32>, i32 -> vector<32x128xf32>
    %c5_210 = arith.constant 5 : index
    %c0_211 = arith.constant 0 : index
    %c0_212 = arith.constant 0 : index
    %247 = vector.load %arg15[%c5_210, %c0_211, %c0_212] : memref<9x64x128xf32, #tpu.memory_space<vmem>>, vector<1x32x128xf32>
    %248 = vector.shape_cast %247 : vector<1x32x128xf32> to vector<32x128xf32>
    %249 = arith.mulf %246, %248 : vector<32x128xf32>
    %c121_i32_213 = arith.constant 121 : i32
    %250 = tpu.dynamic_rotate %227 by %c121_i32_213 dim 1 : vector<32x128xf32>, i32 -> vector<32x128xf32>
    %c6_214 = arith.constant 6 : index
    %c0_215 = arith.constant 0 : index
    %c0_216 = arith.constant 0 : index
    %251 = vector.load %arg15[%c6_214, %c0_215, %c0_216] : memref<9x64x128xf32, #tpu.memory_space<vmem>>, vector<1x32x128xf32>
    %252 = vector.shape_cast %251 : vector<1x32x128xf32> to vector<32x128xf32>
    %253 = arith.mulf %250, %252 : vector<32x128xf32>
    %c120_i32_217 = arith.constant 120 : i32
    %254 = tpu.dynamic_rotate %227 by %c120_i32_217 dim 1 : vector<32x128xf32>, i32 -> vector<32x128xf32>
    %c7_218 = arith.constant 7 : index
    %c0_219 = arith.constant 0 : index
    %c0_220 = arith.constant 0 : index
    %255 = vector.load %arg15[%c7_218, %c0_219, %c0_220] : memref<9x64x128xf32, #tpu.memory_space<vmem>>, vector<1x32x128xf32>
    %256 = vector.shape_cast %255 : vector<1x32x128xf32> to vector<32x128xf32>
    %257 = arith.mulf %254, %256 : vector<32x128xf32>
    %c119_i32_221 = arith.constant 119 : i32
    %258 = tpu.dynamic_rotate %227 by %c119_i32_221 dim 1 : vector<32x128xf32>, i32 -> vector<32x128xf32>
    %c8_222 = arith.constant 8 : index
    %c0_223 = arith.constant 0 : index
    %c0_224 = arith.constant 0 : index
    %259 = vector.load %arg15[%c8_222, %c0_223, %c0_224] : memref<9x64x128xf32, #tpu.memory_space<vmem>>, vector<1x32x128xf32>
    %260 = vector.shape_cast %259 : vector<1x32x128xf32> to vector<32x128xf32>
    %261 = arith.mulf %258, %260 : vector<32x128xf32>
    %262 = tpu.concatenate %233, %237, %241, %245, %227, %249, %253, %257, %261 in 0 : vector<32x128xf32>, vector<32x128xf32>, vector<32x128xf32>, vector<32x128xf32>, vector<32x128xf32>, vector<32x128xf32>, vector<32x128xf32>, vector<32x128xf32>, vector<32x128xf32> -> vector<288x128xf32>
    %263 = arith.truncf %262 : vector<288x128xf32> to vector<288x128xbf16>
    %cst_225 = arith.constant dense<0.000000e+00> : vector<32x128xf32>
    %264 = tpu.matmul %229, %263, %cst_225 {dimension_numbers = #tpu.dot_dimension_numbers<[1], [0], [0], [1], [0, 0, 1, 1], [], []>} : vector<32x288xbf16>, vector<288x128xbf16>, vector<32x128xf32> -> vector<32x128xf32>
    %cst_226 = arith.constant 0.000000e+00 : f32
    %265 = vector.broadcast %cst_226 : f32 to vector<32x128xf32>
    %266 = arith.maximumf %264, %265 : vector<32x128xf32>
    %c2_227 = arith.constant 2 : index
    %c0_228 = arith.constant 0 : index
    %c0_229 = arith.constant 0 : index
    %267 = vector.load %arg9[%c2_227, %c0_228, %c0_229] : memref<6x32x32xbf16, #tpu.memory_space<vmem>>, vector<1x32x32xbf16>
    %268 = vector.shape_cast %267 : vector<1x32x32xbf16> to vector<32x32xbf16>
    %269 = arith.truncf %266 : vector<32x128xf32> to vector<32x128xbf16>
    %cst_230 = arith.constant dense<0.000000e+00> : vector<32x128xf32>
    %270 = tpu.matmul %268, %269, %cst_230 {dimension_numbers = #tpu.dot_dimension_numbers<[1], [0], [0], [1], [0, 0, 1, 1], [], []>} : vector<32x32xbf16>, vector<32x128xbf16>, vector<32x128xf32> -> vector<32x128xf32>
    %271 = arith.addf %227, %270 : vector<32x128xf32>
    %c3_231 = arith.constant 3 : index
    %c0_232 = arith.constant 0 : index
    %c0_233 = arith.constant 0 : index
    %272 = vector.load %arg8[%c3_231, %c0_232, %c0_233] : memref<6x32x288xbf16, #tpu.memory_space<vmem>>, vector<1x32x288xbf16>
    %273 = vector.shape_cast %272 : vector<1x32x288xbf16> to vector<32x288xbf16>
    %c9_i32_234 = arith.constant 9 : i32
    %274 = tpu.dynamic_rotate %271 by %c9_i32_234 dim 1 : vector<32x128xf32>, i32 -> vector<32x128xf32>
    %c0_235 = arith.constant 0 : index
    %c0_236 = arith.constant 0 : index
    %c0_237 = arith.constant 0 : index
    %275 = vector.load %arg15[%c0_235, %c0_236, %c0_237] : memref<9x64x128xf32, #tpu.memory_space<vmem>>, vector<1x32x128xf32>
    %276 = vector.shape_cast %275 : vector<1x32x128xf32> to vector<32x128xf32>
    %277 = arith.mulf %274, %276 : vector<32x128xf32>
    %c8_i32_238 = arith.constant 8 : i32
    %278 = tpu.dynamic_rotate %271 by %c8_i32_238 dim 1 : vector<32x128xf32>, i32 -> vector<32x128xf32>
    %c1_239 = arith.constant 1 : index
    %c0_240 = arith.constant 0 : index
    %c0_241 = arith.constant 0 : index
    %279 = vector.load %arg15[%c1_239, %c0_240, %c0_241] : memref<9x64x128xf32, #tpu.memory_space<vmem>>, vector<1x32x128xf32>
    %280 = vector.shape_cast %279 : vector<1x32x128xf32> to vector<32x128xf32>
    %281 = arith.mulf %278, %280 : vector<32x128xf32>
    %c7_i32_242 = arith.constant 7 : i32
    %282 = tpu.dynamic_rotate %271 by %c7_i32_242 dim 1 : vector<32x128xf32>, i32 -> vector<32x128xf32>
    %c2_243 = arith.constant 2 : index
    %c0_244 = arith.constant 0 : index
    %c0_245 = arith.constant 0 : index
    %283 = vector.load %arg15[%c2_243, %c0_244, %c0_245] : memref<9x64x128xf32, #tpu.memory_space<vmem>>, vector<1x32x128xf32>
    %284 = vector.shape_cast %283 : vector<1x32x128xf32> to vector<32x128xf32>
    %285 = arith.mulf %282, %284 : vector<32x128xf32>
    %c1_i32_246 = arith.constant 1 : i32
    %286 = tpu.dynamic_rotate %271 by %c1_i32_246 dim 1 : vector<32x128xf32>, i32 -> vector<32x128xf32>
    %c3_247 = arith.constant 3 : index
    %c0_248 = arith.constant 0 : index
    %c0_249 = arith.constant 0 : index
    %287 = vector.load %arg15[%c3_247, %c0_248, %c0_249] : memref<9x64x128xf32, #tpu.memory_space<vmem>>, vector<1x32x128xf32>
    %288 = vector.shape_cast %287 : vector<1x32x128xf32> to vector<32x128xf32>
    %289 = arith.mulf %286, %288 : vector<32x128xf32>
    %c127_i32_250 = arith.constant 127 : i32
    %290 = tpu.dynamic_rotate %271 by %c127_i32_250 dim 1 : vector<32x128xf32>, i32 -> vector<32x128xf32>
    %c5_251 = arith.constant 5 : index
    %c0_252 = arith.constant 0 : index
    %c0_253 = arith.constant 0 : index
    %291 = vector.load %arg15[%c5_251, %c0_252, %c0_253] : memref<9x64x128xf32, #tpu.memory_space<vmem>>, vector<1x32x128xf32>
    %292 = vector.shape_cast %291 : vector<1x32x128xf32> to vector<32x128xf32>
    %293 = arith.mulf %290, %292 : vector<32x128xf32>
    %c121_i32_254 = arith.constant 121 : i32
    %294 = tpu.dynamic_rotate %271 by %c121_i32_254 dim 1 : vector<32x128xf32>, i32 -> vector<32x128xf32>
    %c6_255 = arith.constant 6 : index
    %c0_256 = arith.constant 0 : index
    %c0_257 = arith.constant 0 : index
    %295 = vector.load %arg15[%c6_255, %c0_256, %c0_257] : memref<9x64x128xf32, #tpu.memory_space<vmem>>, vector<1x32x128xf32>
    %296 = vector.shape_cast %295 : vector<1x32x128xf32> to vector<32x128xf32>
    %297 = arith.mulf %294, %296 : vector<32x128xf32>
    %c120_i32_258 = arith.constant 120 : i32
    %298 = tpu.dynamic_rotate %271 by %c120_i32_258 dim 1 : vector<32x128xf32>, i32 -> vector<32x128xf32>
    %c7_259 = arith.constant 7 : index
    %c0_260 = arith.constant 0 : index
    %c0_261 = arith.constant 0 : index
    %299 = vector.load %arg15[%c7_259, %c0_260, %c0_261] : memref<9x64x128xf32, #tpu.memory_space<vmem>>, vector<1x32x128xf32>
    %300 = vector.shape_cast %299 : vector<1x32x128xf32> to vector<32x128xf32>
    %301 = arith.mulf %298, %300 : vector<32x128xf32>
    %c119_i32_262 = arith.constant 119 : i32
    %302 = tpu.dynamic_rotate %271 by %c119_i32_262 dim 1 : vector<32x128xf32>, i32 -> vector<32x128xf32>
    %c8_263 = arith.constant 8 : index
    %c0_264 = arith.constant 0 : index
    %c0_265 = arith.constant 0 : index
    %303 = vector.load %arg15[%c8_263, %c0_264, %c0_265] : memref<9x64x128xf32, #tpu.memory_space<vmem>>, vector<1x32x128xf32>
    %304 = vector.shape_cast %303 : vector<1x32x128xf32> to vector<32x128xf32>
    %305 = arith.mulf %302, %304 : vector<32x128xf32>
    %306 = tpu.concatenate %277, %281, %285, %289, %271, %293, %297, %301, %305 in 0 : vector<32x128xf32>, vector<32x128xf32>, vector<32x128xf32>, vector<32x128xf32>, vector<32x128xf32>, vector<32x128xf32>, vector<32x128xf32>, vector<32x128xf32>, vector<32x128xf32> -> vector<288x128xf32>
    %307 = arith.truncf %306 : vector<288x128xf32> to vector<288x128xbf16>
    %cst_266 = arith.constant dense<0.000000e+00> : vector<32x128xf32>
    %308 = tpu.matmul %273, %307, %cst_266 {dimension_numbers = #tpu.dot_dimension_numbers<[1], [0], [0], [1], [0, 0, 1, 1], [], []>} : vector<32x288xbf16>, vector<288x128xbf16>, vector<32x128xf32> -> vector<32x128xf32>
    %cst_267 = arith.constant 0.000000e+00 : f32
    %309 = vector.broadcast %cst_267 : f32 to vector<32x128xf32>
    %310 = arith.maximumf %308, %309 : vector<32x128xf32>
    %c3_268 = arith.constant 3 : index
    %c0_269 = arith.constant 0 : index
    %c0_270 = arith.constant 0 : index
    %311 = vector.load %arg9[%c3_268, %c0_269, %c0_270] : memref<6x32x32xbf16, #tpu.memory_space<vmem>>, vector<1x32x32xbf16>
    %312 = vector.shape_cast %311 : vector<1x32x32xbf16> to vector<32x32xbf16>
    %313 = arith.truncf %310 : vector<32x128xf32> to vector<32x128xbf16>
    %cst_271 = arith.constant dense<0.000000e+00> : vector<32x128xf32>
    %314 = tpu.matmul %312, %313, %cst_271 {dimension_numbers = #tpu.dot_dimension_numbers<[1], [0], [0], [1], [0, 0, 1, 1], [], []>} : vector<32x32xbf16>, vector<32x128xbf16>, vector<32x128xf32> -> vector<32x128xf32>
    %315 = arith.addf %271, %314 : vector<32x128xf32>
    %c4 = arith.constant 4 : index
    %c0_272 = arith.constant 0 : index
    %c0_273 = arith.constant 0 : index
    %316 = vector.load %arg8[%c4, %c0_272, %c0_273] : memref<6x32x288xbf16, #tpu.memory_space<vmem>>, vector<1x32x288xbf16>
    %317 = vector.shape_cast %316 : vector<1x32x288xbf16> to vector<32x288xbf16>
    %c9_i32_274 = arith.constant 9 : i32
    %318 = tpu.dynamic_rotate %315 by %c9_i32_274 dim 1 : vector<32x128xf32>, i32 -> vector<32x128xf32>
    %c0_275 = arith.constant 0 : index
    %c0_276 = arith.constant 0 : index
    %c0_277 = arith.constant 0 : index
    %319 = vector.load %arg15[%c0_275, %c0_276, %c0_277] : memref<9x64x128xf32, #tpu.memory_space<vmem>>, vector<1x32x128xf32>
    %320 = vector.shape_cast %319 : vector<1x32x128xf32> to vector<32x128xf32>
    %321 = arith.mulf %318, %320 : vector<32x128xf32>
    %c8_i32_278 = arith.constant 8 : i32
    %322 = tpu.dynamic_rotate %315 by %c8_i32_278 dim 1 : vector<32x128xf32>, i32 -> vector<32x128xf32>
    %c1_279 = arith.constant 1 : index
    %c0_280 = arith.constant 0 : index
    %c0_281 = arith.constant 0 : index
    %323 = vector.load %arg15[%c1_279, %c0_280, %c0_281] : memref<9x64x128xf32, #tpu.memory_space<vmem>>, vector<1x32x128xf32>
    %324 = vector.shape_cast %323 : vector<1x32x128xf32> to vector<32x128xf32>
    %325 = arith.mulf %322, %324 : vector<32x128xf32>
    %c7_i32_282 = arith.constant 7 : i32
    %326 = tpu.dynamic_rotate %315 by %c7_i32_282 dim 1 : vector<32x128xf32>, i32 -> vector<32x128xf32>
    %c2_283 = arith.constant 2 : index
    %c0_284 = arith.constant 0 : index
    %c0_285 = arith.constant 0 : index
    %327 = vector.load %arg15[%c2_283, %c0_284, %c0_285] : memref<9x64x128xf32, #tpu.memory_space<vmem>>, vector<1x32x128xf32>
    %328 = vector.shape_cast %327 : vector<1x32x128xf32> to vector<32x128xf32>
    %329 = arith.mulf %326, %328 : vector<32x128xf32>
    %c1_i32_286 = arith.constant 1 : i32
    %330 = tpu.dynamic_rotate %315 by %c1_i32_286 dim 1 : vector<32x128xf32>, i32 -> vector<32x128xf32>
    %c3_287 = arith.constant 3 : index
    %c0_288 = arith.constant 0 : index
    %c0_289 = arith.constant 0 : index
    %331 = vector.load %arg15[%c3_287, %c0_288, %c0_289] : memref<9x64x128xf32, #tpu.memory_space<vmem>>, vector<1x32x128xf32>
    %332 = vector.shape_cast %331 : vector<1x32x128xf32> to vector<32x128xf32>
    %333 = arith.mulf %330, %332 : vector<32x128xf32>
    %c127_i32_290 = arith.constant 127 : i32
    %334 = tpu.dynamic_rotate %315 by %c127_i32_290 dim 1 : vector<32x128xf32>, i32 -> vector<32x128xf32>
    %c5_291 = arith.constant 5 : index
    %c0_292 = arith.constant 0 : index
    %c0_293 = arith.constant 0 : index
    %335 = vector.load %arg15[%c5_291, %c0_292, %c0_293] : memref<9x64x128xf32, #tpu.memory_space<vmem>>, vector<1x32x128xf32>
    %336 = vector.shape_cast %335 : vector<1x32x128xf32> to vector<32x128xf32>
    %337 = arith.mulf %334, %336 : vector<32x128xf32>
    %c121_i32_294 = arith.constant 121 : i32
    %338 = tpu.dynamic_rotate %315 by %c121_i32_294 dim 1 : vector<32x128xf32>, i32 -> vector<32x128xf32>
    %c6_295 = arith.constant 6 : index
    %c0_296 = arith.constant 0 : index
    %c0_297 = arith.constant 0 : index
    %339 = vector.load %arg15[%c6_295, %c0_296, %c0_297] : memref<9x64x128xf32, #tpu.memory_space<vmem>>, vector<1x32x128xf32>
    %340 = vector.shape_cast %339 : vector<1x32x128xf32> to vector<32x128xf32>
    %341 = arith.mulf %338, %340 : vector<32x128xf32>
    %c120_i32_298 = arith.constant 120 : i32
    %342 = tpu.dynamic_rotate %315 by %c120_i32_298 dim 1 : vector<32x128xf32>, i32 -> vector<32x128xf32>
    %c7_299 = arith.constant 7 : index
    %c0_300 = arith.constant 0 : index
    %c0_301 = arith.constant 0 : index
    %343 = vector.load %arg15[%c7_299, %c0_300, %c0_301] : memref<9x64x128xf32, #tpu.memory_space<vmem>>, vector<1x32x128xf32>
    %344 = vector.shape_cast %343 : vector<1x32x128xf32> to vector<32x128xf32>
    %345 = arith.mulf %342, %344 : vector<32x128xf32>
    %c119_i32_302 = arith.constant 119 : i32
    %346 = tpu.dynamic_rotate %315 by %c119_i32_302 dim 1 : vector<32x128xf32>, i32 -> vector<32x128xf32>
    %c8_303 = arith.constant 8 : index
    %c0_304 = arith.constant 0 : index
    %c0_305 = arith.constant 0 : index
    %347 = vector.load %arg15[%c8_303, %c0_304, %c0_305] : memref<9x64x128xf32, #tpu.memory_space<vmem>>, vector<1x32x128xf32>
    %348 = vector.shape_cast %347 : vector<1x32x128xf32> to vector<32x128xf32>
    %349 = arith.mulf %346, %348 : vector<32x128xf32>
    %350 = tpu.concatenate %321, %325, %329, %333, %315, %337, %341, %345, %349 in 0 : vector<32x128xf32>, vector<32x128xf32>, vector<32x128xf32>, vector<32x128xf32>, vector<32x128xf32>, vector<32x128xf32>, vector<32x128xf32>, vector<32x128xf32>, vector<32x128xf32> -> vector<288x128xf32>
    %351 = arith.truncf %350 : vector<288x128xf32> to vector<288x128xbf16>
    %cst_306 = arith.constant dense<0.000000e+00> : vector<32x128xf32>
    %352 = tpu.matmul %317, %351, %cst_306 {dimension_numbers = #tpu.dot_dimension_numbers<[1], [0], [0], [1], [0, 0, 1, 1], [], []>} : vector<32x288xbf16>, vector<288x128xbf16>, vector<32x128xf32> -> vector<32x128xf32>
    %cst_307 = arith.constant 0.000000e+00 : f32
    %353 = vector.broadcast %cst_307 : f32 to vector<32x128xf32>
    %354 = arith.maximumf %352, %353 : vector<32x128xf32>
    %c4_308 = arith.constant 4 : index
    %c0_309 = arith.constant 0 : index
    %c0_310 = arith.constant 0 : index
    %355 = vector.load %arg9[%c4_308, %c0_309, %c0_310] : memref<6x32x32xbf16, #tpu.memory_space<vmem>>, vector<1x32x32xbf16>
    %356 = vector.shape_cast %355 : vector<1x32x32xbf16> to vector<32x32xbf16>
    %357 = arith.truncf %354 : vector<32x128xf32> to vector<32x128xbf16>
    %cst_311 = arith.constant dense<0.000000e+00> : vector<32x128xf32>
    %358 = tpu.matmul %356, %357, %cst_311 {dimension_numbers = #tpu.dot_dimension_numbers<[1], [0], [0], [1], [0, 0, 1, 1], [], []>} : vector<32x32xbf16>, vector<32x128xbf16>, vector<32x128xf32> -> vector<32x128xf32>
    %359 = arith.addf %315, %358 : vector<32x128xf32>
    %c5_312 = arith.constant 5 : index
    %c0_313 = arith.constant 0 : index
    %c0_314 = arith.constant 0 : index
    %360 = vector.load %arg8[%c5_312, %c0_313, %c0_314] : memref<6x32x288xbf16, #tpu.memory_space<vmem>>, vector<1x32x288xbf16>
    %361 = vector.shape_cast %360 : vector<1x32x288xbf16> to vector<32x288xbf16>
    %c9_i32_315 = arith.constant 9 : i32
    %362 = tpu.dynamic_rotate %359 by %c9_i32_315 dim 1 : vector<32x128xf32>, i32 -> vector<32x128xf32>
    %c0_316 = arith.constant 0 : index
    %c0_317 = arith.constant 0 : index
    %c0_318 = arith.constant 0 : index
    %363 = vector.load %arg15[%c0_316, %c0_317, %c0_318] : memref<9x64x128xf32, #tpu.memory_space<vmem>>, vector<1x32x128xf32>
    %364 = vector.shape_cast %363 : vector<1x32x128xf32> to vector<32x128xf32>
    %365 = arith.mulf %362, %364 : vector<32x128xf32>
    %c8_i32_319 = arith.constant 8 : i32
    %366 = tpu.dynamic_rotate %359 by %c8_i32_319 dim 1 : vector<32x128xf32>, i32 -> vector<32x128xf32>
    %c1_320 = arith.constant 1 : index
    %c0_321 = arith.constant 0 : index
    %c0_322 = arith.constant 0 : index
    %367 = vector.load %arg15[%c1_320, %c0_321, %c0_322] : memref<9x64x128xf32, #tpu.memory_space<vmem>>, vector<1x32x128xf32>
    %368 = vector.shape_cast %367 : vector<1x32x128xf32> to vector<32x128xf32>
    %369 = arith.mulf %366, %368 : vector<32x128xf32>
    %c7_i32_323 = arith.constant 7 : i32
    %370 = tpu.dynamic_rotate %359 by %c7_i32_323 dim 1 : vector<32x128xf32>, i32 -> vector<32x128xf32>
    %c2_324 = arith.constant 2 : index
    %c0_325 = arith.constant 0 : index
    %c0_326 = arith.constant 0 : index
    %371 = vector.load %arg15[%c2_324, %c0_325, %c0_326] : memref<9x64x128xf32, #tpu.memory_space<vmem>>, vector<1x32x128xf32>
    %372 = vector.shape_cast %371 : vector<1x32x128xf32> to vector<32x128xf32>
    %373 = arith.mulf %370, %372 : vector<32x128xf32>
    %c1_i32_327 = arith.constant 1 : i32
    %374 = tpu.dynamic_rotate %359 by %c1_i32_327 dim 1 : vector<32x128xf32>, i32 -> vector<32x128xf32>
    %c3_328 = arith.constant 3 : index
    %c0_329 = arith.constant 0 : index
    %c0_330 = arith.constant 0 : index
    %375 = vector.load %arg15[%c3_328, %c0_329, %c0_330] : memref<9x64x128xf32, #tpu.memory_space<vmem>>, vector<1x32x128xf32>
    %376 = vector.shape_cast %375 : vector<1x32x128xf32> to vector<32x128xf32>
    %377 = arith.mulf %374, %376 : vector<32x128xf32>
    %c127_i32_331 = arith.constant 127 : i32
    %378 = tpu.dynamic_rotate %359 by %c127_i32_331 dim 1 : vector<32x128xf32>, i32 -> vector<32x128xf32>
    %c5_332 = arith.constant 5 : index
    %c0_333 = arith.constant 0 : index
    %c0_334 = arith.constant 0 : index
    %379 = vector.load %arg15[%c5_332, %c0_333, %c0_334] : memref<9x64x128xf32, #tpu.memory_space<vmem>>, vector<1x32x128xf32>
    %380 = vector.shape_cast %379 : vector<1x32x128xf32> to vector<32x128xf32>
    %381 = arith.mulf %378, %380 : vector<32x128xf32>
    %c121_i32_335 = arith.constant 121 : i32
    %382 = tpu.dynamic_rotate %359 by %c121_i32_335 dim 1 : vector<32x128xf32>, i32 -> vector<32x128xf32>
    %c6_336 = arith.constant 6 : index
    %c0_337 = arith.constant 0 : index
    %c0_338 = arith.constant 0 : index
    %383 = vector.load %arg15[%c6_336, %c0_337, %c0_338] : memref<9x64x128xf32, #tpu.memory_space<vmem>>, vector<1x32x128xf32>
    %384 = vector.shape_cast %383 : vector<1x32x128xf32> to vector<32x128xf32>
    %385 = arith.mulf %382, %384 : vector<32x128xf32>
    %c120_i32_339 = arith.constant 120 : i32
    %386 = tpu.dynamic_rotate %359 by %c120_i32_339 dim 1 : vector<32x128xf32>, i32 -> vector<32x128xf32>
    %c7_340 = arith.constant 7 : index
    %c0_341 = arith.constant 0 : index
    %c0_342 = arith.constant 0 : index
    %387 = vector.load %arg15[%c7_340, %c0_341, %c0_342] : memref<9x64x128xf32, #tpu.memory_space<vmem>>, vector<1x32x128xf32>
    %388 = vector.shape_cast %387 : vector<1x32x128xf32> to vector<32x128xf32>
    %389 = arith.mulf %386, %388 : vector<32x128xf32>
    %c119_i32_343 = arith.constant 119 : i32
    %390 = tpu.dynamic_rotate %359 by %c119_i32_343 dim 1 : vector<32x128xf32>, i32 -> vector<32x128xf32>
    %c8_344 = arith.constant 8 : index
    %c0_345 = arith.constant 0 : index
    %c0_346 = arith.constant 0 : index
    %391 = vector.load %arg15[%c8_344, %c0_345, %c0_346] : memref<9x64x128xf32, #tpu.memory_space<vmem>>, vector<1x32x128xf32>
    %392 = vector.shape_cast %391 : vector<1x32x128xf32> to vector<32x128xf32>
    %393 = arith.mulf %390, %392 : vector<32x128xf32>
    %394 = tpu.concatenate %365, %369, %373, %377, %359, %381, %385, %389, %393 in 0 : vector<32x128xf32>, vector<32x128xf32>, vector<32x128xf32>, vector<32x128xf32>, vector<32x128xf32>, vector<32x128xf32>, vector<32x128xf32>, vector<32x128xf32>, vector<32x128xf32> -> vector<288x128xf32>
    %395 = arith.truncf %394 : vector<288x128xf32> to vector<288x128xbf16>
    %cst_347 = arith.constant dense<0.000000e+00> : vector<32x128xf32>
    %396 = tpu.matmul %361, %395, %cst_347 {dimension_numbers = #tpu.dot_dimension_numbers<[1], [0], [0], [1], [0, 0, 1, 1], [], []>} : vector<32x288xbf16>, vector<288x128xbf16>, vector<32x128xf32> -> vector<32x128xf32>
    %cst_348 = arith.constant 0.000000e+00 : f32
    %397 = vector.broadcast %cst_348 : f32 to vector<32x128xf32>
    %398 = arith.maximumf %396, %397 : vector<32x128xf32>
    %c5_349 = arith.constant 5 : index
    %c0_350 = arith.constant 0 : index
    %c0_351 = arith.constant 0 : index
    %399 = vector.load %arg9[%c5_349, %c0_350, %c0_351] : memref<6x32x32xbf16, #tpu.memory_space<vmem>>, vector<1x32x32xbf16>
    %400 = vector.shape_cast %399 : vector<1x32x32xbf16> to vector<32x32xbf16>
    %401 = arith.truncf %398 : vector<32x128xf32> to vector<32x128xbf16>
    %cst_352 = arith.constant dense<0.000000e+00> : vector<32x128xf32>
    %402 = tpu.matmul %400, %401, %cst_352 {dimension_numbers = #tpu.dot_dimension_numbers<[1], [0], [0], [1], [0, 0, 1, 1], [], []>} : vector<32x32xbf16>, vector<32x128xbf16>, vector<32x128xf32> -> vector<32x128xf32>
    %403 = arith.addf %359, %402 : vector<32x128xf32>
    %cst_353 = arith.constant 0.00999999977 : f32
    %404 = vector.broadcast %cst_353 : f32 to vector<32x128xf32>
    %405 = arith.mulf %404, %403 : vector<32x128xf32>
    %406 = arith.maximumf %403, %405 : vector<32x128xf32>
    %c0_354 = arith.constant 0 : index
    %c0_355 = arith.constant 0 : index
    %407 = vector.load %arg10[%c0_354, %c0_355] : memref<8x32xbf16, #tpu.memory_space<vmem>>, vector<8x32xbf16>
    %408 = arith.truncf %406 : vector<32x128xf32> to vector<32x128xbf16>
    %cst_356 = arith.constant dense<0.000000e+00> : vector<8x128xf32>
    %409 = tpu.matmul %407, %408, %cst_356 {dimension_numbers = #tpu.dot_dimension_numbers<[1], [0], [0], [1], [0, 0, 1, 1], [], []>} : vector<8x32xbf16>, vector<32x128xbf16>, vector<8x128xf32> -> vector<8x128xf32>
    %c0_357 = arith.constant 0 : index
    %c0_358 = arith.constant 0 : index
    %410 = vector.load %arg11[%c0_357, %c0_358] : memref<8x1xf32, #tpu.memory_space<vmem>>, vector<8x1xf32>
    %411 = vector.broadcast %410 : vector<8x1xf32> to vector<8x128xf32>
    %412 = arith.addf %409, %411 : vector<8x128xf32>
    %cst_359 = arith.constant 0.00999999977 : f32
    %413 = vector.broadcast %cst_359 : f32 to vector<8x128xf32>
    %414 = arith.mulf %413, %412 : vector<8x128xf32>
    %415 = arith.maximumf %412, %414 : vector<8x128xf32>
    %c0_360 = arith.constant 0 : index
    %c0_361 = arith.constant 0 : index
    %416 = vector.load %arg17[%c0_360, %c0_361] : memref<8x128xf32, #tpu.memory_space<vmem>>, vector<8x128xf32>
    tpu.vector_store %arg17[%c0_360, %c0_361], %415 {strides = array<i32>} : memref<8x128xf32, #tpu.memory_space<vmem>>, vector<8x128xf32>,
    %c0_362 = arith.constant 0 : index
    %c0_363 = arith.constant 0 : index
    %417 = vector.load %arg12[%c0_362, %c0_363] : memref<16x8xf32, #tpu.memory_space<vmem>>, vector<16x8xf32>
    %cst_364 = arith.constant dense<0.000000e+00> : vector<16x128xf32>
    %418 = tpu.matmul %417, %415, %cst_364 {dimension_numbers = #tpu.dot_dimension_numbers<[1], [0], [0], [1], [0, 0, 1, 1], [], []>} : vector<16x8xf32>, vector<8x128xf32>, vector<16x128xf32> -> vector<16x128xf32>
    %c0_365 = arith.constant 0 : index
    %c0_366 = arith.constant 0 : index
    %419 = vector.load %arg14[%c0_365, %c0_366] : memref<16x1xf32, #tpu.memory_space<vmem>>, vector<16x1xf32>
    %cst_367 = arith.constant 2.000000e+00 : f32
    %420 = vector.broadcast %cst_367 : f32 to vector<16x128xf32>
    %421 = arith.mulf %420, %418 : vector<16x128xf32>
    %422 = vector.broadcast %419 : vector<16x1xf32> to vector<16x128xf32>
    %423 = arith.subf %422, %421 : vector<16x128xf32>
    %cst_368 = arith.constant dense<0x7F800000> : vector<128xf32>
    %424 = vector.multi_reduction <minimumf>, %423, %cst_368 [0] : vector<16x128xf32> to vector<128xf32>
    %425 = vector.shape_cast %424 : vector<128xf32> to vector<1x128xf32>
    %426 = tpu.iota {dimensions = array<i32: 0>} : vector<16x128xi32>
    %427 = arith.sitofp %426 : vector<16x128xi32> to vector<16x128xf32>
    %428 = vector.broadcast %425 : vector<1x128xf32> to vector<16x128xf32>
    %429 = arith.cmpf oeq, %423, %428 : vector<16x128xf32>
    %cst_369 = arith.constant 1.600000e+01 : f32
    %430 = vector.broadcast %cst_369 : f32 to vector<16x128xf32>
    %431 = arith.select %429, %427, %430 : vector<16x128xi1>, vector<16x128xf32>
    %cst_370 = arith.constant dense<0x7F800000> : vector<128xf32>
    %432 = vector.multi_reduction <minimumf>, %431, %cst_370 [0] : vector<16x128xf32> to vector<128xf32>
    %433 = vector.shape_cast %432 : vector<128xf32> to vector<1x128xf32>
    %434 = vector.broadcast %433 : vector<1x128xf32> to vector<16x128xf32>
    %435 = arith.cmpf oeq, %427, %434 : vector<16x128xf32>
    %436 = arith.extui %435 : vector<16x128xi1> to vector<16x128xi32>
    %437 = arith.sitofp %436 : vector<16x128xi32> to vector<16x128xf32>
    %c0_371 = arith.constant 0 : index
    %c0_372 = arith.constant 0 : index
    %438 = vector.load %arg13[%c0_371, %c0_372] : memref<8x16xf32, #tpu.memory_space<vmem>>, vector<8x16xf32>
    %cst_373 = arith.constant dense<0.000000e+00> : vector<8x128xf32>
    %439 = tpu.matmul %438, %437, %cst_373 {dimension_numbers = #tpu.dot_dimension_numbers<[1], [0], [0], [1], [0, 0, 1, 1], [], []>} : vector<8x16xf32>, vector<16x128xf32>, vector<8x128xf32> -> vector<8x128xf32>
    %c0_374 = arith.constant 0 : index
    %c0_375 = arith.constant 0 : index
    %440 = vector.load %arg18[%c0_374, %c0_375] : memref<8x128xf32, #tpu.memory_space<vmem>>, vector<8x128xf32>
    tpu.vector_store %arg18[%c0_374, %c0_375], %439 {strides = array<i32>} : memref<8x128xf32, #tpu.memory_space<vmem>>, vector<8x128xf32>,
    %441 = arith.subf %439, %415 : vector<8x128xf32>
    %442 = arith.mulf %441, %441 : vector<8x128xf32>
    %443 = vector.shape_cast %442 : vector<8x128xf32> to vector<1x8x128xf32>
    %cst_376 = arith.constant dense<0.000000e+00> : vector<1xf32>
    %444 = vector.multi_reduction <add>, %443, %cst_376 [1, 2] : vector<1x8x128xf32> to vector<1xf32>
    %445 = vector.shape_cast %444 : vector<1xf32> to vector<1x1x1xf32>
    %446 = vector.extract %445[0, 0, 0] : f32 from vector<1x1x1xf32>
    %cst_377 = arith.constant 1.250000e+00 : f32
    %447 = arith.mulf %cst_377, %446 : f32
    %cst_378 = arith.constant 1.024000e+03 : f32
    %448 = arith.divf %447, %cst_378 : f32
    %c0_379 = arith.constant 0 : index
    %c0_380 = arith.constant 0 : index
    %449 = memref.load %arg19[%c0_379, %c0_380] : memref<1x1xf32, #tpu.memory_space<smem>>
    memref.store %448, %arg19[%c0_379, %c0_380] : memref<1x1xf32, #tpu.memory_space<smem>>
    return
  }
}

module attributes {stable_mosaic.version = 11 : i64} {
  func.func @_decoder_kernel(%arg0: memref<8x128xf32, #tpu.memory_space<vmem>>, %arg1: memref<32x72xbf16, #tpu.memory_space<vmem>>, %arg2: memref<32x1xf32, #tpu.memory_space<vmem>>, %arg3: memref<6x32x288xbf16, #tpu.memory_space<vmem>>, %arg4: memref<6x32x32xbf16, #tpu.memory_space<vmem>>, %arg5: memref<64x288xbf16, #tpu.memory_space<vmem>>, %arg6: memref<64x1xf32, #tpu.memory_space<vmem>>, %arg7: memref<4x128x512xf32, #tpu.memory_space<vmem>>, %arg8: memref<12x144xbf16, #tpu.memory_space<vmem>>, %arg9: memref<12x1xf32, #tpu.memory_space<vmem>>, %arg10: memref<9x64x128xf32, #tpu.memory_space<vmem>>, %arg11: memref<9x16x512xf32, #tpu.memory_space<vmem>>, %arg12: memref<12x512xf32, #tpu.memory_space<vmem>>) attributes {dimension_semantics = [], scalar_prefetch = 0 : i64, scratch_operands = 0 : i64, tpu.core_type = #tpu.core_type<tc>} {
    %c0 = arith.constant 0 : index
    %c0_0 = arith.constant 0 : index
    %0 = vector.load %arg0[%c0, %c0_0] : memref<8x128xf32, #tpu.memory_space<vmem>>, vector<8x128xf32>
    %c0_1 = arith.constant 0 : index
    %c0_2 = arith.constant 0 : index
    %1 = vector.load %arg1[%c0_1, %c0_2] : memref<32x72xbf16, #tpu.memory_space<vmem>>, vector<32x72xbf16>
    %c0_3 = arith.constant 0 : index
    %c0_4 = arith.constant 0 : index
    %2 = vector.load %arg2[%c0_3, %c0_4] : memref<32x1xf32, #tpu.memory_space<vmem>>, vector<32x1xf32>
    %c9_i32 = arith.constant 9 : i32
    %3 = tpu.dynamic_rotate %0 by %c9_i32 dim 1 : vector<8x128xf32>, i32 -> vector<8x128xf32>
    %c0_5 = arith.constant 0 : index
    %c0_6 = arith.constant 0 : index
    %c0_7 = arith.constant 0 : index
    %4 = vector.load %arg10[%c0_5, %c0_6, %c0_7] : memref<9x64x128xf32, #tpu.memory_space<vmem>>, vector<1x8x128xf32>
    %5 = vector.shape_cast %4 : vector<1x8x128xf32> to vector<8x128xf32>
    %6 = arith.mulf %3, %5 : vector<8x128xf32>
    %c8_i32 = arith.constant 8 : i32
    %7 = tpu.dynamic_rotate %0 by %c8_i32 dim 1 : vector<8x128xf32>, i32 -> vector<8x128xf32>
    %c1 = arith.constant 1 : index
    %c0_8 = arith.constant 0 : index
    %c0_9 = arith.constant 0 : index
    %8 = vector.load %arg10[%c1, %c0_8, %c0_9] : memref<9x64x128xf32, #tpu.memory_space<vmem>>, vector<1x8x128xf32>
    %9 = vector.shape_cast %8 : vector<1x8x128xf32> to vector<8x128xf32>
    %10 = arith.mulf %7, %9 : vector<8x128xf32>
    %c7_i32 = arith.constant 7 : i32
    %11 = tpu.dynamic_rotate %0 by %c7_i32 dim 1 : vector<8x128xf32>, i32 -> vector<8x128xf32>
    %c2 = arith.constant 2 : index
    %c0_10 = arith.constant 0 : index
    %c0_11 = arith.constant 0 : index
    %12 = vector.load %arg10[%c2, %c0_10, %c0_11] : memref<9x64x128xf32, #tpu.memory_space<vmem>>, vector<1x8x128xf32>
    %13 = vector.shape_cast %12 : vector<1x8x128xf32> to vector<8x128xf32>
    %14 = arith.mulf %11, %13 : vector<8x128xf32>
    %c1_i32 = arith.constant 1 : i32
    %15 = tpu.dynamic_rotate %0 by %c1_i32 dim 1 : vector<8x128xf32>, i32 -> vector<8x128xf32>
    %c3 = arith.constant 3 : index
    %c0_12 = arith.constant 0 : index
    %c0_13 = arith.constant 0 : index
    %16 = vector.load %arg10[%c3, %c0_12, %c0_13] : memref<9x64x128xf32, #tpu.memory_space<vmem>>, vector<1x8x128xf32>
    %17 = vector.shape_cast %16 : vector<1x8x128xf32> to vector<8x128xf32>
    %18 = arith.mulf %15, %17 : vector<8x128xf32>
    %c127_i32 = arith.constant 127 : i32
    %19 = tpu.dynamic_rotate %0 by %c127_i32 dim 1 : vector<8x128xf32>, i32 -> vector<8x128xf32>
    %c5 = arith.constant 5 : index
    %c0_14 = arith.constant 0 : index
    %c0_15 = arith.constant 0 : index
    %20 = vector.load %arg10[%c5, %c0_14, %c0_15] : memref<9x64x128xf32, #tpu.memory_space<vmem>>, vector<1x8x128xf32>
    %21 = vector.shape_cast %20 : vector<1x8x128xf32> to vector<8x128xf32>
    %22 = arith.mulf %19, %21 : vector<8x128xf32>
    %c121_i32 = arith.constant 121 : i32
    %23 = tpu.dynamic_rotate %0 by %c121_i32 dim 1 : vector<8x128xf32>, i32 -> vector<8x128xf32>
    %c6 = arith.constant 6 : index
    %c0_16 = arith.constant 0 : index
    %c0_17 = arith.constant 0 : index
    %24 = vector.load %arg10[%c6, %c0_16, %c0_17] : memref<9x64x128xf32, #tpu.memory_space<vmem>>, vector<1x8x128xf32>
    %25 = vector.shape_cast %24 : vector<1x8x128xf32> to vector<8x128xf32>
    %26 = arith.mulf %23, %25 : vector<8x128xf32>
    %c120_i32 = arith.constant 120 : i32
    %27 = tpu.dynamic_rotate %0 by %c120_i32 dim 1 : vector<8x128xf32>, i32 -> vector<8x128xf32>
    %c7 = arith.constant 7 : index
    %c0_18 = arith.constant 0 : index
    %c0_19 = arith.constant 0 : index
    %28 = vector.load %arg10[%c7, %c0_18, %c0_19] : memref<9x64x128xf32, #tpu.memory_space<vmem>>, vector<1x8x128xf32>
    %29 = vector.shape_cast %28 : vector<1x8x128xf32> to vector<8x128xf32>
    %30 = arith.mulf %27, %29 : vector<8x128xf32>
    %c119_i32 = arith.constant 119 : i32
    %31 = tpu.dynamic_rotate %0 by %c119_i32 dim 1 : vector<8x128xf32>, i32 -> vector<8x128xf32>
    %c8 = arith.constant 8 : index
    %c0_20 = arith.constant 0 : index
    %c0_21 = arith.constant 0 : index
    %32 = vector.load %arg10[%c8, %c0_20, %c0_21] : memref<9x64x128xf32, #tpu.memory_space<vmem>>, vector<1x8x128xf32>
    %33 = vector.shape_cast %32 : vector<1x8x128xf32> to vector<8x128xf32>
    %34 = arith.mulf %31, %33 : vector<8x128xf32>
    %35 = tpu.concatenate %6, %10, %14, %18, %0, %22, %26, %30, %34 in 0 : vector<8x128xf32>, vector<8x128xf32>, vector<8x128xf32>, vector<8x128xf32>, vector<8x128xf32>, vector<8x128xf32>, vector<8x128xf32>, vector<8x128xf32>, vector<8x128xf32> -> vector<72x128xf32>
    %36 = arith.truncf %35 : vector<72x128xf32> to vector<72x128xbf16>
    %cst = arith.constant dense<0.000000e+00> : vector<32x128xf32>
    %37 = tpu.matmul %1, %36, %cst {dimension_numbers = #tpu.dot_dimension_numbers<[1], [0], [0], [1], [0, 0, 1, 1], [], []>} : vector<32x72xbf16>, vector<72x128xbf16>, vector<32x128xf32> -> vector<32x128xf32>
    %38 = vector.broadcast %2 : vector<32x1xf32> to vector<32x128xf32>
    %39 = arith.addf %37, %38 : vector<32x128xf32>
    %cst_22 = arith.constant 0.00999999977 : f32
    %40 = vector.broadcast %cst_22 : f32 to vector<32x128xf32>
    %41 = arith.mulf %40, %39 : vector<32x128xf32>
    %42 = arith.maximumf %39, %41 : vector<32x128xf32>
    %c0_23 = arith.constant 0 : index
    %c0_24 = arith.constant 0 : index
    %c0_25 = arith.constant 0 : index
    %43 = vector.load %arg3[%c0_23, %c0_24, %c0_25] : memref<6x32x288xbf16, #tpu.memory_space<vmem>>, vector<1x32x288xbf16>
    %44 = vector.shape_cast %43 : vector<1x32x288xbf16> to vector<32x288xbf16>
    %c9_i32_26 = arith.constant 9 : i32
    %45 = tpu.dynamic_rotate %42 by %c9_i32_26 dim 1 : vector<32x128xf32>, i32 -> vector<32x128xf32>
    %c0_27 = arith.constant 0 : index
    %c0_28 = arith.constant 0 : index
    %c0_29 = arith.constant 0 : index
    %46 = vector.load %arg10[%c0_27, %c0_28, %c0_29] : memref<9x64x128xf32, #tpu.memory_space<vmem>>, vector<1x32x128xf32>
    %47 = vector.shape_cast %46 : vector<1x32x128xf32> to vector<32x128xf32>
    %48 = arith.mulf %45, %47 : vector<32x128xf32>
    %c8_i32_30 = arith.constant 8 : i32
    %49 = tpu.dynamic_rotate %42 by %c8_i32_30 dim 1 : vector<32x128xf32>, i32 -> vector<32x128xf32>
    %c1_31 = arith.constant 1 : index
    %c0_32 = arith.constant 0 : index
    %c0_33 = arith.constant 0 : index
    %50 = vector.load %arg10[%c1_31, %c0_32, %c0_33] : memref<9x64x128xf32, #tpu.memory_space<vmem>>, vector<1x32x128xf32>
    %51 = vector.shape_cast %50 : vector<1x32x128xf32> to vector<32x128xf32>
    %52 = arith.mulf %49, %51 : vector<32x128xf32>
    %c7_i32_34 = arith.constant 7 : i32
    %53 = tpu.dynamic_rotate %42 by %c7_i32_34 dim 1 : vector<32x128xf32>, i32 -> vector<32x128xf32>
    %c2_35 = arith.constant 2 : index
    %c0_36 = arith.constant 0 : index
    %c0_37 = arith.constant 0 : index
    %54 = vector.load %arg10[%c2_35, %c0_36, %c0_37] : memref<9x64x128xf32, #tpu.memory_space<vmem>>, vector<1x32x128xf32>
    %55 = vector.shape_cast %54 : vector<1x32x128xf32> to vector<32x128xf32>
    %56 = arith.mulf %53, %55 : vector<32x128xf32>
    %c1_i32_38 = arith.constant 1 : i32
    %57 = tpu.dynamic_rotate %42 by %c1_i32_38 dim 1 : vector<32x128xf32>, i32 -> vector<32x128xf32>
    %c3_39 = arith.constant 3 : index
    %c0_40 = arith.constant 0 : index
    %c0_41 = arith.constant 0 : index
    %58 = vector.load %arg10[%c3_39, %c0_40, %c0_41] : memref<9x64x128xf32, #tpu.memory_space<vmem>>, vector<1x32x128xf32>
    %59 = vector.shape_cast %58 : vector<1x32x128xf32> to vector<32x128xf32>
    %60 = arith.mulf %57, %59 : vector<32x128xf32>
    %c127_i32_42 = arith.constant 127 : i32
    %61 = tpu.dynamic_rotate %42 by %c127_i32_42 dim 1 : vector<32x128xf32>, i32 -> vector<32x128xf32>
    %c5_43 = arith.constant 5 : index
    %c0_44 = arith.constant 0 : index
    %c0_45 = arith.constant 0 : index
    %62 = vector.load %arg10[%c5_43, %c0_44, %c0_45] : memref<9x64x128xf32, #tpu.memory_space<vmem>>, vector<1x32x128xf32>
    %63 = vector.shape_cast %62 : vector<1x32x128xf32> to vector<32x128xf32>
    %64 = arith.mulf %61, %63 : vector<32x128xf32>
    %c121_i32_46 = arith.constant 121 : i32
    %65 = tpu.dynamic_rotate %42 by %c121_i32_46 dim 1 : vector<32x128xf32>, i32 -> vector<32x128xf32>
    %c6_47 = arith.constant 6 : index
    %c0_48 = arith.constant 0 : index
    %c0_49 = arith.constant 0 : index
    %66 = vector.load %arg10[%c6_47, %c0_48, %c0_49] : memref<9x64x128xf32, #tpu.memory_space<vmem>>, vector<1x32x128xf32>
    %67 = vector.shape_cast %66 : vector<1x32x128xf32> to vector<32x128xf32>
    %68 = arith.mulf %65, %67 : vector<32x128xf32>
    %c120_i32_50 = arith.constant 120 : i32
    %69 = tpu.dynamic_rotate %42 by %c120_i32_50 dim 1 : vector<32x128xf32>, i32 -> vector<32x128xf32>
    %c7_51 = arith.constant 7 : index
    %c0_52 = arith.constant 0 : index
    %c0_53 = arith.constant 0 : index
    %70 = vector.load %arg10[%c7_51, %c0_52, %c0_53] : memref<9x64x128xf32, #tpu.memory_space<vmem>>, vector<1x32x128xf32>
    %71 = vector.shape_cast %70 : vector<1x32x128xf32> to vector<32x128xf32>
    %72 = arith.mulf %69, %71 : vector<32x128xf32>
    %c119_i32_54 = arith.constant 119 : i32
    %73 = tpu.dynamic_rotate %42 by %c119_i32_54 dim 1 : vector<32x128xf32>, i32 -> vector<32x128xf32>
    %c8_55 = arith.constant 8 : index
    %c0_56 = arith.constant 0 : index
    %c0_57 = arith.constant 0 : index
    %74 = vector.load %arg10[%c8_55, %c0_56, %c0_57] : memref<9x64x128xf32, #tpu.memory_space<vmem>>, vector<1x32x128xf32>
    %75 = vector.shape_cast %74 : vector<1x32x128xf32> to vector<32x128xf32>
    %76 = arith.mulf %73, %75 : vector<32x128xf32>
    %77 = tpu.concatenate %48, %52, %56, %60, %42, %64, %68, %72, %76 in 0 : vector<32x128xf32>, vector<32x128xf32>, vector<32x128xf32>, vector<32x128xf32>, vector<32x128xf32>, vector<32x128xf32>, vector<32x128xf32>, vector<32x128xf32>, vector<32x128xf32> -> vector<288x128xf32>
    %78 = arith.truncf %77 : vector<288x128xf32> to vector<288x128xbf16>
    %cst_58 = arith.constant dense<0.000000e+00> : vector<32x128xf32>
    %79 = tpu.matmul %44, %78, %cst_58 {dimension_numbers = #tpu.dot_dimension_numbers<[1], [0], [0], [1], [0, 0, 1, 1], [], []>} : vector<32x288xbf16>, vector<288x128xbf16>, vector<32x128xf32> -> vector<32x128xf32>
    %cst_59 = arith.constant 0.000000e+00 : f32
    %80 = vector.broadcast %cst_59 : f32 to vector<32x128xf32>
    %81 = arith.maximumf %79, %80 : vector<32x128xf32>
    %c0_60 = arith.constant 0 : index
    %c0_61 = arith.constant 0 : index
    %c0_62 = arith.constant 0 : index
    %82 = vector.load %arg4[%c0_60, %c0_61, %c0_62] : memref<6x32x32xbf16, #tpu.memory_space<vmem>>, vector<1x32x32xbf16>
    %83 = vector.shape_cast %82 : vector<1x32x32xbf16> to vector<32x32xbf16>
    %84 = arith.truncf %81 : vector<32x128xf32> to vector<32x128xbf16>
    %cst_63 = arith.constant dense<0.000000e+00> : vector<32x128xf32>
    %85 = tpu.matmul %83, %84, %cst_63 {dimension_numbers = #tpu.dot_dimension_numbers<[1], [0], [0], [1], [0, 0, 1, 1], [], []>} : vector<32x32xbf16>, vector<32x128xbf16>, vector<32x128xf32> -> vector<32x128xf32>
    %86 = arith.addf %42, %85 : vector<32x128xf32>
    %c1_64 = arith.constant 1 : index
    %c0_65 = arith.constant 0 : index
    %c0_66 = arith.constant 0 : index
    %87 = vector.load %arg3[%c1_64, %c0_65, %c0_66] : memref<6x32x288xbf16, #tpu.memory_space<vmem>>, vector<1x32x288xbf16>
    %88 = vector.shape_cast %87 : vector<1x32x288xbf16> to vector<32x288xbf16>
    %c9_i32_67 = arith.constant 9 : i32
    %89 = tpu.dynamic_rotate %86 by %c9_i32_67 dim 1 : vector<32x128xf32>, i32 -> vector<32x128xf32>
    %c0_68 = arith.constant 0 : index
    %c0_69 = arith.constant 0 : index
    %c0_70 = arith.constant 0 : index
    %90 = vector.load %arg10[%c0_68, %c0_69, %c0_70] : memref<9x64x128xf32, #tpu.memory_space<vmem>>, vector<1x32x128xf32>
    %91 = vector.shape_cast %90 : vector<1x32x128xf32> to vector<32x128xf32>
    %92 = arith.mulf %89, %91 : vector<32x128xf32>
    %c8_i32_71 = arith.constant 8 : i32
    %93 = tpu.dynamic_rotate %86 by %c8_i32_71 dim 1 : vector<32x128xf32>, i32 -> vector<32x128xf32>
    %c1_72 = arith.constant 1 : index
    %c0_73 = arith.constant 0 : index
    %c0_74 = arith.constant 0 : index
    %94 = vector.load %arg10[%c1_72, %c0_73, %c0_74] : memref<9x64x128xf32, #tpu.memory_space<vmem>>, vector<1x32x128xf32>
    %95 = vector.shape_cast %94 : vector<1x32x128xf32> to vector<32x128xf32>
    %96 = arith.mulf %93, %95 : vector<32x128xf32>
    %c7_i32_75 = arith.constant 7 : i32
    %97 = tpu.dynamic_rotate %86 by %c7_i32_75 dim 1 : vector<32x128xf32>, i32 -> vector<32x128xf32>
    %c2_76 = arith.constant 2 : index
    %c0_77 = arith.constant 0 : index
    %c0_78 = arith.constant 0 : index
    %98 = vector.load %arg10[%c2_76, %c0_77, %c0_78] : memref<9x64x128xf32, #tpu.memory_space<vmem>>, vector<1x32x128xf32>
    %99 = vector.shape_cast %98 : vector<1x32x128xf32> to vector<32x128xf32>
    %100 = arith.mulf %97, %99 : vector<32x128xf32>
    %c1_i32_79 = arith.constant 1 : i32
    %101 = tpu.dynamic_rotate %86 by %c1_i32_79 dim 1 : vector<32x128xf32>, i32 -> vector<32x128xf32>
    %c3_80 = arith.constant 3 : index
    %c0_81 = arith.constant 0 : index
    %c0_82 = arith.constant 0 : index
    %102 = vector.load %arg10[%c3_80, %c0_81, %c0_82] : memref<9x64x128xf32, #tpu.memory_space<vmem>>, vector<1x32x128xf32>
    %103 = vector.shape_cast %102 : vector<1x32x128xf32> to vector<32x128xf32>
    %104 = arith.mulf %101, %103 : vector<32x128xf32>
    %c127_i32_83 = arith.constant 127 : i32
    %105 = tpu.dynamic_rotate %86 by %c127_i32_83 dim 1 : vector<32x128xf32>, i32 -> vector<32x128xf32>
    %c5_84 = arith.constant 5 : index
    %c0_85 = arith.constant 0 : index
    %c0_86 = arith.constant 0 : index
    %106 = vector.load %arg10[%c5_84, %c0_85, %c0_86] : memref<9x64x128xf32, #tpu.memory_space<vmem>>, vector<1x32x128xf32>
    %107 = vector.shape_cast %106 : vector<1x32x128xf32> to vector<32x128xf32>
    %108 = arith.mulf %105, %107 : vector<32x128xf32>
    %c121_i32_87 = arith.constant 121 : i32
    %109 = tpu.dynamic_rotate %86 by %c121_i32_87 dim 1 : vector<32x128xf32>, i32 -> vector<32x128xf32>
    %c6_88 = arith.constant 6 : index
    %c0_89 = arith.constant 0 : index
    %c0_90 = arith.constant 0 : index
    %110 = vector.load %arg10[%c6_88, %c0_89, %c0_90] : memref<9x64x128xf32, #tpu.memory_space<vmem>>, vector<1x32x128xf32>
    %111 = vector.shape_cast %110 : vector<1x32x128xf32> to vector<32x128xf32>
    %112 = arith.mulf %109, %111 : vector<32x128xf32>
    %c120_i32_91 = arith.constant 120 : i32
    %113 = tpu.dynamic_rotate %86 by %c120_i32_91 dim 1 : vector<32x128xf32>, i32 -> vector<32x128xf32>
    %c7_92 = arith.constant 7 : index
    %c0_93 = arith.constant 0 : index
    %c0_94 = arith.constant 0 : index
    %114 = vector.load %arg10[%c7_92, %c0_93, %c0_94] : memref<9x64x128xf32, #tpu.memory_space<vmem>>, vector<1x32x128xf32>
    %115 = vector.shape_cast %114 : vector<1x32x128xf32> to vector<32x128xf32>
    %116 = arith.mulf %113, %115 : vector<32x128xf32>
    %c119_i32_95 = arith.constant 119 : i32
    %117 = tpu.dynamic_rotate %86 by %c119_i32_95 dim 1 : vector<32x128xf32>, i32 -> vector<32x128xf32>
    %c8_96 = arith.constant 8 : index
    %c0_97 = arith.constant 0 : index
    %c0_98 = arith.constant 0 : index
    %118 = vector.load %arg10[%c8_96, %c0_97, %c0_98] : memref<9x64x128xf32, #tpu.memory_space<vmem>>, vector<1x32x128xf32>
    %119 = vector.shape_cast %118 : vector<1x32x128xf32> to vector<32x128xf32>
    %120 = arith.mulf %117, %119 : vector<32x128xf32>
    %121 = tpu.concatenate %92, %96, %100, %104, %86, %108, %112, %116, %120 in 0 : vector<32x128xf32>, vector<32x128xf32>, vector<32x128xf32>, vector<32x128xf32>, vector<32x128xf32>, vector<32x128xf32>, vector<32x128xf32>, vector<32x128xf32>, vector<32x128xf32> -> vector<288x128xf32>
    %122 = arith.truncf %121 : vector<288x128xf32> to vector<288x128xbf16>
    %cst_99 = arith.constant dense<0.000000e+00> : vector<32x128xf32>
    %123 = tpu.matmul %88, %122, %cst_99 {dimension_numbers = #tpu.dot_dimension_numbers<[1], [0], [0], [1], [0, 0, 1, 1], [], []>} : vector<32x288xbf16>, vector<288x128xbf16>, vector<32x128xf32> -> vector<32x128xf32>
    %cst_100 = arith.constant 0.000000e+00 : f32
    %124 = vector.broadcast %cst_100 : f32 to vector<32x128xf32>
    %125 = arith.maximumf %123, %124 : vector<32x128xf32>
    %c1_101 = arith.constant 1 : index
    %c0_102 = arith.constant 0 : index
    %c0_103 = arith.constant 0 : index
    %126 = vector.load %arg4[%c1_101, %c0_102, %c0_103] : memref<6x32x32xbf16, #tpu.memory_space<vmem>>, vector<1x32x32xbf16>
    %127 = vector.shape_cast %126 : vector<1x32x32xbf16> to vector<32x32xbf16>
    %128 = arith.truncf %125 : vector<32x128xf32> to vector<32x128xbf16>
    %cst_104 = arith.constant dense<0.000000e+00> : vector<32x128xf32>
    %129 = tpu.matmul %127, %128, %cst_104 {dimension_numbers = #tpu.dot_dimension_numbers<[1], [0], [0], [1], [0, 0, 1, 1], [], []>} : vector<32x32xbf16>, vector<32x128xbf16>, vector<32x128xf32> -> vector<32x128xf32>
    %130 = arith.addf %86, %129 : vector<32x128xf32>
    %c2_105 = arith.constant 2 : index
    %c0_106 = arith.constant 0 : index
    %c0_107 = arith.constant 0 : index
    %131 = vector.load %arg3[%c2_105, %c0_106, %c0_107] : memref<6x32x288xbf16, #tpu.memory_space<vmem>>, vector<1x32x288xbf16>
    %132 = vector.shape_cast %131 : vector<1x32x288xbf16> to vector<32x288xbf16>
    %c9_i32_108 = arith.constant 9 : i32
    %133 = tpu.dynamic_rotate %130 by %c9_i32_108 dim 1 : vector<32x128xf32>, i32 -> vector<32x128xf32>
    %c0_109 = arith.constant 0 : index
    %c0_110 = arith.constant 0 : index
    %c0_111 = arith.constant 0 : index
    %134 = vector.load %arg10[%c0_109, %c0_110, %c0_111] : memref<9x64x128xf32, #tpu.memory_space<vmem>>, vector<1x32x128xf32>
    %135 = vector.shape_cast %134 : vector<1x32x128xf32> to vector<32x128xf32>
    %136 = arith.mulf %133, %135 : vector<32x128xf32>
    %c8_i32_112 = arith.constant 8 : i32
    %137 = tpu.dynamic_rotate %130 by %c8_i32_112 dim 1 : vector<32x128xf32>, i32 -> vector<32x128xf32>
    %c1_113 = arith.constant 1 : index
    %c0_114 = arith.constant 0 : index
    %c0_115 = arith.constant 0 : index
    %138 = vector.load %arg10[%c1_113, %c0_114, %c0_115] : memref<9x64x128xf32, #tpu.memory_space<vmem>>, vector<1x32x128xf32>
    %139 = vector.shape_cast %138 : vector<1x32x128xf32> to vector<32x128xf32>
    %140 = arith.mulf %137, %139 : vector<32x128xf32>
    %c7_i32_116 = arith.constant 7 : i32
    %141 = tpu.dynamic_rotate %130 by %c7_i32_116 dim 1 : vector<32x128xf32>, i32 -> vector<32x128xf32>
    %c2_117 = arith.constant 2 : index
    %c0_118 = arith.constant 0 : index
    %c0_119 = arith.constant 0 : index
    %142 = vector.load %arg10[%c2_117, %c0_118, %c0_119] : memref<9x64x128xf32, #tpu.memory_space<vmem>>, vector<1x32x128xf32>
    %143 = vector.shape_cast %142 : vector<1x32x128xf32> to vector<32x128xf32>
    %144 = arith.mulf %141, %143 : vector<32x128xf32>
    %c1_i32_120 = arith.constant 1 : i32
    %145 = tpu.dynamic_rotate %130 by %c1_i32_120 dim 1 : vector<32x128xf32>, i32 -> vector<32x128xf32>
    %c3_121 = arith.constant 3 : index
    %c0_122 = arith.constant 0 : index
    %c0_123 = arith.constant 0 : index
    %146 = vector.load %arg10[%c3_121, %c0_122, %c0_123] : memref<9x64x128xf32, #tpu.memory_space<vmem>>, vector<1x32x128xf32>
    %147 = vector.shape_cast %146 : vector<1x32x128xf32> to vector<32x128xf32>
    %148 = arith.mulf %145, %147 : vector<32x128xf32>
    %c127_i32_124 = arith.constant 127 : i32
    %149 = tpu.dynamic_rotate %130 by %c127_i32_124 dim 1 : vector<32x128xf32>, i32 -> vector<32x128xf32>
    %c5_125 = arith.constant 5 : index
    %c0_126 = arith.constant 0 : index
    %c0_127 = arith.constant 0 : index
    %150 = vector.load %arg10[%c5_125, %c0_126, %c0_127] : memref<9x64x128xf32, #tpu.memory_space<vmem>>, vector<1x32x128xf32>
    %151 = vector.shape_cast %150 : vector<1x32x128xf32> to vector<32x128xf32>
    %152 = arith.mulf %149, %151 : vector<32x128xf32>
    %c121_i32_128 = arith.constant 121 : i32
    %153 = tpu.dynamic_rotate %130 by %c121_i32_128 dim 1 : vector<32x128xf32>, i32 -> vector<32x128xf32>
    %c6_129 = arith.constant 6 : index
    %c0_130 = arith.constant 0 : index
    %c0_131 = arith.constant 0 : index
    %154 = vector.load %arg10[%c6_129, %c0_130, %c0_131] : memref<9x64x128xf32, #tpu.memory_space<vmem>>, vector<1x32x128xf32>
    %155 = vector.shape_cast %154 : vector<1x32x128xf32> to vector<32x128xf32>
    %156 = arith.mulf %153, %155 : vector<32x128xf32>
    %c120_i32_132 = arith.constant 120 : i32
    %157 = tpu.dynamic_rotate %130 by %c120_i32_132 dim 1 : vector<32x128xf32>, i32 -> vector<32x128xf32>
    %c7_133 = arith.constant 7 : index
    %c0_134 = arith.constant 0 : index
    %c0_135 = arith.constant 0 : index
    %158 = vector.load %arg10[%c7_133, %c0_134, %c0_135] : memref<9x64x128xf32, #tpu.memory_space<vmem>>, vector<1x32x128xf32>
    %159 = vector.shape_cast %158 : vector<1x32x128xf32> to vector<32x128xf32>
    %160 = arith.mulf %157, %159 : vector<32x128xf32>
    %c119_i32_136 = arith.constant 119 : i32
    %161 = tpu.dynamic_rotate %130 by %c119_i32_136 dim 1 : vector<32x128xf32>, i32 -> vector<32x128xf32>
    %c8_137 = arith.constant 8 : index
    %c0_138 = arith.constant 0 : index
    %c0_139 = arith.constant 0 : index
    %162 = vector.load %arg10[%c8_137, %c0_138, %c0_139] : memref<9x64x128xf32, #tpu.memory_space<vmem>>, vector<1x32x128xf32>
    %163 = vector.shape_cast %162 : vector<1x32x128xf32> to vector<32x128xf32>
    %164 = arith.mulf %161, %163 : vector<32x128xf32>
    %165 = tpu.concatenate %136, %140, %144, %148, %130, %152, %156, %160, %164 in 0 : vector<32x128xf32>, vector<32x128xf32>, vector<32x128xf32>, vector<32x128xf32>, vector<32x128xf32>, vector<32x128xf32>, vector<32x128xf32>, vector<32x128xf32>, vector<32x128xf32> -> vector<288x128xf32>
    %166 = arith.truncf %165 : vector<288x128xf32> to vector<288x128xbf16>
    %cst_140 = arith.constant dense<0.000000e+00> : vector<32x128xf32>
    %167 = tpu.matmul %132, %166, %cst_140 {dimension_numbers = #tpu.dot_dimension_numbers<[1], [0], [0], [1], [0, 0, 1, 1], [], []>} : vector<32x288xbf16>, vector<288x128xbf16>, vector<32x128xf32> -> vector<32x128xf32>
    %cst_141 = arith.constant 0.000000e+00 : f32
    %168 = vector.broadcast %cst_141 : f32 to vector<32x128xf32>
    %169 = arith.maximumf %167, %168 : vector<32x128xf32>
    %c2_142 = arith.constant 2 : index
    %c0_143 = arith.constant 0 : index
    %c0_144 = arith.constant 0 : index
    %170 = vector.load %arg4[%c2_142, %c0_143, %c0_144] : memref<6x32x32xbf16, #tpu.memory_space<vmem>>, vector<1x32x32xbf16>
    %171 = vector.shape_cast %170 : vector<1x32x32xbf16> to vector<32x32xbf16>
    %172 = arith.truncf %169 : vector<32x128xf32> to vector<32x128xbf16>
    %cst_145 = arith.constant dense<0.000000e+00> : vector<32x128xf32>
    %173 = tpu.matmul %171, %172, %cst_145 {dimension_numbers = #tpu.dot_dimension_numbers<[1], [0], [0], [1], [0, 0, 1, 1], [], []>} : vector<32x32xbf16>, vector<32x128xbf16>, vector<32x128xf32> -> vector<32x128xf32>
    %174 = arith.addf %130, %173 : vector<32x128xf32>
    %c3_146 = arith.constant 3 : index
    %c0_147 = arith.constant 0 : index
    %c0_148 = arith.constant 0 : index
    %175 = vector.load %arg3[%c3_146, %c0_147, %c0_148] : memref<6x32x288xbf16, #tpu.memory_space<vmem>>, vector<1x32x288xbf16>
    %176 = vector.shape_cast %175 : vector<1x32x288xbf16> to vector<32x288xbf16>
    %c9_i32_149 = arith.constant 9 : i32
    %177 = tpu.dynamic_rotate %174 by %c9_i32_149 dim 1 : vector<32x128xf32>, i32 -> vector<32x128xf32>
    %c0_150 = arith.constant 0 : index
    %c0_151 = arith.constant 0 : index
    %c0_152 = arith.constant 0 : index
    %178 = vector.load %arg10[%c0_150, %c0_151, %c0_152] : memref<9x64x128xf32, #tpu.memory_space<vmem>>, vector<1x32x128xf32>
    %179 = vector.shape_cast %178 : vector<1x32x128xf32> to vector<32x128xf32>
    %180 = arith.mulf %177, %179 : vector<32x128xf32>
    %c8_i32_153 = arith.constant 8 : i32
    %181 = tpu.dynamic_rotate %174 by %c8_i32_153 dim 1 : vector<32x128xf32>, i32 -> vector<32x128xf32>
    %c1_154 = arith.constant 1 : index
    %c0_155 = arith.constant 0 : index
    %c0_156 = arith.constant 0 : index
    %182 = vector.load %arg10[%c1_154, %c0_155, %c0_156] : memref<9x64x128xf32, #tpu.memory_space<vmem>>, vector<1x32x128xf32>
    %183 = vector.shape_cast %182 : vector<1x32x128xf32> to vector<32x128xf32>
    %184 = arith.mulf %181, %183 : vector<32x128xf32>
    %c7_i32_157 = arith.constant 7 : i32
    %185 = tpu.dynamic_rotate %174 by %c7_i32_157 dim 1 : vector<32x128xf32>, i32 -> vector<32x128xf32>
    %c2_158 = arith.constant 2 : index
    %c0_159 = arith.constant 0 : index
    %c0_160 = arith.constant 0 : index
    %186 = vector.load %arg10[%c2_158, %c0_159, %c0_160] : memref<9x64x128xf32, #tpu.memory_space<vmem>>, vector<1x32x128xf32>
    %187 = vector.shape_cast %186 : vector<1x32x128xf32> to vector<32x128xf32>
    %188 = arith.mulf %185, %187 : vector<32x128xf32>
    %c1_i32_161 = arith.constant 1 : i32
    %189 = tpu.dynamic_rotate %174 by %c1_i32_161 dim 1 : vector<32x128xf32>, i32 -> vector<32x128xf32>
    %c3_162 = arith.constant 3 : index
    %c0_163 = arith.constant 0 : index
    %c0_164 = arith.constant 0 : index
    %190 = vector.load %arg10[%c3_162, %c0_163, %c0_164] : memref<9x64x128xf32, #tpu.memory_space<vmem>>, vector<1x32x128xf32>
    %191 = vector.shape_cast %190 : vector<1x32x128xf32> to vector<32x128xf32>
    %192 = arith.mulf %189, %191 : vector<32x128xf32>
    %c127_i32_165 = arith.constant 127 : i32
    %193 = tpu.dynamic_rotate %174 by %c127_i32_165 dim 1 : vector<32x128xf32>, i32 -> vector<32x128xf32>
    %c5_166 = arith.constant 5 : index
    %c0_167 = arith.constant 0 : index
    %c0_168 = arith.constant 0 : index
    %194 = vector.load %arg10[%c5_166, %c0_167, %c0_168] : memref<9x64x128xf32, #tpu.memory_space<vmem>>, vector<1x32x128xf32>
    %195 = vector.shape_cast %194 : vector<1x32x128xf32> to vector<32x128xf32>
    %196 = arith.mulf %193, %195 : vector<32x128xf32>
    %c121_i32_169 = arith.constant 121 : i32
    %197 = tpu.dynamic_rotate %174 by %c121_i32_169 dim 1 : vector<32x128xf32>, i32 -> vector<32x128xf32>
    %c6_170 = arith.constant 6 : index
    %c0_171 = arith.constant 0 : index
    %c0_172 = arith.constant 0 : index
    %198 = vector.load %arg10[%c6_170, %c0_171, %c0_172] : memref<9x64x128xf32, #tpu.memory_space<vmem>>, vector<1x32x128xf32>
    %199 = vector.shape_cast %198 : vector<1x32x128xf32> to vector<32x128xf32>
    %200 = arith.mulf %197, %199 : vector<32x128xf32>
    %c120_i32_173 = arith.constant 120 : i32
    %201 = tpu.dynamic_rotate %174 by %c120_i32_173 dim 1 : vector<32x128xf32>, i32 -> vector<32x128xf32>
    %c7_174 = arith.constant 7 : index
    %c0_175 = arith.constant 0 : index
    %c0_176 = arith.constant 0 : index
    %202 = vector.load %arg10[%c7_174, %c0_175, %c0_176] : memref<9x64x128xf32, #tpu.memory_space<vmem>>, vector<1x32x128xf32>
    %203 = vector.shape_cast %202 : vector<1x32x128xf32> to vector<32x128xf32>
    %204 = arith.mulf %201, %203 : vector<32x128xf32>
    %c119_i32_177 = arith.constant 119 : i32
    %205 = tpu.dynamic_rotate %174 by %c119_i32_177 dim 1 : vector<32x128xf32>, i32 -> vector<32x128xf32>
    %c8_178 = arith.constant 8 : index
    %c0_179 = arith.constant 0 : index
    %c0_180 = arith.constant 0 : index
    %206 = vector.load %arg10[%c8_178, %c0_179, %c0_180] : memref<9x64x128xf32, #tpu.memory_space<vmem>>, vector<1x32x128xf32>
    %207 = vector.shape_cast %206 : vector<1x32x128xf32> to vector<32x128xf32>
    %208 = arith.mulf %205, %207 : vector<32x128xf32>
    %209 = tpu.concatenate %180, %184, %188, %192, %174, %196, %200, %204, %208 in 0 : vector<32x128xf32>, vector<32x128xf32>, vector<32x128xf32>, vector<32x128xf32>, vector<32x128xf32>, vector<32x128xf32>, vector<32x128xf32>, vector<32x128xf32>, vector<32x128xf32> -> vector<288x128xf32>
    %210 = arith.truncf %209 : vector<288x128xf32> to vector<288x128xbf16>
    %cst_181 = arith.constant dense<0.000000e+00> : vector<32x128xf32>
    %211 = tpu.matmul %176, %210, %cst_181 {dimension_numbers = #tpu.dot_dimension_numbers<[1], [0], [0], [1], [0, 0, 1, 1], [], []>} : vector<32x288xbf16>, vector<288x128xbf16>, vector<32x128xf32> -> vector<32x128xf32>
    %cst_182 = arith.constant 0.000000e+00 : f32
    %212 = vector.broadcast %cst_182 : f32 to vector<32x128xf32>
    %213 = arith.maximumf %211, %212 : vector<32x128xf32>
    %c3_183 = arith.constant 3 : index
    %c0_184 = arith.constant 0 : index
    %c0_185 = arith.constant 0 : index
    %214 = vector.load %arg4[%c3_183, %c0_184, %c0_185] : memref<6x32x32xbf16, #tpu.memory_space<vmem>>, vector<1x32x32xbf16>
    %215 = vector.shape_cast %214 : vector<1x32x32xbf16> to vector<32x32xbf16>
    %216 = arith.truncf %213 : vector<32x128xf32> to vector<32x128xbf16>
    %cst_186 = arith.constant dense<0.000000e+00> : vector<32x128xf32>
    %217 = tpu.matmul %215, %216, %cst_186 {dimension_numbers = #tpu.dot_dimension_numbers<[1], [0], [0], [1], [0, 0, 1, 1], [], []>} : vector<32x32xbf16>, vector<32x128xbf16>, vector<32x128xf32> -> vector<32x128xf32>
    %218 = arith.addf %174, %217 : vector<32x128xf32>
    %c4 = arith.constant 4 : index
    %c0_187 = arith.constant 0 : index
    %c0_188 = arith.constant 0 : index
    %219 = vector.load %arg3[%c4, %c0_187, %c0_188] : memref<6x32x288xbf16, #tpu.memory_space<vmem>>, vector<1x32x288xbf16>
    %220 = vector.shape_cast %219 : vector<1x32x288xbf16> to vector<32x288xbf16>
    %c9_i32_189 = arith.constant 9 : i32
    %221 = tpu.dynamic_rotate %218 by %c9_i32_189 dim 1 : vector<32x128xf32>, i32 -> vector<32x128xf32>
    %c0_190 = arith.constant 0 : index
    %c0_191 = arith.constant 0 : index
    %c0_192 = arith.constant 0 : index
    %222 = vector.load %arg10[%c0_190, %c0_191, %c0_192] : memref<9x64x128xf32, #tpu.memory_space<vmem>>, vector<1x32x128xf32>
    %223 = vector.shape_cast %222 : vector<1x32x128xf32> to vector<32x128xf32>
    %224 = arith.mulf %221, %223 : vector<32x128xf32>
    %c8_i32_193 = arith.constant 8 : i32
    %225 = tpu.dynamic_rotate %218 by %c8_i32_193 dim 1 : vector<32x128xf32>, i32 -> vector<32x128xf32>
    %c1_194 = arith.constant 1 : index
    %c0_195 = arith.constant 0 : index
    %c0_196 = arith.constant 0 : index
    %226 = vector.load %arg10[%c1_194, %c0_195, %c0_196] : memref<9x64x128xf32, #tpu.memory_space<vmem>>, vector<1x32x128xf32>
    %227 = vector.shape_cast %226 : vector<1x32x128xf32> to vector<32x128xf32>
    %228 = arith.mulf %225, %227 : vector<32x128xf32>
    %c7_i32_197 = arith.constant 7 : i32
    %229 = tpu.dynamic_rotate %218 by %c7_i32_197 dim 1 : vector<32x128xf32>, i32 -> vector<32x128xf32>
    %c2_198 = arith.constant 2 : index
    %c0_199 = arith.constant 0 : index
    %c0_200 = arith.constant 0 : index
    %230 = vector.load %arg10[%c2_198, %c0_199, %c0_200] : memref<9x64x128xf32, #tpu.memory_space<vmem>>, vector<1x32x128xf32>
    %231 = vector.shape_cast %230 : vector<1x32x128xf32> to vector<32x128xf32>
    %232 = arith.mulf %229, %231 : vector<32x128xf32>
    %c1_i32_201 = arith.constant 1 : i32
    %233 = tpu.dynamic_rotate %218 by %c1_i32_201 dim 1 : vector<32x128xf32>, i32 -> vector<32x128xf32>
    %c3_202 = arith.constant 3 : index
    %c0_203 = arith.constant 0 : index
    %c0_204 = arith.constant 0 : index
    %234 = vector.load %arg10[%c3_202, %c0_203, %c0_204] : memref<9x64x128xf32, #tpu.memory_space<vmem>>, vector<1x32x128xf32>
    %235 = vector.shape_cast %234 : vector<1x32x128xf32> to vector<32x128xf32>
    %236 = arith.mulf %233, %235 : vector<32x128xf32>
    %c127_i32_205 = arith.constant 127 : i32
    %237 = tpu.dynamic_rotate %218 by %c127_i32_205 dim 1 : vector<32x128xf32>, i32 -> vector<32x128xf32>
    %c5_206 = arith.constant 5 : index
    %c0_207 = arith.constant 0 : index
    %c0_208 = arith.constant 0 : index
    %238 = vector.load %arg10[%c5_206, %c0_207, %c0_208] : memref<9x64x128xf32, #tpu.memory_space<vmem>>, vector<1x32x128xf32>
    %239 = vector.shape_cast %238 : vector<1x32x128xf32> to vector<32x128xf32>
    %240 = arith.mulf %237, %239 : vector<32x128xf32>
    %c121_i32_209 = arith.constant 121 : i32
    %241 = tpu.dynamic_rotate %218 by %c121_i32_209 dim 1 : vector<32x128xf32>, i32 -> vector<32x128xf32>
    %c6_210 = arith.constant 6 : index
    %c0_211 = arith.constant 0 : index
    %c0_212 = arith.constant 0 : index
    %242 = vector.load %arg10[%c6_210, %c0_211, %c0_212] : memref<9x64x128xf32, #tpu.memory_space<vmem>>, vector<1x32x128xf32>
    %243 = vector.shape_cast %242 : vector<1x32x128xf32> to vector<32x128xf32>
    %244 = arith.mulf %241, %243 : vector<32x128xf32>
    %c120_i32_213 = arith.constant 120 : i32
    %245 = tpu.dynamic_rotate %218 by %c120_i32_213 dim 1 : vector<32x128xf32>, i32 -> vector<32x128xf32>
    %c7_214 = arith.constant 7 : index
    %c0_215 = arith.constant 0 : index
    %c0_216 = arith.constant 0 : index
    %246 = vector.load %arg10[%c7_214, %c0_215, %c0_216] : memref<9x64x128xf32, #tpu.memory_space<vmem>>, vector<1x32x128xf32>
    %247 = vector.shape_cast %246 : vector<1x32x128xf32> to vector<32x128xf32>
    %248 = arith.mulf %245, %247 : vector<32x128xf32>
    %c119_i32_217 = arith.constant 119 : i32
    %249 = tpu.dynamic_rotate %218 by %c119_i32_217 dim 1 : vector<32x128xf32>, i32 -> vector<32x128xf32>
    %c8_218 = arith.constant 8 : index
    %c0_219 = arith.constant 0 : index
    %c0_220 = arith.constant 0 : index
    %250 = vector.load %arg10[%c8_218, %c0_219, %c0_220] : memref<9x64x128xf32, #tpu.memory_space<vmem>>, vector<1x32x128xf32>
    %251 = vector.shape_cast %250 : vector<1x32x128xf32> to vector<32x128xf32>
    %252 = arith.mulf %249, %251 : vector<32x128xf32>
    %253 = tpu.concatenate %224, %228, %232, %236, %218, %240, %244, %248, %252 in 0 : vector<32x128xf32>, vector<32x128xf32>, vector<32x128xf32>, vector<32x128xf32>, vector<32x128xf32>, vector<32x128xf32>, vector<32x128xf32>, vector<32x128xf32>, vector<32x128xf32> -> vector<288x128xf32>
    %254 = arith.truncf %253 : vector<288x128xf32> to vector<288x128xbf16>
    %cst_221 = arith.constant dense<0.000000e+00> : vector<32x128xf32>
    %255 = tpu.matmul %220, %254, %cst_221 {dimension_numbers = #tpu.dot_dimension_numbers<[1], [0], [0], [1], [0, 0, 1, 1], [], []>} : vector<32x288xbf16>, vector<288x128xbf16>, vector<32x128xf32> -> vector<32x128xf32>
    %cst_222 = arith.constant 0.000000e+00 : f32
    %256 = vector.broadcast %cst_222 : f32 to vector<32x128xf32>
    %257 = arith.maximumf %255, %256 : vector<32x128xf32>
    %c4_223 = arith.constant 4 : index
    %c0_224 = arith.constant 0 : index
    %c0_225 = arith.constant 0 : index
    %258 = vector.load %arg4[%c4_223, %c0_224, %c0_225] : memref<6x32x32xbf16, #tpu.memory_space<vmem>>, vector<1x32x32xbf16>
    %259 = vector.shape_cast %258 : vector<1x32x32xbf16> to vector<32x32xbf16>
    %260 = arith.truncf %257 : vector<32x128xf32> to vector<32x128xbf16>
    %cst_226 = arith.constant dense<0.000000e+00> : vector<32x128xf32>
    %261 = tpu.matmul %259, %260, %cst_226 {dimension_numbers = #tpu.dot_dimension_numbers<[1], [0], [0], [1], [0, 0, 1, 1], [], []>} : vector<32x32xbf16>, vector<32x128xbf16>, vector<32x128xf32> -> vector<32x128xf32>
    %262 = arith.addf %218, %261 : vector<32x128xf32>
    %c5_227 = arith.constant 5 : index
    %c0_228 = arith.constant 0 : index
    %c0_229 = arith.constant 0 : index
    %263 = vector.load %arg3[%c5_227, %c0_228, %c0_229] : memref<6x32x288xbf16, #tpu.memory_space<vmem>>, vector<1x32x288xbf16>
    %264 = vector.shape_cast %263 : vector<1x32x288xbf16> to vector<32x288xbf16>
    %c9_i32_230 = arith.constant 9 : i32
    %265 = tpu.dynamic_rotate %262 by %c9_i32_230 dim 1 : vector<32x128xf32>, i32 -> vector<32x128xf32>
    %c0_231 = arith.constant 0 : index
    %c0_232 = arith.constant 0 : index
    %c0_233 = arith.constant 0 : index
    %266 = vector.load %arg10[%c0_231, %c0_232, %c0_233] : memref<9x64x128xf32, #tpu.memory_space<vmem>>, vector<1x32x128xf32>
    %267 = vector.shape_cast %266 : vector<1x32x128xf32> to vector<32x128xf32>
    %268 = arith.mulf %265, %267 : vector<32x128xf32>
    %c8_i32_234 = arith.constant 8 : i32
    %269 = tpu.dynamic_rotate %262 by %c8_i32_234 dim 1 : vector<32x128xf32>, i32 -> vector<32x128xf32>
    %c1_235 = arith.constant 1 : index
    %c0_236 = arith.constant 0 : index
    %c0_237 = arith.constant 0 : index
    %270 = vector.load %arg10[%c1_235, %c0_236, %c0_237] : memref<9x64x128xf32, #tpu.memory_space<vmem>>, vector<1x32x128xf32>
    %271 = vector.shape_cast %270 : vector<1x32x128xf32> to vector<32x128xf32>
    %272 = arith.mulf %269, %271 : vector<32x128xf32>
    %c7_i32_238 = arith.constant 7 : i32
    %273 = tpu.dynamic_rotate %262 by %c7_i32_238 dim 1 : vector<32x128xf32>, i32 -> vector<32x128xf32>
    %c2_239 = arith.constant 2 : index
    %c0_240 = arith.constant 0 : index
    %c0_241 = arith.constant 0 : index
    %274 = vector.load %arg10[%c2_239, %c0_240, %c0_241] : memref<9x64x128xf32, #tpu.memory_space<vmem>>, vector<1x32x128xf32>
    %275 = vector.shape_cast %274 : vector<1x32x128xf32> to vector<32x128xf32>
    %276 = arith.mulf %273, %275 : vector<32x128xf32>
    %c1_i32_242 = arith.constant 1 : i32
    %277 = tpu.dynamic_rotate %262 by %c1_i32_242 dim 1 : vector<32x128xf32>, i32 -> vector<32x128xf32>
    %c3_243 = arith.constant 3 : index
    %c0_244 = arith.constant 0 : index
    %c0_245 = arith.constant 0 : index
    %278 = vector.load %arg10[%c3_243, %c0_244, %c0_245] : memref<9x64x128xf32, #tpu.memory_space<vmem>>, vector<1x32x128xf32>
    %279 = vector.shape_cast %278 : vector<1x32x128xf32> to vector<32x128xf32>
    %280 = arith.mulf %277, %279 : vector<32x128xf32>
    %c127_i32_246 = arith.constant 127 : i32
    %281 = tpu.dynamic_rotate %262 by %c127_i32_246 dim 1 : vector<32x128xf32>, i32 -> vector<32x128xf32>
    %c5_247 = arith.constant 5 : index
    %c0_248 = arith.constant 0 : index
    %c0_249 = arith.constant 0 : index
    %282 = vector.load %arg10[%c5_247, %c0_248, %c0_249] : memref<9x64x128xf32, #tpu.memory_space<vmem>>, vector<1x32x128xf32>
    %283 = vector.shape_cast %282 : vector<1x32x128xf32> to vector<32x128xf32>
    %284 = arith.mulf %281, %283 : vector<32x128xf32>
    %c121_i32_250 = arith.constant 121 : i32
    %285 = tpu.dynamic_rotate %262 by %c121_i32_250 dim 1 : vector<32x128xf32>, i32 -> vector<32x128xf32>
    %c6_251 = arith.constant 6 : index
    %c0_252 = arith.constant 0 : index
    %c0_253 = arith.constant 0 : index
    %286 = vector.load %arg10[%c6_251, %c0_252, %c0_253] : memref<9x64x128xf32, #tpu.memory_space<vmem>>, vector<1x32x128xf32>
    %287 = vector.shape_cast %286 : vector<1x32x128xf32> to vector<32x128xf32>
    %288 = arith.mulf %285, %287 : vector<32x128xf32>
    %c120_i32_254 = arith.constant 120 : i32
    %289 = tpu.dynamic_rotate %262 by %c120_i32_254 dim 1 : vector<32x128xf32>, i32 -> vector<32x128xf32>
    %c7_255 = arith.constant 7 : index
    %c0_256 = arith.constant 0 : index
    %c0_257 = arith.constant 0 : index
    %290 = vector.load %arg10[%c7_255, %c0_256, %c0_257] : memref<9x64x128xf32, #tpu.memory_space<vmem>>, vector<1x32x128xf32>
    %291 = vector.shape_cast %290 : vector<1x32x128xf32> to vector<32x128xf32>
    %292 = arith.mulf %289, %291 : vector<32x128xf32>
    %c119_i32_258 = arith.constant 119 : i32
    %293 = tpu.dynamic_rotate %262 by %c119_i32_258 dim 1 : vector<32x128xf32>, i32 -> vector<32x128xf32>
    %c8_259 = arith.constant 8 : index
    %c0_260 = arith.constant 0 : index
    %c0_261 = arith.constant 0 : index
    %294 = vector.load %arg10[%c8_259, %c0_260, %c0_261] : memref<9x64x128xf32, #tpu.memory_space<vmem>>, vector<1x32x128xf32>
    %295 = vector.shape_cast %294 : vector<1x32x128xf32> to vector<32x128xf32>
    %296 = arith.mulf %293, %295 : vector<32x128xf32>
    %297 = tpu.concatenate %268, %272, %276, %280, %262, %284, %288, %292, %296 in 0 : vector<32x128xf32>, vector<32x128xf32>, vector<32x128xf32>, vector<32x128xf32>, vector<32x128xf32>, vector<32x128xf32>, vector<32x128xf32>, vector<32x128xf32>, vector<32x128xf32> -> vector<288x128xf32>
    %298 = arith.truncf %297 : vector<288x128xf32> to vector<288x128xbf16>
    %cst_262 = arith.constant dense<0.000000e+00> : vector<32x128xf32>
    %299 = tpu.matmul %264, %298, %cst_262 {dimension_numbers = #tpu.dot_dimension_numbers<[1], [0], [0], [1], [0, 0, 1, 1], [], []>} : vector<32x288xbf16>, vector<288x128xbf16>, vector<32x128xf32> -> vector<32x128xf32>
    %cst_263 = arith.constant 0.000000e+00 : f32
    %300 = vector.broadcast %cst_263 : f32 to vector<32x128xf32>
    %301 = arith.maximumf %299, %300 : vector<32x128xf32>
    %c5_264 = arith.constant 5 : index
    %c0_265 = arith.constant 0 : index
    %c0_266 = arith.constant 0 : index
    %302 = vector.load %arg4[%c5_264, %c0_265, %c0_266] : memref<6x32x32xbf16, #tpu.memory_space<vmem>>, vector<1x32x32xbf16>
    %303 = vector.shape_cast %302 : vector<1x32x32xbf16> to vector<32x32xbf16>
    %304 = arith.truncf %301 : vector<32x128xf32> to vector<32x128xbf16>
    %cst_267 = arith.constant dense<0.000000e+00> : vector<32x128xf32>
    %305 = tpu.matmul %303, %304, %cst_267 {dimension_numbers = #tpu.dot_dimension_numbers<[1], [0], [0], [1], [0, 0, 1, 1], [], []>} : vector<32x32xbf16>, vector<32x128xbf16>, vector<32x128xf32> -> vector<32x128xf32>
    %306 = arith.addf %262, %305 : vector<32x128xf32>
    %cst_268 = arith.constant 0.00999999977 : f32
    %307 = vector.broadcast %cst_268 : f32 to vector<32x128xf32>
    %308 = arith.mulf %307, %306 : vector<32x128xf32>
    %309 = arith.maximumf %306, %308 : vector<32x128xf32>
    %c0_269 = arith.constant 0 : index
    %c0_270 = arith.constant 0 : index
    %310 = vector.load %arg5[%c0_269, %c0_270] : memref<64x288xbf16, #tpu.memory_space<vmem>>, vector<64x288xbf16>
    %c0_271 = arith.constant 0 : index
    %c0_272 = arith.constant 0 : index
    %311 = vector.load %arg6[%c0_271, %c0_272] : memref<64x1xf32, #tpu.memory_space<vmem>>, vector<64x1xf32>
    %c9_i32_273 = arith.constant 9 : i32
    %312 = tpu.dynamic_rotate %309 by %c9_i32_273 dim 1 : vector<32x128xf32>, i32 -> vector<32x128xf32>
    %c0_274 = arith.constant 0 : index
    %c0_275 = arith.constant 0 : index
    %c0_276 = arith.constant 0 : index
    %313 = vector.load %arg10[%c0_274, %c0_275, %c0_276] : memref<9x64x128xf32, #tpu.memory_space<vmem>>, vector<1x32x128xf32>
    %314 = vector.shape_cast %313 : vector<1x32x128xf32> to vector<32x128xf32>
    %315 = arith.mulf %312, %314 : vector<32x128xf32>
    %c8_i32_277 = arith.constant 8 : i32
    %316 = tpu.dynamic_rotate %309 by %c8_i32_277 dim 1 : vector<32x128xf32>, i32 -> vector<32x128xf32>
    %c1_278 = arith.constant 1 : index
    %c0_279 = arith.constant 0 : index
    %c0_280 = arith.constant 0 : index
    %317 = vector.load %arg10[%c1_278, %c0_279, %c0_280] : memref<9x64x128xf32, #tpu.memory_space<vmem>>, vector<1x32x128xf32>
    %318 = vector.shape_cast %317 : vector<1x32x128xf32> to vector<32x128xf32>
    %319 = arith.mulf %316, %318 : vector<32x128xf32>
    %c7_i32_281 = arith.constant 7 : i32
    %320 = tpu.dynamic_rotate %309 by %c7_i32_281 dim 1 : vector<32x128xf32>, i32 -> vector<32x128xf32>
    %c2_282 = arith.constant 2 : index
    %c0_283 = arith.constant 0 : index
    %c0_284 = arith.constant 0 : index
    %321 = vector.load %arg10[%c2_282, %c0_283, %c0_284] : memref<9x64x128xf32, #tpu.memory_space<vmem>>, vector<1x32x128xf32>
    %322 = vector.shape_cast %321 : vector<1x32x128xf32> to vector<32x128xf32>
    %323 = arith.mulf %320, %322 : vector<32x128xf32>
    %c1_i32_285 = arith.constant 1 : i32
    %324 = tpu.dynamic_rotate %309 by %c1_i32_285 dim 1 : vector<32x128xf32>, i32 -> vector<32x128xf32>
    %c3_286 = arith.constant 3 : index
    %c0_287 = arith.constant 0 : index
    %c0_288 = arith.constant 0 : index
    %325 = vector.load %arg10[%c3_286, %c0_287, %c0_288] : memref<9x64x128xf32, #tpu.memory_space<vmem>>, vector<1x32x128xf32>
    %326 = vector.shape_cast %325 : vector<1x32x128xf32> to vector<32x128xf32>
    %327 = arith.mulf %324, %326 : vector<32x128xf32>
    %c127_i32_289 = arith.constant 127 : i32
    %328 = tpu.dynamic_rotate %309 by %c127_i32_289 dim 1 : vector<32x128xf32>, i32 -> vector<32x128xf32>
    %c5_290 = arith.constant 5 : index
    %c0_291 = arith.constant 0 : index
    %c0_292 = arith.constant 0 : index
    %329 = vector.load %arg10[%c5_290, %c0_291, %c0_292] : memref<9x64x128xf32, #tpu.memory_space<vmem>>, vector<1x32x128xf32>
    %330 = vector.shape_cast %329 : vector<1x32x128xf32> to vector<32x128xf32>
    %331 = arith.mulf %328, %330 : vector<32x128xf32>
    %c121_i32_293 = arith.constant 121 : i32
    %332 = tpu.dynamic_rotate %309 by %c121_i32_293 dim 1 : vector<32x128xf32>, i32 -> vector<32x128xf32>
    %c6_294 = arith.constant 6 : index
    %c0_295 = arith.constant 0 : index
    %c0_296 = arith.constant 0 : index
    %333 = vector.load %arg10[%c6_294, %c0_295, %c0_296] : memref<9x64x128xf32, #tpu.memory_space<vmem>>, vector<1x32x128xf32>
    %334 = vector.shape_cast %333 : vector<1x32x128xf32> to vector<32x128xf32>
    %335 = arith.mulf %332, %334 : vector<32x128xf32>
    %c120_i32_297 = arith.constant 120 : i32
    %336 = tpu.dynamic_rotate %309 by %c120_i32_297 dim 1 : vector<32x128xf32>, i32 -> vector<32x128xf32>
    %c7_298 = arith.constant 7 : index
    %c0_299 = arith.constant 0 : index
    %c0_300 = arith.constant 0 : index
    %337 = vector.load %arg10[%c7_298, %c0_299, %c0_300] : memref<9x64x128xf32, #tpu.memory_space<vmem>>, vector<1x32x128xf32>
    %338 = vector.shape_cast %337 : vector<1x32x128xf32> to vector<32x128xf32>
    %339 = arith.mulf %336, %338 : vector<32x128xf32>
    %c119_i32_301 = arith.constant 119 : i32
    %340 = tpu.dynamic_rotate %309 by %c119_i32_301 dim 1 : vector<32x128xf32>, i32 -> vector<32x128xf32>
    %c8_302 = arith.constant 8 : index
    %c0_303 = arith.constant 0 : index
    %c0_304 = arith.constant 0 : index
    %341 = vector.load %arg10[%c8_302, %c0_303, %c0_304] : memref<9x64x128xf32, #tpu.memory_space<vmem>>, vector<1x32x128xf32>
    %342 = vector.shape_cast %341 : vector<1x32x128xf32> to vector<32x128xf32>
    %343 = arith.mulf %340, %342 : vector<32x128xf32>
    %344 = tpu.concatenate %315, %319, %323, %327, %309, %331, %335, %339, %343 in 0 : vector<32x128xf32>, vector<32x128xf32>, vector<32x128xf32>, vector<32x128xf32>, vector<32x128xf32>, vector<32x128xf32>, vector<32x128xf32>, vector<32x128xf32>, vector<32x128xf32> -> vector<288x128xf32>
    %345 = arith.truncf %344 : vector<288x128xf32> to vector<288x128xbf16>
    %cst_305 = arith.constant dense<0.000000e+00> : vector<64x128xf32>
    %346 = tpu.matmul %310, %345, %cst_305 {dimension_numbers = #tpu.dot_dimension_numbers<[1], [0], [0], [1], [0, 0, 1, 1], [], []>} : vector<64x288xbf16>, vector<288x128xbf16>, vector<64x128xf32> -> vector<64x128xf32>
    %347 = vector.broadcast %311 : vector<64x1xf32> to vector<64x128xf32>
    %348 = arith.addf %346, %347 : vector<64x128xf32>
    %cst_306 = arith.constant 0.00999999977 : f32
    %349 = vector.broadcast %cst_306 : f32 to vector<64x128xf32>
    %350 = arith.mulf %349, %348 : vector<64x128xf32>
    %351 = arith.maximumf %348, %350 : vector<64x128xf32>
    %cst_307 = arith.constant 0.000000e+00 : f32
    %352 = vector.broadcast %cst_307 : f32 to vector<16x512xf32>
    %353 = vector.extract_strided_slice %351 {offsets = [0, 0], sizes = [16, 128], strides = [1, 1]} : vector<64x128xf32> to vector<16x128xf32>
    %c0_308 = arith.constant 0 : index
    %c0_309 = arith.constant 0 : index
    %c0_310 = arith.constant 0 : index
    %354 = vector.load %arg7[%c0_308, %c0_309, %c0_310] : memref<4x128x512xf32, #tpu.memory_space<vmem>>, vector<1x128x512xf32>
    %355 = vector.shape_cast %354 : vector<1x128x512xf32> to vector<128x512xf32>
    %cst_311 = arith.constant dense<0.000000e+00> : vector<16x512xf32>
    %356 = tpu.matmul %353, %355, %cst_311 {dimension_numbers = #tpu.dot_dimension_numbers<[1], [0], [0], [1], [0, 0, 1, 1], [], []>} : vector<16x128xf32>, vector<128x512xf32>, vector<16x512xf32> -> vector<16x512xf32>
    %357 = arith.addf %352, %356 : vector<16x512xf32>
    %358 = vector.extract_strided_slice %351 {offsets = [16, 0], sizes = [16, 128], strides = [1, 1]} : vector<64x128xf32> to vector<16x128xf32>
    %c1_312 = arith.constant 1 : index
    %c0_313 = arith.constant 0 : index
    %c0_314 = arith.constant 0 : index
    %359 = vector.load %arg7[%c1_312, %c0_313, %c0_314] : memref<4x128x512xf32, #tpu.memory_space<vmem>>, vector<1x128x512xf32>
    %360 = vector.shape_cast %359 : vector<1x128x512xf32> to vector<128x512xf32>
    %cst_315 = arith.constant dense<0.000000e+00> : vector<16x512xf32>
    %361 = tpu.matmul %358, %360, %cst_315 {dimension_numbers = #tpu.dot_dimension_numbers<[1], [0], [0], [1], [0, 0, 1, 1], [], []>} : vector<16x128xf32>, vector<128x512xf32>, vector<16x512xf32> -> vector<16x512xf32>
    %362 = arith.addf %357, %361 : vector<16x512xf32>
    %363 = vector.extract_strided_slice %351 {offsets = [32, 0], sizes = [16, 128], strides = [1, 1]} : vector<64x128xf32> to vector<16x128xf32>
    %c2_316 = arith.constant 2 : index
    %c0_317 = arith.constant 0 : index
    %c0_318 = arith.constant 0 : index
    %364 = vector.load %arg7[%c2_316, %c0_317, %c0_318] : memref<4x128x512xf32, #tpu.memory_space<vmem>>, vector<1x128x512xf32>
    %365 = vector.shape_cast %364 : vector<1x128x512xf32> to vector<128x512xf32>
    %cst_319 = arith.constant dense<0.000000e+00> : vector<16x512xf32>
    %366 = tpu.matmul %363, %365, %cst_319 {dimension_numbers = #tpu.dot_dimension_numbers<[1], [0], [0], [1], [0, 0, 1, 1], [], []>} : vector<16x128xf32>, vector<128x512xf32>, vector<16x512xf32> -> vector<16x512xf32>
    %367 = arith.addf %362, %366 : vector<16x512xf32>
    %368 = vector.extract_strided_slice %351 {offsets = [48, 0], sizes = [16, 128], strides = [1, 1]} : vector<64x128xf32> to vector<16x128xf32>
    %c3_320 = arith.constant 3 : index
    %c0_321 = arith.constant 0 : index
    %c0_322 = arith.constant 0 : index
    %369 = vector.load %arg7[%c3_320, %c0_321, %c0_322] : memref<4x128x512xf32, #tpu.memory_space<vmem>>, vector<1x128x512xf32>
    %370 = vector.shape_cast %369 : vector<1x128x512xf32> to vector<128x512xf32>
    %cst_323 = arith.constant dense<0.000000e+00> : vector<16x512xf32>
    %371 = tpu.matmul %368, %370, %cst_323 {dimension_numbers = #tpu.dot_dimension_numbers<[1], [0], [0], [1], [0, 0, 1, 1], [], []>} : vector<16x128xf32>, vector<128x512xf32>, vector<16x512xf32> -> vector<16x512xf32>
    %372 = arith.addf %367, %371 : vector<16x512xf32>
    %c0_324 = arith.constant 0 : index
    %c0_325 = arith.constant 0 : index
    %373 = vector.load %arg8[%c0_324, %c0_325] : memref<12x144xbf16, #tpu.memory_space<vmem>>, vector<12x144xbf16>
    %c0_326 = arith.constant 0 : index
    %c0_327 = arith.constant 0 : index
    %374 = vector.load %arg9[%c0_326, %c0_327] : memref<12x1xf32, #tpu.memory_space<vmem>>, vector<12x1xf32>
    %c17_i32 = arith.constant 17 : i32
    %375 = tpu.dynamic_rotate %372 by %c17_i32 dim 1 : vector<16x512xf32>, i32 -> vector<16x512xf32>
    %c0_328 = arith.constant 0 : index
    %c0_329 = arith.constant 0 : index
    %c0_330 = arith.constant 0 : index
    %376 = vector.load %arg11[%c0_328, %c0_329, %c0_330] : memref<9x16x512xf32, #tpu.memory_space<vmem>>, vector<1x16x512xf32>
    %377 = vector.shape_cast %376 : vector<1x16x512xf32> to vector<16x512xf32>
    %378 = arith.mulf %375, %377 : vector<16x512xf32>
    %c16_i32 = arith.constant 16 : i32
    %379 = tpu.dynamic_rotate %372 by %c16_i32 dim 1 : vector<16x512xf32>, i32 -> vector<16x512xf32>
    %c1_331 = arith.constant 1 : index
    %c0_332 = arith.constant 0 : index
    %c0_333 = arith.constant 0 : index
    %380 = vector.load %arg11[%c1_331, %c0_332, %c0_333] : memref<9x16x512xf32, #tpu.memory_space<vmem>>, vector<1x16x512xf32>
    %381 = vector.shape_cast %380 : vector<1x16x512xf32> to vector<16x512xf32>
    %382 = arith.mulf %379, %381 : vector<16x512xf32>
    %c15_i32 = arith.constant 15 : i32
    %383 = tpu.dynamic_rotate %372 by %c15_i32 dim 1 : vector<16x512xf32>, i32 -> vector<16x512xf32>
    %c2_334 = arith.constant 2 : index
    %c0_335 = arith.constant 0 : index
    %c0_336 = arith.constant 0 : index
    %384 = vector.load %arg11[%c2_334, %c0_335, %c0_336] : memref<9x16x512xf32, #tpu.memory_space<vmem>>, vector<1x16x512xf32>
    %385 = vector.shape_cast %384 : vector<1x16x512xf32> to vector<16x512xf32>
    %386 = arith.mulf %383, %385 : vector<16x512xf32>
    %c1_i32_337 = arith.constant 1 : i32
    %387 = tpu.dynamic_rotate %372 by %c1_i32_337 dim 1 : vector<16x512xf32>, i32 -> vector<16x512xf32>
    %c3_338 = arith.constant 3 : index
    %c0_339 = arith.constant 0 : index
    %c0_340 = arith.constant 0 : index
    %388 = vector.load %arg11[%c3_338, %c0_339, %c0_340] : memref<9x16x512xf32, #tpu.memory_space<vmem>>, vector<1x16x512xf32>
    %389 = vector.shape_cast %388 : vector<1x16x512xf32> to vector<16x512xf32>
    %390 = arith.mulf %387, %389 : vector<16x512xf32>
    %c511_i32 = arith.constant 511 : i32
    %391 = tpu.dynamic_rotate %372 by %c511_i32 dim 1 : vector<16x512xf32>, i32 -> vector<16x512xf32>
    %c5_341 = arith.constant 5 : index
    %c0_342 = arith.constant 0 : index
    %c0_343 = arith.constant 0 : index
    %392 = vector.load %arg11[%c5_341, %c0_342, %c0_343] : memref<9x16x512xf32, #tpu.memory_space<vmem>>, vector<1x16x512xf32>
    %393 = vector.shape_cast %392 : vector<1x16x512xf32> to vector<16x512xf32>
    %394 = arith.mulf %391, %393 : vector<16x512xf32>
    %c497_i32 = arith.constant 497 : i32
    %395 = tpu.dynamic_rotate %372 by %c497_i32 dim 1 : vector<16x512xf32>, i32 -> vector<16x512xf32>
    %c6_344 = arith.constant 6 : index
    %c0_345 = arith.constant 0 : index
    %c0_346 = arith.constant 0 : index
    %396 = vector.load %arg11[%c6_344, %c0_345, %c0_346] : memref<9x16x512xf32, #tpu.memory_space<vmem>>, vector<1x16x512xf32>
    %397 = vector.shape_cast %396 : vector<1x16x512xf32> to vector<16x512xf32>
    %398 = arith.mulf %395, %397 : vector<16x512xf32>
    %c496_i32 = arith.constant 496 : i32
    %399 = tpu.dynamic_rotate %372 by %c496_i32 dim 1 : vector<16x512xf32>, i32 -> vector<16x512xf32>
    %c7_347 = arith.constant 7 : index
    %c0_348 = arith.constant 0 : index
    %c0_349 = arith.constant 0 : index
    %400 = vector.load %arg11[%c7_347, %c0_348, %c0_349] : memref<9x16x512xf32, #tpu.memory_space<vmem>>, vector<1x16x512xf32>
    %401 = vector.shape_cast %400 : vector<1x16x512xf32> to vector<16x512xf32>
    %402 = arith.mulf %399, %401 : vector<16x512xf32>
    %c495_i32 = arith.constant 495 : i32
    %403 = tpu.dynamic_rotate %372 by %c495_i32 dim 1 : vector<16x512xf32>, i32 -> vector<16x512xf32>
    %c8_350 = arith.constant 8 : index
    %c0_351 = arith.constant 0 : index
    %c0_352 = arith.constant 0 : index
    %404 = vector.load %arg11[%c8_350, %c0_351, %c0_352] : memref<9x16x512xf32, #tpu.memory_space<vmem>>, vector<1x16x512xf32>
    %405 = vector.shape_cast %404 : vector<1x16x512xf32> to vector<16x512xf32>
    %406 = arith.mulf %403, %405 : vector<16x512xf32>
    %407 = tpu.concatenate %378, %382, %386, %390, %372, %394, %398, %402, %406 in 0 : vector<16x512xf32>, vector<16x512xf32>, vector<16x512xf32>, vector<16x512xf32>, vector<16x512xf32>, vector<16x512xf32>, vector<16x512xf32>, vector<16x512xf32>, vector<16x512xf32> -> vector<144x512xf32>
    %408 = arith.truncf %407 : vector<144x512xf32> to vector<144x512xbf16>
    %cst_353 = arith.constant dense<0.000000e+00> : vector<12x512xf32>
    %409 = tpu.matmul %373, %408, %cst_353 {dimension_numbers = #tpu.dot_dimension_numbers<[1], [0], [0], [1], [0, 0, 1, 1], [], []>} : vector<12x144xbf16>, vector<144x512xbf16>, vector<12x512xf32> -> vector<12x512xf32>
    %410 = vector.broadcast %374 : vector<12x1xf32> to vector<12x512xf32>
    %411 = arith.addf %409, %410 : vector<12x512xf32>
    %412 = math.tanh %411 : vector<12x512xf32>
    %c0_354 = arith.constant 0 : index
    %c0_355 = arith.constant 0 : index
    %413 = vector.load %arg12[%c0_354, %c0_355] : memref<12x512xf32, #tpu.memory_space<vmem>>, vector<12x512xf32>
    tpu.vector_store %arg12[%c0_354, %c0_355], %412 {strides = array<i32>} : memref<12x512xf32, #tpu.memory_space<vmem>>, vector<12x512xf32>,
    return
  }
}

</mosaic_0001>

<llo_original>
// kernel: tpu_custom_call.1
$region0: #{tpu_custom_call.1}
  #allocation0 [shape = 'u32[]', space=smem, size = 0x4, offset = 0x4, fixed_abs, tag = 'smem constant byte address 0x4 - core index']
  #allocation1 [shape = 'u32[72,128]{1,0:T(1,128)}', space=vmem, size = 0x9000, scoped, tag = 'internal scratch']
  %s0 = inlined_call_operand.hbm [shape: f32[8,128], index: 0, kind: input, shape index: {}]
  %s1 = inlined_call_operand.hbm [shape: f32[8,128], index: 1, kind: output, shape index: {}]
  %s2 = sld [smem:[#allocation0]]
  $region18: #{tpu_custom_call.1} parent=0
    _
  %s4 = ssub.s32 1, %s2
  %s5 = scalar_select 0, %s4, %s2
  $region1: #{tpu_custom_call.1} parent=0
    #allocation2 [shape = 'u8[4096]{0}', space=vmem, size = 0x1000, scoped, tag = 'input window, operand 0, single buffered']
    #allocation3 [shape = 's32[1]{0}', space=sflag, size = 0x4, scoped, tag = 'scoped memory for tpu_custom_call.1']
    #allocation4 [shape = 's32[1]{0}', space=sflag, size = 0x4, scoped, tag = 'scoped memory for tpu_custom_call.1']
    #allocation5 [shape = 'u8[4096]{0}', space=vmem, size = 0x1000, scoped, tag = 'output window, operand 0, single buffered']
    %6 = vsyncpa [#allocation3], 0
    %7 = vsyncpa [#allocation4], 0
    // Predicated region
    $region2: #{tpu_custom_call.1} parent=1 // pred_check
      _
    $region3: #{tpu_custom_call.1} parent=1 // pred_check_branch
      %9 = sbr.rel (0) target = $region5
    $region4: #{tpu_custom_call.1} parent=1 // pred_region
      %11 = vsyncadd [#allocation3], 0
      %s13 = sshll.u32 %s0, 4
      %s14 = int_to_ptr.hbm [resolvable:$true] %s13
      %s15 = sshll.u32 [#allocation2], 4
      %s16 = int_to_ptr.vmem [resolvable:$true] %s15
      %18 = dma.hbm_to_vmem [thread:$0]  %s14, 128, %s16, [#allocation3]
    $region5: #{tpu_custom_call.1} parent=1 // pred_fallthru
      _
    // Predicated region
    $region6: #{tpu_custom_call.1} parent=1 // pred_check
      _
    $region7: #{tpu_custom_call.1} parent=1 // pred_check_branch
      %20 = sbr.rel (0) target = $region9
    $region8: #{tpu_custom_call.1} parent=1 // pred_region
      %22 = dma.done [#allocation3], 128
    $region9: #{tpu_custom_call.1} parent=1 // pred_fallthru
      _
    %v23 = vld [vmem:[#allocation2] sm:$0xff]
    %24 = vrot.lane.b32.xlu0 %v23, 1
    %v25 = vpop.permute.xlu0 %24
    %26 = vst [vmem:[#allocation5] sm:$0xff] %v25
    // Predicated region
    $region10: #{tpu_custom_call.1} parent=1 // pred_check
      _
    $region11: #{tpu_custom_call.1} parent=1 // pred_check_branch
      %28 = sbr.rel (0) target = $region13
    $region12: #{tpu_custom_call.1} parent=1 // pred_region
      %30 = vsyncadd [#allocation4], 0
      %s32 = sshll.u32 [#allocation5], 4
      %s33 = int_to_ptr.vmem [resolvable:$true] %s32
      %s34 = sshll.u32 %s1, 4
      %s35 = int_to_ptr.hbm [resolvable:$true] %s34
      %37 = dma.vmem_to_hbm [thread:$0]  %s33, 128, %s35, [#allocation4]
    $region13: #{tpu_custom_call.1} parent=1 // pred_fallthru
      _
    // Predicated region
    $region14: #{tpu_custom_call.1} parent=1 // pred_check
      _
    $region15: #{tpu_custom_call.1} parent=1 // pred_check_branch
      %39 = sbr.rel (0) target = $region17
    $region16: #{tpu_custom_call.1} parent=1 // pred_region
      %41 = dma.done [#allocation4], 128
    $region17: #{tpu_custom_call.1} parent=1 // pred_fallthru
      _
    %42 = vsyncpa [#allocation3], 1
    %43 = vsyncpa [#allocation4], 1

// kernel: vqvae_forward.2
$region0: #{vqvae_forward.2}
  #allocation0 [shape = 'u32[]', space=smem, size = 0x4, offset = 0x4, fixed_abs, tag = 'smem constant byte address 0x4 - core index']
  #allocation1 [shape = 'u32[72,128]{1,0:T(1,128)}', space=vmem, size = 0x9000, scoped, tag = 'internal scratch']
  %s0 = inlined_call_operand.vmem [shape: f32[16,512], index: 0, kind: input, shape index: {}]
  %s1 = inlined_call_operand.vmem [shape: bf16[16,144], index: 1, kind: input, shape index: {}]
  %s2 = inlined_call_operand.vmem [shape: f32[16,1], index: 2, kind: input, shape index: {}]
  %s3 = inlined_call_operand.vmem [shape: f32[4,512,128], index: 3, kind: input, shape index: {}]
  %s4 = inlined_call_operand.vmem [shape: bf16[32,576], index: 4, kind: input, shape index: {}]
  %s5 = inlined_call_operand.vmem [shape: f32[32,1], index: 5, kind: input, shape index: {}]
  %s6 = inlined_call_operand.vmem [shape: bf16[32,288], index: 6, kind: input, shape index: {}]
  %s7 = inlined_call_operand.vmem [shape: f32[32,1], index: 7, kind: input, shape index: {}]
  %s8 = inlined_call_operand.vmem [shape: bf16[6,32,288], index: 8, kind: input, shape index: {}]
  %s9 = inlined_call_operand.vmem [shape: bf16[6,32,32], index: 9, kind: input, shape index: {}]
  %s10 = inlined_call_operand.vmem [shape: bf16[8,32], index: 10, kind: input, shape index: {}]
  %s11 = inlined_call_operand.vmem [shape: f32[8,1], index: 11, kind: input, shape index: {}]
  %s12 = inlined_call_operand.vmem [shape: f32[16,8], index: 12, kind: input, shape index: {}]
  %s13 = inlined_call_operand.vmem [shape: f32[8,16], index: 13, kind: input, shape index: {}]
  %s14 = inlined_call_operand.vmem [shape: f32[16,1], index: 14, kind: input, shape index: {}]
  %s15 = inlined_call_operand.vmem [shape: f32[9,64,128], index: 15, kind: input, shape index: {}]
  %s16 = inlined_call_operand.vmem [shape: f32[9,16,512], index: 16, kind: input, shape index: {}]
  %s17 = inlined_call_operand.vmem [shape: f32[8,128], index: 17, kind: output, shape index: {0}]
  %s18 = inlined_call_operand.vmem [shape: f32[8,128], index: 18, kind: output, shape index: {1}]
  %s19 = inlined_call_operand.hbm [shape: f32[1,1], index: 19, kind: output, shape index: {2}]
  %20 = xla_tuple %s17, %s18, %s19
  %s21 = sld [smem:[#allocation0]]
  $region94: #{vqvae_forward.2} parent=0
    _
  %s23 = ssub.s32 1, %s21
  %s24 = scalar_select 0, %s23, %s21
  $region1: #{vqvae_forward.2} parent=0
    #allocation2 [shape = 'u8[512]{0}', space=smem, size = 0x200, scoped, tag = 'output window, operand 2, single buffered']
    #allocation3 [shape = 's32[1]{0}', space=sflag, size = 0x4, scoped, tag = 'scoped memory for vqvae_forward.2']
    %25 = vsyncpa [#allocation3], 0
    // Predicated region
    $region2: #{vqvae_forward.2} parent=1 // pred_check
      _
    $region3: #{vqvae_forward.2} parent=1 // pred_check_branch
      %27 = sbr.rel (0) target = $region5
    $region4: #{vqvae_forward.2} parent=1 // pred_region
      _
    $region5: #{vqvae_forward.2} parent=1 // pred_fallthru
      _
    // Predicated region
    $region6: #{vqvae_forward.2} parent=1 // pred_check
      _
    $region7: #{vqvae_forward.2} parent=1 // pred_check_branch
      %29 = sbr.rel (0) target = $region9
    $region8: #{vqvae_forward.2} parent=1 // pred_region
      _
    $region9: #{vqvae_forward.2} parent=1 // pred_fallthru
      _
    // Predicated region
    $region10: #{vqvae_forward.2} parent=1 // pred_check
      _
    $region11: #{vqvae_forward.2} parent=1 // pred_check_branch
      %31 = sbr.rel (0) target = $region13
    $region12: #{vqvae_forward.2} parent=1 // pred_region
      _
    $region13: #{vqvae_forward.2} parent=1 // pred_fallthru
      _
    // Predicated region
    $region14: #{vqvae_forward.2} parent=1 // pred_check
      _
    $region15: #{vqvae_forward.2} parent=1 // pred_check_branch
      %33 = sbr.rel (0) target = $region17
    $region16: #{vqvae_forward.2} parent=1 // pred_region
      _
    $region17: #{vqvae_forward.2} parent=1 // pred_fallthru
      _
    // Predicated region
    $region18: #{vqvae_forward.2} parent=1 // pred_check
      _
    $region19: #{vqvae_forward.2} parent=1 // pred_check_branch
      %35 = sbr.rel (0) target = $region21
    $region20: #{vqvae_forward.2} parent=1 // pred_region
      _
    $region21: #{vqvae_forward.2} parent=1 // pred_fallthru
      _
    // Predicated region
    $region22: #{vqvae_forward.2} parent=1 // pred_check
      _
    $region23: #{vqvae_forward.2} parent=1 // pred_check_branch
      %37 = sbr.rel (0) target = $region25
    $region24: #{vqvae_forward.2} parent=1 // pred_region
      _
    $region25: #{vqvae_forward.2} parent=1 // pred_fallthru
      _
    // Predicated region
    $region26: #{vqvae_forward.2} parent=1 // pred_check
      _
    $region27: #{vqvae_forward.2} parent=1 // pred_check_branch
      %39 = sbr.rel (0) target = $region29
    $region28: #{vqvae_forward.2} parent=1 // pred_region
      _
    $region29: #{vqvae_forward.2} parent=1 // pred_fallthru
      _
    // Predicated region
    $region30: #{vqvae_forward.2} parent=1 // pred_check
      _
    $region31: #{vqvae_forward.2} parent=1 // pred_check_branch
      %41 = sbr.rel (0) target = $region33
    $region32: #{vqvae_forward.2} parent=1 // pred_region
      _
    $region33: #{vqvae_forward.2} parent=1 // pred_fallthru
      _
    // Predicated region
    $region34: #{vqvae_forward.2} parent=1 // pred_check
      _
    $region35: #{vqvae_forward.2} parent=1 // pred_check_branch
      %43 = sbr.rel (0) target = $region37
    $region36: #{vqvae_forward.2} parent=1 // pred_region
      _
    $region37: #{vqvae_forward.2} parent=1 // pred_fallthru
      _
    // Predicated region
    $region38: #{vqvae_forward.2} parent=1 // pred_check
      _
    $region39: #{vqvae_forward.2} parent=1 // pred_check_branch
      %45 = sbr.rel (0) target = $region41
    $region40: #{vqvae_forward.2} parent=1 // pred_region
      _
    $region41: #{vqvae_forward.2} parent=1 // pred_fallthru
      _
    // Predicated region
    $region42: #{vqvae_forward.2} parent=1 // pred_check
      _
    $region43: #{vqvae_forward.2} parent=1 // pred_check_branch
      %47 = sbr.rel (0) target = $region45
    $region44: #{vqvae_forward.2} parent=1 // pred_region
      _
    $region45: #{vqvae_forward.2} parent=1 // pred_fallthru
      _
    // Predicated region
    $region46: #{vqvae_forward.2} parent=1 // pred_check
      _
    $region47: #{vqvae_forward.2} parent=1 // pred_check_branch
      %49 = sbr.rel (0) target = $region49
    $region48: #{vqvae_forward.2} parent=1 // pred_region
      _
    $region49: #{vqvae_forward.2} parent=1 // pred_fallthru
      _
    // Predicated region
    $region50: #{vqvae_forward.2} parent=1 // pred_check
      _
    $region51: #{vqvae_forward.2} parent=1 // pred_check_branch
      %51 = sbr.rel (0) target = $region53
    $region52: #{vqvae_forward.2} parent=1 // pred_region
      _
    $region53: #{vqvae_forward.2} parent=1 // pred_fallthru
      _
    // Predicated region
    $region54: #{vqvae_forward.2} parent=1 // pred_check
      _
    $region55: #{vqvae_forward.2} parent=1 // pred_check_branch
      %53 = sbr.rel (0) target = $region57
    $region56: #{vqvae_forward.2} parent=1 // pred_region
      _
    $region57: #{vqvae_forward.2} parent=1 // pred_fallthru
      _
    // Predicated region
    $region58: #{vqvae_forward.2} parent=1 // pred_check
      _
    $region59: #{vqvae_forward.2} parent=1 // pred_check_branch
      %55 = sbr.rel (0) target = $region61
    $region60: #{vqvae_forward.2} parent=1 // pred_region
      _
    $region61: #{vqvae_forward.2} parent=1 // pred_fallthru
      _
    // Predicated region
    $region62: #{vqvae_forward.2} parent=1 // pred_check
      _
    $region63: #{vqvae_forward.2} parent=1 // pred_check_branch
      %57 = sbr.rel (0) target = $region65
    $region64: #{vqvae_forward.2} parent=1 // pred_region
      _
    $region65: #{vqvae_forward.2} parent=1 // pred_fallthru
      _
    // Predicated region
    $region66: #{vqvae_forward.2} parent=1 // pred_check
      _
    $region67: #{vqvae_forward.2} parent=1 // pred_check_branch
      %59 = sbr.rel (0) target = $region69
    $region68: #{vqvae_forward.2} parent=1 // pred_region
      _
    $region69: #{vqvae_forward.2} parent=1 // pred_fallthru
      _
    %v61 = vld [vmem:[%s0] sm:$0xff]
    %v62 = vld [vmem:[%s0 + $0x8] sm:$0xff]
    %v63 = vld [vmem:[%s0 + $0x10] sm:$0xff]
    %v64 = vld [vmem:[%s0 + $0x18] sm:$0xff]
    %v65 = vld [vmem:[%s0 + $0x20] sm:$0xff]
    %v66 = vld [vmem:[%s0 + $0x28] sm:$0xff]
    %v67 = vld [vmem:[%s0 + $0x30] sm:$0xff]
    %v68 = vld [vmem:[%s0 + $0x38] sm:$0xff]
    %v69 = vld [vmem:[%s1] sm:$0xff]
    %v70 = vld [vmem:[%s1 + $0x8] sm:$0xff]
    %v71 = vld [vmem:[%s2] sm:$0xff]
    %v72 = vld [vmem:[%s2 + $0x8] sm:$0xff]
    %73 = vrot.lane.b32.xlu0 %v61, 17
    %v74 = vpop.permute.xlu0 %73
    %75 = vrot.lane.b32.xlu0 %v65, 17
    %v76 = vpop.permute.xlu0 %75
    %77 = vrot.lane.b32.xlu0 %v62, 17
    %v78 = vpop.permute.xlu0 %77
    %79 = vrot.lane.b32.xlu0 %v66, 17
    %v80 = vpop.permute.xlu0 %79
    %81 = vrot.lane.b32.xlu0 %v63, 17
    %v82 = vpop.permute.xlu0 %81
    %83 = vrot.lane.b32.xlu0 %v67, 17
    %v84 = vpop.permute.xlu0 %83
    %85 = vrot.lane.b32.xlu0 %v64, 17
    %v86 = vpop.permute.xlu0 %85
    %87 = vrot.lane.b32.xlu0 %v68, 17
    %v88 = vpop.permute.xlu0 %87
    %v89 = vlaneseq
    %v90 = vand.u32 %v89, 127
    %vm91 = vcmp.lt.s32.totalorder %v90, 17
    %v92 = vsel %vm91, %v82, %v86
    %v93 = vsel %vm91, %v84, %v88
    %v94 = vsel %vm91, %v78, %v82
    %v95 = vsel %vm91, %v80, %v84
    %v96 = vsel %vm91, %v74, %v78
    %v97 = vsel %vm91, %v76, %v80
    %v98 = vsel %vm91, %v86, %v74
    %v99 = vsel %vm91, %v88, %v76
    %v100 = vld [vmem:[%s16] sm:$0xff]
    %v101 = vld [vmem:[%s16 + $0x8] sm:$0xff]
    %v102 = vld [vmem:[%s16 + $0x10] sm:$0xff]
    %v103 = vld [vmem:[%s16 + $0x18] sm:$0xff]
    %v104 = vld [vmem:[%s16 + $0x20] sm:$0xff]
    %v105 = vld [vmem:[%s16 + $0x28] sm:$0xff]
    %v106 = vld [vmem:[%s16 + $0x30] sm:$0xff]
    %v107 = vld [vmem:[%s16 + $0x38] sm:$0xff]
    %v108 = vmul.f32 %v98, %v100
    %v109 = vmul.f32 %v96, %v101
    %v110 = vmul.f32 %v94, %v102
    %v111 = vmul.f32 %v92, %v103
    %v112 = vmul.f32 %v99, %v104
    %v113 = vmul.f32 %v97, %v105
    %v114 = vmul.f32 %v95, %v106
    %v115 = vmul.f32 %v93, %v107
    %116 = vrot.lane.b32.xlu0 %v61, 16
    %v117 = vpop.permute.xlu0 %116
    %118 = vrot.lane.b32.xlu0 %v65, 16
    %v119 = vpop.permute.xlu0 %118
    %120 = vrot.lane.b32.xlu0 %v62, 16
    %v121 = vpop.permute.xlu0 %120
    %122 = vrot.lane.b32.xlu0 %v66, 16
    %v123 = vpop.permute.xlu0 %122
    %124 = vrot.lane.b32.xlu0 %v63, 16
    %v125 = vpop.permute.xlu0 %124
    %126 = vrot.lane.b32.xlu0 %v67, 16
    %v127 = vpop.permute.xlu0 %126
    %128 = vrot.lane.b32.xlu0 %v64, 16
    %v129 = vpop.permute.xlu0 %128
    %130 = vrot.lane.b32.xlu0 %v68, 16
    %v131 = vpop.permute.xlu0 %130
    %vm132 = vcmp.lt.s32.totalorder %v90, 16
    %v133 = vsel %vm132, %v125, %v129
    %v134 = vsel %vm132, %v127, %v131
    %v135 = vsel %vm132, %v121, %v125
    %v136 = vsel %vm132, %v123, %v127
    %v137 = vsel %vm132, %v117, %v121
    %v138 = vsel %vm132, %v119, %v123
    %v139 = vsel %vm132, %v129, %v117
    %v140 = vsel %vm132, %v131, %v119
    %s141 = scalar_lea.vmem %s16, 64
    %v142 = vld [vmem:[%s141] sm:$0xff]
    %v143 = vld [vmem:[%s141 + $0x8] sm:$0xff]
    %v144 = vld [vmem:[%s141 + $0x10] sm:$0xff]
    %v145 = vld [vmem:[%s141 + $0x18] sm:$0xff]
    %v146 = vld [vmem:[%s141 + $0x20] sm:$0xff]
    %v147 = vld [vmem:[%s141 + $0x28] sm:$0xff]
    %v148 = vld [vmem:[%s141 + $0x30] sm:$0xff]
    %v149 = vld [vmem:[%s141 + $0x38] sm:$0xff]
    %v150 = vmul.f32 %v139, %v142
    %v151 = vmul.f32 %v137, %v143
    %v152 = vmul.f32 %v135, %v144
    %v153 = vmul.f32 %v133, %v145
    %v154 = vmul.f32 %v140, %v146
    %v155 = vmul.f32 %v138, %v147
    %v156 = vmul.f32 %v136, %v148
    %v157 = vmul.f32 %v134, %v149
    %158 = vrot.lane.b32.xlu0 %v61, 15
    %v159 = vpop.permute.xlu0 %158
    %160 = vrot.lane.b32.xlu0 %v65, 15
    %v161 = vpop.permute.xlu0 %160
    %162 = vrot.lane.b32.xlu0 %v62, 15
    %v163 = vpop.permute.xlu0 %162
    %164 = vrot.lane.b32.xlu0 %v66, 15
    %v165 = vpop.permute.xlu0 %164
    %166 = vrot.lane.b32.xlu0 %v63, 15
    %v167 = vpop.permute.xlu0 %166
    %168 = vrot.lane.b32.xlu0 %v67, 15
    %v169 = vpop.permute.xlu0 %168
    %170 = vrot.lane.b32.xlu0 %v64, 15
    %v171 = vpop.permute.xlu0 %170
    %172 = vrot.lane.b32.xlu0 %v68, 15
    %v173 = vpop.permute.xlu0 %172
    %vm174 = vcmp.lt.s32.totalorder %v90, 15
    %v175 = vsel %vm174, %v167, %v171
    %v176 = vsel %vm174, %v169, %v173
    %v177 = vsel %vm174, %v163, %v167
    %v178 = vsel %vm174, %v165, %v169
    %v179 = vsel %vm174, %v159, %v163
    %v180 = vsel %vm174, %v161, %v165
    %v181 = vsel %vm174, %v171, %v159
    %v182 = vsel %vm174, %v173, %v161
    %s183 = scalar_lea.vmem %s16, 128
    %v184 = vld [vmem:[%s183] sm:$0xff]
    %v185 = vld [vmem:[%s183 + $0x8] sm:$0xff]
    %v186 = vld [vmem:[%s183 + $0x10] sm:$0xff]
    %v187 = vld [vmem:[%s183 + $0x18] sm:$0xff]
    %v188 = vld [vmem:[%s183 + $0x20] sm:$0xff]
    %v189 = vld [vmem:[%s183 + $0x28] sm:$0xff]
    %v190 = vld [vmem:[%s183 + $0x30] sm:$0xff]
    %v191 = vld [vmem:[%s183 + $0x38] sm:$0xff]
    %v192 = vmul.f32 %v181, %v184
    %v193 = vmul.f32 %v179, %v185
    %v194 = vmul.f32 %v177, %v186
    %v195 = vmul.f32 %v175, %v187
    %v196 = vmul.f32 %v182, %v188
    %v197 = vmul.f32 %v180, %v189
    %v198 = vmul.f32 %v178, %v190
    %v199 = vmul.f32 %v176, %v191
    %200 = vrot.lane.b32.xlu0 %v61, 1
    %v201 = vpop.permute.xlu0 %200
    %202 = vrot.lane.b32.xlu0 %v65, 1
    %v203 = vpop.permute.xlu0 %202
    %204 = vrot.lane.b32.xlu0 %v62, 1
    %v205 = vpop.permute.xlu0 %204
    %206 = vrot.lane.b32.xlu0 %v66, 1
    %v207 = vpop.permute.xlu0 %206
    %208 = vrot.lane.b32.xlu0 %v63, 1
    %v209 = vpop.permute.xlu0 %208
    %210 = vrot.lane.b32.xlu0 %v67, 1
    %v211 = vpop.permute.xlu0 %210
    %212 = vrot.lane.b32.xlu0 %v64, 1
    %v213 = vpop.permute.xlu0 %212
    %214 = vrot.lane.b32.xlu0 %v68, 1
    %v215 = vpop.permute.xlu0 %214
    %vm216 = vcmp.lt.s32.totalorder %v90, 1
    %v217 = vsel %vm216, %v209, %v213
    %v218 = vsel %vm216, %v211, %v215
    %v219 = vsel %vm216, %v205, %v209
    %v220 = vsel %vm216, %v207, %v211
    %v221 = vsel %vm216, %v201, %v205
    %v222 = vsel %vm216, %v203, %v207
    %v223 = vsel %vm216, %v213, %v201
    %v224 = vsel %vm216, %v215, %v203
    %s225 = scalar_lea.vmem %s16, 192
    %v226 = vld [vmem:[%s225] sm:$0xff]
    %v227 = vld [vmem:[%s225 + $0x8] sm:$0xff]
    %v228 = vld [vmem:[%s225 + $0x10] sm:$0xff]
    %v229 = vld [vmem:[%s225 + $0x18] sm:$0xff]
    %v230 = vld [vmem:[%s225 + $0x20] sm:$0xff]
    %v231 = vld [vmem:[%s225 + $0x28] sm:$0xff]
    %v232 = vld [vmem:[%s225 + $0x30] sm:$0xff]
    %v233 = vld [vmem:[%s225 + $0x38] sm:$0xff]
    %v234 = vmul.f32 %v223, %v226
    %v235 = vmul.f32 %v221, %v227
    %v236 = vmul.f32 %v219, %v228
    %v237 = vmul.f32 %v217, %v229
    %v238 = vmul.f32 %v224, %v230
    %v239 = vmul.f32 %v222, %v231
    %v240 = vmul.f32 %v220, %v232
    %v241 = vmul.f32 %v218, %v233
    %242 = vrot.lane.b32.xlu0 %v61, 127
    %v243 = vpop.permute.xlu0 %242
    %244 = vrot.lane.b32.xlu0 %v65, 127
    %v245 = vpop.permute.xlu0 %244
    %246 = vrot.lane.b32.xlu0 %v62, 127
    %v247 = vpop.permute.xlu0 %246
    %248 = vrot.lane.b32.xlu0 %v66, 127
    %v249 = vpop.permute.xlu0 %248
    %250 = vrot.lane.b32.xlu0 %v63, 127
    %v251 = vpop.permute.xlu0 %250
    %252 = vrot.lane.b32.xlu0 %v67, 127
    %v253 = vpop.permute.xlu0 %252
    %254 = vrot.lane.b32.xlu0 %v64, 127
    %v255 = vpop.permute.xlu0 %254
    %256 = vrot.lane.b32.xlu0 %v68, 127
    %v257 = vpop.permute.xlu0 %256
    %vm258 = vcmp.lt.s32.totalorder %v90, 127
    %v259 = vsel %vm258, %v251, %v255
    %v260 = vsel %vm258, %v253, %v257
    %v261 = vsel %vm258, %v247, %v251
    %v262 = vsel %vm258, %v249, %v253
    %v263 = vsel %vm258, %v243, %v247
    %v264 = vsel %vm258, %v245, %v249
    %v265 = vsel %vm258, %v255, %v243
    %v266 = vsel %vm258, %v257, %v245
    %s267 = scalar_lea.vmem %s16, 320
    %v268 = vld [vmem:[%s267] sm:$0xff]
    %v269 = vld [vmem:[%s267 + $0x8] sm:$0xff]
    %v270 = vld [vmem:[%s267 + $0x10] sm:$0xff]
    %v271 = vld [vmem:[%s267 + $0x18] sm:$0xff]
    %v272 = vld [vmem:[%s267 + $0x20] sm:$0xff]
    %v273 = vld [vmem:[%s267 + $0x28] sm:$0xff]
    %v274 = vld [vmem:[%s267 + $0x30] sm:$0xff]
    %v275 = vld [vmem:[%s267 + $0x38] sm:$0xff]
    %v276 = vmul.f32 %v263, %v268
    %v277 = vmul.f32 %v261, %v269
    %v278 = vmul.f32 %v259, %v270
    %v279 = vmul.f32 %v265, %v271
    %v280 = vmul.f32 %v264, %v272
    %v281 = vmul.f32 %v262, %v273
    %v282 = vmul.f32 %v260, %v274
    %v283 = vmul.f32 %v266, %v275
    %284 = vrot.lane.b32.xlu0 %v61, 113
    %v285 = vpop.permute.xlu0 %284
    %286 = vrot.lane.b32.xlu0 %v65, 113
    %v287 = vpop.permute.xlu0 %286
    %288 = vrot.lane.b32.xlu0 %v62, 113
    %v289 = vpop.permute.xlu0 %288
    %290 = vrot.lane.b32.xlu0 %v66, 113
    %v291 = vpop.permute.xlu0 %290
    %292 = vrot.lane.b32.xlu0 %v63, 113
    %v293 = vpop.permute.xlu0 %292
    %294 = vrot.lane.b32.xlu0 %v67, 113
    %v295 = vpop.permute.xlu0 %294
    %296 = vrot.lane.b32.xlu0 %v64, 113
    %v297 = vpop.permute.xlu0 %296
    %298 = vrot.lane.b32.xlu0 %v68, 113
    %v299 = vpop.permute.xlu0 %298
    %vm300 = vcmp.lt.s32.totalorder %v90, 113
    %v301 = vsel %vm300, %v293, %v297
    %v302 = vsel %vm300, %v295, %v299
    %v303 = vsel %vm300, %v289, %v293
    %v304 = vsel %vm300, %v291, %v295
    %v305 = vsel %vm300, %v285, %v289
    %v306 = vsel %vm300, %v287, %v291
    %v307 = vsel %vm300, %v297, %v285
    %v308 = vsel %vm300, %v299, %v287
    %s309 = scalar_lea.vmem %s16, 384
    %v310 = vld [vmem:[%s309] sm:$0xff]
    %v311 = vld [vmem:[%s309 + $0x8] sm:$0xff]
    %v312 = vld [vmem:[%s309 + $0x10] sm:$0xff]
    %v313 = vld [vmem:[%s309 + $0x18] sm:$0xff]
    %v314 = vld [vmem:[%s309 + $0x20] sm:$0xff]
    %v315 = vld [vmem:[%s309 + $0x28] sm:$0xff]
    %v316 = vld [vmem:[%s309 + $0x30] sm:$0xff]
    %v317 = vld [vmem:[%s309 + $0x38] sm:$0xff]
    %v318 = vmul.f32 %v305, %v310
    %v319 = vmul.f32 %v303, %v311
    %v320 = vmul.f32 %v301, %v312
    %v321 = vmul.f32 %v307, %v313
    %v322 = vmul.f32 %v306, %v314
    %v323 = vmul.f32 %v304, %v315
    %v324 = vmul.f32 %v302, %v316
    %v325 = vmul.f32 %v308, %v317
    %326 = vrot.lane.b32.xlu0 %v61, 112
    %v327 = vpop.permute.xlu0 %326
    %328 = vrot.lane.b32.xlu0 %v65, 112
    %v329 = vpop.permute.xlu0 %328
    %330 = vrot.lane.b32.xlu0 %v62, 112
    %v331 = vpop.permute.xlu0 %330
    %332 = vrot.lane.b32.xlu0 %v66, 112
    %v333 = vpop.permute.xlu0 %332
    %334 = vrot.lane.b32.xlu0 %v63, 112
    %v335 = vpop.permute.xlu0 %334
    %336 = vrot.lane.b32.xlu0 %v67, 112
    %v337 = vpop.permute.xlu0 %336
    %338 = vrot.lane.b32.xlu0 %v64, 112
    %v339 = vpop.permute.xlu0 %338
    %340 = vrot.lane.b32.xlu0 %v68, 112
    %v341 = vpop.permute.xlu0 %340
    %vm342 = vcmp.lt.s32.totalorder %v90, 112
    %v343 = vsel %vm342, %v335, %v339
    %v344 = vsel %vm342, %v337, %v341
    %v345 = vsel %vm342, %v331, %v335
    %v346 = vsel %vm342, %v333, %v337
    %v347 = vsel %vm342, %v327, %v331
    %v348 = vsel %vm342, %v329, %v333
    %v349 = vsel %vm342, %v339, %v327
    %v350 = vsel %vm342, %v341, %v329
    %s351 = scalar_lea.vmem %s16, 448
    %v352 = vld [vmem:[%s351] sm:$0xff]
    %v353 = vld [vmem:[%s351 + $0x8] sm:$0xff]
    %v354 = vld [vmem:[%s351 + $0x10] sm:$0xff]
    %v355 = vld [vmem:[%s351 + $0x18] sm:$0xff]
    %v356 = vld [vmem:[%s351 + $0x20] sm:$0xff]
    %v357 = vld [vmem:[%s351 + $0x28] sm:$0xff]
    %v358 = vld [vmem:[%s351 + $0x30] sm:$0xff]
    %v359 = vld [vmem:[%s351 + $0x38] sm:$0xff]
    %v360 = vmul.f32 %v347, %v352
    %v361 = vmul.f32 %v345, %v353
    %v362 = vmul.f32 %v343, %v354
    %v363 = vmul.f32 %v349, %v355
    %v364 = vmul.f32 %v348, %v356
    %v365 = vmul.f32 %v346, %v357
    %v366 = vmul.f32 %v344, %v358
    %v367 = vmul.f32 %v350, %v359
    %368 = vrot.lane.b32.xlu0 %v61, 111
    %v369 = vpop.permute.xlu0 %368
    %370 = vrot.lane.b32.xlu0 %v65, 111
    %v371 = vpop.permute.xlu0 %370
    %372 = vrot.lane.b32.xlu0 %v62, 111
    %v373 = vpop.permute.xlu0 %372
    %374 = vrot.lane.b32.xlu0 %v66, 111
    %v375 = vpop.permute.xlu0 %374
    %376 = vrot.lane.b32.xlu0 %v63, 111
    %v377 = vpop.permute.xlu0 %376
    %378 = vrot.lane.b32.xlu0 %v67, 111
    %v379 = vpop.permute.xlu0 %378
    %380 = vrot.lane.b32.xlu0 %v64, 111
    %v381 = vpop.permute.xlu0 %380
    %382 = vrot.lane.b32.xlu0 %v68, 111
    %v383 = vpop.permute.xlu0 %382
    %vm384 = vcmp.lt.s32.totalorder %v90, 111
    %v385 = vsel %vm384, %v377, %v381
    %v386 = vsel %vm384, %v379, %v383
    %v387 = vsel %vm384, %v373, %v377
    %v388 = vsel %vm384, %v375, %v379
    %v389 = vsel %vm384, %v369, %v373
    %v390 = vsel %vm384, %v371, %v375
    %v391 = vsel %vm384, %v381, %v369
    %v392 = vsel %vm384, %v383, %v371
    %s393 = scalar_lea.vmem %s16, 512
    %v394 = vld [vmem:[%s393] sm:$0xff]
    %v395 = vld [vmem:[%s393 + $0x8] sm:$0xff]
    %v396 = vld [vmem:[%s393 + $0x10] sm:$0xff]
    %v397 = vld [vmem:[%s393 + $0x18] sm:$0xff]
    %v398 = vld [vmem:[%s393 + $0x20] sm:$0xff]
    %v399 = vld [vmem:[%s393 + $0x28] sm:$0xff]
    %v400 = vld [vmem:[%s393 + $0x30] sm:$0xff]
    %v401 = vld [vmem:[%s393 + $0x38] sm:$0xff]
    %v402 = vmul.f32 %v389, %v394
    %v403 = vmul.f32 %v387, %v395
    %v404 = vmul.f32 %v385, %v396
    %v405 = vmul.f32 %v391, %v397
    %v406 = vmul.f32 %v390, %v398
    %v407 = vmul.f32 %v388, %v399
    %v408 = vmul.f32 %v386, %v400
    %v409 = vmul.f32 %v392, %v401
    %v410 = vpack.c.bf16 %v112, %v108
    %v411 = vpack.c.bf16 %v113, %v109
    %v412 = vpack.c.bf16 %v114, %v110
    %v413 = vpack.c.bf16 %v115, %v111
    %v414 = vpack.c.bf16 %v154, %v150
    %v415 = vpack.c.bf16 %v155, %v151
    %v416 = vpack.c.bf16 %v156, %v152
    %v417 = vpack.c.bf16 %v157, %v153
    %v418 = vpack.c.bf16 %v196, %v192
    %v419 = vpack.c.bf16 %v197, %v193
    %v420 = vpack.c.bf16 %v198, %v194
    %v421 = vpack.c.bf16 %v199, %v195
    %v422 = vpack.c.bf16 %v238, %v234
    %v423 = vpack.c.bf16 %v239, %v235
    %v424 = vpack.c.bf16 %v240, %v236
    %v425 = vpack.c.bf16 %v241, %v237
    %v426 = vpack.c.bf16 %v65, %v61
    %v427 = vpack.c.bf16 %v66, %v62
    %v428 = vpack.c.bf16 %v67, %v63
    %v429 = vpack.c.bf16 %v68, %v64
    %v430 = vpack.c.bf16 %v280, %v276
    %v431 = vpack.c.bf16 %v281, %v277
    %v432 = vpack.c.bf16 %v282, %v278
    %v433 = vpack.c.bf16 %v283, %v279
    %v434 = vpack.c.bf16 %v322, %v318
    %v435 = vpack.c.bf16 %v323, %v319
    %v436 = vpack.c.bf16 %v324, %v320
    %v437 = vpack.c.bf16 %v325, %v321
    %v438 = vpack.c.bf16 %v364, %v360
    %v439 = vpack.c.bf16 %v365, %v361
    %v440 = vpack.c.bf16 %v366, %v362
    %v441 = vpack.c.bf16 %v367, %v363
    %v442 = vpack.c.bf16 %v406, %v402
    %v443 = vpack.c.bf16 %v407, %v403
    %v444 = vpack.c.bf16 %v408, %v404
    %v445 = vpack.c.bf16 %v409, %v405
    %447 = vset.pattern.permute.xlu0 0
    %448 = vperm.xlu0 %447, %v71
    %v449 = vpop.permute.xlu0 %448
    %452 = vset.pattern.permute.xlu0 0
    %453 = vperm.xlu0 %452, %v72
    %v454 = vpop.permute.xlu0 %453
    %v458 = vunpack.c.l.b16 %v69
    %v459 = vunpack.c.h.b16 %v69
    %v460 = vunpack.c.l.b16 %v70
    %v461 = vunpack.c.h.b16 %v70
    %v462 = vpack.c.b16 %v460, %v458
    %v463 = vpack.c.b16 %v461, %v459
    %vm465 = vcmask 130048
    %v467 = vsel %vm465, %v463, 0
    %469 = vmatpush.bf16.msra.mxu0 %v438
    %470 = vmatpush.bf16.msra.mxu0 %v434
    %471 = vmatpush.bf16.msra.mxu0 %v430
    %472 = vmatpush.bf16.msra.mxu0 %v426
    %473 = vmatpush.bf16.msra.mxu0 %v422
    %474 = vmatpush.bf16.msra.mxu0 %v418
    %475 = vmatpush.bf16.msra.mxu0 %v414
    %476 = vmatpush.bf16.msra.mxu0 %v410
    %477 = vmatmul.bf16.gmra.mxu0 %v462
    %v478 = vpop.f32.mrf.mxu0
    %v479 = vadd.f32 %v449, %v478
    %v480 = vpop.f32.mrf.mxu0
    %v481 = vadd.f32 %v454, %v480
    %482 = vdwg.mxu0
    %483 = vmatpush.bf16.msra.mxu0 0
    %484 = vmatpush.bf16.msra.mxu0 0
    %485 = vmatpush.bf16.msra.mxu0 0
    %486 = vmatpush.bf16.msra.mxu0 0
    %487 = vmatpush.bf16.msra.mxu0 0
    %488 = vmatpush.bf16.msra.mxu0 0
    %489 = vmatpush.bf16.msra.mxu0 0
    %490 = vmatpush.bf16.msra.mxu0 %v442
    %491 = vmatmul.bf16.gmra.mxu0 %v467
    %v492 = vpop.f32.mrf.mxu0
    %v493 = vadd.f32 %v479, %v492
    %v494 = vpop.f32.mrf.mxu0
    %v495 = vadd.f32 %v481, %v494
    %496 = vdwg.mxu0
    %497 = vmatpush.bf16.msra.mxu0 %v439
    %498 = vmatpush.bf16.msra.mxu0 %v435
    %499 = vmatpush.bf16.msra.mxu0 %v431
    %500 = vmatpush.bf16.msra.mxu0 %v427
    %501 = vmatpush.bf16.msra.mxu0 %v423
    %502 = vmatpush.bf16.msra.mxu0 %v419
    %503 = vmatpush.bf16.msra.mxu0 %v415
    %504 = vmatpush.bf16.msra.mxu0 %v411
    %505 = vmatmul.bf16.gmra.mxu0 %v462
    %v506 = vpop.f32.mrf.mxu0
    %v507 = vadd.f32 %v449, %v506
    %v508 = vpop.f32.mrf.mxu0
    %v509 = vadd.f32 %v454, %v508
    %510 = vdwg.mxu0
    %511 = vmatpush.bf16.msra.mxu0 0
    %512 = vmatpush.bf16.msra.mxu0 0
    %513 = vmatpush.bf16.msra.mxu0 0
    %514 = vmatpush.bf16.msra.mxu0 0
    %515 = vmatpush.bf16.msra.mxu0 0
    %516 = vmatpush.bf16.msra.mxu0 0
    %517 = vmatpush.bf16.msra.mxu0 0
    %518 = vmatpush.bf16.msra.mxu0 %v443
    %519 = vmatmul.bf16.gmra.mxu0 %v467
    %v520 = vpop.f32.mrf.mxu0
    %v521 = vadd.f32 %v507, %v520
    %v522 = vpop.f32.mrf.mxu0
    %v523 = vadd.f32 %v509, %v522
    %524 = vdwg.mxu0
    %525 = vmatpush.bf16.msra.mxu0 %v440
    %526 = vmatpush.bf16.msra.mxu0 %v436
    %527 = vmatpush.bf16.msra.mxu0 %v432
    %528 = vmatpush.bf16.msra.mxu0 %v428
    %529 = vmatpush.bf16.msra.mxu0 %v424
    %530 = vmatpush.bf16.msra.mxu0 %v420
    %531 = vmatpush.bf16.msra.mxu0 %v416
    %532 = vmatpush.bf16.msra.mxu0 %v412
    %533 = vmatmul.bf16.gmra.mxu0 %v462
    %v534 = vpop.f32.mrf.mxu0
    %v535 = vadd.f32 %v449, %v534
    %v536 = vpop.f32.mrf.mxu0
    %v537 = vadd.f32 %v454, %v536
    %538 = vdwg.mxu0
    %539 = vmatpush.bf16.msra.mxu0 0
    %540 = vmatpush.bf16.msra.mxu0 0
    %541 = vmatpush.bf16.msra.mxu0 0
    %542 = vmatpush.bf16.msra.mxu0 0
    %543 = vmatpush.bf16.msra.mxu0 0
    %544 = vmatpush.bf16.msra.mxu0 0
    %545 = vmatpush.bf16.msra.mxu0 0
    %546 = vmatpush.bf16.msra.mxu0 %v444
    %547 = vmatmul.bf16.gmra.mxu0 %v467
    %v548 = vpop.f32.mrf.mxu0
    %v549 = vadd.f32 %v535, %v548
    %v550 = vpop.f32.mrf.mxu0
    %v551 = vadd.f32 %v537, %v550
    %552 = vdwg.mxu0
    %553 = vmatpush.bf16.msra.mxu0 %v441
    %554 = vmatpush.bf16.msra.mxu0 %v437
    %555 = vmatpush.bf16.msra.mxu0 %v433
    %556 = vmatpush.bf16.msra.mxu0 %v429
    %557 = vmatpush.bf16.msra.mxu0 %v425
    %558 = vmatpush.bf16.msra.mxu0 %v421
    %559 = vmatpush.bf16.msra.mxu0 %v417
    %560 = vmatpush.bf16.msra.mxu0 %v413
    %561 = vmatmul.bf16.gmra.mxu0 %v462
    %v562 = vpop.f32.mrf.mxu0
    %v563 = vadd.f32 %v449, %v562
    %v564 = vpop.f32.mrf.mxu0
    %v565 = vadd.f32 %v454, %v564
    %566 = vdwg.mxu0
    %567 = vmatpush.bf16.msra.mxu0 0
    %568 = vmatpush.bf16.msra.mxu0 0
    %569 = vmatpush.bf16.msra.mxu0 0
    %570 = vmatpush.bf16.msra.mxu0 0
    %571 = vmatpush.bf16.msra.mxu0 0
    %572 = vmatpush.bf16.msra.mxu0 0
    %573 = vmatpush.bf16.msra.mxu0 0
    %574 = vmatpush.bf16.msra.mxu0 %v445
    %575 = vmatmul.bf16.gmra.mxu0 %v467
    %v576 = vpop.f32.mrf.mxu0
    %v577 = vadd.f32 %v563, %v576
    %v578 = vpop.f32.mrf.mxu0
    %v579 = vadd.f32 %v565, %v578
    %580 = vdwg.mxu0
    %v581 = vmul.f32 %v493, 0.01
    %v582 = vmul.f32 %v521, 0.01
    %v583 = vmul.f32 %v549, 0.01
    %v584 = vmul.f32 %v577, 0.01
    %v585 = vmul.f32 %v495, 0.01
    %v586 = vmul.f32 %v523, 0.01
    %v587 = vmul.f32 %v551, 0.01
    %v588 = vmul.f32 %v579, 0.01
    %v589 = vmax.f32 %v493, %v581
    %v590 = vmax.f32 %v521, %v582
    %v591 = vmax.f32 %v549, %v583
    %v592 = vmax.f32 %v577, %v584
    %v593 = vmax.f32 %v495, %v585
    %v594 = vmax.f32 %v523, %v586
    %v595 = vmax.f32 %v551, %v587
    %v596 = vmax.f32 %v579, %v588
    %v597 = vld [vmem:[%s3] sm:$0xff]
    %v598 = vld [vmem:[%s3 + $0x8] sm:$0xff]
    %v599 = vld [vmem:[%s3 + $0x10] sm:$0xff]
    %v600 = vld [vmem:[%s3 + $0x18] sm:$0xff]
    %v601 = vld [vmem:[%s3 + $0x20] sm:$0xff]
    %v602 = vld [vmem:[%s3 + $0x28] sm:$0xff]
    %v603 = vld [vmem:[%s3 + $0x30] sm:$0xff]
    %v604 = vld [vmem:[%s3 + $0x38] sm:$0xff]
    %v605 = vld [vmem:[%s3 + $0x40] sm:$0xff]
    %v606 = vld [vmem:[%s3 + $0x48] sm:$0xff]
    %v607 = vld [vmem:[%s3 + $0x50] sm:$0xff]
    %v608 = vld [vmem:[%s3 + $0x58] sm:$0xff]
    %v609 = vld [vmem:[%s3 + $0x60] sm:$0xff]
    %v610 = vld [vmem:[%s3 + $0x68] sm:$0xff]
    %v611 = vld [vmem:[%s3 + $0x70] sm:$0xff]
    %v612 = vld [vmem:[%s3 + $0x78] sm:$0xff]
    %v613 = vld [vmem:[%s3 + $0x80] sm:$0xff]
    %v614 = vld [vmem:[%s3 + $0x88] sm:$0xff]
    %v615 = vld [vmem:[%s3 + $0x90] sm:$0xff]
    %v616 = vld [vmem:[%s3 + $0x98] sm:$0xff]
    %v617 = vld [vmem:[%s3 + $0xa0] sm:$0xff]
    %v618 = vld [vmem:[%s3 + $0xa8] sm:$0xff]
    %v619 = vld [vmem:[%s3 + $0xb0] sm:$0xff]
    %v620 = vld [vmem:[%s3 + $0xb8] sm:$0xff]
    %v621 = vld [vmem:[%s3 + $0xc0] sm:$0xff]
    %v622 = vld [vmem:[%s3 + $0xc8] sm:$0xff]
    %v623 = vld [vmem:[%s3 + $0xd0] sm:$0xff]
    %v624 = vld [vmem:[%s3 + $0xd8] sm:$0xff]
    %v625 = vld [vmem:[%s3 + $0xe0] sm:$0xff]
    %v626 = vld [vmem:[%s3 + $0xe8] sm:$0xff]
    %v627 = vld [vmem:[%s3 + $0xf0] sm:$0xff]
    %v628 = vld [vmem:[%s3 + $0xf8] sm:$0xff]
    %v629 = vld [vmem:[%s3 + $0x100] sm:$0xff]
    %v630 = vld [vmem:[%s3 + $0x108] sm:$0xff]
    %v631 = vld [vmem:[%s3 + $0x110] sm:$0xff]
    %v632 = vld [vmem:[%s3 + $0x118] sm:$0xff]
    %v633 = vld [vmem:[%s3 + $0x120] sm:$0xff]
    %v634 = vld [vmem:[%s3 + $0x128] sm:$0xff]
    %v635 = vld [vmem:[%s3 + $0x130] sm:$0xff]
    %v636 = vld [vmem:[%s3 + $0x138] sm:$0xff]
    %v637 = vld [vmem:[%s3 + $0x140] sm:$0xff]
    %v638 = vld [vmem:[%s3 + $0x148] sm:$0xff]
    %v639 = vld [vmem:[%s3 + $0x150] sm:$0xff]
    %v640 = vld [vmem:[%s3 + $0x158] sm:$0xff]
    %v641 = vld [vmem:[%s3 + $0x160] sm:$0xff]
    %v642 = vld [vmem:[%s3 + $0x168] sm:$0xff]
    %v643 = vld [vmem:[%s3 + $0x170] sm:$0xff]
    %v644 = vld [vmem:[%s3 + $0x178] sm:$0xff]
    %v645 = vld [vmem:[%s3 + $0x180] sm:$0xff]
    %v646 = vld [vmem:[%s3 + $0x188] sm:$0xff]
    %v647 = vld [vmem:[%s3 + $0x190] sm:$0xff]
    %v648 = vld [vmem:[%s3 + $0x198] sm:$0xff]
    %v649 = vld [vmem:[%s3 + $0x1a0] sm:$0xff]
    %v650 = vld [vmem:[%s3 + $0x1a8] sm:$0xff]
    %v651 = vld [vmem:[%s3 + $0x1b0] sm:$0xff]
    %v652 = vld [vmem:[%s3 + $0x1b8] sm:$0xff]
    %v653 = vld [vmem:[%s3 + $0x1c0] sm:$0xff]
    %v654 = vld [vmem:[%s3 + $0x1c8] sm:$0xff]
    %v655 = vld [vmem:[%s3 + $0x1d0] sm:$0xff]
    %v656 = vld [vmem:[%s3 + $0x1d8] sm:$0xff]
    %v657 = vld [vmem:[%s3 + $0x1e0] sm:$0xff]
    %v658 = vld [vmem:[%s3 + $0x1e8] sm:$0xff]
    %v659 = vld [vmem:[%s3 + $0x1f0] sm:$0xff]
    %v660 = vld [vmem:[%s3 + $0x1f8] sm:$0xff]
    %661 = vmatpush.msra.mxu0 %v612
    %662 = vmatpush.msra.mxu0 %v611
    %663 = vmatpush.msra.mxu0 %v610
    %664 = vmatpush.msra.mxu0 %v609
    %665 = vmatpush.msra.mxu0 %v608
    %666 = vmatpush.msra.mxu0 %v607
    %667 = vmatpush.msra.mxu0 %v606
    %668 = vmatpush.msra.mxu0 %v605
    %669 = vmatpush.msra.mxu0 %v604
    %670 = vmatpush.msra.mxu0 %v603
    %671 = vmatpush.msra.mxu0 %v602
    %672 = vmatpush.msra.mxu0 %v601
    %673 = vmatpush.msra.mxu0 %v600
    %674 = vmatpush.msra.mxu0 %v599
    %675 = vmatpush.msra.mxu0 %v598
    %676 = vmatpush.msra.mxu0 %v597
    %677 = vmatmul.f32.gmra.mxu0 %v589
    %v678 = vpop.f32.mrf.mxu0
    %v679 = vadd.f32 0.0, %v678
    %680 = vmatmul.f32.gmra.mxu0 %v593
    %v681 = vpop.f32.mrf.mxu0
    %v682 = vadd.f32 0.0, %v681
    %683 = vdwg.mxu0
    %684 = vmatpush.msra.mxu0 %v628
    %685 = vmatpush.msra.mxu0 %v627
    %686 = vmatpush.msra.mxu0 %v626
    %687 = vmatpush.msra.mxu0 %v625
    %688 = vmatpush.msra.mxu0 %v624
    %689 = vmatpush.msra.mxu0 %v623
    %690 = vmatpush.msra.mxu0 %v622
    %691 = vmatpush.msra.mxu0 %v621
    %692 = vmatpush.msra.mxu0 %v620
    %693 = vmatpush.msra.mxu0 %v619
    %694 = vmatpush.msra.mxu0 %v618
    %695 = vmatpush.msra.mxu0 %v617
    %696 = vmatpush.msra.mxu0 %v616
    %697 = vmatpush.msra.mxu0 %v615
    %698 = vmatpush.msra.mxu0 %v614
    %699 = vmatpush.msra.mxu0 %v613
    %700 = vmatmul.f32.gmra.mxu0 %v590
    %v701 = vpop.f32.mrf.mxu0
    %v702 = vadd.f32 %v679, %v701
    %703 = vmatmul.f32.gmra.mxu0 %v594
    %v704 = vpop.f32.mrf.mxu0
    %v705 = vadd.f32 %v682, %v704
    %706 = vdwg.mxu0
    %707 = vmatpush.msra.mxu0 %v644
    %708 = vmatpush.msra.mxu0 %v643
    %709 = vmatpush.msra.mxu0 %v642
    %710 = vmatpush.msra.mxu0 %v641
    %711 = vmatpush.msra.mxu0 %v640
    %712 = vmatpush.msra.mxu0 %v639
    %713 = vmatpush.msra.mxu0 %v638
    %714 = vmatpush.msra.mxu0 %v637
    %715 = vmatpush.msra.mxu0 %v636
    %716 = vmatpush.msra.mxu0 %v635
    %717 = vmatpush.msra.mxu0 %v634
    %718 = vmatpush.msra.mxu0 %v633
    %719 = vmatpush.msra.mxu0 %v632
    %720 = vmatpush.msra.mxu0 %v631
    %721 = vmatpush.msra.mxu0 %v630
    %722 = vmatpush.msra.mxu0 %v629
    %723 = vmatmul.f32.gmra.mxu0 %v591
    %v724 = vpop.f32.mrf.mxu0
    %v725 = vadd.f32 %v702, %v724
    %726 = vmatmul.f32.gmra.mxu0 %v595
    %v727 = vpop.f32.mrf.mxu0
    %v728 = vadd.f32 %v705, %v727
    %729 = vdwg.mxu0
    %730 = vmatpush.msra.mxu0 %v660
    %731 = vmatpush.msra.mxu0 %v659
    %732 = vmatpush.msra.mxu0 %v658
    %733 = vmatpush.msra.mxu0 %v657
    %734 = vmatpush.msra.mxu0 %v656
    %735 = vmatpush.msra.mxu0 %v655
    %736 = vmatpush.msra.mxu0 %v654
    %737 = vmatpush.msra.mxu0 %v653
    %738 = vmatpush.msra.mxu0 %v652
    %739 = vmatpush.msra.mxu0 %v651
    %740 = vmatpush.msra.mxu0 %v650
    %741 = vmatpush.msra.mxu0 %v649
    %742 = vmatpush.msra.mxu0 %v648
    %743 = vmatpush.msra.mxu0 %v647
    %744 = vmatpush.msra.mxu0 %v646
    %745 = vmatpush.msra.mxu0 %v645
    %746 = vmatmul.f32.gmra.mxu0 %v592
    %v747 = vpop.f32.mrf.mxu0
    %v748 = vadd.f32 %v725, %v747
    %749 = vmatmul.f32.gmra.mxu0 %v596
    %v750 = vpop.f32.mrf.mxu0
    %v751 = vadd.f32 %v728, %v750
    %752 = vdwg.mxu0
    %s753 = scalar_lea.vmem %s3, 512
    %v754 = vld [vmem:[%s753] sm:$0xff]
    %v755 = vld [vmem:[%s753 + $0x8] sm:$0xff]
    %v756 = vld [vmem:[%s753 + $0x10] sm:$0xff]
    %v757 = vld [vmem:[%s753 + $0x18] sm:$0xff]
    %v758 = vld [vmem:[%s753 + $0x20] sm:$0xff]
    %v759 = vld [vmem:[%s753 + $0x28] sm:$0xff]
    %v760 = vld [vmem:[%s753 + $0x30] sm:$0xff]
    %v761 = vld [vmem:[%s753 + $0x38] sm:$0xff]
    %v762 = vld [vmem:[%s753 + $0x40] sm:$0xff]
    %v763 = vld [vmem:[%s753 + $0x48] sm:$0xff]
    %v764 = vld [vmem:[%s753 + $0x50] sm:$0xff]
    %v765 = vld [vmem:[%s753 + $0x58] sm:$0xff]
    %v766 = vld [vmem:[%s753 + $0x60] sm:$0xff]
    %v767 = vld [vmem:[%s753 + $0x68] sm:$0xff]
    %v768 = vld [vmem:[%s753 + $0x70] sm:$0xff]
    %v769 = vld [vmem:[%s753 + $0x78] sm:$0xff]
    %v770 = vld [vmem:[%s753 + $0x80] sm:$0xff]
    %v771 = vld [vmem:[%s753 + $0x88] sm:$0xff]
    %v772 = vld [vmem:[%s753 + $0x90] sm:$0xff]
    %v773 = vld [vmem:[%s753 + $0x98] sm:$0xff]
    %v774 = vld [vmem:[%s753 + $0xa0] sm:$0xff]
    %v775 = vld [vmem:[%s753 + $0xa8] sm:$0xff]
    %v776 = vld [vmem:[%s753 + $0xb0] sm:$0xff]
    %v777 = vld [vmem:[%s753 + $0xb8] sm:$0xff]
    %v778 = vld [vmem:[%s753 + $0xc0] sm:$0xff]
    %v779 = vld [vmem:[%s753 + $0xc8] sm:$0xff]
    %v780 = vld [vmem:[%s753 + $0xd0] sm:$0xff]
    %v781 = vld [vmem:[%s753 + $0xd8] sm:$0xff]
    %v782 = vld [vmem:[%s753 + $0xe0] sm:$0xff]
    %v783 = vld [vmem:[%s753 + $0xe8] sm:$0xff]
    %v784 = vld [vmem:[%s753 + $0xf0] sm:$0xff]
    %v785 = vld [vmem:[%s753 + $0xf8] sm:$0xff]
    %v786 = vld [vmem:[%s753 + $0x100] sm:$0xff]
    %v787 = vld [vmem:[%s753 + $0x108] sm:$0xff]
    %v788 = vld [vmem:[%s753 + $0x110] sm:$0xff]
    %v789 = vld [vmem:[%s753 + $0x118] sm:$0xff]
    %v790 = vld [vmem:[%s753 + $0x120] sm:$0xff]
    %v791 = vld [vmem:[%s753 + $0x128] sm:$0xff]
    %v792 = vld [vmem:[%s753 + $0x130] sm:$0xff]
    %v793 = vld [vmem:[%s753 + $0x138] sm:$0xff]
    %v794 = vld [vmem:[%s753 + $0x140] sm:$0xff]
    %v795 = vld [vmem:[%s753 + $0x148] sm:$0xff]
    %v796 = vld [vmem:[%s753 + $0x150] sm:$0xff]
    %v797 = vld [vmem:[%s753 + $0x158] sm:$0xff]
    %v798 = vld [vmem:[%s753 + $0x160] sm:$0xff]
    %v799 = vld [vmem:[%s753 + $0x168] sm:$0xff]
    %v800 = vld [vmem:[%s753 + $0x170] sm:$0xff]
    %v801 = vld [vmem:[%s753 + $0x178] sm:$0xff]
    %v802 = vld [vmem:[%s753 + $0x180] sm:$0xff]
    %v803 = vld [vmem:[%s753 + $0x188] sm:$0xff]
    %v804 = vld [vmem:[%s753 + $0x190] sm:$0xff]
    %v805 = vld [vmem:[%s753 + $0x198] sm:$0xff]
    %v806 = vld [vmem:[%s753 + $0x1a0] sm:$0xff]
    %v807 = vld [vmem:[%s753 + $0x1a8] sm:$0xff]
    %v808 = vld [vmem:[%s753 + $0x1b0] sm:$0xff]
    %v809 = vld [vmem:[%s753 + $0x1b8] sm:$0xff]
    %v810 = vld [vmem:[%s753 + $0x1c0] sm:$0xff]
    %v811 = vld [vmem:[%s753 + $0x1c8] sm:$0xff]
    %v812 = vld [vmem:[%s753 + $0x1d0] sm:$0xff]
    %v813 = vld [vmem:[%s753 + $0x1d8] sm:$0xff]
    %v814 = vld [vmem:[%s753 + $0x1e0] sm:$0xff]
    %v815 = vld [vmem:[%s753 + $0x1e8] sm:$0xff]
    %v816 = vld [vmem:[%s753 + $0x1f0] sm:$0xff]
    %v817 = vld [vmem:[%s753 + $0x1f8] sm:$0xff]
    %818 = vmatpush.msra.mxu0 %v769
    %819 = vmatpush.msra.mxu0 %v768
    %820 = vmatpush.msra.mxu0 %v767
    %821 = vmatpush.msra.mxu0 %v766
    %822 = vmatpush.msra.mxu0 %v765
    %823 = vmatpush.msra.mxu0 %v764
    %824 = vmatpush.msra.mxu0 %v763
    %825 = vmatpush.msra.mxu0 %v762
    %826 = vmatpush.msra.mxu0 %v761
    %827 = vmatpush.msra.mxu0 %v760
    %828 = vmatpush.msra.mxu0 %v759
    %829 = vmatpush.msra.mxu0 %v758
    %830 = vmatpush.msra.mxu0 %v757
    %831 = vmatpush.msra.mxu0 %v756
    %832 = vmatpush.msra.mxu0 %v755
    %833 = vmatpush.msra.mxu0 %v754
    %834 = vmatmul.f32.gmra.mxu0 %v589
    %v835 = vpop.f32.mrf.mxu0
    %v836 = vadd.f32 0.0, %v835
    %837 = vmatmul.f32.gmra.mxu0 %v593
    %v838 = vpop.f32.mrf.mxu0
    %v839 = vadd.f32 0.0, %v838
    %840 = vdwg.mxu0
    %841 = vmatpush.msra.mxu0 %v785
    %842 = vmatpush.msra.mxu0 %v784
    %843 = vmatpush.msra.mxu0 %v783
    %844 = vmatpush.msra.mxu0 %v782
    %845 = vmatpush.msra.mxu0 %v781
    %846 = vmatpush.msra.mxu0 %v780
    %847 = vmatpush.msra.mxu0 %v779
    %848 = vmatpush.msra.mxu0 %v778
    %849 = vmatpush.msra.mxu0 %v777
    %850 = vmatpush.msra.mxu0 %v776
    %851 = vmatpush.msra.mxu0 %v775
    %852 = vmatpush.msra.mxu0 %v774
    %853 = vmatpush.msra.mxu0 %v773
    %854 = vmatpush.msra.mxu0 %v772
    %855 = vmatpush.msra.mxu0 %v771
    %856 = vmatpush.msra.mxu0 %v770
    %857 = vmatmul.f32.gmra.mxu0 %v590
    %v858 = vpop.f32.mrf.mxu0
    %v859 = vadd.f32 %v836, %v858
    %860 = vmatmul.f32.gmra.mxu0 %v594
    %v861 = vpop.f32.mrf.mxu0
    %v862 = vadd.f32 %v839, %v861
    %863 = vdwg.mxu0
    %864 = vmatpush.msra.mxu0 %v801
    %865 = vmatpush.msra.mxu0 %v800
    %866 = vmatpush.msra.mxu0 %v799
    %867 = vmatpush.msra.mxu0 %v798
    %868 = vmatpush.msra.mxu0 %v797
    %869 = vmatpush.msra.mxu0 %v796
    %870 = vmatpush.msra.mxu0 %v795
    %871 = vmatpush.msra.mxu0 %v794
    %872 = vmatpush.msra.mxu0 %v793
    %873 = vmatpush.msra.mxu0 %v792
    %874 = vmatpush.msra.mxu0 %v791
    %875 = vmatpush.msra.mxu0 %v790
    %876 = vmatpush.msra.mxu0 %v789
    %877 = vmatpush.msra.mxu0 %v788
    %878 = vmatpush.msra.mxu0 %v787
    %879 = vmatpush.msra.mxu0 %v786
    %880 = vmatmul.f32.gmra.mxu0 %v591
    %v881 = vpop.f32.mrf.mxu0
    %v882 = vadd.f32 %v859, %v881
    %883 = vmatmul.f32.gmra.mxu0 %v595
    %v884 = vpop.f32.mrf.mxu0
    %v885 = vadd.f32 %v862, %v884
    %886 = vdwg.mxu0
    %887 = vmatpush.msra.mxu0 %v817
    %888 = vmatpush.msra.mxu0 %v816
    %889 = vmatpush.msra.mxu0 %v815
    %890 = vmatpush.msra.mxu0 %v814
    %891 = vmatpush.msra.mxu0 %v813
    %892 = vmatpush.msra.mxu0 %v812
    %893 = vmatpush.msra.mxu0 %v811
    %894 = vmatpush.msra.mxu0 %v810
    %895 = vmatpush.msra.mxu0 %v809
    %896 = vmatpush.msra.mxu0 %v808
    %897 = vmatpush.msra.mxu0 %v807
    %898 = vmatpush.msra.mxu0 %v806
    %899 = vmatpush.msra.mxu0 %v805
    %900 = vmatpush.msra.mxu0 %v804
    %901 = vmatpush.msra.mxu0 %v803
    %902 = vmatpush.msra.mxu0 %v802
    %903 = vmatmul.f32.gmra.mxu0 %v592
    %v904 = vpop.f32.mrf.mxu0
    %v905 = vadd.f32 %v882, %v904
    %906 = vmatmul.f32.gmra.mxu0 %v596
    %v907 = vpop.f32.mrf.mxu0
    %v908 = vadd.f32 %v885, %v907
    %909 = vdwg.mxu0
    %s910 = scalar_lea.vmem %s3, 1024
    %v911 = vld [vmem:[%s910] sm:$0xff]
    %v912 = vld [vmem:[%s910 + $0x8] sm:$0xff]
    %v913 = vld [vmem:[%s910 + $0x10] sm:$0xff]
    %v914 = vld [vmem:[%s910 + $0x18] sm:$0xff]
    %v915 = vld [vmem:[%s910 + $0x20] sm:$0xff]
    %v916 = vld [vmem:[%s910 + $0x28] sm:$0xff]
    %v917 = vld [vmem:[%s910 + $0x30] sm:$0xff]
    %v918 = vld [vmem:[%s910 + $0x38] sm:$0xff]
    %v919 = vld [vmem:[%s910 + $0x40] sm:$0xff]
    %v920 = vld [vmem:[%s910 + $0x48] sm:$0xff]
    %v921 = vld [vmem:[%s910 + $0x50] sm:$0xff]
    %v922 = vld [vmem:[%s910 + $0x58] sm:$0xff]
    %v923 = vld [vmem:[%s910 + $0x60] sm:$0xff]
    %v924 = vld [vmem:[%s910 + $0x68] sm:$0xff]
    %v925 = vld [vmem:[%s910 + $0x70] sm:$0xff]
    %v926 = vld [vmem:[%s910 + $0x78] sm:$0xff]
    %v927 = vld [vmem:[%s910 + $0x80] sm:$0xff]
    %v928 = vld [vmem:[%s910 + $0x88] sm:$0xff]
    %v929 = vld [vmem:[%s910 + $0x90] sm:$0xff]
    %v930 = vld [vmem:[%s910 + $0x98] sm:$0xff]
    %v931 = vld [vmem:[%s910 + $0xa0] sm:$0xff]
    %v932 = vld [vmem:[%s910 + $0xa8] sm:$0xff]
    %v933 = vld [vmem:[%s910 + $0xb0] sm:$0xff]
    %v934 = vld [vmem:[%s910 + $0xb8] sm:$0xff]
    %v935 = vld [vmem:[%s910 + $0xc0] sm:$0xff]
    %v936 = vld [vmem:[%s910 + $0xc8] sm:$0xff]
    %v937 = vld [vmem:[%s910 + $0xd0] sm:$0xff]
    %v938 = vld [vmem:[%s910 + $0xd8] sm:$0xff]
    %v939 = vld [vmem:[%s910 + $0xe0] sm:$0xff]
    %v940 = vld [vmem:[%s910 + $0xe8] sm:$0xff]
    %v941 = vld [vmem:[%s910 + $0xf0] sm:$0xff]
    %v942 = vld [vmem:[%s910 + $0xf8] sm:$0xff]
    %v943 = vld [vmem:[%s910 + $0x100] sm:$0xff]
    %v944 = vld [vmem:[%s910 + $0x108] sm:$0xff]
    %v945 = vld [vmem:[%s910 + $0x110] sm:$0xff]
    %v946 = vld [vmem:[%s910 + $0x118] sm:$0xff]
    %v947 = vld [vmem:[%s910 + $0x120] sm:$0xff]
    %v948 = vld [vmem:[%s910 + $0x128] sm:$0xff]
    %v949 = vld [vmem:[%s910 + $0x130] sm:$0xff]
    %v950 = vld [vmem:[%s910 + $0x138] sm:$0xff]
    %v951 = vld [vmem:[%s910 + $0x140] sm:$0xff]
    %v952 = vld [vmem:[%s910 + $0x148] sm:$0xff]
    %v953 = vld [vmem:[%s910 + $0x150] sm:$0xff]
    %v954 = vld [vmem:[%s910 + $0x158] sm:$0xff]
    %v955 = vld [vmem:[%s910 + $0x160] sm:$0xff]
    %v956 = vld [vmem:[%s910 + $0x168] sm:$0xff]
    %v957 = vld [vmem:[%s910 + $0x170] sm:$0xff]
    %v958 = vld [vmem:[%s910 + $0x178] sm:$0xff]
    %v959 = vld [vmem:[%s910 + $0x180] sm:$0xff]
    %v960 = vld [vmem:[%s910 + $0x188] sm:$0xff]
    %v961 = vld [vmem:[%s910 + $0x190] sm:$0xff]
    %v962 = vld [vmem:[%s910 + $0x198] sm:$0xff]
    %v963 = vld [vmem:[%s910 + $0x1a0] sm:$0xff]
    %v964 = vld [vmem:[%s910 + $0x1a8] sm:$0xff]
    %v965 = vld [vmem:[%s910 + $0x1b0] sm:$0xff]
    %v966 = vld [vmem:[%s910 + $0x1b8] sm:$0xff]
    %v967 = vld [vmem:[%s910 + $0x1c0] sm:$0xff]
    %v968 = vld [vmem:[%s910 + $0x1c8] sm:$0xff]
    %v969 = vld [vmem:[%s910 + $0x1d0] sm:$0xff]
    %v970 = vld [vmem:[%s910 + $0x1d8] sm:$0xff]
    %v971 = vld [vmem:[%s910 + $0x1e0] sm:$0xff]
    %v972 = vld [vmem:[%s910 + $0x1e8] sm:$0xff]
    %v973 = vld [vmem:[%s910 + $0x1f0] sm:$0xff]
    %v974 = vld [vmem:[%s910 + $0x1f8] sm:$0xff]
    %975 = vmatpush.msra.mxu0 %v926
    %976 = vmatpush.msra.mxu0 %v925
    %977 = vmatpush.msra.mxu0 %v924
    %978 = vmatpush.msra.mxu0 %v923
    %979 = vmatpush.msra.mxu0 %v922
    %980 = vmatpush.msra.mxu0 %v921
    %981 = vmatpush.msra.mxu0 %v920
    %982 = vmatpush.msra.mxu0 %v919
    %983 = vmatpush.msra.mxu0 %v918
    %984 = vmatpush.msra.mxu0 %v917
    %985 = vmatpush.msra.mxu0 %v916
    %986 = vmatpush.msra.mxu0 %v915
    %987 = vmatpush.msra.mxu0 %v914
    %988 = vmatpush.msra.mxu0 %v913
    %989 = vmatpush.msra.mxu0 %v912
    %990 = vmatpush.msra.mxu0 %v911
    %991 = vmatmul.f32.gmra.mxu0 %v589
    %v992 = vpop.f32.mrf.mxu0
    %v993 = vadd.f32 0.0, %v992
    %994 = vmatmul.f32.gmra.mxu0 %v593
    %v995 = vpop.f32.mrf.mxu0
    %v996 = vadd.f32 0.0, %v995
    %997 = vdwg.mxu0
    %998 = vmatpush.msra.mxu0 %v942
    %999 = vmatpush.msra.mxu0 %v941
    %1000 = vmatpush.msra.mxu0 %v940
    %1001 = vmatpush.msra.mxu0 %v939
    %1002 = vmatpush.msra.mxu0 %v938
    %1003 = vmatpush.msra.mxu0 %v937
    %1004 = vmatpush.msra.mxu0 %v936
    %1005 = vmatpush.msra.mxu0 %v935
    %1006 = vmatpush.msra.mxu0 %v934
    %1007 = vmatpush.msra.mxu0 %v933
    %1008 = vmatpush.msra.mxu0 %v932
    %1009 = vmatpush.msra.mxu0 %v931
    %1010 = vmatpush.msra.mxu0 %v930
    %1011 = vmatpush.msra.mxu0 %v929
    %1012 = vmatpush.msra.mxu0 %v928
    %1013 = vmatpush.msra.mxu0 %v927
    %1014 = vmatmul.f32.gmra.mxu0 %v590
    %v1015 = vpop.f32.mrf.mxu0
    %v1016 = vadd.f32 %v993, %v1015
    %1017 = vmatmul.f32.gmra.mxu0 %v594
    %v1018 = vpop.f32.mrf.mxu0
    %v1019 = vadd.f32 %v996, %v1018
    %1020 = vdwg.mxu0
    %1021 = vmatpush.msra.mxu0 %v958
    %1022 = vmatpush.msra.mxu0 %v957
    %1023 = vmatpush.msra.mxu0 %v956
    %1024 = vmatpush.msra.mxu0 %v955
    %1025 = vmatpush.msra.mxu0 %v954
    %1026 = vmatpush.msra.mxu0 %v953
    %1027 = vmatpush.msra.mxu0 %v952
    %1028 = vmatpush.msra.mxu0 %v951
    %1029 = vmatpush.msra.mxu0 %v950
    %1030 = vmatpush.msra.mxu0 %v949
    %1031 = vmatpush.msra.mxu0 %v948
    %1032 = vmatpush.msra.mxu0 %v947
    %1033 = vmatpush.msra.mxu0 %v946
    %1034 = vmatpush.msra.mxu0 %v945
    %1035 = vmatpush.msra.mxu0 %v944
    %1036 = vmatpush.msra.mxu0 %v943
    %1037 = vmatmul.f32.gmra.mxu0 %v591
    %v1038 = vpop.f32.mrf.mxu0
    %v1039 = vadd.f32 %v1016, %v1038
    %1040 = vmatmul.f32.gmra.mxu0 %v595
    %v1041 = vpop.f32.mrf.mxu0
    %v1042 = vadd.f32 %v1019, %v1041
    %1043 = vdwg.mxu0
    %1044 = vmatpush.msra.mxu0 %v974
    %1045 = vmatpush.msra.mxu0 %v973
    %1046 = vmatpush.msra.mxu0 %v972
    %1047 = vmatpush.msra.mxu0 %v971
    %1048 = vmatpush.msra.mxu0 %v970
    %1049 = vmatpush.msra.mxu0 %v969
    %1050 = vmatpush.msra.mxu0 %v968
    %1051 = vmatpush.msra.mxu0 %v967
    %1052 = vmatpush.msra.mxu0 %v966
    %1053 = vmatpush.msra.mxu0 %v965
    %1054 = vmatpush.msra.mxu0 %v964
    %1055 = vmatpush.msra.mxu0 %v963
    %1056 = vmatpush.msra.mxu0 %v962
    %1057 = vmatpush.msra.mxu0 %v961
    %1058 = vmatpush.msra.mxu0 %v960
    %1059 = vmatpush.msra.mxu0 %v959
    %1060 = vmatmul.f32.gmra.mxu0 %v592
    %v1061 = vpop.f32.mrf.mxu0
    %v1062 = vadd.f32 %v1039, %v1061
    %1063 = vmatmul.f32.gmra.mxu0 %v596
    %v1064 = vpop.f32.mrf.mxu0
    %v1065 = vadd.f32 %v1042, %v1064
    %1066 = vdwg.mxu0
    %s1067 = scalar_lea.vmem %s3, 1536
    %v1068 = vld [vmem:[%s1067] sm:$0xff]
    %v1069 = vld [vmem:[%s1067 + $0x8] sm:$0xff]
    %v1070 = vld [vmem:[%s1067 + $0x10] sm:$0xff]
    %v1071 = vld [vmem:[%s1067 + $0x18] sm:$0xff]
    %v1072 = vld [vmem:[%s1067 + $0x20] sm:$0xff]
    %v1073 = vld [vmem:[%s1067 + $0x28] sm:$0xff]
    %v1074 = vld [vmem:[%s1067 + $0x30] sm:$0xff]
    %v1075 = vld [vmem:[%s1067 + $0x38] sm:$0xff]
    %v1076 = vld [vmem:[%s1067 + $0x40] sm:$0xff]
    %v1077 = vld [vmem:[%s1067 + $0x48] sm:$0xff]
    %v1078 = vld [vmem:[%s1067 + $0x50] sm:$0xff]
    %v1079 = vld [vmem:[%s1067 + $0x58] sm:$0xff]
    %v1080 = vld [vmem:[%s1067 + $0x60] sm:$0xff]
    %v1081 = vld [vmem:[%s1067 + $0x68] sm:$0xff]
    %v1082 = vld [vmem:[%s1067 + $0x70] sm:$0xff]
    %v1083 = vld [vmem:[%s1067 + $0x78] sm:$0xff]
    %v1084 = vld [vmem:[%s1067 + $0x80] sm:$0xff]
    %v1085 = vld [vmem:[%s1067 + $0x88] sm:$0xff]
    %v1086 = vld [vmem:[%s1067 + $0x90] sm:$0xff]
    %v1087 = vld [vmem:[%s1067 + $0x98] sm:$0xff]
    %v1088 = vld [vmem:[%s1067 + $0xa0] sm:$0xff]
    %v1089 = vld [vmem:[%s1067 + $0xa8] sm:$0xff]
    %v1090 = vld [vmem:[%s1067 + $0xb0] sm:$0xff]
    %v1091 = vld [vmem:[%s1067 + $0xb8] sm:$0xff]
    %v1092 = vld [vmem:[%s1067 + $0xc0] sm:$0xff]
    %v1093 = vld [vmem:[%s1067 + $0xc8] sm:$0xff]
    %v1094 = vld [vmem:[%s1067 + $0xd0] sm:$0xff]
    %v1095 = vld [vmem:[%s1067 + $0xd8] sm:$0xff]
    %v1096 = vld [vmem:[%s1067 + $0xe0] sm:$0xff]
    %v1097 = vld [vmem:[%s1067 + $0xe8] sm:$0xff]
    %v1098 = vld [vmem:[%s1067 + $0xf0] sm:$0xff]
    %v1099 = vld [vmem:[%s1067 + $0xf8] sm:$0xff]
    %v1100 = vld [vmem:[%s1067 + $0x100] sm:$0xff]
    %v1101 = vld [vmem:[%s1067 + $0x108] sm:$0xff]
    %v1102 = vld [vmem:[%s1067 + $0x110] sm:$0xff]
    %v1103 = vld [vmem:[%s1067 + $0x118] sm:$0xff]
    %v1104 = vld [vmem:[%s1067 + $0x120] sm:$0xff]
    %v1105 = vld [vmem:[%s1067 + $0x128] sm:$0xff]
    %v1106 = vld [vmem:[%s1067 + $0x130] sm:$0xff]
    %v1107 = vld [vmem:[%s1067 + $0x138] sm:$0xff]
    %v1108 = vld [vmem:[%s1067 + $0x140] sm:$0xff]
    %v1109 = vld [vmem:[%s1067 + $0x148] sm:$0xff]
    %v1110 = vld [vmem:[%s1067 + $0x150] sm:$0xff]
    %v1111 = vld [vmem:[%s1067 + $0x158] sm:$0xff]
    %v1112 = vld [vmem:[%s1067 + $0x160] sm:$0xff]
    %v1113 = vld [vmem:[%s1067 + $0x168] sm:$0xff]
    %v1114 = vld [vmem:[%s1067 + $0x170] sm:$0xff]
    %v1115 = vld [vmem:[%s1067 + $0x178] sm:$0xff]
    %v1116 = vld [vmem:[%s1067 + $0x180] sm:$0xff]
    %v1117 = vld [vmem:[%s1067 + $0x188] sm:$0xff]
    %v1118 = vld [vmem:[%s1067 + $0x190] sm:$0xff]
    %v1119 = vld [vmem:[%s1067 + $0x198] sm:$0xff]
    %v1120 = vld [vmem:[%s1067 + $0x1a0] sm:$0xff]
    %v1121 = vld [vmem:[%s1067 + $0x1a8] sm:$0xff]
    %v1122 = vld [vmem:[%s1067 + $0x1b0] sm:$0xff]
    %v1123 = vld [vmem:[%s1067 + $0x1b8] sm:$0xff]
    %v1124 = vld [vmem:[%s1067 + $0x1c0] sm:$0xff]
    %v1125 = vld [vmem:[%s1067 + $0x1c8] sm:$0xff]
    %v1126 = vld [vmem:[%s1067 + $0x1d0] sm:$0xff]
    %v1127 = vld [vmem:[%s1067 + $0x1d8] sm:$0xff]
    %v1128 = vld [vmem:[%s1067 + $0x1e0] sm:$0xff]
    %v1129 = vld [vmem:[%s1067 + $0x1e8] sm:$0xff]
    %v1130 = vld [vmem:[%s1067 + $0x1f0] sm:$0xff]
    %v1131 = vld [vmem:[%s1067 + $0x1f8] sm:$0xff]
    %1132 = vmatpush.msra.mxu0 %v1083
    %1133 = vmatpush.msra.mxu0 %v1082
    %1134 = vmatpush.msra.mxu0 %v1081
    %1135 = vmatpush.msra.mxu0 %v1080
    %1136 = vmatpush.msra.mxu0 %v1079
    %1137 = vmatpush.msra.mxu0 %v1078
    %1138 = vmatpush.msra.mxu0 %v1077
    %1139 = vmatpush.msra.mxu0 %v1076
    %1140 = vmatpush.msra.mxu0 %v1075
    %1141 = vmatpush.msra.mxu0 %v1074
    %1142 = vmatpush.msra.mxu0 %v1073
    %1143 = vmatpush.msra.mxu0 %v1072
    %1144 = vmatpush.msra.mxu0 %v1071
    %1145 = vmatpush.msra.mxu0 %v1070
    %1146 = vmatpush.msra.mxu0 %v1069
    %1147 = vmatpush.msra.mxu0 %v1068
    %1148 = vmatmul.f32.gmra.mxu0 %v589
    %v1149 = vpop.f32.mrf.mxu0
    %v1150 = vadd.f32 0.0, %v1149
    %1151 = vmatmul.f32.gmra.mxu0 %v593
    %v1152 = vpop.f32.mrf.mxu0
    %v1153 = vadd.f32 0.0, %v1152
    %1154 = vdwg.mxu0
    %1155 = vmatpush.msra.mxu0 %v1099
    %1156 = vmatpush.msra.mxu0 %v1098
    %1157 = vmatpush.msra.mxu0 %v1097
    %1158 = vmatpush.msra.mxu0 %v1096
    %1159 = vmatpush.msra.mxu0 %v1095
    %1160 = vmatpush.msra.mxu0 %v1094
    %1161 = vmatpush.msra.mxu0 %v1093
    %1162 = vmatpush.msra.mxu0 %v1092
    %1163 = vmatpush.msra.mxu0 %v1091
    %1164 = vmatpush.msra.mxu0 %v1090
    %1165 = vmatpush.msra.mxu0 %v1089
    %1166 = vmatpush.msra.mxu0 %v1088
    %1167 = vmatpush.msra.mxu0 %v1087
    %1168 = vmatpush.msra.mxu0 %v1086
    %1169 = vmatpush.msra.mxu0 %v1085
    %1170 = vmatpush.msra.mxu0 %v1084
    %1171 = vmatmul.f32.gmra.mxu0 %v590
    %v1172 = vpop.f32.mrf.mxu0
    %v1173 = vadd.f32 %v1150, %v1172
    %1174 = vmatmul.f32.gmra.mxu0 %v594
    %v1175 = vpop.f32.mrf.mxu0
    %v1176 = vadd.f32 %v1153, %v1175
    %1177 = vdwg.mxu0
    %1178 = vmatpush.msra.mxu0 %v1115
    %1179 = vmatpush.msra.mxu0 %v1114
    %1180 = vmatpush.msra.mxu0 %v1113
    %1181 = vmatpush.msra.mxu0 %v1112
    %1182 = vmatpush.msra.mxu0 %v1111
    %1183 = vmatpush.msra.mxu0 %v1110
    %1184 = vmatpush.msra.mxu0 %v1109
    %1185 = vmatpush.msra.mxu0 %v1108
    %1186 = vmatpush.msra.mxu0 %v1107
    %1187 = vmatpush.msra.mxu0 %v1106
    %1188 = vmatpush.msra.mxu0 %v1105
    %1189 = vmatpush.msra.mxu0 %v1104
    %1190 = vmatpush.msra.mxu0 %v1103
    %1191 = vmatpush.msra.mxu0 %v1102
    %1192 = vmatpush.msra.mxu0 %v1101
    %1193 = vmatpush.msra.mxu0 %v1100
    %1194 = vmatmul.f32.gmra.mxu0 %v591
    %v1195 = vpop.f32.mrf.mxu0
    %v1196 = vadd.f32 %v1173, %v1195
    %1197 = vmatmul.f32.gmra.mxu0 %v595
    %v1198 = vpop.f32.mrf.mxu0
    %v1199 = vadd.f32 %v1176, %v1198
    %1200 = vdwg.mxu0
    %1201 = vmatpush.msra.mxu0 %v1131
    %1202 = vmatpush.msra.mxu0 %v1130
    %1203 = vmatpush.msra.mxu0 %v1129
    %1204 = vmatpush.msra.mxu0 %v1128
    %1205 = vmatpush.msra.mxu0 %v1127
    %1206 = vmatpush.msra.mxu0 %v1126
    %1207 = vmatpush.msra.mxu0 %v1125
    %1208 = vmatpush.msra.mxu0 %v1124
    %1209 = vmatpush.msra.mxu0 %v1123
    %1210 = vmatpush.msra.mxu0 %v1122
    %1211 = vmatpush.msra.mxu0 %v1121
    %1212 = vmatpush.msra.mxu0 %v1120
    %1213 = vmatpush.msra.mxu0 %v1119
    %1214 = vmatpush.msra.mxu0 %v1118
    %1215 = vmatpush.msra.mxu0 %v1117
    %1216 = vmatpush.msra.mxu0 %v1116
    %1217 = vmatmul.f32.gmra.mxu0 %v592
    %v1218 = vpop.f32.mrf.mxu0
    %v1219 = vadd.f32 %v1196, %v1218
    %1220 = vmatmul.f32.gmra.mxu0 %v596
    %v1221 = vpop.f32.mrf.mxu0
    %v1222 = vadd.f32 %v1199, %v1221
    %1223 = vdwg.mxu0
    %v1224 = vld [vmem:[%s4] sm:$0xff]
    %v1225 = vld [vmem:[%s4 + $0x8] sm:$0xff]
    %v1226 = vld [vmem:[%s4 + $0x10] sm:$0xf]
    %v1227 = vld [vmem:[%s4 + $0x14] sm:$0xff]
    %v1228 = vld [vmem:[%s4 + $0x1c] sm:$0xff]
    %v1229 = vld [vmem:[%s4 + $0x24] sm:$0xf]
    %v1230 = vld [vmem:[%s4 + $0x28] sm:$0xff]
    %v1231 = vld [vmem:[%s4 + $0x30] sm:$0xff]
    %v1232 = vld [vmem:[%s4 + $0x38] sm:$0xf]
    %v1233 = vld [vmem:[%s4 + $0x3c] sm:$0xff]
    %v1234 = vld [vmem:[%s4 + $0x44] sm:$0xff]
    %v1235 = vld [vmem:[%s4 + $0x4c] sm:$0xf]
    %v1236 = vld [vmem:[%s5] sm:$0xff]
    %v1237 = vld [vmem:[%s5 + $0x8] sm:$0xff]
    %v1238 = vld [vmem:[%s5 + $0x10] sm:$0xff]
    %v1239 = vld [vmem:[%s5 + $0x18] sm:$0xff]
    %1240 = vrot.lane.b32.xlu0 %v748, 9
    %v1241 = vpop.permute.xlu0 %1240
    %1242 = vrot.lane.b32.xlu0 %v751, 9
    %v1243 = vpop.permute.xlu0 %1242
    %1244 = vrot.lane.b32.xlu0 %v905, 9
    %v1245 = vpop.permute.xlu0 %1244
    %1246 = vrot.lane.b32.xlu0 %v908, 9
    %v1247 = vpop.permute.xlu0 %1246
    %1248 = vrot.lane.b32.xlu0 %v1062, 9
    %v1249 = vpop.permute.xlu0 %1248
    %1250 = vrot.lane.b32.xlu0 %v1065, 9
    %v1251 = vpop.permute.xlu0 %1250
    %1252 = vrot.lane.b32.xlu0 %v1219, 9
    %v1253 = vpop.permute.xlu0 %1252
    %1254 = vrot.lane.b32.xlu0 %v1222, 9
    %v1255 = vpop.permute.xlu0 %1254
    %v1256 = vld [vmem:[%s15] sm:$0xff]
    %v1257 = vld [vmem:[%s15 + $0x8] sm:$0xff]
    %v1258 = vld [vmem:[%s15 + $0x10] sm:$0xff]
    %v1259 = vld [vmem:[%s15 + $0x18] sm:$0xff]
    %v1260 = vld [vmem:[%s15 + $0x20] sm:$0xff]
    %v1261 = vld [vmem:[%s15 + $0x28] sm:$0xff]
    %v1262 = vld [vmem:[%s15 + $0x30] sm:$0xff]
    %v1263 = vld [vmem:[%s15 + $0x38] sm:$0xff]
    %v1264 = vmul.f32 %v1241, %v1256
    %v1265 = vmul.f32 %v1243, %v1257
    %v1266 = vmul.f32 %v1245, %v1258
    %v1267 = vmul.f32 %v1247, %v1259
    %v1268 = vmul.f32 %v1249, %v1260
    %v1269 = vmul.f32 %v1251, %v1261
    %v1270 = vmul.f32 %v1253, %v1262
    %v1271 = vmul.f32 %v1255, %v1263
    %1272 = vrot.lane.b32.xlu0 %v748, 8
    %v1273 = vpop.permute.xlu0 %1272
    %1274 = vrot.lane.b32.xlu0 %v751, 8
    %v1275 = vpop.permute.xlu0 %1274
    %1276 = vrot.lane.b32.xlu0 %v905, 8
    %v1277 = vpop.permute.xlu0 %1276
    %1278 = vrot.lane.b32.xlu0 %v908, 8
    %v1279 = vpop.permute.xlu0 %1278
    %1280 = vrot.lane.b32.xlu0 %v1062, 8
    %v1281 = vpop.permute.xlu0 %1280
    %1282 = vrot.lane.b32.xlu0 %v1065, 8
    %v1283 = vpop.permute.xlu0 %1282
    %1284 = vrot.lane.b32.xlu0 %v1219, 8
    %v1285 = vpop.permute.xlu0 %1284
    %1286 = vrot.lane.b32.xlu0 %v1222, 8
    %v1287 = vpop.permute.xlu0 %1286
    %s1288 = scalar_lea.vmem %s15, 64
    %v1289 = vld [vmem:[%s1288] sm:$0xff]
    %v1290 = vld [vmem:[%s1288 + $0x8] sm:$0xff]
    %v1291 = vld [vmem:[%s1288 + $0x10] sm:$0xff]
    %v1292 = vld [vmem:[%s1288 + $0x18] sm:$0xff]
    %v1293 = vld [vmem:[%s1288 + $0x20] sm:$0xff]
    %v1294 = vld [vmem:[%s1288 + $0x28] sm:$0xff]
    %v1295 = vld [vmem:[%s1288 + $0x30] sm:$0xff]
    %v1296 = vld [vmem:[%s1288 + $0x38] sm:$0xff]
    %v1297 = vmul.f32 %v1273, %v1289
    %v1298 = vmul.f32 %v1275, %v1290
    %v1299 = vmul.f32 %v1277, %v1291
    %v1300 = vmul.f32 %v1279, %v1292
    %v1301 = vmul.f32 %v1281, %v1293
    %v1302 = vmul.f32 %v1283, %v1294
    %v1303 = vmul.f32 %v1285, %v1295
    %v1304 = vmul.f32 %v1287, %v1296
    %1305 = vrot.lane.b32.xlu0 %v748, 7
    %v1306 = vpop.permute.xlu0 %1305
    %1307 = vrot.lane.b32.xlu0 %v751, 7
    %v1308 = vpop.permute.xlu0 %1307
    %1309 = vrot.lane.b32.xlu0 %v905, 7
    %v1310 = vpop.permute.xlu0 %1309
    %1311 = vrot.lane.b32.xlu0 %v908, 7
    %v1312 = vpop.permute.xlu0 %1311
    %1313 = vrot.lane.b32.xlu0 %v1062, 7
    %v1314 = vpop.permute.xlu0 %1313
    %1315 = vrot.lane.b32.xlu0 %v1065, 7
    %v1316 = vpop.permute.xlu0 %1315
    %1317 = vrot.lane.b32.xlu0 %v1219, 7
    %v1318 = vpop.permute.xlu0 %1317
    %1319 = vrot.lane.b32.xlu0 %v1222, 7
    %v1320 = vpop.permute.xlu0 %1319
    %s1321 = scalar_lea.vmem %s15, 128
    %v1322 = vld [vmem:[%s1321] sm:$0xff]
    %v1323 = vld [vmem:[%s1321 + $0x8] sm:$0xff]
    %v1324 = vld [vmem:[%s1321 + $0x10] sm:$0xff]
    %v1325 = vld [vmem:[%s1321 + $0x18] sm:$0xff]
    %v1326 = vld [vmem:[%s1321 + $0x20] sm:$0xff]
    %v1327 = vld [vmem:[%s1321 + $0x28] sm:$0xff]
    %v1328 = vld [vmem:[%s1321 + $0x30] sm:$0xff]
    %v1329 = vld [vmem:[%s1321 + $0x38] sm:$0xff]
    %v1330 = vmul.f32 %v1306, %v1322
    %v1331 = vmul.f32 %v1308, %v1323
    %v1332 = vmul.f32 %v1310, %v1324
    %v1333 = vmul.f32 %v1312, %v1325
    %v1334 = vmul.f32 %v1314, %v1326
    %v1335 = vmul.f32 %v1316, %v1327
    %v1336 = vmul.f32 %v1318, %v1328
    %v1337 = vmul.f32 %v1320, %v1329
    %1338 = vrot.lane.b32.xlu0 %v748, 1
    %v1339 = vpop.permute.xlu0 %1338
    %1340 = vrot.lane.b32.xlu0 %v751, 1
    %v1341 = vpop.permute.xlu0 %1340
    %1342 = vrot.lane.b32.xlu0 %v905, 1
    %v1343 = vpop.permute.xlu0 %1342
    %1344 = vrot.lane.b32.xlu0 %v908, 1
    %v1345 = vpop.permute.xlu0 %1344
    %1346 = vrot.lane.b32.xlu0 %v1062, 1
    %v1347 = vpop.permute.xlu0 %1346
    %1348 = vrot.lane.b32.xlu0 %v1065, 1
    %v1349 = vpop.permute.xlu0 %1348
    %1350 = vrot.lane.b32.xlu0 %v1219, 1
    %v1351 = vpop.permute.xlu0 %1350
    %1352 = vrot.lane.b32.xlu0 %v1222, 1
    %v1353 = vpop.permute.xlu0 %1352
    %s1354 = scalar_lea.vmem %s15, 192
    %v1355 = vld [vmem:[%s1354] sm:$0xff]
    %v1356 = vld [vmem:[%s1354 + $0x8] sm:$0xff]
    %v1357 = vld [vmem:[%s1354 + $0x10] sm:$0xff]
    %v1358 = vld [vmem:[%s1354 + $0x18] sm:$0xff]
    %v1359 = vld [vmem:[%s1354 + $0x20] sm:$0xff]
    %v1360 = vld [vmem:[%s1354 + $0x28] sm:$0xff]
    %v1361 = vld [vmem:[%s1354 + $0x30] sm:$0xff]
    %v1362 = vld [vmem:[%s1354 + $0x38] sm:$0xff]
    %v1363 = vmul.f32 %v1339, %v1355
    %v1364 = vmul.f32 %v1341, %v1356
    %v1365 = vmul.f32 %v1343, %v1357
    %v1366 = vmul.f32 %v1345, %v1358
    %v1367 = vmul.f32 %v1347, %v1359
    %v1368 = vmul.f32 %v1349, %v1360
    %v1369 = vmul.f32 %v1351, %v1361
    %v1370 = vmul.f32 %v1353, %v1362
    %1371 = vrot.lane.b32.xlu0 %v748, 127
    %v1372 = vpop.permute.xlu0 %1371
    %1373 = vrot.lane.b32.xlu0 %v751, 127
    %v1374 = vpop.permute.xlu0 %1373
    %1375 = vrot.lane.b32.xlu0 %v905, 127
    %v1376 = vpop.permute.xlu0 %1375
    %1377 = vrot.lane.b32.xlu0 %v908, 127
    %v1378 = vpop.permute.xlu0 %1377
    %1379 = vrot.lane.b32.xlu0 %v1062, 127
    %v1380 = vpop.permute.xlu0 %1379
    %1381 = vrot.lane.b32.xlu0 %v1065, 127
    %v1382 = vpop.permute.xlu0 %1381
    %1383 = vrot.lane.b32.xlu0 %v1219, 127
    %v1384 = vpop.permute.xlu0 %1383
    %1385 = vrot.lane.b32.xlu0 %v1222, 127
    %v1386 = vpop.permute.xlu0 %1385
    %s1387 = scalar_lea.vmem %s15, 320
    %v1388 = vld [vmem:[%s1387] sm:$0xff]
    %v1389 = vld [vmem:[%s1387 + $0x8] sm:$0xff]
    %v1390 = vld [vmem:[%s1387 + $0x10] sm:$0xff]
    %v1391 = vld [vmem:[%s1387 + $0x18] sm:$0xff]
    %v1392 = vld [vmem:[%s1387 + $0x20] sm:$0xff]
    %v1393 = vld [vmem:[%s1387 + $0x28] sm:$0xff]
    %v1394 = vld [vmem:[%s1387 + $0x30] sm:$0xff]
    %v1395 = vld [vmem:[%s1387 + $0x38] sm:$0xff]
    %v1396 = vmul.f32 %v1372, %v1388
    %v1397 = vmul.f32 %v1374, %v1389
    %v1398 = vmul.f32 %v1376, %v1390
    %v1399 = vmul.f32 %v1378, %v1391
    %v1400 = vmul.f32 %v1380, %v1392
    %v1401 = vmul.f32 %v1382, %v1393
    %v1402 = vmul.f32 %v1384, %v1394
    %v1403 = vmul.f32 %v1386, %v1395
    %1404 = vrot.lane.b32.xlu0 %v748, 121
    %v1405 = vpop.permute.xlu0 %1404
    %1406 = vrot.lane.b32.xlu0 %v751, 121
    %v1407 = vpop.permute.xlu0 %1406
    %1408 = vrot.lane.b32.xlu0 %v905, 121
    %v1409 = vpop.permute.xlu0 %1408
    %1410 = vrot.lane.b32.xlu0 %v908, 121
    %v1411 = vpop.permute.xlu0 %1410
    %1412 = vrot.lane.b32.xlu0 %v1062, 121
    %v1413 = vpop.permute.xlu0 %1412
    %1414 = vrot.lane.b32.xlu0 %v1065, 121
    %v1415 = vpop.permute.xlu0 %1414
    %1416 = vrot.lane.b32.xlu0 %v1219, 121
    %v1417 = vpop.permute.xlu0 %1416
    %1418 = vrot.lane.b32.xlu0 %v1222, 121
    %v1419 = vpop.permute.xlu0 %1418
    %s1420 = scalar_lea.vmem %s15, 384
    %v1421 = vld [vmem:[%s1420] sm:$0xff]
    %v1422 = vld [vmem:[%s1420 + $0x8] sm:$0xff]
    %v1423 = vld [vmem:[%s1420 + $0x10] sm:$0xff]
    %v1424 = vld [vmem:[%s1420 + $0x18] sm:$0xff]
    %v1425 = vld [vmem:[%s1420 + $0x20] sm:$0xff]
    %v1426 = vld [vmem:[%s1420 + $0x28] sm:$0xff]
    %v1427 = vld [vmem:[%s1420 + $0x30] sm:$0xff]
    %v1428 = vld [vmem:[%s1420 + $0x38] sm:$0xff]
    %v1429 = vmul.f32 %v1405, %v1421
    %v1430 = vmul.f32 %v1407, %v1422
    %v1431 = vmul.f32 %v1409, %v1423
    %v1432 = vmul.f32 %v1411, %v1424
    %v1433 = vmul.f32 %v1413, %v1425
    %v1434 = vmul.f32 %v1415, %v1426
    %v1435 = vmul.f32 %v1417, %v1427
    %v1436 = vmul.f32 %v1419, %v1428
    %1437 = vrot.lane.b32.xlu0 %v748, 120
    %v1438 = vpop.permute.xlu0 %1437
    %1439 = vrot.lane.b32.xlu0 %v751, 120
    %v1440 = vpop.permute.xlu0 %1439
    %1441 = vrot.lane.b32.xlu0 %v905, 120
    %v1442 = vpop.permute.xlu0 %1441
    %1443 = vrot.lane.b32.xlu0 %v908, 120
    %v1444 = vpop.permute.xlu0 %1443
    %1445 = vrot.lane.b32.xlu0 %v1062, 120
    %v1446 = vpop.permute.xlu0 %1445
    %1447 = vrot.lane.b32.xlu0 %v1065, 120
    %v1448 = vpop.permute.xlu0 %1447
    %1449 = vrot.lane.b32.xlu0 %v1219, 120
    %v1450 = vpop.permute.xlu0 %1449
    %1451 = vrot.lane.b32.xlu0 %v1222, 120
    %v1452 = vpop.permute.xlu0 %1451
    %s1453 = scalar_lea.vmem %s15, 448
    %v1454 = vld [vmem:[%s1453] sm:$0xff]
    %v1455 = vld [vmem:[%s1453 + $0x8] sm:$0xff]
    %v1456 = vld [vmem:[%s1453 + $0x10] sm:$0xff]
    %v1457 = vld [vmem:[%s1453 + $0x18] sm:$0xff]
    %v1458 = vld [vmem:[%s1453 + $0x20] sm:$0xff]
    %v1459 = vld [vmem:[%s1453 + $0x28] sm:$0xff]
    %v1460 = vld [vmem:[%s1453 + $0x30] sm:$0xff]
    %v1461 = vld [vmem:[%s1453 + $0x38] sm:$0xff]
    %v1462 = vmul.f32 %v1438, %v1454
    %v1463 = vmul.f32 %v1440, %v1455
    %v1464 = vmul.f32 %v1442, %v1456
    %v1465 = vmul.f32 %v1444, %v1457
    %v1466 = vmul.f32 %v1446, %v1458
    %v1467 = vmul.f32 %v1448, %v1459
    %v1468 = vmul.f32 %v1450, %v1460
    %v1469 = vmul.f32 %v1452, %v1461
    %1470 = vrot.lane.b32.xlu0 %v748, 119
    %v1471 = vpop.permute.xlu0 %1470
    %1472 = vrot.lane.b32.xlu0 %v751, 119
    %v1473 = vpop.permute.xlu0 %1472
    %1474 = vrot.lane.b32.xlu0 %v905, 119
    %v1475 = vpop.permute.xlu0 %1474
    %1476 = vrot.lane.b32.xlu0 %v908, 119
    %v1477 = vpop.permute.xlu0 %1476
    %1478 = vrot.lane.b32.xlu0 %v1062, 119
    %v1479 = vpop.permute.xlu0 %1478
    %1480 = vrot.lane.b32.xlu0 %v1065, 119
    %v1481 = vpop.permute.xlu0 %1480
    %1482 = vrot.lane.b32.xlu0 %v1219, 119
    %v1483 = vpop.permute.xlu0 %1482
    %1484 = vrot.lane.b32.xlu0 %v1222, 119
    %v1485 = vpop.permute.xlu0 %1484
    %s1486 = scalar_lea.vmem %s15, 512
    %v1487 = vld [vmem:[%s1486] sm:$0xff]
    %v1488 = vld [vmem:[%s1486 + $0x8] sm:$0xff]
    %v1489 = vld [vmem:[%s1486 + $0x10] sm:$0xff]
    %v1490 = vld [vmem:[%s1486 + $0x18] sm:$0xff]
    %v1491 = vld [vmem:[%s1486 + $0x20] sm:$0xff]
    %v1492 = vld [vmem:[%s1486 + $0x28] sm:$0xff]
    %v1493 = vld [vmem:[%s1486 + $0x30] sm:$0xff]
    %v1494 = vld [vmem:[%s1486 + $0x38] sm:$0xff]
    %v1495 = vmul.f32 %v1471, %v1487
    %v1496 = vmul.f32 %v1473, %v1488
    %v1497 = vmul.f32 %v1475, %v1489
    %v1498 = vmul.f32 %v1477, %v1490
    %v1499 = vmul.f32 %v1479, %v1491
    %v1500 = vmul.f32 %v1481, %v1492
    %v1501 = vmul.f32 %v1483, %v1493
    %v1502 = vmul.f32 %v1485, %v1494
    %v1503 = vpack.c.bf16 %v1265, %v1264
    %v1504 = vpack.c.bf16 %v1267, %v1266
    %v1505 = vpack.c.bf16 %v1269, %v1268
    %v1506 = vpack.c.bf16 %v1271, %v1270
    %v1507 = vpack.c.bf16 %v1298, %v1297
    %v1508 = vpack.c.bf16 %v1300, %v1299
    %v1509 = vpack.c.bf16 %v1302, %v1301
    %v1510 = vpack.c.bf16 %v1304, %v1303
    %v1511 = vpack.c.bf16 %v1331, %v1330
    %v1512 = vpack.c.bf16 %v1333, %v1332
    %v1513 = vpack.c.bf16 %v1335, %v1334
    %v1514 = vpack.c.bf16 %v1337, %v1336
    %v1515 = vpack.c.bf16 %v1364, %v1363
    %v1516 = vpack.c.bf16 %v1366, %v1365
    %v1517 = vpack.c.bf16 %v1368, %v1367
    %v1518 = vpack.c.bf16 %v1370, %v1369
    %v1519 = vpack.c.bf16 %v751, %v748
    %v1520 = vpack.c.bf16 %v908, %v905
    %v1521 = vpack.c.bf16 %v1065, %v1062
    %v1522 = vpack.c.bf16 %v1222, %v1219
    %v1523 = vpack.c.bf16 %v1397, %v1396
    %v1524 = vpack.c.bf16 %v1399, %v1398
    %v1525 = vpack.c.bf16 %v1401, %v1400
    %v1526 = vpack.c.bf16 %v1403, %v1402
    %v1527 = vpack.c.bf16 %v1430, %v1429
    %v1528 = vpack.c.bf16 %v1432, %v1431
    %v1529 = vpack.c.bf16 %v1434, %v1433
    %v1530 = vpack.c.bf16 %v1436, %v1435
    %v1531 = vpack.c.bf16 %v1463, %v1462
    %v1532 = vpack.c.bf16 %v1465, %v1464
    %v1533 = vpack.c.bf16 %v1467, %v1466
    %v1534 = vpack.c.bf16 %v1469, %v1468
    %v1535 = vpack.c.bf16 %v1496, %v1495
    %v1536 = vpack.c.bf16 %v1498, %v1497
    %v1537 = vpack.c.bf16 %v1500, %v1499
    %v1538 = vpack.c.bf16 %v1502, %v1501
    %1540 = vset.pattern.permute.xlu0 0
    %1541 = vperm.xlu0 %1540, %v1236
    %v1542 = vpop.permute.xlu0 %1541
    %1545 = vset.pattern.permute.xlu0 0
    %1546 = vperm.xlu0 %1545, %v1237
    %v1547 = vpop.permute.xlu0 %1546
    %1550 = vset.pattern.permute.xlu0 0
    %1551 = vperm.xlu0 %1550, %v1238
    %v1552 = vpop.permute.xlu0 %1551
    %1555 = vset.pattern.permute.xlu0 0
    %1556 = vperm.xlu0 %1555, %v1239
    %v1557 = vpop.permute.xlu0 %1556
    %v1571 = vunpack.c.l.b16 %v1224
    %v1572 = vunpack.c.h.b16 %v1224
    %v1573 = vunpack.c.l.b16 %v1225
    %v1574 = vunpack.c.h.b16 %v1225
    %v1575 = vunpack.c.l.b16 %v1226
    %v1576 = vunpack.c.l.b16 %v1227
    %v1577 = vunpack.c.h.b16 %v1227
    %v1578 = vunpack.c.l.b16 %v1228
    %v1579 = vunpack.c.h.b16 %v1228
    %v1580 = vunpack.c.l.b16 %v1229
    %v1581 = vunpack.c.l.b16 %v1230
    %v1582 = vunpack.c.h.b16 %v1230
    %v1583 = vunpack.c.l.b16 %v1231
    %v1584 = vunpack.c.h.b16 %v1231
    %v1585 = vunpack.c.l.b16 %v1232
    %v1586 = vunpack.c.l.b16 %v1233
    %v1587 = vunpack.c.h.b16 %v1233
    %v1588 = vunpack.c.l.b16 %v1234
    %v1589 = vunpack.c.h.b16 %v1234
    %v1590 = vunpack.c.l.b16 %v1235
    %v1591 = vpack.c.b16 %v1576, %v1571
    %v1592 = vpack.c.b16 %v1577, %v1572
    %v1593 = vpack.c.b16 %v1578, %v1573
    %v1594 = vpack.c.b16 %v1579, %v1574
    %v1595 = vpack.c.b16 %v1580, %v1575
    %v1596 = vpack.c.b16 %v1586, %v1581
    %v1597 = vpack.c.b16 %v1587, %v1582
    %v1598 = vpack.c.b16 %v1588, %v1583
    %v1599 = vpack.c.b16 %v1589, %v1584
    %v1600 = vpack.c.b16 %v1590, %v1585
    %vm1609 = vcmask 523264
    %v1611 = vsel %vm1609, %v1595, 0
    %v1614 = vsel %vm1609, %v1600, 0
    %1616 = vmatpush.bf16.msra.mxu0 %v1510
    %1617 = vmatpush.bf16.msra.mxu0 %v1509
    %1618 = vmatpush.bf16.msra.mxu0 %v1508
    %1619 = vmatpush.bf16.msra.mxu0 %v1507
    %1620 = vmatpush.bf16.msra.mxu0 %v1506
    %1621 = vmatpush.bf16.msra.mxu0 %v1505
    %1622 = vmatpush.bf16.msra.mxu0 %v1504
    %1623 = vmatpush.bf16.msra.mxu0 %v1503
    %1624 = vmatmul.bf16.gmra.mxu0 %v1591
    %v1625 = vpop.f32.mrf.mxu0
    %v1626 = vadd.f32 %v1542, %v1625
    %v1627 = vpop.f32.mrf.mxu0
    %v1628 = vadd.f32 %v1547, %v1627
    %1629 = vmatmul.bf16.gmra.mxu0 %v1596
    %v1630 = vpop.f32.mrf.mxu0
    %v1631 = vadd.f32 %v1552, %v1630
    %v1632 = vpop.f32.mrf.mxu0
    %v1633 = vadd.f32 %v1557, %v1632
    %1634 = vdwg.mxu0
    %1635 = vmatpush.bf16.msra.mxu0 %v1518
    %1636 = vmatpush.bf16.msra.mxu0 %v1517
    %1637 = vmatpush.bf16.msra.mxu0 %v1516
    %1638 = vmatpush.bf16.msra.mxu0 %v1515
    %1639 = vmatpush.bf16.msra.mxu0 %v1514
    %1640 = vmatpush.bf16.msra.mxu0 %v1513
    %1641 = vmatpush.bf16.msra.mxu0 %v1512
    %1642 = vmatpush.bf16.msra.mxu0 %v1511
    %1643 = vmatmul.bf16.gmra.mxu0 %v1592
    %v1644 = vpop.f32.mrf.mxu0
    %v1645 = vadd.f32 %v1626, %v1644
    %v1646 = vpop.f32.mrf.mxu0
    %v1647 = vadd.f32 %v1628, %v1646
    %1648 = vmatmul.bf16.gmra.mxu0 %v1597
    %v1649 = vpop.f32.mrf.mxu0
    %v1650 = vadd.f32 %v1631, %v1649
    %v1651 = vpop.f32.mrf.mxu0
    %v1652 = vadd.f32 %v1633, %v1651
    %1653 = vdwg.mxu0
    %1654 = vmatpush.bf16.msra.mxu0 %v1526
    %1655 = vmatpush.bf16.msra.mxu0 %v1525
    %1656 = vmatpush.bf16.msra.mxu0 %v1524
    %1657 = vmatpush.bf16.msra.mxu0 %v1523
    %1658 = vmatpush.bf16.msra.mxu0 %v1522
    %1659 = vmatpush.bf16.msra.mxu0 %v1521
    %1660 = vmatpush.bf16.msra.mxu0 %v1520
    %1661 = vmatpush.bf16.msra.mxu0 %v1519
    %1662 = vmatmul.bf16.gmra.mxu0 %v1593
    %v1663 = vpop.f32.mrf.mxu0
    %v1664 = vadd.f32 %v1645, %v1663
    %v1665 = vpop.f32.mrf.mxu0
    %v1666 = vadd.f32 %v1647, %v1665
    %1667 = vmatmul.bf16.gmra.mxu0 %v1598
    %v1668 = vpop.f32.mrf.mxu0
    %v1669 = vadd.f32 %v1650, %v1668
    %v1670 = vpop.f32.mrf.mxu0
    %v1671 = vadd.f32 %v1652, %v1670
    %1672 = vdwg.mxu0
    %1673 = vmatpush.bf16.msra.mxu0 %v1534
    %1674 = vmatpush.bf16.msra.mxu0 %v1533
    %1675 = vmatpush.bf16.msra.mxu0 %v1532
    %1676 = vmatpush.bf16.msra.mxu0 %v1531
    %1677 = vmatpush.bf16.msra.mxu0 %v1530
    %1678 = vmatpush.bf16.msra.mxu0 %v1529
    %1679 = vmatpush.bf16.msra.mxu0 %v1528
    %1680 = vmatpush.bf16.msra.mxu0 %v1527
    %1681 = vmatmul.bf16.gmra.mxu0 %v1594
    %v1682 = vpop.f32.mrf.mxu0
    %v1683 = vadd.f32 %v1664, %v1682
    %v1684 = vpop.f32.mrf.mxu0
    %v1685 = vadd.f32 %v1666, %v1684
    %1686 = vmatmul.bf16.gmra.mxu0 %v1599
    %v1687 = vpop.f32.mrf.mxu0
    %v1688 = vadd.f32 %v1669, %v1687
    %v1689 = vpop.f32.mrf.mxu0
    %v1690 = vadd.f32 %v1671, %v1689
    %1691 = vdwg.mxu0
    %1692 = vmatpush.bf16.msra.mxu0 0
    %1693 = vmatpush.bf16.msra.mxu0 0
    %1694 = vmatpush.bf16.msra.mxu0 0
    %1695 = vmatpush.bf16.msra.mxu0 0
    %1696 = vmatpush.bf16.msra.mxu0 %v1538
    %1697 = vmatpush.bf16.msra.mxu0 %v1537
    %1698 = vmatpush.bf16.msra.mxu0 %v1536
    %1699 = vmatpush.bf16.msra.mxu0 %v1535
    %1700 = vmatmul.bf16.gmra.mxu0 %v1611
    %v1701 = vpop.f32.mrf.mxu0
    %v1702 = vadd.f32 %v1683, %v1701
    %v1703 = vpop.f32.mrf.mxu0
    %v1704 = vadd.f32 %v1685, %v1703
    %1705 = vmatmul.bf16.gmra.mxu0 %v1614
    %v1706 = vpop.f32.mrf.mxu0
    %v1707 = vadd.f32 %v1688, %v1706
    %v1708 = vpop.f32.mrf.mxu0
    %v1709 = vadd.f32 %v1690, %v1708
    %1710 = vdwg.mxu0
    %v1711 = vmul.f32 %v1702, 0.01
    %v1712 = vmul.f32 %v1704, 0.01
    %v1713 = vmul.f32 %v1707, 0.01
    %v1714 = vmul.f32 %v1709, 0.01
    %v1715 = vmax.f32 %v1702, %v1711
    %v1716 = vmax.f32 %v1704, %v1712
    %v1717 = vmax.f32 %v1707, %v1713
    %v1718 = vmax.f32 %v1709, %v1714
    %v1719 = vld [vmem:[%s6] sm:$0xff]
    %v1720 = vld [vmem:[%s6 + $0x8] sm:$0xf]
    %v1721 = vld [vmem:[%s6 + $0xc] sm:$0xff]
    %v1722 = vld [vmem:[%s6 + $0x14] sm:$0xf]
    %v1723 = vld [vmem:[%s6 + $0x18] sm:$0xff]
    %v1724 = vld [vmem:[%s6 + $0x20] sm:$0xf]
    %v1725 = vld [vmem:[%s6 + $0x24] sm:$0xff]
    %v1726 = vld [vmem:[%s6 + $0x2c] sm:$0xf]
    %v1727 = vld [vmem:[%s7] sm:$0xff]
    %v1728 = vld [vmem:[%s7 + $0x8] sm:$0xff]
    %v1729 = vld [vmem:[%s7 + $0x10] sm:$0xff]
    %v1730 = vld [vmem:[%s7 + $0x18] sm:$0xff]
    %1731 = vrot.lane.b32.xlu0 %v1715, 9
    %v1732 = vpop.permute.xlu0 %1731
    %1733 = vrot.lane.b32.xlu0 %v1716, 9
    %v1734 = vpop.permute.xlu0 %1733
    %1735 = vrot.lane.b32.xlu0 %v1717, 9
    %v1736 = vpop.permute.xlu0 %1735
    %1737 = vrot.lane.b32.xlu0 %v1718, 9
    %v1738 = vpop.permute.xlu0 %1737
    %v1739 = vld [vmem:[%s15] sm:$0xff]
    %v1740 = vld [vmem:[%s15 + $0x8] sm:$0xff]
    %v1741 = vld [vmem:[%s15 + $0x10] sm:$0xff]
    %v1742 = vld [vmem:[%s15 + $0x18] sm:$0xff]
    %v1743 = vmul.f32 %v1732, %v1739
    %v1744 = vmul.f32 %v1734, %v1740
    %v1745 = vmul.f32 %v1736, %v1741
    %v1746 = vmul.f32 %v1738, %v1742
    %1747 = vrot.lane.b32.xlu0 %v1715, 8
    %v1748 = vpop.permute.xlu0 %1747
    %1749 = vrot.lane.b32.xlu0 %v1716, 8
    %v1750 = vpop.permute.xlu0 %1749
    %1751 = vrot.lane.b32.xlu0 %v1717, 8
    %v1752 = vpop.permute.xlu0 %1751
    %1753 = vrot.lane.b32.xlu0 %v1718, 8
    %v1754 = vpop.permute.xlu0 %1753
    %v1755 = vld [vmem:[%s1288] sm:$0xff]
    %v1756 = vld [vmem:[%s1288 + $0x8] sm:$0xff]
    %v1757 = vld [vmem:[%s1288 + $0x10] sm:$0xff]
    %v1758 = vld [vmem:[%s1288 + $0x18] sm:$0xff]
    %v1759 = vmul.f32 %v1748, %v1755
    %v1760 = vmul.f32 %v1750, %v1756
    %v1761 = vmul.f32 %v1752, %v1757
    %v1762 = vmul.f32 %v1754, %v1758
    %1763 = vrot.lane.b32.xlu0 %v1715, 7
    %v1764 = vpop.permute.xlu0 %1763
    %1765 = vrot.lane.b32.xlu0 %v1716, 7
    %v1766 = vpop.permute.xlu0 %1765
    %1767 = vrot.lane.b32.xlu0 %v1717, 7
    %v1768 = vpop.permute.xlu0 %1767
    %1769 = vrot.lane.b32.xlu0 %v1718, 7
    %v1770 = vpop.permute.xlu0 %1769
    %v1771 = vld [vmem:[%s1321] sm:$0xff]
    %v1772 = vld [vmem:[%s1321 + $0x8] sm:$0xff]
    %v1773 = vld [vmem:[%s1321 + $0x10] sm:$0xff]
    %v1774 = vld [vmem:[%s1321 + $0x18] sm:$0xff]
    %v1775 = vmul.f32 %v1764, %v1771
    %v1776 = vmul.f32 %v1766, %v1772
    %v1777 = vmul.f32 %v1768, %v1773
    %v1778 = vmul.f32 %v1770, %v1774
    %1779 = vrot.lane.b32.xlu0 %v1715, 1
    %v1780 = vpop.permute.xlu0 %1779
    %1781 = vrot.lane.b32.xlu0 %v1716, 1
    %v1782 = vpop.permute.xlu0 %1781
    %1783 = vrot.lane.b32.xlu0 %v1717, 1
    %v1784 = vpop.permute.xlu0 %1783
    %1785 = vrot.lane.b32.xlu0 %v1718, 1
    %v1786 = vpop.permute.xlu0 %1785
    %v1787 = vld [vmem:[%s1354] sm:$0xff]
    %v1788 = vld [vmem:[%s1354 + $0x8] sm:$0xff]
    %v1789 = vld [vmem:[%s1354 + $0x10] sm:$0xff]
    %v1790 = vld [vmem:[%s1354 + $0x18] sm:$0xff]
    %v1791 = vmul.f32 %v1780, %v1787
    %v1792 = vmul.f32 %v1782, %v1788
    %v1793 = vmul.f32 %v1784, %v1789
    %v1794 = vmul.f32 %v1786, %v1790
    %1795 = vrot.lane.b32.xlu0 %v1715, 127
    %v1796 = vpop.permute.xlu0 %1795
    %1797 = vrot.lane.b32.xlu0 %v1716, 127
    %v1798 = vpop.permute.xlu0 %1797
    %1799 = vrot.lane.b32.xlu0 %v1717, 127
    %v1800 = vpop.permute.xlu0 %1799
    %1801 = vrot.lane.b32.xlu0 %v1718, 127
    %v1802 = vpop.permute.xlu0 %1801
    %v1803 = vld [vmem:[%s1387] sm:$0xff]
    %v1804 = vld [vmem:[%s1387 + $0x8] sm:$0xff]
    %v1805 = vld [vmem:[%s1387 + $0x10] sm:$0xff]
    %v1806 = vld [vmem:[%s1387 + $0x18] sm:$0xff]
    %v1807 = vmul.f32 %v1796, %v1803
    %v1808 = vmul.f32 %v1798, %v1804
    %v1809 = vmul.f32 %v1800, %v1805
    %v1810 = vmul.f32 %v1802, %v1806
    %1811 = vrot.lane.b32.xlu0 %v1715, 121
    %v1812 = vpop.permute.xlu0 %1811
    %1813 = vrot.lane.b32.xlu0 %v1716, 121
    %v1814 = vpop.permute.xlu0 %1813
    %1815 = vrot.lane.b32.xlu0 %v1717, 121
    %v1816 = vpop.permute.xlu0 %1815
    %1817 = vrot.lane.b32.xlu0 %v1718, 121
    %v1818 = vpop.permute.xlu0 %1817
    %v1819 = vld [vmem:[%s1420] sm:$0xff]
    %v1820 = vld [vmem:[%s1420 + $0x8] sm:$0xff]
    %v1821 = vld [vmem:[%s1420 + $0x10] sm:$0xff]
    %v1822 = vld [vmem:[%s1420 + $0x18] sm:$0xff]
    %v1823 = vmul.f32 %v1812, %v1819
    %v1824 = vmul.f32 %v1814, %v1820
    %v1825 = vmul.f32 %v1816, %v1821
    %v1826 = vmul.f32 %v1818, %v1822
    %1827 = vrot.lane.b32.xlu0 %v1715, 120
    %v1828 = vpop.permute.xlu0 %1827
    %1829 = vrot.lane.b32.xlu0 %v1716, 120
    %v1830 = vpop.permute.xlu0 %1829
    %1831 = vrot.lane.b32.xlu0 %v1717, 120
    %v1832 = vpop.permute.xlu0 %1831
    %1833 = vrot.lane.b32.xlu0 %v1718, 120
    %v1834 = vpop.permute.xlu0 %1833
    %v1835 = vld [vmem:[%s1453] sm:$0xff]
    %v1836 = vld [vmem:[%s1453 + $0x8] sm:$0xff]
    %v1837 = vld [vmem:[%s1453 + $0x10] sm:$0xff]
    %v1838 = vld [vmem:[%s1453 + $0x18] sm:$0xff]
    %v1839 = vmul.f32 %v1828, %v1835
    %v1840 = vmul.f32 %v1830, %v1836
    %v1841 = vmul.f32 %v1832, %v1837
    %v1842 = vmul.f32 %v1834, %v1838
    %1843 = vrot.lane.b32.xlu0 %v1715, 119
    %v1844 = vpop.permute.xlu0 %1843
    %1845 = vrot.lane.b32.xlu0 %v1716, 119
    %v1846 = vpop.permute.xlu0 %1845
    %1847 = vrot.lane.b32.xlu0 %v1717, 119
    %v1848 = vpop.permute.xlu0 %1847
    %1849 = vrot.lane.b32.xlu0 %v1718, 119
    %v1850 = vpop.permute.xlu0 %1849
    %v1851 = vld [vmem:[%s1486] sm:$0xff]
    %v1852 = vld [vmem:[%s1486 + $0x8] sm:$0xff]
    %v1853 = vld [vmem:[%s1486 + $0x10] sm:$0xff]
    %v1854 = vld [vmem:[%s1486 + $0x18] sm:$0xff]
    %v1855 = vmul.f32 %v1844, %v1851
    %v1856 = vmul.f32 %v1846, %v1852
    %v1857 = vmul.f32 %v1848, %v1853
    %v1858 = vmul.f32 %v1850, %v1854
    %v1859 = vpack.c.bf16 %v1744, %v1743
    %v1860 = vpack.c.bf16 %v1746, %v1745
    %v1861 = vpack.c.bf16 %v1760, %v1759
    %v1862 = vpack.c.bf16 %v1762, %v1761
    %v1863 = vpack.c.bf16 %v1776, %v1775
    %v1864 = vpack.c.bf16 %v1778, %v1777
    %v1865 = vpack.c.bf16 %v1792, %v1791
    %v1866 = vpack.c.bf16 %v1794, %v1793
    %v1867 = vpack.c.bf16 %v1716, %v1715
    %v1868 = vpack.c.bf16 %v1718, %v1717
    %v1869 = vpack.c.bf16 %v1808, %v1807
    %v1870 = vpack.c.bf16 %v1810, %v1809
    %v1871 = vpack.c.bf16 %v1824, %v1823
    %v1872 = vpack.c.bf16 %v1826, %v1825
    %v1873 = vpack.c.bf16 %v1840, %v1839
    %v1874 = vpack.c.bf16 %v1842, %v1841
    %v1875 = vpack.c.bf16 %v1856, %v1855
    %v1876 = vpack.c.bf16 %v1858, %v1857
    %1878 = vset.pattern.permute.xlu0 0
    %1879 = vperm.xlu0 %1878, %v1727
    %v1880 = vpop.permute.xlu0 %1879
    %1883 = vset.pattern.permute.xlu0 0
    %1884 = vperm.xlu0 %1883, %v1728
    %v1885 = vpop.permute.xlu0 %1884
    %1888 = vset.pattern.permute.xlu0 0
    %1889 = vperm.xlu0 %1888, %v1729
    %v1890 = vpop.permute.xlu0 %1889
    %1893 = vset.pattern.permute.xlu0 0
    %1894 = vperm.xlu0 %1893, %v1730
    %v1895 = vpop.permute.xlu0 %1894
    %v1905 = vunpack.c.l.b16 %v1719
    %v1906 = vunpack.c.h.b16 %v1719
    %v1907 = vunpack.c.l.b16 %v1720
    %v1908 = vunpack.c.l.b16 %v1721
    %v1909 = vunpack.c.h.b16 %v1721
    %v1910 = vunpack.c.l.b16 %v1722
    %v1911 = vunpack.c.l.b16 %v1723
    %v1912 = vunpack.c.h.b16 %v1723
    %v1913 = vunpack.c.l.b16 %v1724
    %v1914 = vunpack.c.l.b16 %v1725
    %v1915 = vunpack.c.h.b16 %v1725
    %v1916 = vunpack.c.l.b16 %v1726
    %v1917 = vpack.c.b16 %v1908, %v1905
    %v1918 = vpack.c.b16 %v1909, %v1906
    %v1919 = vpack.c.b16 %v1910, %v1907
    %v1920 = vpack.c.b16 %v1914, %v1911
    %v1921 = vpack.c.b16 %v1915, %v1912
    %v1922 = vpack.c.b16 %v1916, %v1913
    %vm1927 = vcmask 261120
    %v1929 = vsel %vm1927, %v1919, 0
    %v1932 = vsel %vm1927, %v1922, 0
    %1934 = vmatpush.bf16.msra.mxu0 %v1866
    %1935 = vmatpush.bf16.msra.mxu0 %v1865
    %1936 = vmatpush.bf16.msra.mxu0 %v1864
    %1937 = vmatpush.bf16.msra.mxu0 %v1863
    %1938 = vmatpush.bf16.msra.mxu0 %v1862
    %1939 = vmatpush.bf16.msra.mxu0 %v1861
    %1940 = vmatpush.bf16.msra.mxu0 %v1860
    %1941 = vmatpush.bf16.msra.mxu0 %v1859
    %1942 = vmatmul.bf16.gmra.mxu0 %v1917
    %v1943 = vpop.f32.mrf.mxu0
    %v1944 = vadd.f32 %v1880, %v1943
    %v1945 = vpop.f32.mrf.mxu0
    %v1946 = vadd.f32 %v1885, %v1945
    %1947 = vmatmul.bf16.gmra.mxu0 %v1920
    %v1948 = vpop.f32.mrf.mxu0
    %v1949 = vadd.f32 %v1890, %v1948
    %v1950 = vpop.f32.mrf.mxu0
    %v1951 = vadd.f32 %v1895, %v1950
    %1952 = vdwg.mxu0
    %1953 = vmatpush.bf16.msra.mxu0 %v1874
    %1954 = vmatpush.bf16.msra.mxu0 %v1873
    %1955 = vmatpush.bf16.msra.mxu0 %v1872
    %1956 = vmatpush.bf16.msra.mxu0 %v1871
    %1957 = vmatpush.bf16.msra.mxu0 %v1870
    %1958 = vmatpush.bf16.msra.mxu0 %v1869
    %1959 = vmatpush.bf16.msra.mxu0 %v1868
    %1960 = vmatpush.bf16.msra.mxu0 %v1867
    %1961 = vmatmul.bf16.gmra.mxu0 %v1918
    %v1962 = vpop.f32.mrf.mxu0
    %v1963 = vadd.f32 %v1944, %v1962
    %v1964 = vpop.f32.mrf.mxu0
    %v1965 = vadd.f32 %v1946, %v1964
    %1966 = vmatmul.bf16.gmra.mxu0 %v1921
    %v1967 = vpop.f32.mrf.mxu0
    %v1968 = vadd.f32 %v1949, %v1967
    %v1969 = vpop.f32.mrf.mxu0
    %v1970 = vadd.f32 %v1951, %v1969
    %1971 = vdwg.mxu0
    %1972 = vmatpush.bf16.msra.mxu0 0
    %1973 = vmatpush.bf16.msra.mxu0 0
    %1974 = vmatpush.bf16.msra.mxu0 0
    %1975 = vmatpush.bf16.msra.mxu0 0
    %1976 = vmatpush.bf16.msra.mxu0 0
    %1977 = vmatpush.bf16.msra.mxu0 0
    %1978 = vmatpush.bf16.msra.mxu0 %v1876
    %1979 = vmatpush.bf16.msra.mxu0 %v1875
    %1980 = vmatmul.bf16.gmra.mxu0 %v1929
    %v1981 = vpop.f32.mrf.mxu0
    %v1982 = vadd.f32 %v1963, %v1981
    %v1983 = vpop.f32.mrf.mxu0
    %v1984 = vadd.f32 %v1965, %v1983
    %1985 = vmatmul.bf16.gmra.mxu0 %v1932
    %v1986 = vpop.f32.mrf.mxu0
    %v1987 = vadd.f32 %v1968, %v1986
    %v1988 = vpop.f32.mrf.mxu0
    %v1989 = vadd.f32 %v1970, %v1988
    %1990 = vdwg.mxu0
    %v1991 = vmul.f32 %v1982, 0.01
    %v1992 = vmul.f32 %v1984, 0.01
    %v1993 = vmul.f32 %v1987, 0.01
    %v1994 = vmul.f32 %v1989, 0.01
    %v1995 = vmax.f32 %v1982, %v1991
    %v1996 = vmax.f32 %v1984, %v1992
    %v1997 = vmax.f32 %v1987, %v1993
    %v1998 = vmax.f32 %v1989, %v1994
    %v1999 = vld [vmem:[%s8] sm:$0xff]
    %v2000 = vld [vmem:[%s8 + $0x8] sm:$0xf]
    %v2001 = vld [vmem:[%s8 + $0xc] sm:$0xff]
    %v2002 = vld [vmem:[%s8 + $0x14] sm:$0xf]
    %v2003 = vld [vmem:[%s8 + $0x18] sm:$0xff]
    %v2004 = vld [vmem:[%s8 + $0x20] sm:$0xf]
    %v2005 = vld [vmem:[%s8 + $0x24] sm:$0xff]
    %v2006 = vld [vmem:[%s8 + $0x2c] sm:$0xf]
    %2007 = vrot.lane.b32.xlu0 %v1995, 9
    %v2008 = vpop.permute.xlu0 %2007
    %2009 = vrot.lane.b32.xlu0 %v1996, 9
    %v2010 = vpop.permute.xlu0 %2009
    %2011 = vrot.lane.b32.xlu0 %v1997, 9
    %v2012 = vpop.permute.xlu0 %2011
    %2013 = vrot.lane.b32.xlu0 %v1998, 9
    %v2014 = vpop.permute.xlu0 %2013
    %v2015 = vmul.f32 %v2008, %v1739
    %v2016 = vmul.f32 %v2010, %v1740
    %v2017 = vmul.f32 %v2012, %v1741
    %v2018 = vmul.f32 %v2014, %v1742
    %2019 = vrot.lane.b32.xlu0 %v1995, 8
    %v2020 = vpop.permute.xlu0 %2019
    %2021 = vrot.lane.b32.xlu0 %v1996, 8
    %v2022 = vpop.permute.xlu0 %2021
    %2023 = vrot.lane.b32.xlu0 %v1997, 8
    %v2024 = vpop.permute.xlu0 %2023
    %2025 = vrot.lane.b32.xlu0 %v1998, 8
    %v2026 = vpop.permute.xlu0 %2025
    %v2027 = vmul.f32 %v2020, %v1755
    %v2028 = vmul.f32 %v2022, %v1756
    %v2029 = vmul.f32 %v2024, %v1757
    %v2030 = vmul.f32 %v2026, %v1758
    %2031 = vrot.lane.b32.xlu0 %v1995, 7
    %v2032 = vpop.permute.xlu0 %2031
    %2033 = vrot.lane.b32.xlu0 %v1996, 7
    %v2034 = vpop.permute.xlu0 %2033
    %2035 = vrot.lane.b32.xlu0 %v1997, 7
    %v2036 = vpop.permute.xlu0 %2035
    %2037 = vrot.lane.b32.xlu0 %v1998, 7
    %v2038 = vpop.permute.xlu0 %2037
    %v2039 = vmul.f32 %v2032, %v1771
    %v2040 = vmul.f32 %v2034, %v1772
    %v2041 = vmul.f32 %v2036, %v1773
    %v2042 = vmul.f32 %v2038, %v1774
    %2043 = vrot.lane.b32.xlu0 %v1995, 1
    %v2044 = vpop.permute.xlu0 %2043
    %2045 = vrot.lane.b32.xlu0 %v1996, 1
    %v2046 = vpop.permute.xlu0 %2045
    %2047 = vrot.lane.b32.xlu0 %v1997, 1
    %v2048 = vpop.permute.xlu0 %2047
    %2049 = vrot.lane.b32.xlu0 %v1998, 1
    %v2050 = vpop.permute.xlu0 %2049
    %v2051 = vmul.f32 %v2044, %v1787
    %v2052 = vmul.f32 %v2046, %v1788
    %v2053 = vmul.f32 %v2048, %v1789
    %v2054 = vmul.f32 %v2050, %v1790
    %2055 = vrot.lane.b32.xlu0 %v1995, 127
    %v2056 = vpop.permute.xlu0 %2055
    %2057 = vrot.lane.b32.xlu0 %v1996, 127
    %v2058 = vpop.permute.xlu0 %2057
    %2059 = vrot.lane.b32.xlu0 %v1997, 127
    %v2060 = vpop.permute.xlu0 %2059
    %2061 = vrot.lane.b32.xlu0 %v1998, 127
    %v2062 = vpop.permute.xlu0 %2061
    %v2063 = vmul.f32 %v2056, %v1803
    %v2064 = vmul.f32 %v2058, %v1804
    %v2065 = vmul.f32 %v2060, %v1805
    %v2066 = vmul.f32 %v2062, %v1806
    %2067 = vrot.lane.b32.xlu0 %v1995, 121
    %v2068 = vpop.permute.xlu0 %2067
    %2069 = vrot.lane.b32.xlu0 %v1996, 121
    %v2070 = vpop.permute.xlu0 %2069
    %2071 = vrot.lane.b32.xlu0 %v1997, 121
    %v2072 = vpop.permute.xlu0 %2071
    %2073 = vrot.lane.b32.xlu0 %v1998, 121
    %v2074 = vpop.permute.xlu0 %2073
    %v2075 = vmul.f32 %v2068, %v1819
    %v2076 = vmul.f32 %v2070, %v1820
    %v2077 = vmul.f32 %v2072, %v1821
    %v2078 = vmul.f32 %v2074, %v1822
    %2079 = vrot.lane.b32.xlu0 %v1995, 120
    %v2080 = vpop.permute.xlu0 %2079
    %2081 = vrot.lane.b32.xlu0 %v1996, 120
    %v2082 = vpop.permute.xlu0 %2081
    %2083 = vrot.lane.b32.xlu0 %v1997, 120
    %v2084 = vpop.permute.xlu0 %2083
    %2085 = vrot.lane.b32.xlu0 %v1998, 120
    %v2086 = vpop.permute.xlu0 %2085
    %v2087 = vmul.f32 %v2080, %v1835
    %v2088 = vmul.f32 %v2082, %v1836
    %v2089 = vmul.f32 %v2084, %v1837
    %v2090 = vmul.f32 %v2086, %v1838
    %2091 = vrot.lane.b32.xlu0 %v1995, 119
    %v2092 = vpop.permute.xlu0 %2091
    %2093 = vrot.lane.b32.xlu0 %v1996, 119
    %v2094 = vpop.permute.xlu0 %2093
    %2095 = vrot.lane.b32.xlu0 %v1997, 119
    %v2096 = vpop.permute.xlu0 %2095
    %2097 = vrot.lane.b32.xlu0 %v1998, 119
    %v2098 = vpop.permute.xlu0 %2097
    %v2099 = vmul.f32 %v2092, %v1851
    %v2100 = vmul.f32 %v2094, %v1852
    %v2101 = vmul.f32 %v2096, %v1853
    %v2102 = vmul.f32 %v2098, %v1854
    %v2103 = vpack.c.bf16 %v2016, %v2015
    %v2104 = vpack.c.bf16 %v2018, %v2017
    %v2105 = vpack.c.bf16 %v2028, %v2027
    %v2106 = vpack.c.bf16 %v2030, %v2029
    %v2107 = vpack.c.bf16 %v2040, %v2039
    %v2108 = vpack.c.bf16 %v2042, %v2041
    %v2109 = vpack.c.bf16 %v2052, %v2051
    %v2110 = vpack.c.bf16 %v2054, %v2053
    %v2111 = vpack.c.bf16 %v1996, %v1995
    %v2112 = vpack.c.bf16 %v1998, %v1997
    %v2113 = vpack.c.bf16 %v2064, %v2063
    %v2114 = vpack.c.bf16 %v2066, %v2065
    %v2115 = vpack.c.bf16 %v2076, %v2075
    %v2116 = vpack.c.bf16 %v2078, %v2077
    %v2117 = vpack.c.bf16 %v2088, %v2087
    %v2118 = vpack.c.bf16 %v2090, %v2089
    %v2119 = vpack.c.bf16 %v2100, %v2099
    %v2120 = vpack.c.bf16 %v2102, %v2101
    %v2129 = vunpack.c.l.b16 %v1999
    %v2130 = vunpack.c.h.b16 %v1999
    %v2131 = vunpack.c.l.b16 %v2000
    %v2132 = vunpack.c.l.b16 %v2001
    %v2133 = vunpack.c.h.b16 %v2001
    %v2134 = vunpack.c.l.b16 %v2002
    %v2135 = vunpack.c.l.b16 %v2003
    %v2136 = vunpack.c.h.b16 %v2003
    %v2137 = vunpack.c.l.b16 %v2004
    %v2138 = vunpack.c.l.b16 %v2005
    %v2139 = vunpack.c.h.b16 %v2005
    %v2140 = vunpack.c.l.b16 %v2006
    %v2141 = vpack.c.b16 %v2132, %v2129
    %v2142 = vpack.c.b16 %v2133, %v2130
    %v2143 = vpack.c.b16 %v2134, %v2131
    %v2144 = vpack.c.b16 %v2138, %v2135
    %v2145 = vpack.c.b16 %v2139, %v2136
    %v2146 = vpack.c.b16 %v2140, %v2137
    %v2152 = vsel %vm1927, %v2143, 0
    %v2155 = vsel %vm1927, %v2146, 0
    %2157 = vmatpush.bf16.msra.mxu0 %v2110
    %2158 = vmatpush.bf16.msra.mxu0 %v2109
    %2159 = vmatpush.bf16.msra.mxu0 %v2108
    %2160 = vmatpush.bf16.msra.mxu0 %v2107
    %2161 = vmatpush.bf16.msra.mxu0 %v2106
    %2162 = vmatpush.bf16.msra.mxu0 %v2105
    %2163 = vmatpush.bf16.msra.mxu0 %v2104
    %2164 = vmatpush.bf16.msra.mxu0 %v2103
    %2165 = vmatmul.bf16.gmra.mxu0 %v2141
    %v2166 = vpop.f32.mrf.mxu0
    %v2167 = vadd.f32 0.0, %v2166
    %v2168 = vpop.f32.mrf.mxu0
    %v2169 = vadd.f32 0.0, %v2168
    %2170 = vmatmul.bf16.gmra.mxu0 %v2144
    %v2171 = vpop.f32.mrf.mxu0
    %v2172 = vadd.f32 0.0, %v2171
    %v2173 = vpop.f32.mrf.mxu0
    %v2174 = vadd.f32 0.0, %v2173
    %2175 = vdwg.mxu0
    %2176 = vmatpush.bf16.msra.mxu0 %v2118
    %2177 = vmatpush.bf16.msra.mxu0 %v2117
    %2178 = vmatpush.bf16.msra.mxu0 %v2116
    %2179 = vmatpush.bf16.msra.mxu0 %v2115
    %2180 = vmatpush.bf16.msra.mxu0 %v2114
    %2181 = vmatpush.bf16.msra.mxu0 %v2113
    %2182 = vmatpush.bf16.msra.mxu0 %v2112
    %2183 = vmatpush.bf16.msra.mxu0 %v2111
    %2184 = vmatmul.bf16.gmra.mxu0 %v2142
    %v2185 = vpop.f32.mrf.mxu0
    %v2186 = vadd.f32 %v2167, %v2185
    %v2187 = vpop.f32.mrf.mxu0
    %v2188 = vadd.f32 %v2169, %v2187
    %2189 = vmatmul.bf16.gmra.mxu0 %v2145
    %v2190 = vpop.f32.mrf.mxu0
    %v2191 = vadd.f32 %v2172, %v2190
    %v2192 = vpop.f32.mrf.mxu0
    %v2193 = vadd.f32 %v2174, %v2192
    %2194 = vdwg.mxu0
    %2195 = vmatpush.bf16.msra.mxu0 0
    %2196 = vmatpush.bf16.msra.mxu0 0
    %2197 = vmatpush.bf16.msra.mxu0 0
    %2198 = vmatpush.bf16.msra.mxu0 0
    %2199 = vmatpush.bf16.msra.mxu0 0
    %2200 = vmatpush.bf16.msra.mxu0 0
    %2201 = vmatpush.bf16.msra.mxu0 %v2120
    %2202 = vmatpush.bf16.msra.mxu0 %v2119
    %2203 = vmatmul.bf16.gmra.mxu0 %v2152
    %v2204 = vpop.f32.mrf.mxu0
    %v2205 = vadd.f32 %v2186, %v2204
    %v2206 = vpop.f32.mrf.mxu0
    %v2207 = vadd.f32 %v2188, %v2206
    %2208 = vmatmul.bf16.gmra.mxu0 %v2155
    %v2209 = vpop.f32.mrf.mxu0
    %v2210 = vadd.f32 %v2191, %v2209
    %v2211 = vpop.f32.mrf.mxu0
    %v2212 = vadd.f32 %v2193, %v2211
    %2213 = vdwg.mxu0
    %v2214 = vmax.f32 %v2205, 0.0
    %v2215 = vmax.f32 %v2207, 0.0
    %v2216 = vmax.f32 %v2210, 0.0
    %v2217 = vmax.f32 %v2212, 0.0
    %v2218 = vld [vmem:[%s9] sm:$0xf]
    %v2219 = vld [vmem:[%s9 + $0x4] sm:$0xf]
    %v2220 = vld [vmem:[%s9 + $0x8] sm:$0xf]
    %v2221 = vld [vmem:[%s9 + $0xc] sm:$0xf]
    %v2222 = vpack.c.bf16 %v2215, %v2214
    %v2223 = vpack.c.bf16 %v2217, %v2216
    %v2228 = vunpack.c.l.b16 %v2218
    %v2229 = vunpack.c.l.b16 %v2219
    %v2230 = vunpack.c.l.b16 %v2220
    %v2231 = vunpack.c.l.b16 %v2221
    %v2232 = vpack.c.b16 %v2229, %v2228
    %v2233 = vpack.c.b16 %v2231, %v2230
    %v2235 = vsel %vm1927, %v2232, 0
    %v2238 = vsel %vm1927, %v2233, 0
    %2240 = vmatpush.bf16.msra.mxu0 0
    %2241 = vmatpush.bf16.msra.mxu0 0
    %2242 = vmatpush.bf16.msra.mxu0 0
    %2243 = vmatpush.bf16.msra.mxu0 0
    %2244 = vmatpush.bf16.msra.mxu0 0
    %2245 = vmatpush.bf16.msra.mxu0 0
    %2246 = vmatpush.bf16.msra.mxu0 %v2223
    %2247 = vmatpush.bf16.msra.mxu0 %v2222
    %2248 = vmatmul.bf16.gmra.mxu0 %v2235
    %v2249 = vpop.f32.mrf.mxu0
    %v2250 = vadd.f32 0.0, %v2249
    %v2251 = vpop.f32.mrf.mxu0
    %v2252 = vadd.f32 0.0, %v2251
    %2253 = vmatmul.bf16.gmra.mxu0 %v2238
    %v2254 = vpop.f32.mrf.mxu0
    %v2255 = vadd.f32 0.0, %v2254
    %v2256 = vpop.f32.mrf.mxu0
    %v2257 = vadd.f32 0.0, %v2256
    %2258 = vdwg.mxu0
    %v2259 = vadd.f32 %v1995, %v2250
    %v2260 = vadd.f32 %v1996, %v2252
    %v2261 = vadd.f32 %v1997, %v2255
    %v2262 = vadd.f32 %v1998, %v2257
    %s2263 = scalar_lea.vmem %s8, 48
    %v2264 = vld [vmem:[%s2263] sm:$0xff]
    %v2265 = vld [vmem:[%s2263 + $0x8] sm:$0xf]
    %v2266 = vld [vmem:[%s2263 + $0xc] sm:$0xff]
    %v2267 = vld [vmem:[%s2263 + $0x14] sm:$0xf]
    %v2268 = vld [vmem:[%s2263 + $0x18] sm:$0xff]
    %v2269 = vld [vmem:[%s2263 + $0x20] sm:$0xf]
    %v2270 = vld [vmem:[%s2263 + $0x24] sm:$0xff]
    %v2271 = vld [vmem:[%s2263 + $0x2c] sm:$0xf]
    %2272 = vrot.lane.b32.xlu0 %v2259, 9
    %v2273 = vpop.permute.xlu0 %2272
    %2274 = vrot.lane.b32.xlu0 %v2260, 9
    %v2275 = vpop.permute.xlu0 %2274
    %2276 = vrot.lane.b32.xlu0 %v2261, 9
    %v2277 = vpop.permute.xlu0 %2276
    %2278 = vrot.lane.b32.xlu0 %v2262, 9
    %v2279 = vpop.permute.xlu0 %2278
    %v2280 = vmul.f32 %v2273, %v1739
    %v2281 = vmul.f32 %v2275, %v1740
    %v2282 = vmul.f32 %v2277, %v1741
    %v2283 = vmul.f32 %v2279, %v1742
    %2284 = vrot.lane.b32.xlu0 %v2259, 8
    %v2285 = vpop.permute.xlu0 %2284
    %2286 = vrot.lane.b32.xlu0 %v2260, 8
    %v2287 = vpop.permute.xlu0 %2286
    %2288 = vrot.lane.b32.xlu0 %v2261, 8
    %v2289 = vpop.permute.xlu0 %2288
    %2290 = vrot.lane.b32.xlu0 %v2262, 8
    %v2291 = vpop.permute.xlu0 %2290
    %v2292 = vmul.f32 %v2285, %v1755
    %v2293 = vmul.f32 %v2287, %v1756
    %v2294 = vmul.f32 %v2289, %v1757
    %v2295 = vmul.f32 %v2291, %v1758
    %2296 = vrot.lane.b32.xlu0 %v2259, 7
    %v2297 = vpop.permute.xlu0 %2296
    %2298 = vrot.lane.b32.xlu0 %v2260, 7
    %v2299 = vpop.permute.xlu0 %2298
    %2300 = vrot.lane.b32.xlu0 %v2261, 7
    %v2301 = vpop.permute.xlu0 %2300
    %2302 = vrot.lane.b32.xlu0 %v2262, 7
    %v2303 = vpop.permute.xlu0 %2302
    %v2304 = vmul.f32 %v2297, %v1771
    %v2305 = vmul.f32 %v2299, %v1772
    %v2306 = vmul.f32 %v2301, %v1773
    %v2307 = vmul.f32 %v2303, %v1774
    %2308 = vrot.lane.b32.xlu0 %v2259, 1
    %v2309 = vpop.permute.xlu0 %2308
    %2310 = vrot.lane.b32.xlu0 %v2260, 1
    %v2311 = vpop.permute.xlu0 %2310
    %2312 = vrot.lane.b32.xlu0 %v2261, 1
    %v2313 = vpop.permute.xlu0 %2312
    %2314 = vrot.lane.b32.xlu0 %v2262, 1
    %v2315 = vpop.permute.xlu0 %2314
    %v2316 = vmul.f32 %v2309, %v1787
    %v2317 = vmul.f32 %v2311, %v1788
    %v2318 = vmul.f32 %v2313, %v1789
    %v2319 = vmul.f32 %v2315, %v1790
    %2320 = vrot.lane.b32.xlu0 %v2259, 127
    %v2321 = vpop.permute.xlu0 %2320
    %2322 = vrot.lane.b32.xlu0 %v2260, 127
    %v2323 = vpop.permute.xlu0 %2322
    %2324 = vrot.lane.b32.xlu0 %v2261, 127
    %v2325 = vpop.permute.xlu0 %2324
    %2326 = vrot.lane.b32.xlu0 %v2262, 127
    %v2327 = vpop.permute.xlu0 %2326
    %v2328 = vmul.f32 %v2321, %v1803
    %v2329 = vmul.f32 %v2323, %v1804
    %v2330 = vmul.f32 %v2325, %v1805
    %v2331 = vmul.f32 %v2327, %v1806
    %2332 = vrot.lane.b32.xlu0 %v2259, 121
    %v2333 = vpop.permute.xlu0 %2332
    %2334 = vrot.lane.b32.xlu0 %v2260, 121
    %v2335 = vpop.permute.xlu0 %2334
    %2336 = vrot.lane.b32.xlu0 %v2261, 121
    %v2337 = vpop.permute.xlu0 %2336
    %2338 = vrot.lane.b32.xlu0 %v2262, 121
    %v2339 = vpop.permute.xlu0 %2338
    %v2340 = vmul.f32 %v2333, %v1819
    %v2341 = vmul.f32 %v2335, %v1820
    %v2342 = vmul.f32 %v2337, %v1821
    %v2343 = vmul.f32 %v2339, %v1822
    %2344 = vrot.lane.b32.xlu0 %v2259, 120
    %v2345 = vpop.permute.xlu0 %2344
    %2346 = vrot.lane.b32.xlu0 %v2260, 120
    %v2347 = vpop.permute.xlu0 %2346
    %2348 = vrot.lane.b32.xlu0 %v2261, 120
    %v2349 = vpop.permute.xlu0 %2348
    %2350 = vrot.lane.b32.xlu0 %v2262, 120
    %v2351 = vpop.permute.xlu0 %2350
    %v2352 = vmul.f32 %v2345, %v1835
    %v2353 = vmul.f32 %v2347, %v1836
    %v2354 = vmul.f32 %v2349, %v1837
    %v2355 = vmul.f32 %v2351, %v1838
    %2356 = vrot.lane.b32.xlu0 %v2259, 119
    %v2357 = vpop.permute.xlu0 %2356
    %2358 = vrot.lane.b32.xlu0 %v2260, 119
    %v2359 = vpop.permute.xlu0 %2358
    %2360 = vrot.lane.b32.xlu0 %v2261, 119
    %v2361 = vpop.permute.xlu0 %2360
    %2362 = vrot.lane.b32.xlu0 %v2262, 119
    %v2363 = vpop.permute.xlu0 %2362
    %v2364 = vmul.f32 %v2357, %v1851
    %v2365 = vmul.f32 %v2359, %v1852
    %v2366 = vmul.f32 %v2361, %v1853
    %v2367 = vmul.f32 %v2363, %v1854
    %v2368 = vpack.c.bf16 %v2281, %v2280
    %v2369 = vpack.c.bf16 %v2283, %v2282
    %v2370 = vpack.c.bf16 %v2293, %v2292
    %v2371 = vpack.c.bf16 %v2295, %v2294
    %v2372 = vpack.c.bf16 %v2305, %v2304
    %v2373 = vpack.c.bf16 %v2307, %v2306
    %v2374 = vpack.c.bf16 %v2317, %v2316
    %v2375 = vpack.c.bf16 %v2319, %v2318
    %v2376 = vpack.c.bf16 %v2260, %v2259
    %v2377 = vpack.c.bf16 %v2262, %v2261
    %v2378 = vpack.c.bf16 %v2329, %v2328
    %v2379 = vpack.c.bf16 %v2331, %v2330
    %v2380 = vpack.c.bf16 %v2341, %v2340
    %v2381 = vpack.c.bf16 %v2343, %v2342
    %v2382 = vpack.c.bf16 %v2353, %v2352
    %v2383 = vpack.c.bf16 %v2355, %v2354
    %v2384 = vpack.c.bf16 %v2365, %v2364
    %v2385 = vpack.c.bf16 %v2367, %v2366
    %v2394 = vunpack.c.l.b16 %v2264
    %v2395 = vunpack.c.h.b16 %v2264
    %v2396 = vunpack.c.l.b16 %v2265
    %v2397 = vunpack.c.l.b16 %v2266
    %v2398 = vunpack.c.h.b16 %v2266
    %v2399 = vunpack.c.l.b16 %v2267
    %v2400 = vunpack.c.l.b16 %v2268
    %v2401 = vunpack.c.h.b16 %v2268
    %v2402 = vunpack.c.l.b16 %v2269
    %v2403 = vunpack.c.l.b16 %v2270
    %v2404 = vunpack.c.h.b16 %v2270
    %v2405 = vunpack.c.l.b16 %v2271
    %v2406 = vpack.c.b16 %v2397, %v2394
    %v2407 = vpack.c.b16 %v2398, %v2395
    %v2408 = vpack.c.b16 %v2399, %v2396
    %v2409 = vpack.c.b16 %v2403, %v2400
    %v2410 = vpack.c.b16 %v2404, %v2401
    %v2411 = vpack.c.b16 %v2405, %v2402
    %v2417 = vsel %vm1927, %v2408, 0
    %v2420 = vsel %vm1927, %v2411, 0
    %2422 = vmatpush.bf16.msra.mxu0 %v2375
    %2423 = vmatpush.bf16.msra.mxu0 %v2374
    %2424 = vmatpush.bf16.msra.mxu0 %v2373
    %2425 = vmatpush.bf16.msra.mxu0 %v2372
    %2426 = vmatpush.bf16.msra.mxu0 %v2371
    %2427 = vmatpush.bf16.msra.mxu0 %v2370
    %2428 = vmatpush.bf16.msra.mxu0 %v2369
    %2429 = vmatpush.bf16.msra.mxu0 %v2368
    %2430 = vmatmul.bf16.gmra.mxu0 %v2406
    %v2431 = vpop.f32.mrf.mxu0
    %v2432 = vadd.f32 0.0, %v2431
    %v2433 = vpop.f32.mrf.mxu0
    %v2434 = vadd.f32 0.0, %v2433
    %2435 = vmatmul.bf16.gmra.mxu0 %v2409
    %v2436 = vpop.f32.mrf.mxu0
    %v2437 = vadd.f32 0.0, %v2436
    %v2438 = vpop.f32.mrf.mxu0
    %v2439 = vadd.f32 0.0, %v2438
    %2440 = vdwg.mxu0
    %2441 = vmatpush.bf16.msra.mxu0 %v2383
    %2442 = vmatpush.bf16.msra.mxu0 %v2382
    %2443 = vmatpush.bf16.msra.mxu0 %v2381
    %2444 = vmatpush.bf16.msra.mxu0 %v2380
    %2445 = vmatpush.bf16.msra.mxu0 %v2379
    %2446 = vmatpush.bf16.msra.mxu0 %v2378
    %2447 = vmatpush.bf16.msra.mxu0 %v2377
    %2448 = vmatpush.bf16.msra.mxu0 %v2376
    %2449 = vmatmul.bf16.gmra.mxu0 %v2407
    %v2450 = vpop.f32.mrf.mxu0
    %v2451 = vadd.f32 %v2432, %v2450
    %v2452 = vpop.f32.mrf.mxu0
    %v2453 = vadd.f32 %v2434, %v2452
    %2454 = vmatmul.bf16.gmra.mxu0 %v2410
    %v2455 = vpop.f32.mrf.mxu0
    %v2456 = vadd.f32 %v2437, %v2455
    %v2457 = vpop.f32.mrf.mxu0
    %v2458 = vadd.f32 %v2439, %v2457
    %2459 = vdwg.mxu0
    %2460 = vmatpush.bf16.msra.mxu0 0
    %2461 = vmatpush.bf16.msra.mxu0 0
    %2462 = vmatpush.bf16.msra.mxu0 0
    %2463 = vmatpush.bf16.msra.mxu0 0
    %2464 = vmatpush.bf16.msra.mxu0 0
    %2465 = vmatpush.bf16.msra.mxu0 0
    %2466 = vmatpush.bf16.msra.mxu0 %v2385
    %2467 = vmatpush.bf16.msra.mxu0 %v2384
    %2468 = vmatmul.bf16.gmra.mxu0 %v2417
    %v2469 = vpop.f32.mrf.mxu0
    %v2470 = vadd.f32 %v2451, %v2469
    %v2471 = vpop.f32.mrf.mxu0
    %v2472 = vadd.f32 %v2453, %v2471
    %2473 = vmatmul.bf16.gmra.mxu0 %v2420
    %v2474 = vpop.f32.mrf.mxu0
    %v2475 = vadd.f32 %v2456, %v2474
    %v2476 = vpop.f32.mrf.mxu0
    %v2477 = vadd.f32 %v2458, %v2476
    %2478 = vdwg.mxu0
    %v2479 = vmax.f32 %v2470, 0.0
    %v2480 = vmax.f32 %v2472, 0.0
    %v2481 = vmax.f32 %v2475, 0.0
    %v2482 = vmax.f32 %v2477, 0.0
    %s2483 = scalar_lea.vmem %s9, 16
    %v2484 = vld [vmem:[%s2483] sm:$0xf]
    %v2485 = vld [vmem:[%s2483 + $0x4] sm:$0xf]
    %v2486 = vld [vmem:[%s2483 + $0x8] sm:$0xf]
    %v2487 = vld [vmem:[%s2483 + $0xc] sm:$0xf]
    %v2488 = vpack.c.bf16 %v2480, %v2479
    %v2489 = vpack.c.bf16 %v2482, %v2481
    %v2494 = vunpack.c.l.b16 %v2484
    %v2495 = vunpack.c.l.b16 %v2485
    %v2496 = vunpack.c.l.b16 %v2486
    %v2497 = vunpack.c.l.b16 %v2487
    %v2498 = vpack.c.b16 %v2495, %v2494
    %v2499 = vpack.c.b16 %v2497, %v2496
    %v2501 = vsel %vm1927, %v2498, 0
    %v2504 = vsel %vm1927, %v2499, 0
    %2506 = vmatpush.bf16.msra.mxu0 0
    %2507 = vmatpush.bf16.msra.mxu0 0
    %2508 = vmatpush.bf16.msra.mxu0 0
    %2509 = vmatpush.bf16.msra.mxu0 0
    %2510 = vmatpush.bf16.msra.mxu0 0
    %2511 = vmatpush.bf16.msra.mxu0 0
    %2512 = vmatpush.bf16.msra.mxu0 %v2489
    %2513 = vmatpush.bf16.msra.mxu0 %v2488
    %2514 = vmatmul.bf16.gmra.mxu0 %v2501
    %v2515 = vpop.f32.mrf.mxu0
    %v2516 = vadd.f32 0.0, %v2515
    %v2517 = vpop.f32.mrf.mxu0
    %v2518 = vadd.f32 0.0, %v2517
    %2519 = vmatmul.bf16.gmra.mxu0 %v2504
    %v2520 = vpop.f32.mrf.mxu0
    %v2521 = vadd.f32 0.0, %v2520
    %v2522 = vpop.f32.mrf.mxu0
    %v2523 = vadd.f32 0.0, %v2522
    %2524 = vdwg.mxu0
    %v2525 = vadd.f32 %v2259, %v2516
    %v2526 = vadd.f32 %v2260, %v2518
    %v2527 = vadd.f32 %v2261, %v2521
    %v2528 = vadd.f32 %v2262, %v2523
    %s2529 = scalar_lea.vmem %s8, 96
    %v2530 = vld [vmem:[%s2529] sm:$0xff]
    %v2531 = vld [vmem:[%s2529 + $0x8] sm:$0xf]
    %v2532 = vld [vmem:[%s2529 + $0xc] sm:$0xff]
    %v2533 = vld [vmem:[%s2529 + $0x14] sm:$0xf]
    %v2534 = vld [vmem:[%s2529 + $0x18] sm:$0xff]
    %v2535 = vld [vmem:[%s2529 + $0x20] sm:$0xf]
    %v2536 = vld [vmem:[%s2529 + $0x24] sm:$0xff]
    %v2537 = vld [vmem:[%s2529 + $0x2c] sm:$0xf]
    %2538 = vrot.lane.b32.xlu0 %v2525, 9
    %v2539 = vpop.permute.xlu0 %2538
    %2540 = vrot.lane.b32.xlu0 %v2526, 9
    %v2541 = vpop.permute.xlu0 %2540
    %2542 = vrot.lane.b32.xlu0 %v2527, 9
    %v2543 = vpop.permute.xlu0 %2542
    %2544 = vrot.lane.b32.xlu0 %v2528, 9
    %v2545 = vpop.permute.xlu0 %2544
    %v2546 = vmul.f32 %v2539, %v1739
    %v2547 = vmul.f32 %v2541, %v1740
    %v2548 = vmul.f32 %v2543, %v1741
    %v2549 = vmul.f32 %v2545, %v1742
    %2550 = vrot.lane.b32.xlu0 %v2525, 8
    %v2551 = vpop.permute.xlu0 %2550
    %2552 = vrot.lane.b32.xlu0 %v2526, 8
    %v2553 = vpop.permute.xlu0 %2552
    %2554 = vrot.lane.b32.xlu0 %v2527, 8
    %v2555 = vpop.permute.xlu0 %2554
    %2556 = vrot.lane.b32.xlu0 %v2528, 8
    %v2557 = vpop.permute.xlu0 %2556
    %v2558 = vmul.f32 %v2551, %v1755
    %v2559 = vmul.f32 %v2553, %v1756
    %v2560 = vmul.f32 %v2555, %v1757
    %v2561 = vmul.f32 %v2557, %v1758
    %2562 = vrot.lane.b32.xlu0 %v2525, 7
    %v2563 = vpop.permute.xlu0 %2562
    %2564 = vrot.lane.b32.xlu0 %v2526, 7
    %v2565 = vpop.permute.xlu0 %2564
    %2566 = vrot.lane.b32.xlu0 %v2527, 7
    %v2567 = vpop.permute.xlu0 %2566
    %2568 = vrot.lane.b32.xlu0 %v2528, 7
    %v2569 = vpop.permute.xlu0 %2568
    %v2570 = vmul.f32 %v2563, %v1771
    %v2571 = vmul.f32 %v2565, %v1772
    %v2572 = vmul.f32 %v2567, %v1773
    %v2573 = vmul.f32 %v2569, %v1774
    %2574 = vrot.lane.b32.xlu0 %v2525, 1
    %v2575 = vpop.permute.xlu0 %2574
    %2576 = vrot.lane.b32.xlu0 %v2526, 1
    %v2577 = vpop.permute.xlu0 %2576
    %2578 = vrot.lane.b32.xlu0 %v2527, 1
    %v2579 = vpop.permute.xlu0 %2578
    %2580 = vrot.lane.b32.xlu0 %v2528, 1
    %v2581 = vpop.permute.xlu0 %2580
    %v2582 = vmul.f32 %v2575, %v1787
    %v2583 = vmul.f32 %v2577, %v1788
    %v2584 = vmul.f32 %v2579, %v1789
    %v2585 = vmul.f32 %v2581, %v1790
    %2586 = vrot.lane.b32.xlu0 %v2525, 127
    %v2587 = vpop.permute.xlu0 %2586
    %2588 = vrot.lane.b32.xlu0 %v2526, 127
    %v2589 = vpop.permute.xlu0 %2588
    %2590 = vrot.lane.b32.xlu0 %v2527, 127
    %v2591 = vpop.permute.xlu0 %2590
    %2592 = vrot.lane.b32.xlu0 %v2528, 127
    %v2593 = vpop.permute.xlu0 %2592
    %v2594 = vmul.f32 %v2587, %v1803
    %v2595 = vmul.f32 %v2589, %v1804
    %v2596 = vmul.f32 %v2591, %v1805
    %v2597 = vmul.f32 %v2593, %v1806
    %2598 = vrot.lane.b32.xlu0 %v2525, 121
    %v2599 = vpop.permute.xlu0 %2598
    %2600 = vrot.lane.b32.xlu0 %v2526, 121
    %v2601 = vpop.permute.xlu0 %2600
    %2602 = vrot.lane.b32.xlu0 %v2527, 121
    %v2603 = vpop.permute.xlu0 %2602
    %2604 = vrot.lane.b32.xlu0 %v2528, 121
    %v2605 = vpop.permute.xlu0 %2604
    %v2606 = vmul.f32 %v2599, %v1819
    %v2607 = vmul.f32 %v2601, %v1820
    %v2608 = vmul.f32 %v2603, %v1821
    %v2609 = vmul.f32 %v2605, %v1822
    %2610 = vrot.lane.b32.xlu0 %v2525, 120
    %v2611 = vpop.permute.xlu0 %2610
    %2612 = vrot.lane.b32.xlu0 %v2526, 120
    %v2613 = vpop.permute.xlu0 %2612
    %2614 = vrot.lane.b32.xlu0 %v2527, 120
    %v2615 = vpop.permute.xlu0 %2614
    %2616 = vrot.lane.b32.xlu0 %v2528, 120
    %v2617 = vpop.permute.xlu0 %2616
    %v2618 = vmul.f32 %v2611, %v1835
    %v2619 = vmul.f32 %v2613, %v1836
    %v2620 = vmul.f32 %v2615, %v1837
    %v2621 = vmul.f32 %v2617, %v1838
    %2622 = vrot.lane.b32.xlu0 %v2525, 119
    %v2623 = vpop.permute.xlu0 %2622
    %2624 = vrot.lane.b32.xlu0 %v2526, 119
    %v2625 = vpop.permute.xlu0 %2624
    %2626 = vrot.lane.b32.xlu0 %v2527, 119
    %v2627 = vpop.permute.xlu0 %2626
    %2628 = vrot.lane.b32.xlu0 %v2528, 119
    %v2629 = vpop.permute.xlu0 %2628
    %v2630 = vmul.f32 %v2623, %v1851
    %v2631 = vmul.f32 %v2625, %v1852
    %v2632 = vmul.f32 %v2627, %v1853
    %v2633 = vmul.f32 %v2629, %v1854
    %v2634 = vpack.c.bf16 %v2547, %v2546
    %v2635 = vpack.c.bf16 %v2549, %v2548
    %v2636 = vpack.c.bf16 %v2559, %v2558
    %v2637 = vpack.c.bf16 %v2561, %v2560
    %v2638 = vpack.c.bf16 %v2571, %v2570
    %v2639 = vpack.c.bf16 %v2573, %v2572
    %v2640 = vpack.c.bf16 %v2583, %v2582
    %v2641 = vpack.c.bf16 %v2585, %v2584
    %v2642 = vpack.c.bf16 %v2526, %v2525
    %v2643 = vpack.c.bf16 %v2528, %v2527
    %v2644 = vpack.c.bf16 %v2595, %v2594
    %v2645 = vpack.c.bf16 %v2597, %v2596
    %v2646 = vpack.c.bf16 %v2607, %v2606
    %v2647 = vpack.c.bf16 %v2609, %v2608
    %v2648 = vpack.c.bf16 %v2619, %v2618
    %v2649 = vpack.c.bf16 %v2621, %v2620
    %v2650 = vpack.c.bf16 %v2631, %v2630
    %v2651 = vpack.c.bf16 %v2633, %v2632
    %v2660 = vunpack.c.l.b16 %v2530
    %v2661 = vunpack.c.h.b16 %v2530
    %v2662 = vunpack.c.l.b16 %v2531
    %v2663 = vunpack.c.l.b16 %v2532
    %v2664 = vunpack.c.h.b16 %v2532
    %v2665 = vunpack.c.l.b16 %v2533
    %v2666 = vunpack.c.l.b16 %v2534
    %v2667 = vunpack.c.h.b16 %v2534
    %v2668 = vunpack.c.l.b16 %v2535
    %v2669 = vunpack.c.l.b16 %v2536
    %v2670 = vunpack.c.h.b16 %v2536
    %v2671 = vunpack.c.l.b16 %v2537
    %v2672 = vpack.c.b16 %v2663, %v2660
    %v2673 = vpack.c.b16 %v2664, %v2661
    %v2674 = vpack.c.b16 %v2665, %v2662
    %v2675 = vpack.c.b16 %v2669, %v2666
    %v2676 = vpack.c.b16 %v2670, %v2667
    %v2677 = vpack.c.b16 %v2671, %v2668
    %v2683 = vsel %vm1927, %v2674, 0
    %v2686 = vsel %vm1927, %v2677, 0
    %2688 = vmatpush.bf16.msra.mxu0 %v2641
    %2689 = vmatpush.bf16.msra.mxu0 %v2640
    %2690 = vmatpush.bf16.msra.mxu0 %v2639
    %2691 = vmatpush.bf16.msra.mxu0 %v2638
    %2692 = vmatpush.bf16.msra.mxu0 %v2637
    %2693 = vmatpush.bf16.msra.mxu0 %v2636
    %2694 = vmatpush.bf16.msra.mxu0 %v2635
    %2695 = vmatpush.bf16.msra.mxu0 %v2634
    %2696 = vmatmul.bf16.gmra.mxu0 %v2672
    %v2697 = vpop.f32.mrf.mxu0
    %v2698 = vadd.f32 0.0, %v2697
    %v2699 = vpop.f32.mrf.mxu0
    %v2700 = vadd.f32 0.0, %v2699
    %2701 = vmatmul.bf16.gmra.mxu0 %v2675
    %v2702 = vpop.f32.mrf.mxu0
    %v2703 = vadd.f32 0.0, %v2702
    %v2704 = vpop.f32.mrf.mxu0
    %v2705 = vadd.f32 0.0, %v2704
    %2706 = vdwg.mxu0
    %2707 = vmatpush.bf16.msra.mxu0 %v2649
    %2708 = vmatpush.bf16.msra.mxu0 %v2648
    %2709 = vmatpush.bf16.msra.mxu0 %v2647
    %2710 = vmatpush.bf16.msra.mxu0 %v2646
    %2711 = vmatpush.bf16.msra.mxu0 %v2645
    %2712 = vmatpush.bf16.msra.mxu0 %v2644
    %2713 = vmatpush.bf16.msra.mxu0 %v2643
    %2714 = vmatpush.bf16.msra.mxu0 %v2642
    %2715 = vmatmul.bf16.gmra.mxu0 %v2673
    %v2716 = vpop.f32.mrf.mxu0
    %v2717 = vadd.f32 %v2698, %v2716
    %v2718 = vpop.f32.mrf.mxu0
    %v2719 = vadd.f32 %v2700, %v2718
    %2720 = vmatmul.bf16.gmra.mxu0 %v2676
    %v2721 = vpop.f32.mrf.mxu0
    %v2722 = vadd.f32 %v2703, %v2721
    %v2723 = vpop.f32.mrf.mxu0
    %v2724 = vadd.f32 %v2705, %v2723
    %2725 = vdwg.mxu0
    %2726 = vmatpush.bf16.msra.mxu0 0
    %2727 = vmatpush.bf16.msra.mxu0 0
    %2728 = vmatpush.bf16.msra.mxu0 0
    %2729 = vmatpush.bf16.msra.mxu0 0
    %2730 = vmatpush.bf16.msra.mxu0 0
    %2731 = vmatpush.bf16.msra.mxu0 0
    %2732 = vmatpush.bf16.msra.mxu0 %v2651
    %2733 = vmatpush.bf16.msra.mxu0 %v2650
    %2734 = vmatmul.bf16.gmra.mxu0 %v2683
    %v2735 = vpop.f32.mrf.mxu0
    %v2736 = vadd.f32 %v2717, %v2735
    %v2737 = vpop.f32.mrf.mxu0
    %v2738 = vadd.f32 %v2719, %v2737
    %2739 = vmatmul.bf16.gmra.mxu0 %v2686
    %v2740 = vpop.f32.mrf.mxu0
    %v2741 = vadd.f32 %v2722, %v2740
    %v2742 = vpop.f32.mrf.mxu0
    %v2743 = vadd.f32 %v2724, %v2742
    %2744 = vdwg.mxu0
    %v2745 = vmax.f32 %v2736, 0.0
    %v2746 = vmax.f32 %v2738, 0.0
    %v2747 = vmax.f32 %v2741, 0.0
    %v2748 = vmax.f32 %v2743, 0.0
    %s2749 = scalar_lea.vmem %s9, 32
    %v2750 = vld [vmem:[%s2749] sm:$0xf]
    %v2751 = vld [vmem:[%s2749 + $0x4] sm:$0xf]
    %v2752 = vld [vmem:[%s2749 + $0x8] sm:$0xf]
    %v2753 = vld [vmem:[%s2749 + $0xc] sm:$0xf]
    %v2754 = vpack.c.bf16 %v2746, %v2745
    %v2755 = vpack.c.bf16 %v2748, %v2747
    %v2760 = vunpack.c.l.b16 %v2750
    %v2761 = vunpack.c.l.b16 %v2751
    %v2762 = vunpack.c.l.b16 %v2752
    %v2763 = vunpack.c.l.b16 %v2753
    %v2764 = vpack.c.b16 %v2761, %v2760
    %v2765 = vpack.c.b16 %v2763, %v2762
    %v2767 = vsel %vm1927, %v2764, 0
    %v2770 = vsel %vm1927, %v2765, 0
    %2772 = vmatpush.bf16.msra.mxu0 0
    %2773 = vmatpush.bf16.msra.mxu0 0
    %2774 = vmatpush.bf16.msra.mxu0 0
    %2775 = vmatpush.bf16.msra.mxu0 0
    %2776 = vmatpush.bf16.msra.mxu0 0
    %2777 = vmatpush.bf16.msra.mxu0 0
    %2778 = vmatpush.bf16.msra.mxu0 %v2755
    %2779 = vmatpush.bf16.msra.mxu0 %v2754
    %2780 = vmatmul.bf16.gmra.mxu0 %v2767
    %v2781 = vpop.f32.mrf.mxu0
    %v2782 = vadd.f32 0.0, %v2781
    %v2783 = vpop.f32.mrf.mxu0
    %v2784 = vadd.f32 0.0, %v2783
    %2785 = vmatmul.bf16.gmra.mxu0 %v2770
    %v2786 = vpop.f32.mrf.mxu0
    %v2787 = vadd.f32 0.0, %v2786
    %v2788 = vpop.f32.mrf.mxu0
    %v2789 = vadd.f32 0.0, %v2788
    %2790 = vdwg.mxu0
    %v2791 = vadd.f32 %v2525, %v2782
    %v2792 = vadd.f32 %v2526, %v2784
    %v2793 = vadd.f32 %v2527, %v2787
    %v2794 = vadd.f32 %v2528, %v2789
    %s2795 = scalar_lea.vmem %s8, 144
    %v2796 = vld [vmem:[%s2795] sm:$0xff]
    %v2797 = vld [vmem:[%s2795 + $0x8] sm:$0xf]
    %v2798 = vld [vmem:[%s2795 + $0xc] sm:$0xff]
    %v2799 = vld [vmem:[%s2795 + $0x14] sm:$0xf]
    %v2800 = vld [vmem:[%s2795 + $0x18] sm:$0xff]
    %v2801 = vld [vmem:[%s2795 + $0x20] sm:$0xf]
    %v2802 = vld [vmem:[%s2795 + $0x24] sm:$0xff]
    %v2803 = vld [vmem:[%s2795 + $0x2c] sm:$0xf]
    %2804 = vrot.lane.b32.xlu0 %v2791, 9
    %v2805 = vpop.permute.xlu0 %2804
    %2806 = vrot.lane.b32.xlu0 %v2792, 9
    %v2807 = vpop.permute.xlu0 %2806
    %2808 = vrot.lane.b32.xlu0 %v2793, 9
    %v2809 = vpop.permute.xlu0 %2808
    %2810 = vrot.lane.b32.xlu0 %v2794, 9
    %v2811 = vpop.permute.xlu0 %2810
    %v2812 = vmul.f32 %v2805, %v1739
    %v2813 = vmul.f32 %v2807, %v1740
    %v2814 = vmul.f32 %v2809, %v1741
    %v2815 = vmul.f32 %v2811, %v1742
    %2816 = vrot.lane.b32.xlu0 %v2791, 8
    %v2817 = vpop.permute.xlu0 %2816
    %2818 = vrot.lane.b32.xlu0 %v2792, 8
    %v2819 = vpop.permute.xlu0 %2818
    %2820 = vrot.lane.b32.xlu0 %v2793, 8
    %v2821 = vpop.permute.xlu0 %2820
    %2822 = vrot.lane.b32.xlu0 %v2794, 8
    %v2823 = vpop.permute.xlu0 %2822
    %v2824 = vmul.f32 %v2817, %v1755
    %v2825 = vmul.f32 %v2819, %v1756
    %v2826 = vmul.f32 %v2821, %v1757
    %v2827 = vmul.f32 %v2823, %v1758
    %2828 = vrot.lane.b32.xlu0 %v2791, 7
    %v2829 = vpop.permute.xlu0 %2828
    %2830 = vrot.lane.b32.xlu0 %v2792, 7
    %v2831 = vpop.permute.xlu0 %2830
    %2832 = vrot.lane.b32.xlu0 %v2793, 7
    %v2833 = vpop.permute.xlu0 %2832
    %2834 = vrot.lane.b32.xlu0 %v2794, 7
    %v2835 = vpop.permute.xlu0 %2834
    %v2836 = vmul.f32 %v2829, %v1771
    %v2837 = vmul.f32 %v2831, %v1772
    %v2838 = vmul.f32 %v2833, %v1773
    %v2839 = vmul.f32 %v2835, %v1774
    %2840 = vrot.lane.b32.xlu0 %v2791, 1
    %v2841 = vpop.permute.xlu0 %2840
    %2842 = vrot.lane.b32.xlu0 %v2792, 1
    %v2843 = vpop.permute.xlu0 %2842
    %2844 = vrot.lane.b32.xlu0 %v2793, 1
    %v2845 = vpop.permute.xlu0 %2844
    %2846 = vrot.lane.b32.xlu0 %v2794, 1
    %v2847 = vpop.permute.xlu0 %2846
    %v2848 = vmul.f32 %v2841, %v1787
    %v2849 = vmul.f32 %v2843, %v1788
    %v2850 = vmul.f32 %v2845, %v1789
    %v2851 = vmul.f32 %v2847, %v1790
    %2852 = vrot.lane.b32.xlu0 %v2791, 127
    %v2853 = vpop.permute.xlu0 %2852
    %2854 = vrot.lane.b32.xlu0 %v2792, 127
    %v2855 = vpop.permute.xlu0 %2854
    %2856 = vrot.lane.b32.xlu0 %v2793, 127
    %v2857 = vpop.permute.xlu0 %2856
    %2858 = vrot.lane.b32.xlu0 %v2794, 127
    %v2859 = vpop.permute.xlu0 %2858
    %v2860 = vmul.f32 %v2853, %v1803
    %v2861 = vmul.f32 %v2855, %v1804
    %v2862 = vmul.f32 %v2857, %v1805
    %v2863 = vmul.f32 %v2859, %v1806
    %2864 = vrot.lane.b32.xlu0 %v2791, 121
    %v2865 = vpop.permute.xlu0 %2864
    %2866 = vrot.lane.b32.xlu0 %v2792, 121
    %v2867 = vpop.permute.xlu0 %2866
    %2868 = vrot.lane.b32.xlu0 %v2793, 121
    %v2869 = vpop.permute.xlu0 %2868
    %2870 = vrot.lane.b32.xlu0 %v2794, 121
    %v2871 = vpop.permute.xlu0 %2870
    %v2872 = vmul.f32 %v2865, %v1819
    %v2873 = vmul.f32 %v2867, %v1820
    %v2874 = vmul.f32 %v2869, %v1821
    %v2875 = vmul.f32 %v2871, %v1822
    %2876 = vrot.lane.b32.xlu0 %v2791, 120
    %v2877 = vpop.permute.xlu0 %2876
    %2878 = vrot.lane.b32.xlu0 %v2792, 120
    %v2879 = vpop.permute.xlu0 %2878
    %2880 = vrot.lane.b32.xlu0 %v2793, 120
    %v2881 = vpop.permute.xlu0 %2880
    %2882 = vrot.lane.b32.xlu0 %v2794, 120
    %v2883 = vpop.permute.xlu0 %2882
    %v2884 = vmul.f32 %v2877, %v1835
    %v2885 = vmul.f32 %v2879, %v1836
    %v2886 = vmul.f32 %v2881, %v1837
    %v2887 = vmul.f32 %v2883, %v1838
    %2888 = vrot.lane.b32.xlu0 %v2791, 119
    %v2889 = vpop.permute.xlu0 %2888
    %2890 = vrot.lane.b32.xlu0 %v2792, 119
    %v2891 = vpop.permute.xlu0 %2890
    %2892 = vrot.lane.b32.xlu0 %v2793, 119
    %v2893 = vpop.permute.xlu0 %2892
    %2894 = vrot.lane.b32.xlu0 %v2794, 119
    %v2895 = vpop.permute.xlu0 %2894
    %v2896 = vmul.f32 %v2889, %v1851
    %v2897 = vmul.f32 %v2891, %v1852
    %v2898 = vmul.f32 %v2893, %v1853
    %v2899 = vmul.f32 %v2895, %v1854
    %v2900 = vpack.c.bf16 %v2813, %v2812
    %v2901 = vpack.c.bf16 %v2815, %v2814
    %v2902 = vpack.c.bf16 %v2825, %v2824
    %v2903 = vpack.c.bf16 %v2827, %v2826
    %v2904 = vpack.c.bf16 %v2837, %v2836
    %v2905 = vpack.c.bf16 %v2839, %v2838
    %v2906 = vpack.c.bf16 %v2849, %v2848
    %v2907 = vpack.c.bf16 %v2851, %v2850
    %v2908 = vpack.c.bf16 %v2792, %v2791
    %v2909 = vpack.c.bf16 %v2794, %v2793
    %v2910 = vpack.c.bf16 %v2861, %v2860
    %v2911 = vpack.c.bf16 %v2863, %v2862
    %v2912 = vpack.c.bf16 %v2873, %v2872
    %v2913 = vpack.c.bf16 %v2875, %v2874
    %v2914 = vpack.c.bf16 %v2885, %v2884
    %v2915 = vpack.c.bf16 %v2887, %v2886
    %v2916 = vpack.c.bf16 %v2897, %v2896
    %v2917 = vpack.c.bf16 %v2899, %v2898
    %v2926 = vunpack.c.l.b16 %v2796
    %v2927 = vunpack.c.h.b16 %v2796
    %v2928 = vunpack.c.l.b16 %v2797
    %v2929 = vunpack.c.l.b16 %v2798
    %v2930 = vunpack.c.h.b16 %v2798
    %v2931 = vunpack.c.l.b16 %v2799
    %v2932 = vunpack.c.l.b16 %v2800
    %v2933 = vunpack.c.h.b16 %v2800
    %v2934 = vunpack.c.l.b16 %v2801
    %v2935 = vunpack.c.l.b16 %v2802
    %v2936 = vunpack.c.h.b16 %v2802
    %v2937 = vunpack.c.l.b16 %v2803
    %v2938 = vpack.c.b16 %v2929, %v2926
    %v2939 = vpack.c.b16 %v2930, %v2927
    %v2940 = vpack.c.b16 %v2931, %v2928
    %v2941 = vpack.c.b16 %v2935, %v2932
    %v2942 = vpack.c.b16 %v2936, %v2933
    %v2943 = vpack.c.b16 %v2937, %v2934
    %v2949 = vsel %vm1927, %v2940, 0
    %v2952 = vsel %vm1927, %v2943, 0
    %2954 = vmatpush.bf16.msra.mxu0 %v2907
    %2955 = vmatpush.bf16.msra.mxu0 %v2906
    %2956 = vmatpush.bf16.msra.mxu0 %v2905
    %2957 = vmatpush.bf16.msra.mxu0 %v2904
    %2958 = vmatpush.bf16.msra.mxu0 %v2903
    %2959 = vmatpush.bf16.msra.mxu0 %v2902
    %2960 = vmatpush.bf16.msra.mxu0 %v2901
    %2961 = vmatpush.bf16.msra.mxu0 %v2900
    %2962 = vmatmul.bf16.gmra.mxu0 %v2938
    %v2963 = vpop.f32.mrf.mxu0
    %v2964 = vadd.f32 0.0, %v2963
    %v2965 = vpop.f32.mrf.mxu0
    %v2966 = vadd.f32 0.0, %v2965
    %2967 = vmatmul.bf16.gmra.mxu0 %v2941
    %v2968 = vpop.f32.mrf.mxu0
    %v2969 = vadd.f32 0.0, %v2968
    %v2970 = vpop.f32.mrf.mxu0
    %v2971 = vadd.f32 0.0, %v2970
    %2972 = vdwg.mxu0
    %2973 = vmatpush.bf16.msra.mxu0 %v2915
    %2974 = vmatpush.bf16.msra.mxu0 %v2914
    %2975 = vmatpush.bf16.msra.mxu0 %v2913
    %2976 = vmatpush.bf16.msra.mxu0 %v2912
    %2977 = vmatpush.bf16.msra.mxu0 %v2911
    %2978 = vmatpush.bf16.msra.mxu0 %v2910
    %2979 = vmatpush.bf16.msra.mxu0 %v2909
    %2980 = vmatpush.bf16.msra.mxu0 %v2908
    %2981 = vmatmul.bf16.gmra.mxu0 %v2939
    %v2982 = vpop.f32.mrf.mxu0
    %v2983 = vadd.f32 %v2964, %v2982
    %v2984 = vpop.f32.mrf.mxu0
    %v2985 = vadd.f32 %v2966, %v2984
    %2986 = vmatmul.bf16.gmra.mxu0 %v2942
    %v2987 = vpop.f32.mrf.mxu0
    %v2988 = vadd.f32 %v2969, %v2987
    %v2989 = vpop.f32.mrf.mxu0
    %v2990 = vadd.f32 %v2971, %v2989
    %2991 = vdwg.mxu0
    %2992 = vmatpush.bf16.msra.mxu0 0
    %2993 = vmatpush.bf16.msra.mxu0 0
    %2994 = vmatpush.bf16.msra.mxu0 0
    %2995 = vmatpush.bf16.msra.mxu0 0
    %2996 = vmatpush.bf16.msra.mxu0 0
    %2997 = vmatpush.bf16.msra.mxu0 0
    %2998 = vmatpush.bf16.msra.mxu0 %v2917
    %2999 = vmatpush.bf16.msra.mxu0 %v2916
    %3000 = vmatmul.bf16.gmra.mxu0 %v2949
    %v3001 = vpop.f32.mrf.mxu0
    %v3002 = vadd.f32 %v2983, %v3001
    %v3003 = vpop.f32.mrf.mxu0
    %v3004 = vadd.f32 %v2985, %v3003
    %3005 = vmatmul.bf16.gmra.mxu0 %v2952
    %v3006 = vpop.f32.mrf.mxu0
    %v3007 = vadd.f32 %v2988, %v3006
    %v3008 = vpop.f32.mrf.mxu0
    %v3009 = vadd.f32 %v2990, %v3008
    %3010 = vdwg.mxu0
    %v3011 = vmax.f32 %v3002, 0.0
    %v3012 = vmax.f32 %v3004, 0.0
    %v3013 = vmax.f32 %v3007, 0.0
    %v3014 = vmax.f32 %v3009, 0.0
    %s3015 = scalar_lea.vmem %s9, 48
    %v3016 = vld [vmem:[%s3015] sm:$0xf]
    %v3017 = vld [vmem:[%s3015 + $0x4] sm:$0xf]
    %v3018 = vld [vmem:[%s3015 + $0x8] sm:$0xf]
    %v3019 = vld [vmem:[%s3015 + $0xc] sm:$0xf]
    %v3020 = vpack.c.bf16 %v3012, %v3011
    %v3021 = vpack.c.bf16 %v3014, %v3013
    %v3026 = vunpack.c.l.b16 %v3016
    %v3027 = vunpack.c.l.b16 %v3017
    %v3028 = vunpack.c.l.b16 %v3018
    %v3029 = vunpack.c.l.b16 %v3019
    %v3030 = vpack.c.b16 %v3027, %v3026
    %v3031 = vpack.c.b16 %v3029, %v3028
    %v3033 = vsel %vm1927, %v3030, 0
    %v3036 = vsel %vm1927, %v3031, 0
    %3038 = vmatpush.bf16.msra.mxu0 0
    %3039 = vmatpush.bf16.msra.mxu0 0
    %3040 = vmatpush.bf16.msra.mxu0 0
    %3041 = vmatpush.bf16.msra.mxu0 0
    %3042 = vmatpush.bf16.msra.mxu0 0
    %3043 = vmatpush.bf16.msra.mxu0 0
    %3044 = vmatpush.bf16.msra.mxu0 %v3021
    %3045 = vmatpush.bf16.msra.mxu0 %v3020
    %3046 = vmatmul.bf16.gmra.mxu0 %v3033
    %v3047 = vpop.f32.mrf.mxu0
    %v3048 = vadd.f32 0.0, %v3047
    %v3049 = vpop.f32.mrf.mxu0
    %v3050 = vadd.f32 0.0, %v3049
    %3051 = vmatmul.bf16.gmra.mxu0 %v3036
    %v3052 = vpop.f32.mrf.mxu0
    %v3053 = vadd.f32 0.0, %v3052
    %v3054 = vpop.f32.mrf.mxu0
    %v3055 = vadd.f32 0.0, %v3054
    %3056 = vdwg.mxu0
    %v3057 = vadd.f32 %v2791, %v3048
    %v3058 = vadd.f32 %v2792, %v3050
    %v3059 = vadd.f32 %v2793, %v3053
    %v3060 = vadd.f32 %v2794, %v3055
    %s3061 = scalar_lea.vmem %s8, 192
    %v3062 = vld [vmem:[%s3061] sm:$0xff]
    %v3063 = vld [vmem:[%s3061 + $0x8] sm:$0xf]
    %v3064 = vld [vmem:[%s3061 + $0xc] sm:$0xff]
    %v3065 = vld [vmem:[%s3061 + $0x14] sm:$0xf]
    %v3066 = vld [vmem:[%s3061 + $0x18] sm:$0xff]
    %v3067 = vld [vmem:[%s3061 + $0x20] sm:$0xf]
    %v3068 = vld [vmem:[%s3061 + $0x24] sm:$0xff]
    %v3069 = vld [vmem:[%s3061 + $0x2c] sm:$0xf]
    %3070 = vrot.lane.b32.xlu0 %v3057, 9
    %v3071 = vpop.permute.xlu0 %3070
    %3072 = vrot.lane.b32.xlu0 %v3058, 9
    %v3073 = vpop.permute.xlu0 %3072
    %3074 = vrot.lane.b32.xlu0 %v3059, 9
    %v3075 = vpop.permute.xlu0 %3074
    %3076 = vrot.lane.b32.xlu0 %v3060, 9
    %v3077 = vpop.permute.xlu0 %3076
    %v3078 = vmul.f32 %v3071, %v1739
    %v3079 = vmul.f32 %v3073, %v1740
    %v3080 = vmul.f32 %v3075, %v1741
    %v3081 = vmul.f32 %v3077, %v1742
    %3082 = vrot.lane.b32.xlu0 %v3057, 8
    %v3083 = vpop.permute.xlu0 %3082
    %3084 = vrot.lane.b32.xlu0 %v3058, 8
    %v3085 = vpop.permute.xlu0 %3084
    %3086 = vrot.lane.b32.xlu0 %v3059, 8
    %v3087 = vpop.permute.xlu0 %3086
    %3088 = vrot.lane.b32.xlu0 %v3060, 8
    %v3089 = vpop.permute.xlu0 %3088
    %v3090 = vmul.f32 %v3083, %v1755
    %v3091 = vmul.f32 %v3085, %v1756
    %v3092 = vmul.f32 %v3087, %v1757
    %v3093 = vmul.f32 %v3089, %v1758
    %3094 = vrot.lane.b32.xlu0 %v3057, 7
    %v3095 = vpop.permute.xlu0 %3094
    %3096 = vrot.lane.b32.xlu0 %v3058, 7
    %v3097 = vpop.permute.xlu0 %3096
    %3098 = vrot.lane.b32.xlu0 %v3059, 7
    %v3099 = vpop.permute.xlu0 %3098
    %3100 = vrot.lane.b32.xlu0 %v3060, 7
    %v3101 = vpop.permute.xlu0 %3100
    %v3102 = vmul.f32 %v3095, %v1771
    %v3103 = vmul.f32 %v3097, %v1772
    %v3104 = vmul.f32 %v3099, %v1773
    %v3105 = vmul.f32 %v3101, %v1774
    %3106 = vrot.lane.b32.xlu0 %v3057, 1
    %v3107 = vpop.permute.xlu0 %3106
    %3108 = vrot.lane.b32.xlu0 %v3058, 1
    %v3109 = vpop.permute.xlu0 %3108
    %3110 = vrot.lane.b32.xlu0 %v3059, 1
    %v3111 = vpop.permute.xlu0 %3110
    %3112 = vrot.lane.b32.xlu0 %v3060, 1
    %v3113 = vpop.permute.xlu0 %3112
    %v3114 = vmul.f32 %v3107, %v1787
    %v3115 = vmul.f32 %v3109, %v1788
    %v3116 = vmul.f32 %v3111, %v1789
    %v3117 = vmul.f32 %v3113, %v1790
    %3118 = vrot.lane.b32.xlu0 %v3057, 127
    %v3119 = vpop.permute.xlu0 %3118
    %3120 = vrot.lane.b32.xlu0 %v3058, 127
    %v3121 = vpop.permute.xlu0 %3120
    %3122 = vrot.lane.b32.xlu0 %v3059, 127
    %v3123 = vpop.permute.xlu0 %3122
    %3124 = vrot.lane.b32.xlu0 %v3060, 127
    %v3125 = vpop.permute.xlu0 %3124
    %v3126 = vmul.f32 %v3119, %v1803
    %v3127 = vmul.f32 %v3121, %v1804
    %v3128 = vmul.f32 %v3123, %v1805
    %v3129 = vmul.f32 %v3125, %v1806
    %3130 = vrot.lane.b32.xlu0 %v3057, 121
    %v3131 = vpop.permute.xlu0 %3130
    %3132 = vrot.lane.b32.xlu0 %v3058, 121
    %v3133 = vpop.permute.xlu0 %3132
    %3134 = vrot.lane.b32.xlu0 %v3059, 121
    %v3135 = vpop.permute.xlu0 %3134
    %3136 = vrot.lane.b32.xlu0 %v3060, 121
    %v3137 = vpop.permute.xlu0 %3136
    %v3138 = vmul.f32 %v3131, %v1819
    %v3139 = vmul.f32 %v3133, %v1820
    %v3140 = vmul.f32 %v3135, %v1821
    %v3141 = vmul.f32 %v3137, %v1822
    %3142 = vrot.lane.b32.xlu0 %v3057, 120
    %v3143 = vpop.permute.xlu0 %3142
    %3144 = vrot.lane.b32.xlu0 %v3058, 120
    %v3145 = vpop.permute.xlu0 %3144
    %3146 = vrot.lane.b32.xlu0 %v3059, 120
    %v3147 = vpop.permute.xlu0 %3146
    %3148 = vrot.lane.b32.xlu0 %v3060, 120
    %v3149 = vpop.permute.xlu0 %3148
    %v3150 = vmul.f32 %v3143, %v1835
    %v3151 = vmul.f32 %v3145, %v1836
    %v3152 = vmul.f32 %v3147, %v1837
    %v3153 = vmul.f32 %v3149, %v1838
    %3154 = vrot.lane.b32.xlu0 %v3057, 119
    %v3155 = vpop.permute.xlu0 %3154
    %3156 = vrot.lane.b32.xlu0 %v3058, 119
    %v3157 = vpop.permute.xlu0 %3156
    %3158 = vrot.lane.b32.xlu0 %v3059, 119
    %v3159 = vpop.permute.xlu0 %3158
    %3160 = vrot.lane.b32.xlu0 %v3060, 119
    %v3161 = vpop.permute.xlu0 %3160
    %v3162 = vmul.f32 %v3155, %v1851
    %v3163 = vmul.f32 %v3157, %v1852
    %v3164 = vmul.f32 %v3159, %v1853
    %v3165 = vmul.f32 %v3161, %v1854
    %v3166 = vpack.c.bf16 %v3079, %v3078
    %v3167 = vpack.c.bf16 %v3081, %v3080
    %v3168 = vpack.c.bf16 %v3091, %v3090
    %v3169 = vpack.c.bf16 %v3093, %v3092
    %v3170 = vpack.c.bf16 %v3103, %v3102
    %v3171 = vpack.c.bf16 %v3105, %v3104
    %v3172 = vpack.c.bf16 %v3115, %v3114
    %v3173 = vpack.c.bf16 %v3117, %v3116
    %v3174 = vpack.c.bf16 %v3058, %v3057
    %v3175 = vpack.c.bf16 %v3060, %v3059
    %v3176 = vpack.c.bf16 %v3127, %v3126
    %v3177 = vpack.c.bf16 %v3129, %v3128
    %v3178 = vpack.c.bf16 %v3139, %v3138
    %v3179 = vpack.c.bf16 %v3141, %v3140
    %v3180 = vpack.c.bf16 %v3151, %v3150
    %v3181 = vpack.c.bf16 %v3153, %v3152
    %v3182 = vpack.c.bf16 %v3163, %v3162
    %v3183 = vpack.c.bf16 %v3165, %v3164
    %v3192 = vunpack.c.l.b16 %v3062
    %v3193 = vunpack.c.h.b16 %v3062
    %v3194 = vunpack.c.l.b16 %v3063
    %v3195 = vunpack.c.l.b16 %v3064
    %v3196 = vunpack.c.h.b16 %v3064
    %v3197 = vunpack.c.l.b16 %v3065
    %v3198 = vunpack.c.l.b16 %v3066
    %v3199 = vunpack.c.h.b16 %v3066
    %v3200 = vunpack.c.l.b16 %v3067
    %v3201 = vunpack.c.l.b16 %v3068
    %v3202 = vunpack.c.h.b16 %v3068
    %v3203 = vunpack.c.l.b16 %v3069
    %v3204 = vpack.c.b16 %v3195, %v3192
    %v3205 = vpack.c.b16 %v3196, %v3193
    %v3206 = vpack.c.b16 %v3197, %v3194
    %v3207 = vpack.c.b16 %v3201, %v3198
    %v3208 = vpack.c.b16 %v3202, %v3199
    %v3209 = vpack.c.b16 %v3203, %v3200
    %v3215 = vsel %vm1927, %v3206, 0
    %v3218 = vsel %vm1927, %v3209, 0
    %3220 = vmatpush.bf16.msra.mxu0 %v3173
    %3221 = vmatpush.bf16.msra.mxu0 %v3172
    %3222 = vmatpush.bf16.msra.mxu0 %v3171
    %3223 = vmatpush.bf16.msra.mxu0 %v3170
    %3224 = vmatpush.bf16.msra.mxu0 %v3169
    %3225 = vmatpush.bf16.msra.mxu0 %v3168
    %3226 = vmatpush.bf16.msra.mxu0 %v3167
    %3227 = vmatpush.bf16.msra.mxu0 %v3166
    %3228 = vmatmul.bf16.gmra.mxu0 %v3204
    %v3229 = vpop.f32.mrf.mxu0
    %v3230 = vadd.f32 0.0, %v3229
    %v3231 = vpop.f32.mrf.mxu0
    %v3232 = vadd.f32 0.0, %v3231
    %3233 = vmatmul.bf16.gmra.mxu0 %v3207
    %v3234 = vpop.f32.mrf.mxu0
    %v3235 = vadd.f32 0.0, %v3234
    %v3236 = vpop.f32.mrf.mxu0
    %v3237 = vadd.f32 0.0, %v3236
    %3238 = vdwg.mxu0
    %3239 = vmatpush.bf16.msra.mxu0 %v3181
    %3240 = vmatpush.bf16.msra.mxu0 %v3180
    %3241 = vmatpush.bf16.msra.mxu0 %v3179
    %3242 = vmatpush.bf16.msra.mxu0 %v3178
    %3243 = vmatpush.bf16.msra.mxu0 %v3177
    %3244 = vmatpush.bf16.msra.mxu0 %v3176
    %3245 = vmatpush.bf16.msra.mxu0 %v3175
    %3246 = vmatpush.bf16.msra.mxu0 %v3174
    %3247 = vmatmul.bf16.gmra.mxu0 %v3205
    %v3248 = vpop.f32.mrf.mxu0
    %v3249 = vadd.f32 %v3230, %v3248
    %v3250 = vpop.f32.mrf.mxu0
    %v3251 = vadd.f32 %v3232, %v3250
    %3252 = vmatmul.bf16.gmra.mxu0 %v3208
    %v3253 = vpop.f32.mrf.mxu0
    %v3254 = vadd.f32 %v3235, %v3253
    %v3255 = vpop.f32.mrf.mxu0
    %v3256 = vadd.f32 %v3237, %v3255
    %3257 = vdwg.mxu0
    %3258 = vmatpush.bf16.msra.mxu0 0
    %3259 = vmatpush.bf16.msra.mxu0 0
    %3260 = vmatpush.bf16.msra.mxu0 0
    %3261 = vmatpush.bf16.msra.mxu0 0
    %3262 = vmatpush.bf16.msra.mxu0 0
    %3263 = vmatpush.bf16.msra.mxu0 0
    %3264 = vmatpush.bf16.msra.mxu0 %v3183
    %3265 = vmatpush.bf16.msra.mxu0 %v3182
    %3266 = vmatmul.bf16.gmra.mxu0 %v3215
    %v3267 = vpop.f32.mrf.mxu0
    %v3268 = vadd.f32 %v3249, %v3267
    %v3269 = vpop.f32.mrf.mxu0
    %v3270 = vadd.f32 %v3251, %v3269
    %3271 = vmatmul.bf16.gmra.mxu0 %v3218
    %v3272 = vpop.f32.mrf.mxu0
    %v3273 = vadd.f32 %v3254, %v3272
    %v3274 = vpop.f32.mrf.mxu0
    %v3275 = vadd.f32 %v3256, %v3274
    %3276 = vdwg.mxu0
    %v3277 = vmax.f32 %v3268, 0.0
    %v3278 = vmax.f32 %v3270, 0.0
    %v3279 = vmax.f32 %v3273, 0.0
    %v3280 = vmax.f32 %v3275, 0.0
    %s3281 = scalar_lea.vmem %s9, 64
    %v3282 = vld [vmem:[%s3281] sm:$0xf]
    %v3283 = vld [vmem:[%s3281 + $0x4] sm:$0xf]
    %v3284 = vld [vmem:[%s3281 + $0x8] sm:$0xf]
    %v3285 = vld [vmem:[%s3281 + $0xc] sm:$0xf]
    %v3286 = vpack.c.bf16 %v3278, %v3277
    %v3287 = vpack.c.bf16 %v3280, %v3279
    %v3292 = vunpack.c.l.b16 %v3282
    %v3293 = vunpack.c.l.b16 %v3283
    %v3294 = vunpack.c.l.b16 %v3284
    %v3295 = vunpack.c.l.b16 %v3285
    %v3296 = vpack.c.b16 %v3293, %v3292
    %v3297 = vpack.c.b16 %v3295, %v3294
    %v3299 = vsel %vm1927, %v3296, 0
    %v3302 = vsel %vm1927, %v3297, 0
    %3304 = vmatpush.bf16.msra.mxu0 0
    %3305 = vmatpush.bf16.msra.mxu0 0
    %3306 = vmatpush.bf16.msra.mxu0 0
    %3307 = vmatpush.bf16.msra.mxu0 0
    %3308 = vmatpush.bf16.msra.mxu0 0
    %3309 = vmatpush.bf16.msra.mxu0 0
    %3310 = vmatpush.bf16.msra.mxu0 %v3287
    %3311 = vmatpush.bf16.msra.mxu0 %v3286
    %3312 = vmatmul.bf16.gmra.mxu0 %v3299
    %v3313 = vpop.f32.mrf.mxu0
    %v3314 = vadd.f32 0.0, %v3313
    %v3315 = vpop.f32.mrf.mxu0
    %v3316 = vadd.f32 0.0, %v3315
    %3317 = vmatmul.bf16.gmra.mxu0 %v3302
    %v3318 = vpop.f32.mrf.mxu0
    %v3319 = vadd.f32 0.0, %v3318
    %v3320 = vpop.f32.mrf.mxu0
    %v3321 = vadd.f32 0.0, %v3320
    %3322 = vdwg.mxu0
    %v3323 = vadd.f32 %v3057, %v3314
    %v3324 = vadd.f32 %v3058, %v3316
    %v3325 = vadd.f32 %v3059, %v3319
    %v3326 = vadd.f32 %v3060, %v3321
    %s3327 = scalar_lea.vmem %s8, 240
    %v3328 = vld [vmem:[%s3327] sm:$0xff]
    %v3329 = vld [vmem:[%s3327 + $0x8] sm:$0xf]
    %v3330 = vld [vmem:[%s3327 + $0xc] sm:$0xff]
    %v3331 = vld [vmem:[%s3327 + $0x14] sm:$0xf]
    %v3332 = vld [vmem:[%s3327 + $0x18] sm:$0xff]
    %v3333 = vld [vmem:[%s3327 + $0x20] sm:$0xf]
    %v3334 = vld [vmem:[%s3327 + $0x24] sm:$0xff]
    %v3335 = vld [vmem:[%s3327 + $0x2c] sm:$0xf]
    %3336 = vrot.lane.b32.xlu0 %v3323, 9
    %v3337 = vpop.permute.xlu0 %3336
    %3338 = vrot.lane.b32.xlu0 %v3324, 9
    %v3339 = vpop.permute.xlu0 %3338
    %3340 = vrot.lane.b32.xlu0 %v3325, 9
    %v3341 = vpop.permute.xlu0 %3340
    %3342 = vrot.lane.b32.xlu0 %v3326, 9
    %v3343 = vpop.permute.xlu0 %3342
    %v3344 = vmul.f32 %v3337, %v1739
    %v3345 = vmul.f32 %v3339, %v1740
    %v3346 = vmul.f32 %v3341, %v1741
    %v3347 = vmul.f32 %v3343, %v1742
    %3348 = vrot.lane.b32.xlu0 %v3323, 8
    %v3349 = vpop.permute.xlu0 %3348
    %3350 = vrot.lane.b32.xlu0 %v3324, 8
    %v3351 = vpop.permute.xlu0 %3350
    %3352 = vrot.lane.b32.xlu0 %v3325, 8
    %v3353 = vpop.permute.xlu0 %3352
    %3354 = vrot.lane.b32.xlu0 %v3326, 8
    %v3355 = vpop.permute.xlu0 %3354
    %v3356 = vmul.f32 %v3349, %v1755
    %v3357 = vmul.f32 %v3351, %v1756
    %v3358 = vmul.f32 %v3353, %v1757
    %v3359 = vmul.f32 %v3355, %v1758
    %3360 = vrot.lane.b32.xlu0 %v3323, 7
    %v3361 = vpop.permute.xlu0 %3360
    %3362 = vrot.lane.b32.xlu0 %v3324, 7
    %v3363 = vpop.permute.xlu0 %3362
    %3364 = vrot.lane.b32.xlu0 %v3325, 7
    %v3365 = vpop.permute.xlu0 %3364
    %3366 = vrot.lane.b32.xlu0 %v3326, 7
    %v3367 = vpop.permute.xlu0 %3366
    %v3368 = vmul.f32 %v3361, %v1771
    %v3369 = vmul.f32 %v3363, %v1772
    %v3370 = vmul.f32 %v3365, %v1773
    %v3371 = vmul.f32 %v3367, %v1774
    %3372 = vrot.lane.b32.xlu0 %v3323, 1
    %v3373 = vpop.permute.xlu0 %3372
    %3374 = vrot.lane.b32.xlu0 %v3324, 1
    %v3375 = vpop.permute.xlu0 %3374
    %3376 = vrot.lane.b32.xlu0 %v3325, 1
    %v3377 = vpop.permute.xlu0 %3376
    %3378 = vrot.lane.b32.xlu0 %v3326, 1
    %v3379 = vpop.permute.xlu0 %3378
    %v3380 = vmul.f32 %v3373, %v1787
    %v3381 = vmul.f32 %v3375, %v1788
    %v3382 = vmul.f32 %v3377, %v1789
    %v3383 = vmul.f32 %v3379, %v1790
    %3384 = vrot.lane.b32.xlu0 %v3323, 127
    %v3385 = vpop.permute.xlu0 %3384
    %3386 = vrot.lane.b32.xlu0 %v3324, 127
    %v3387 = vpop.permute.xlu0 %3386
    %3388 = vrot.lane.b32.xlu0 %v3325, 127
    %v3389 = vpop.permute.xlu0 %3388
    %3390 = vrot.lane.b32.xlu0 %v3326, 127
    %v3391 = vpop.permute.xlu0 %3390
    %v3392 = vmul.f32 %v3385, %v1803
    %v3393 = vmul.f32 %v3387, %v1804
    %v3394 = vmul.f32 %v3389, %v1805
    %v3395 = vmul.f32 %v3391, %v1806
    %3396 = vrot.lane.b32.xlu0 %v3323, 121
    %v3397 = vpop.permute.xlu0 %3396
    %3398 = vrot.lane.b32.xlu0 %v3324, 121
    %v3399 = vpop.permute.xlu0 %3398
    %3400 = vrot.lane.b32.xlu0 %v3325, 121
    %v3401 = vpop.permute.xlu0 %3400
    %3402 = vrot.lane.b32.xlu0 %v3326, 121
    %v3403 = vpop.permute.xlu0 %3402
    %v3404 = vmul.f32 %v3397, %v1819
    %v3405 = vmul.f32 %v3399, %v1820
    %v3406 = vmul.f32 %v3401, %v1821
    %v3407 = vmul.f32 %v3403, %v1822
    %3408 = vrot.lane.b32.xlu0 %v3323, 120
    %v3409 = vpop.permute.xlu0 %3408
    %3410 = vrot.lane.b32.xlu0 %v3324, 120
    %v3411 = vpop.permute.xlu0 %3410
    %3412 = vrot.lane.b32.xlu0 %v3325, 120
    %v3413 = vpop.permute.xlu0 %3412
    %3414 = vrot.lane.b32.xlu0 %v3326, 120
    %v3415 = vpop.permute.xlu0 %3414
    %v3416 = vmul.f32 %v3409, %v1835
    %v3417 = vmul.f32 %v3411, %v1836
    %v3418 = vmul.f32 %v3413, %v1837
    %v3419 = vmul.f32 %v3415, %v1838
    %3420 = vrot.lane.b32.xlu0 %v3323, 119
    %v3421 = vpop.permute.xlu0 %3420
    %3422 = vrot.lane.b32.xlu0 %v3324, 119
    %v3423 = vpop.permute.xlu0 %3422
    %3424 = vrot.lane.b32.xlu0 %v3325, 119
    %v3425 = vpop.permute.xlu0 %3424
    %3426 = vrot.lane.b32.xlu0 %v3326, 119
    %v3427 = vpop.permute.xlu0 %3426
    %v3428 = vmul.f32 %v3421, %v1851
    %v3429 = vmul.f32 %v3423, %v1852
    %v3430 = vmul.f32 %v3425, %v1853
    %v3431 = vmul.f32 %v3427, %v1854
    %v3432 = vpack.c.bf16 %v3345, %v3344
    %v3433 = vpack.c.bf16 %v3347, %v3346
    %v3434 = vpack.c.bf16 %v3357, %v3356
    %v3435 = vpack.c.bf16 %v3359, %v3358
    %v3436 = vpack.c.bf16 %v3369, %v3368
    %v3437 = vpack.c.bf16 %v3371, %v3370
    %v3438 = vpack.c.bf16 %v3381, %v3380
    %v3439 = vpack.c.bf16 %v3383, %v3382
    %v3440 = vpack.c.bf16 %v3324, %v3323
    %v3441 = vpack.c.bf16 %v3326, %v3325
    %v3442 = vpack.c.bf16 %v3393, %v3392
    %v3443 = vpack.c.bf16 %v3395, %v3394
    %v3444 = vpack.c.bf16 %v3405, %v3404
    %v3445 = vpack.c.bf16 %v3407, %v3406
    %v3446 = vpack.c.bf16 %v3417, %v3416
    %v3447 = vpack.c.bf16 %v3419, %v3418
    %v3448 = vpack.c.bf16 %v3429, %v3428
    %v3449 = vpack.c.bf16 %v3431, %v3430
    %v3458 = vunpack.c.l.b16 %v3328
    %v3459 = vunpack.c.h.b16 %v3328
    %v3460 = vunpack.c.l.b16 %v3329
    %v3461 = vunpack.c.l.b16 %v3330
    %v3462 = vunpack.c.h.b16 %v3330
    %v3463 = vunpack.c.l.b16 %v3331
    %v3464 = vunpack.c.l.b16 %v3332
    %v3465 = vunpack.c.h.b16 %v3332
    %v3466 = vunpack.c.l.b16 %v3333
    %v3467 = vunpack.c.l.b16 %v3334
    %v3468 = vunpack.c.h.b16 %v3334
    %v3469 = vunpack.c.l.b16 %v3335
    %v3470 = vpack.c.b16 %v3461, %v3458
    %v3471 = vpack.c.b16 %v3462, %v3459
    %v3472 = vpack.c.b16 %v3463, %v3460
    %v3473 = vpack.c.b16 %v3467, %v3464
    %v3474 = vpack.c.b16 %v3468, %v3465
    %v3475 = vpack.c.b16 %v3469, %v3466
    %v3481 = vsel %vm1927, %v3472, 0
    %v3484 = vsel %vm1927, %v3475, 0
    %3486 = vmatpush.bf16.msra.mxu0 %v3439
    %3487 = vmatpush.bf16.msra.mxu0 %v3438
    %3488 = vmatpush.bf16.msra.mxu0 %v3437
    %3489 = vmatpush.bf16.msra.mxu0 %v3436
    %3490 = vmatpush.bf16.msra.mxu0 %v3435
    %3491 = vmatpush.bf16.msra.mxu0 %v3434
    %3492 = vmatpush.bf16.msra.mxu0 %v3433
    %3493 = vmatpush.bf16.msra.mxu0 %v3432
    %3494 = vmatmul.bf16.gmra.mxu0 %v3470
    %v3495 = vpop.f32.mrf.mxu0
    %v3496 = vadd.f32 0.0, %v3495
    %v3497 = vpop.f32.mrf.mxu0
    %v3498 = vadd.f32 0.0, %v3497
    %3499 = vmatmul.bf16.gmra.mxu0 %v3473
    %v3500 = vpop.f32.mrf.mxu0
    %v3501 = vadd.f32 0.0, %v3500
    %v3502 = vpop.f32.mrf.mxu0
    %v3503 = vadd.f32 0.0, %v3502
    %3504 = vdwg.mxu0
    %3505 = vmatpush.bf16.msra.mxu0 %v3447
    %3506 = vmatpush.bf16.msra.mxu0 %v3446
    %3507 = vmatpush.bf16.msra.mxu0 %v3445
    %3508 = vmatpush.bf16.msra.mxu0 %v3444
    %3509 = vmatpush.bf16.msra.mxu0 %v3443
    %3510 = vmatpush.bf16.msra.mxu0 %v3442
    %3511 = vmatpush.bf16.msra.mxu0 %v3441
    %3512 = vmatpush.bf16.msra.mxu0 %v3440
    %3513 = vmatmul.bf16.gmra.mxu0 %v3471
    %v3514 = vpop.f32.mrf.mxu0
    %v3515 = vadd.f32 %v3496, %v3514
    %v3516 = vpop.f32.mrf.mxu0
    %v3517 = vadd.f32 %v3498, %v3516
    %3518 = vmatmul.bf16.gmra.mxu0 %v3474
    %v3519 = vpop.f32.mrf.mxu0
    %v3520 = vadd.f32 %v3501, %v3519
    %v3521 = vpop.f32.mrf.mxu0
    %v3522 = vadd.f32 %v3503, %v3521
    %3523 = vdwg.mxu0
    %3524 = vmatpush.bf16.msra.mxu0 0
    %3525 = vmatpush.bf16.msra.mxu0 0
    %3526 = vmatpush.bf16.msra.mxu0 0
    %3527 = vmatpush.bf16.msra.mxu0 0
    %3528 = vmatpush.bf16.msra.mxu0 0
    %3529 = vmatpush.bf16.msra.mxu0 0
    %3530 = vmatpush.bf16.msra.mxu0 %v3449
    %3531 = vmatpush.bf16.msra.mxu0 %v3448
    %3532 = vmatmul.bf16.gmra.mxu0 %v3481
    %v3533 = vpop.f32.mrf.mxu0
    %v3534 = vadd.f32 %v3515, %v3533
    %v3535 = vpop.f32.mrf.mxu0
    %v3536 = vadd.f32 %v3517, %v3535
    %3537 = vmatmul.bf16.gmra.mxu0 %v3484
    %v3538 = vpop.f32.mrf.mxu0
    %v3539 = vadd.f32 %v3520, %v3538
    %v3540 = vpop.f32.mrf.mxu0
    %v3541 = vadd.f32 %v3522, %v3540
    %3542 = vdwg.mxu0
    %v3543 = vmax.f32 %v3534, 0.0
    %v3544 = vmax.f32 %v3536, 0.0
    %v3545 = vmax.f32 %v3539, 0.0
    %v3546 = vmax.f32 %v3541, 0.0
    %s3547 = scalar_lea.vmem %s9, 80
    %v3548 = vld [vmem:[%s3547] sm:$0xf]
    %v3549 = vld [vmem:[%s3547 + $0x4] sm:$0xf]
    %v3550 = vld [vmem:[%s3547 + $0x8] sm:$0xf]
    %v3551 = vld [vmem:[%s3547 + $0xc] sm:$0xf]
    %v3552 = vpack.c.bf16 %v3544, %v3543
    %v3553 = vpack.c.bf16 %v3546, %v3545
    %v3558 = vunpack.c.l.b16 %v3548
    %v3559 = vunpack.c.l.b16 %v3549
    %v3560 = vunpack.c.l.b16 %v3550
    %v3561 = vunpack.c.l.b16 %v3551
    %v3562 = vpack.c.b16 %v3559, %v3558
    %v3563 = vpack.c.b16 %v3561, %v3560
    %v3565 = vsel %vm1927, %v3562, 0
    %v3568 = vsel %vm1927, %v3563, 0
    %3570 = vmatpush.bf16.msra.mxu0 0
    %3571 = vmatpush.bf16.msra.mxu0 0
    %3572 = vmatpush.bf16.msra.mxu0 0
    %3573 = vmatpush.bf16.msra.mxu0 0
    %3574 = vmatpush.bf16.msra.mxu0 0
    %3575 = vmatpush.bf16.msra.mxu0 0
    %3576 = vmatpush.bf16.msra.mxu0 %v3553
    %3577 = vmatpush.bf16.msra.mxu0 %v3552
    %3578 = vmatmul.bf16.gmra.mxu0 %v3565
    %v3579 = vpop.f32.mrf.mxu0
    %v3580 = vadd.f32 0.0, %v3579
    %v3581 = vpop.f32.mrf.mxu0
    %v3582 = vadd.f32 0.0, %v3581
    %3583 = vmatmul.bf16.gmra.mxu0 %v3568
    %v3584 = vpop.f32.mrf.mxu0
    %v3585 = vadd.f32 0.0, %v3584
    %v3586 = vpop.f32.mrf.mxu0
    %v3587 = vadd.f32 0.0, %v3586
    %3588 = vdwg.mxu0
    %v3589 = vadd.f32 %v3323, %v3580
    %v3590 = vadd.f32 %v3324, %v3582
    %v3591 = vadd.f32 %v3325, %v3585
    %v3592 = vadd.f32 %v3326, %v3587
    %v3593 = vmul.f32 %v3589, 0.01
    %v3594 = vmul.f32 %v3590, 0.01
    %v3595 = vmul.f32 %v3591, 0.01
    %v3596 = vmul.f32 %v3592, 0.01
    %v3597 = vmax.f32 %v3589, %v3593
    %v3598 = vmax.f32 %v3590, %v3594
    %v3599 = vmax.f32 %v3591, %v3595
    %v3600 = vmax.f32 %v3592, %v3596
    %v3601 = vld [vmem:[%s10] sm:$0xf]
    %v3602 = vpack.c.bf16 %v3598, %v3597
    %v3603 = vpack.c.bf16 %v3600, %v3599
    %v3604 = vld [vmem:[%s11] sm:$0xff]
    %3606 = vset.pattern.permute.xlu0 0
    %3607 = vperm.xlu0 %3606, %v3604
    %v3608 = vpop.permute.xlu0 %3607
    %v3611 = vsel %vm1927, %v3601, 0
    %3613 = vmatpush.bf16.msra.mxu0 0
    %3614 = vmatpush.bf16.msra.mxu0 0
    %3615 = vmatpush.bf16.msra.mxu0 0
    %3616 = vmatpush.bf16.msra.mxu0 0
    %3617 = vmatpush.bf16.msra.mxu0 0
    %3618 = vmatpush.bf16.msra.mxu0 0
    %3619 = vmatpush.bf16.msra.mxu0 %v3603
    %3620 = vmatpush.bf16.msra.mxu0 %v3602
    %3621 = vmatmul.bf16.gmra.mxu0 %v3611
    %v3622 = vpop.f32.mrf.mxu0
    %v3623 = vadd.f32 %v3608, %v3622
    %v3624 = vpop.f32.mrf.mxu0
    %3625 = vdwg.mxu0
    %v3626 = vmul.f32 %v3623, 0.01
    %v3627 = vmax.f32 %v3623, %v3626
    %3628 = vst [vmem:[%s17] sm:$0xff] %v3627
    %v3629 = vld [vmem:[%s12] sm:$0xff]
    %v3630 = vld [vmem:[%s12 + $0x8] sm:$0xff]
    %vm3631 = vcmask 64512
    %v3633 = vsel %vm3631, %v3629, 0
    %v3636 = vsel %vm3631, %v3630, 0
    %3638 = vmatpush.msra.mxu0 0.0
    %3639 = vmatpush.msra.mxu0 0.0
    %3640 = vmatpush.msra.mxu0 0.0
    %3641 = vmatpush.msra.mxu0 0.0
    %3642 = vmatpush.msra.mxu0 0.0
    %3643 = vmatpush.msra.mxu0 0.0
    %3644 = vmatpush.msra.mxu0 0.0
    %3645 = vmatpush.msra.mxu0 0.0
    %3646 = vmatpush.msra.mxu0 0.0
    %3647 = vmatpush.msra.mxu0 0.0
    %3648 = vmatpush.msra.mxu0 0.0
    %3649 = vmatpush.msra.mxu0 0.0
    %3650 = vmatpush.msra.mxu0 0.0
    %3651 = vmatpush.msra.mxu0 0.0
    %3652 = vmatpush.msra.mxu0 0.0
    %3653 = vmatpush.msra.mxu0 %v3627
    %3654 = vmatmul.f32.gmra.mxu0 %v3633
    %v3655 = vpop.f32.mrf.mxu0
    %v3656 = vadd.f32 0.0, %v3655
    %3657 = vmatmul.f32.gmra.mxu0 %v3636
    %v3658 = vpop.f32.mrf.mxu0
    %v3659 = vadd.f32 0.0, %v3658
    %3660 = vdwg.mxu0
    %v3661 = vld [vmem:[%s14] sm:$0xff]
    %v3662 = vld [vmem:[%s14 + $0x8] sm:$0xff]
    %v3663 = vmul.f32 %v3656, 2.0
    %v3664 = vmul.f32 %v3659, 2.0
    %3666 = vset.pattern.permute.xlu0 0
    %3667 = vperm.xlu0 %3666, %v3661
    %v3668 = vpop.permute.xlu0 %3667
    %3671 = vset.pattern.permute.xlu0 0
    %3672 = vperm.xlu0 %3671, %v3662
    %v3673 = vpop.permute.xlu0 %3672
    %v3675 = vsub.f32 %v3668, %v3663
    %v3676 = vsub.f32 %v3673, %v3664
    %v3677 = vmin.f32 %v3675, %v3676
    %v3678 = vrot.slane %v3677, 4
    %v3679 = vmin.f32 %v3677, %v3678
    %v3680 = vrot.slane %v3679, 2
    %v3681 = vmin.f32 %v3679, %v3680
    %v3682 = vrot.slane %v3681, 1
    %v3683 = vmin.f32 %v3681, %v3682
    %v3684 = vlaneseq
    %v3685 = vshrl.u32 %v3684, 7
    %v3686 = vadd.s32 %v3685, 8
    %v3687 = vcvt.s32.f32 %v3685
    %v3688 = vcvt.s32.f32 %v3686
    %vm3689 = vcmp.eq.f32.partialorder %v3675, %v3683
    %vm3690 = vcmp.eq.f32.partialorder %v3676, %v3683
    %v3691 = vsel %vm3689, %v3687, 16.0
    %v3692 = vsel %vm3690, %v3688, 16.0
    %v3693 = vmin.f32 %v3691, %v3692
    %v3694 = vrot.slane %v3693, 4
    %v3695 = vmin.f32 %v3693, %v3694
    %v3696 = vrot.slane %v3695, 2
    %v3697 = vmin.f32 %v3695, %v3696
    %v3698 = vrot.slane %v3697, 1
    %v3699 = vmin.f32 %v3697, %v3698
    %vm3700 = vcmp.eq.f32.partialorder %v3687, %v3699
    %vm3701 = vcmp.eq.f32.partialorder %v3688, %v3699
    %v3702 = vsel %vm3700, 1, 0
    %v3703 = vsel %vm3701, 1, 0
    %v3704 = vcvt.s32.f32 %v3702
    %v3705 = vcvt.s32.f32 %v3703
    %v3706 = vld [vmem:[%s13] sm:$0xff]
    %v3708 = vsel %vm465, %v3706, 0
    %3710 = vmatpush.msra.mxu0 0.0
    %3711 = vmatpush.msra.mxu0 0.0
    %3712 = vmatpush.msra.mxu0 0.0
    %3713 = vmatpush.msra.mxu0 0.0
    %3714 = vmatpush.msra.mxu0 0.0
    %3715 = vmatpush.msra.mxu0 0.0
    %3716 = vmatpush.msra.mxu0 0.0
    %3717 = vmatpush.msra.mxu0 0.0
    %3718 = vmatpush.msra.mxu0 0.0
    %3719 = vmatpush.msra.mxu0 0.0
    %3720 = vmatpush.msra.mxu0 0.0
    %3721 = vmatpush.msra.mxu0 0.0
    %3722 = vmatpush.msra.mxu0 0.0
    %3723 = vmatpush.msra.mxu0 0.0
    %3724 = vmatpush.msra.mxu0 %v3705
    %3725 = vmatpush.msra.mxu0 %v3704
    %3726 = vmatmul.f32.gmra.mxu0 %v3708
    %v3727 = vpop.f32.mrf.mxu0
    %v3728 = vadd.f32 0.0, %v3727
    %3729 = vdwg.mxu0
    %3730 = vst [vmem:[%s18] sm:$0xff] %v3728
    %v3731 = vsub.f32 %v3728, %v3627
    %v3732 = vmul.f32 %v3731, %v3731
    %3733 = vadd.xlane.f32.xlu0 %v3732
    %v3734 = vpop.xlane.xlu0 %3733
    %v3735 = vrot.slane %v3734, 4
    %v3736 = vadd.f32 %v3734, %v3735
    %v3737 = vrot.slane %v3736, 2
    %v3738 = vadd.f32 %v3736, %v3737
    %v3739 = vrot.slane %v3738, 1
    %v3740 = vadd.f32 %v3738, %v3739
    %s3741 = vtos %v3740
    %s3742 = smul.f32 %s3741, 1.25
    %v3743 = vrcp.pop 1024.0
    %v3744 = vmul.f32 1024.0, %v3743
    %v3745 = vsub.f32 1.0, %v3744
    %v3746 = vmul.f32 %v3743, %v3745
    %v3747 = vadd.f32 %v3743, %v3746
    %vm3748 = vweird.f32 %v3743
    %v3749 = vsel %vm3748, %v3743, %v3747
    %s3750 = vtos %v3749
    %s3751 = smul.f32 %s3742, %s3750
    %s3752 = scalar_lea.smem [#allocation2], 0
    %3753 = sst [smem:[%s3752]] %s3751
    // Predicated region
    $region70: #{vqvae_forward.2} parent=1 // pred_check
      _
    $region71: #{vqvae_forward.2} parent=1 // pred_check_branch
      %3755 = sbr.rel (0) target = $region73
    $region72: #{vqvae_forward.2} parent=1 // pred_region
      _
    $region73: #{vqvae_forward.2} parent=1 // pred_fallthru
      _
    // Predicated region
    $region74: #{vqvae_forward.2} parent=1 // pred_check
      _
    $region75: #{vqvae_forward.2} parent=1 // pred_check_branch
      %3757 = sbr.rel (0) target = $region77
    $region76: #{vqvae_forward.2} parent=1 // pred_region
      _
    $region77: #{vqvae_forward.2} parent=1 // pred_fallthru
      _
    // Predicated region
    $region78: #{vqvae_forward.2} parent=1 // pred_check
      _
    $region79: #{vqvae_forward.2} parent=1 // pred_check_branch
      %3759 = sbr.rel (0) target = $region81
    $region80: #{vqvae_forward.2} parent=1 // pred_region
      %3761 = vsyncadd [#allocation3], 0
      %s3763 = sshll.u32 %s19, 4
      %s3764 = int_to_ptr.hbm [resolvable:$true] %s3763
      %3766 = dma.smem_to_hbm [#allocation2], 16, %s3764, [#allocation3]
    $region81: #{vqvae_forward.2} parent=1 // pred_fallthru
      _
    // Predicated region
    $region82: #{vqvae_forward.2} parent=1 // pred_check
      _
    $region83: #{vqvae_forward.2} parent=1 // pred_check_branch
      %3768 = sbr.rel (0) target = $region85
    $region84: #{vqvae_forward.2} parent=1 // pred_region
      _
    $region85: #{vqvae_forward.2} parent=1 // pred_fallthru
      _
    // Predicated region
    $region86: #{vqvae_forward.2} parent=1 // pred_check
      _
    $region87: #{vqvae_forward.2} parent=1 // pred_check_branch
      %3770 = sbr.rel (0) target = $region89
    $region88: #{vqvae_forward.2} parent=1 // pred_region
      _
    $region89: #{vqvae_forward.2} parent=1 // pred_fallthru
      _
    // Predicated region
    $region90: #{vqvae_forward.2} parent=1 // pred_check
      _
    $region91: #{vqvae_forward.2} parent=1 // pred_check_branch
      %3772 = sbr.rel (0) target = $region93
    $region92: #{vqvae_forward.2} parent=1 // pred_region
      %3774 = dma.done [#allocation3], 16
    $region93: #{vqvae_forward.2} parent=1 // pred_fallthru
      _
    %3775 = sfence
    %3776 = vsyncpa [#allocation3], 1

// kernel: vqvae_forward.3
$region0: #{vqvae_forward.3}
  #allocation0 [shape = 'u32[]', space=smem, size = 0x4, offset = 0x4, fixed_abs, tag = 'smem constant byte address 0x4 - core index']
  #allocation1 [shape = 'u32[72,128]{1,0:T(1,128)}', space=vmem, size = 0x9000, scoped, tag = 'internal scratch']
  %s0 = inlined_call_operand.vmem [shape: f32[8,128], index: 0, kind: input, shape index: {}]
  %s1 = inlined_call_operand.vmem [shape: bf16[32,72], index: 1, kind: input, shape index: {}]
  %s2 = inlined_call_operand.vmem [shape: f32[32,1], index: 2, kind: input, shape index: {}]
  %s3 = inlined_call_operand.vmem [shape: bf16[6,32,288], index: 3, kind: input, shape index: {}]
  %s4 = inlined_call_operand.vmem [shape: bf16[6,32,32], index: 4, kind: input, shape index: {}]
  %s5 = inlined_call_operand.vmem [shape: bf16[64,288], index: 5, kind: input, shape index: {}]
  %s6 = inlined_call_operand.vmem [shape: f32[64,1], index: 6, kind: input, shape index: {}]
  %s7 = inlined_call_operand.vmem [shape: f32[4,128,512], index: 7, kind: input, shape index: {}]
  %s8 = inlined_call_operand.vmem [shape: bf16[12,144], index: 8, kind: input, shape index: {}]
  %s9 = inlined_call_operand.vmem [shape: f32[12,1], index: 9, kind: input, shape index: {}]
  %s10 = inlined_call_operand.vmem [shape: f32[9,64,128], index: 10, kind: input, shape index: {}]
  %s11 = inlined_call_operand.vmem [shape: f32[9,16,512], index: 11, kind: input, shape index: {}]
  %s12 = inlined_call_operand.vmem [shape: f32[12,512], index: 12, kind: output, shape index: {}]
  %s13 = sld [smem:[#allocation0]]
  $region58: #{vqvae_forward.3} parent=0
    _
  %s15 = ssub.s32 1, %s13
  %s16 = scalar_select 0, %s15, %s13
  // Predicated region
  $region2: #{vqvae_forward.3} parent=0 // pred_check
    _
  $region3: #{vqvae_forward.3} parent=0 // pred_check_branch
    %18 = sbr.rel (0) target = $region5
  $region4: #{vqvae_forward.3} parent=0 // pred_region
    _
  $region5: #{vqvae_forward.3} parent=0 // pred_fallthru
    _
  // Predicated region
  $region6: #{vqvae_forward.3} parent=0 // pred_check
    _
  $region7: #{vqvae_forward.3} parent=0 // pred_check_branch
    %20 = sbr.rel (0) target = $region9
  $region8: #{vqvae_forward.3} parent=0 // pred_region
    _
  $region9: #{vqvae_forward.3} parent=0 // pred_fallthru
    _
  // Predicated region
  $region10: #{vqvae_forward.3} parent=0 // pred_check
    _
  $region11: #{vqvae_forward.3} parent=0 // pred_check_branch
    %22 = sbr.rel (0) target = $region13
  $region12: #{vqvae_forward.3} parent=0 // pred_region
    _
  $region13: #{vqvae_forward.3} parent=0 // pred_fallthru
    _
  // Predicated region
  $region14: #{vqvae_forward.3} parent=0 // pred_check
    _
  $region15: #{vqvae_forward.3} parent=0 // pred_check_branch
    %24 = sbr.rel (0) target = $region17
  $region16: #{vqvae_forward.3} parent=0 // pred_region
    _
  $region17: #{vqvae_forward.3} parent=0 // pred_fallthru
    _
  // Predicated region
  $region18: #{vqvae_forward.3} parent=0 // pred_check
    _
  $region19: #{vqvae_forward.3} parent=0 // pred_check_branch
    %26 = sbr.rel (0) target = $region21
  $region20: #{vqvae_forward.3} parent=0 // pred_region
    _
  $region21: #{vqvae_forward.3} parent=0 // pred_fallthru
    _
  // Predicated region
  $region22: #{vqvae_forward.3} parent=0 // pred_check
    _
  $region23: #{vqvae_forward.3} parent=0 // pred_check_branch
    %28 = sbr.rel (0) target = $region25
  $region24: #{vqvae_forward.3} parent=0 // pred_region
    _
  $region25: #{vqvae_forward.3} parent=0 // pred_fallthru
    _
  // Predicated region
  $region26: #{vqvae_forward.3} parent=0 // pred_check
    _
  $region27: #{vqvae_forward.3} parent=0 // pred_check_branch
    %30 = sbr.rel (0) target = $region29
  $region28: #{vqvae_forward.3} parent=0 // pred_region
    _
  $region29: #{vqvae_forward.3} parent=0 // pred_fallthru
    _
  // Predicated region
  $region30: #{vqvae_forward.3} parent=0 // pred_check
    _
  $region31: #{vqvae_forward.3} parent=0 // pred_check_branch
    %32 = sbr.rel (0) target = $region33
  $region32: #{vqvae_forward.3} parent=0 // pred_region
    _
  $region33: #{vqvae_forward.3} parent=0 // pred_fallthru
    _
  // Predicated region
  $region34: #{vqvae_forward.3} parent=0 // pred_check
    _
  $region35: #{vqvae_forward.3} parent=0 // pred_check_branch
    %34 = sbr.rel (0) target = $region37
  $region36: #{vqvae_forward.3} parent=0 // pred_region
    _
  $region37: #{vqvae_forward.3} parent=0 // pred_fallthru
    _
  // Predicated region
  $region38: #{vqvae_forward.3} parent=0 // pred_check
    _
  $region39: #{vqvae_forward.3} parent=0 // pred_check_branch
    %36 = sbr.rel (0) target = $region41
  $region40: #{vqvae_forward.3} parent=0 // pred_region
    _
  $region41: #{vqvae_forward.3} parent=0 // pred_fallthru
    _
  // Predicated region
  $region42: #{vqvae_forward.3} parent=0 // pred_check
    _
  $region43: #{vqvae_forward.3} parent=0 // pred_check_branch
    %38 = sbr.rel (0) target = $region45
  $region44: #{vqvae_forward.3} parent=0 // pred_region
    _
  $region45: #{vqvae_forward.3} parent=0 // pred_fallthru
    _
  // Predicated region
  $region46: #{vqvae_forward.3} parent=0 // pred_check
    _
  $region47: #{vqvae_forward.3} parent=0 // pred_check_branch
    %40 = sbr.rel (0) target = $region49
  $region48: #{vqvae_forward.3} parent=0 // pred_region
    _
  $region49: #{vqvae_forward.3} parent=0 // pred_fallthru
    _
  %v42 = vld [vmem:[%s0] sm:$0xff]
  %v43 = vld [vmem:[%s1] sm:$0xf]
  %v44 = vld [vmem:[%s1 + $0x4] sm:$0xf]
  %v45 = vld [vmem:[%s1 + $0x8] sm:$0xf]
  %v46 = vld [vmem:[%s1 + $0xc] sm:$0xf]
  %v47 = vld [vmem:[%s2] sm:$0xff]
  %v48 = vld [vmem:[%s2 + $0x8] sm:$0xff]
  %v49 = vld [vmem:[%s2 + $0x10] sm:$0xff]
  %v50 = vld [vmem:[%s2 + $0x18] sm:$0xff]
  %51 = vrot.lane.b32.xlu0 %v42, 9
  %v52 = vpop.permute.xlu0 %51
  %v53 = vld [vmem:[%s10] sm:$0xff]
  %v54 = vmul.f32 %v52, %v53
  %55 = vrot.lane.b32.xlu0 %v42, 8
  %v56 = vpop.permute.xlu0 %55
  %s57 = scalar_lea.vmem %s10, 64
  %v58 = vld [vmem:[%s57] sm:$0xff]
  %v59 = vmul.f32 %v56, %v58
  %60 = vrot.lane.b32.xlu0 %v42, 7
  %v61 = vpop.permute.xlu0 %60
  %s62 = scalar_lea.vmem %s10, 128
  %v63 = vld [vmem:[%s62] sm:$0xff]
  %v64 = vmul.f32 %v61, %v63
  %65 = vrot.lane.b32.xlu0 %v42, 1
  %v66 = vpop.permute.xlu0 %65
  %s67 = scalar_lea.vmem %s10, 192
  %v68 = vld [vmem:[%s67] sm:$0xff]
  %v69 = vmul.f32 %v66, %v68
  %70 = vrot.lane.b32.xlu0 %v42, 127
  %v71 = vpop.permute.xlu0 %70
  %s72 = scalar_lea.vmem %s10, 320
  %v73 = vld [vmem:[%s72] sm:$0xff]
  %v74 = vmul.f32 %v71, %v73
  %75 = vrot.lane.b32.xlu0 %v42, 121
  %v76 = vpop.permute.xlu0 %75
  %s77 = scalar_lea.vmem %s10, 384
  %v78 = vld [vmem:[%s77] sm:$0xff]
  %v79 = vmul.f32 %v76, %v78
  %80 = vrot.lane.b32.xlu0 %v42, 120
  %v81 = vpop.permute.xlu0 %80
  %s82 = scalar_lea.vmem %s10, 448
  %v83 = vld [vmem:[%s82] sm:$0xff]
  %v84 = vmul.f32 %v81, %v83
  %85 = vrot.lane.b32.xlu0 %v42, 119
  %v86 = vpop.permute.xlu0 %85
  %s87 = scalar_lea.vmem %s10, 512
  %v88 = vld [vmem:[%s87] sm:$0xff]
  %v89 = vmul.f32 %v86, %v88
  %v90 = vpack.c.bf16 %v59, %v54
  %v91 = vpack.c.bf16 %v69, %v64
  %v92 = vpack.c.bf16 %v74, %v42
  %v93 = vpack.c.bf16 %v84, %v79
  %v94 = vpack.c.bf16 %v89, %v89
  %96 = vset.pattern.permute.xlu0 0
  %97 = vperm.xlu0 %96, %v47
  %v98 = vpop.permute.xlu0 %97
  %101 = vset.pattern.permute.xlu0 0
  %102 = vperm.xlu0 %101, %v48
  %v103 = vpop.permute.xlu0 %102
  %106 = vset.pattern.permute.xlu0 0
  %107 = vperm.xlu0 %106, %v49
  %v108 = vpop.permute.xlu0 %107
  %111 = vset.pattern.permute.xlu0 0
  %112 = vperm.xlu0 %111, %v50
  %v113 = vpop.permute.xlu0 %112
  %v119 = vunpack.c.l.b16 %v43
  %v120 = vunpack.c.l.b16 %v44
  %v121 = vunpack.c.l.b16 %v45
  %v122 = vunpack.c.l.b16 %v46
  %v123 = vpack.c.b16 %v120, %v119
  %v124 = vpack.c.b16 %v122, %v121
  %vm125 = vcmask 588800
  %v127 = vsel %vm125, %v123, 0
  %v130 = vsel %vm125, %v124, 0
  %vm132 = vcmask 1043456
  %v134 = vsel %vm132, %v94, 0
  %136 = vmatpush.bf16.msra.mxu0 0
  %137 = vmatpush.bf16.msra.mxu0 0
  %138 = vmatpush.bf16.msra.mxu0 0
  %139 = vmatpush.bf16.msra.mxu0 %v134
  %140 = vmatpush.bf16.msra.mxu0 %v93
  %141 = vmatpush.bf16.msra.mxu0 %v92
  %142 = vmatpush.bf16.msra.mxu0 %v91
  %143 = vmatpush.bf16.msra.mxu0 %v90
  %144 = vmatmul.bf16.gmra.mxu0 %v127
  %v145 = vpop.f32.mrf.mxu0
  %v146 = vadd.f32 %v98, %v145
  %v147 = vpop.f32.mrf.mxu0
  %v148 = vadd.f32 %v103, %v147
  %149 = vmatmul.bf16.gmra.mxu0 %v130
  %v150 = vpop.f32.mrf.mxu0
  %v151 = vadd.f32 %v108, %v150
  %v152 = vpop.f32.mrf.mxu0
  %v153 = vadd.f32 %v113, %v152
  %154 = vdwg.mxu0
  %v155 = vmul.f32 %v146, 0.01
  %v156 = vmul.f32 %v148, 0.01
  %v157 = vmul.f32 %v151, 0.01
  %v158 = vmul.f32 %v153, 0.01
  %v159 = vmax.f32 %v146, %v155
  %v160 = vmax.f32 %v148, %v156
  %v161 = vmax.f32 %v151, %v157
  %v162 = vmax.f32 %v153, %v158
  %v163 = vld [vmem:[%s3] sm:$0xff]
  %v164 = vld [vmem:[%s3 + $0x8] sm:$0xf]
  %v165 = vld [vmem:[%s3 + $0xc] sm:$0xff]
  %v166 = vld [vmem:[%s3 + $0x14] sm:$0xf]
  %v167 = vld [vmem:[%s3 + $0x18] sm:$0xff]
  %v168 = vld [vmem:[%s3 + $0x20] sm:$0xf]
  %v169 = vld [vmem:[%s3 + $0x24] sm:$0xff]
  %v170 = vld [vmem:[%s3 + $0x2c] sm:$0xf]
  %171 = vrot.lane.b32.xlu0 %v159, 9
  %v172 = vpop.permute.xlu0 %171
  %173 = vrot.lane.b32.xlu0 %v160, 9
  %v174 = vpop.permute.xlu0 %173
  %175 = vrot.lane.b32.xlu0 %v161, 9
  %v176 = vpop.permute.xlu0 %175
  %177 = vrot.lane.b32.xlu0 %v162, 9
  %v178 = vpop.permute.xlu0 %177
  %v179 = vld [vmem:[%s10] sm:$0xff]
  %v180 = vld [vmem:[%s10 + $0x8] sm:$0xff]
  %v181 = vld [vmem:[%s10 + $0x10] sm:$0xff]
  %v182 = vld [vmem:[%s10 + $0x18] sm:$0xff]
  %v183 = vmul.f32 %v172, %v179
  %v184 = vmul.f32 %v174, %v180
  %v185 = vmul.f32 %v176, %v181
  %v186 = vmul.f32 %v178, %v182
  %187 = vrot.lane.b32.xlu0 %v159, 8
  %v188 = vpop.permute.xlu0 %187
  %189 = vrot.lane.b32.xlu0 %v160, 8
  %v190 = vpop.permute.xlu0 %189
  %191 = vrot.lane.b32.xlu0 %v161, 8
  %v192 = vpop.permute.xlu0 %191
  %193 = vrot.lane.b32.xlu0 %v162, 8
  %v194 = vpop.permute.xlu0 %193
  %v195 = vld [vmem:[%s57] sm:$0xff]
  %v196 = vld [vmem:[%s57 + $0x8] sm:$0xff]
  %v197 = vld [vmem:[%s57 + $0x10] sm:$0xff]
  %v198 = vld [vmem:[%s57 + $0x18] sm:$0xff]
  %v199 = vmul.f32 %v188, %v195
  %v200 = vmul.f32 %v190, %v196
  %v201 = vmul.f32 %v192, %v197
  %v202 = vmul.f32 %v194, %v198
  %203 = vrot.lane.b32.xlu0 %v159, 7
  %v204 = vpop.permute.xlu0 %203
  %205 = vrot.lane.b32.xlu0 %v160, 7
  %v206 = vpop.permute.xlu0 %205
  %207 = vrot.lane.b32.xlu0 %v161, 7
  %v208 = vpop.permute.xlu0 %207
  %209 = vrot.lane.b32.xlu0 %v162, 7
  %v210 = vpop.permute.xlu0 %209
  %v211 = vld [vmem:[%s62] sm:$0xff]
  %v212 = vld [vmem:[%s62 + $0x8] sm:$0xff]
  %v213 = vld [vmem:[%s62 + $0x10] sm:$0xff]
  %v214 = vld [vmem:[%s62 + $0x18] sm:$0xff]
  %v215 = vmul.f32 %v204, %v211
  %v216 = vmul.f32 %v206, %v212
  %v217 = vmul.f32 %v208, %v213
  %v218 = vmul.f32 %v210, %v214
  %219 = vrot.lane.b32.xlu0 %v159, 1
  %v220 = vpop.permute.xlu0 %219
  %221 = vrot.lane.b32.xlu0 %v160, 1
  %v222 = vpop.permute.xlu0 %221
  %223 = vrot.lane.b32.xlu0 %v161, 1
  %v224 = vpop.permute.xlu0 %223
  %225 = vrot.lane.b32.xlu0 %v162, 1
  %v226 = vpop.permute.xlu0 %225
  %v227 = vld [vmem:[%s67] sm:$0xff]
  %v228 = vld [vmem:[%s67 + $0x8] sm:$0xff]
  %v229 = vld [vmem:[%s67 + $0x10] sm:$0xff]
  %v230 = vld [vmem:[%s67 + $0x18] sm:$0xff]
  %v231 = vmul.f32 %v220, %v227
  %v232 = vmul.f32 %v222, %v228
  %v233 = vmul.f32 %v224, %v229
  %v234 = vmul.f32 %v226, %v230
  %235 = vrot.lane.b32.xlu0 %v159, 127
  %v236 = vpop.permute.xlu0 %235
  %237 = vrot.lane.b32.xlu0 %v160, 127
  %v238 = vpop.permute.xlu0 %237
  %239 = vrot.lane.b32.xlu0 %v161, 127
  %v240 = vpop.permute.xlu0 %239
  %241 = vrot.lane.b32.xlu0 %v162, 127
  %v242 = vpop.permute.xlu0 %241
  %v243 = vld [vmem:[%s72] sm:$0xff]
  %v244 = vld [vmem:[%s72 + $0x8] sm:$0xff]
  %v245 = vld [vmem:[%s72 + $0x10] sm:$0xff]
  %v246 = vld [vmem:[%s72 + $0x18] sm:$0xff]
  %v247 = vmul.f32 %v236, %v243
  %v248 = vmul.f32 %v238, %v244
  %v249 = vmul.f32 %v240, %v245
  %v250 = vmul.f32 %v242, %v246
  %251 = vrot.lane.b32.xlu0 %v159, 121
  %v252 = vpop.permute.xlu0 %251
  %253 = vrot.lane.b32.xlu0 %v160, 121
  %v254 = vpop.permute.xlu0 %253
  %255 = vrot.lane.b32.xlu0 %v161, 121
  %v256 = vpop.permute.xlu0 %255
  %257 = vrot.lane.b32.xlu0 %v162, 121
  %v258 = vpop.permute.xlu0 %257
  %v259 = vld [vmem:[%s77] sm:$0xff]
  %v260 = vld [vmem:[%s77 + $0x8] sm:$0xff]
  %v261 = vld [vmem:[%s77 + $0x10] sm:$0xff]
  %v262 = vld [vmem:[%s77 + $0x18] sm:$0xff]
  %v263 = vmul.f32 %v252, %v259
  %v264 = vmul.f32 %v254, %v260
  %v265 = vmul.f32 %v256, %v261
  %v266 = vmul.f32 %v258, %v262
  %267 = vrot.lane.b32.xlu0 %v159, 120
  %v268 = vpop.permute.xlu0 %267
  %269 = vrot.lane.b32.xlu0 %v160, 120
  %v270 = vpop.permute.xlu0 %269
  %271 = vrot.lane.b32.xlu0 %v161, 120
  %v272 = vpop.permute.xlu0 %271
  %273 = vrot.lane.b32.xlu0 %v162, 120
  %v274 = vpop.permute.xlu0 %273
  %v275 = vld [vmem:[%s82] sm:$0xff]
  %v276 = vld [vmem:[%s82 + $0x8] sm:$0xff]
  %v277 = vld [vmem:[%s82 + $0x10] sm:$0xff]
  %v278 = vld [vmem:[%s82 + $0x18] sm:$0xff]
  %v279 = vmul.f32 %v268, %v275
  %v280 = vmul.f32 %v270, %v276
  %v281 = vmul.f32 %v272, %v277
  %v282 = vmul.f32 %v274, %v278
  %283 = vrot.lane.b32.xlu0 %v159, 119
  %v284 = vpop.permute.xlu0 %283
  %285 = vrot.lane.b32.xlu0 %v160, 119
  %v286 = vpop.permute.xlu0 %285
  %287 = vrot.lane.b32.xlu0 %v161, 119
  %v288 = vpop.permute.xlu0 %287
  %289 = vrot.lane.b32.xlu0 %v162, 119
  %v290 = vpop.permute.xlu0 %289
  %v291 = vld [vmem:[%s87] sm:$0xff]
  %v292 = vld [vmem:[%s87 + $0x8] sm:$0xff]
  %v293 = vld [vmem:[%s87 + $0x10] sm:$0xff]
  %v294 = vld [vmem:[%s87 + $0x18] sm:$0xff]
  %v295 = vmul.f32 %v284, %v291
  %v296 = vmul.f32 %v286, %v292
  %v297 = vmul.f32 %v288, %v293
  %v298 = vmul.f32 %v290, %v294
  %v299 = vpack.c.bf16 %v184, %v183
  %v300 = vpack.c.bf16 %v186, %v185
  %v301 = vpack.c.bf16 %v200, %v199
  %v302 = vpack.c.bf16 %v202, %v201
  %v303 = vpack.c.bf16 %v216, %v215
  %v304 = vpack.c.bf16 %v218, %v217
  %v305 = vpack.c.bf16 %v232, %v231
  %v306 = vpack.c.bf16 %v234, %v233
  %v307 = vpack.c.bf16 %v160, %v159
  %v308 = vpack.c.bf16 %v162, %v161
  %v309 = vpack.c.bf16 %v248, %v247
  %v310 = vpack.c.bf16 %v250, %v249
  %v311 = vpack.c.bf16 %v264, %v263
  %v312 = vpack.c.bf16 %v266, %v265
  %v313 = vpack.c.bf16 %v280, %v279
  %v314 = vpack.c.bf16 %v282, %v281
  %v315 = vpack.c.bf16 %v296, %v295
  %v316 = vpack.c.bf16 %v298, %v297
  %v325 = vunpack.c.l.b16 %v163
  %v326 = vunpack.c.h.b16 %v163
  %v327 = vunpack.c.l.b16 %v164
  %v328 = vunpack.c.l.b16 %v165
  %v329 = vunpack.c.h.b16 %v165
  %v330 = vunpack.c.l.b16 %v166
  %v331 = vunpack.c.l.b16 %v167
  %v332 = vunpack.c.h.b16 %v167
  %v333 = vunpack.c.l.b16 %v168
  %v334 = vunpack.c.l.b16 %v169
  %v335 = vunpack.c.h.b16 %v169
  %v336 = vunpack.c.l.b16 %v170
  %v337 = vpack.c.b16 %v328, %v325
  %v338 = vpack.c.b16 %v329, %v326
  %v339 = vpack.c.b16 %v330, %v327
  %v340 = vpack.c.b16 %v334, %v331
  %v341 = vpack.c.b16 %v335, %v332
  %v342 = vpack.c.b16 %v336, %v333
  %vm347 = vcmask 261120
  %v349 = vsel %vm347, %v339, 0
  %v352 = vsel %vm347, %v342, 0
  %354 = vmatpush.bf16.msra.mxu0 %v306
  %355 = vmatpush.bf16.msra.mxu0 %v305
  %356 = vmatpush.bf16.msra.mxu0 %v304
  %357 = vmatpush.bf16.msra.mxu0 %v303
  %358 = vmatpush.bf16.msra.mxu0 %v302
  %359 = vmatpush.bf16.msra.mxu0 %v301
  %360 = vmatpush.bf16.msra.mxu0 %v300
  %361 = vmatpush.bf16.msra.mxu0 %v299
  %362 = vmatmul.bf16.gmra.mxu0 %v337
  %v363 = vpop.f32.mrf.mxu0
  %v364 = vadd.f32 0.0, %v363
  %v365 = vpop.f32.mrf.mxu0
  %v366 = vadd.f32 0.0, %v365
  %367 = vmatmul.bf16.gmra.mxu0 %v340
  %v368 = vpop.f32.mrf.mxu0
  %v369 = vadd.f32 0.0, %v368
  %v370 = vpop.f32.mrf.mxu0
  %v371 = vadd.f32 0.0, %v370
  %372 = vdwg.mxu0
  %373 = vmatpush.bf16.msra.mxu0 %v314
  %374 = vmatpush.bf16.msra.mxu0 %v313
  %375 = vmatpush.bf16.msra.mxu0 %v312
  %376 = vmatpush.bf16.msra.mxu0 %v311
  %377 = vmatpush.bf16.msra.mxu0 %v310
  %378 = vmatpush.bf16.msra.mxu0 %v309
  %379 = vmatpush.bf16.msra.mxu0 %v308
  %380 = vmatpush.bf16.msra.mxu0 %v307
  %381 = vmatmul.bf16.gmra.mxu0 %v338
  %v382 = vpop.f32.mrf.mxu0
  %v383 = vadd.f32 %v364, %v382
  %v384 = vpop.f32.mrf.mxu0
  %v385 = vadd.f32 %v366, %v384
  %386 = vmatmul.bf16.gmra.mxu0 %v341
  %v387 = vpop.f32.mrf.mxu0
  %v388 = vadd.f32 %v369, %v387
  %v389 = vpop.f32.mrf.mxu0
  %v390 = vadd.f32 %v371, %v389
  %391 = vdwg.mxu0
  %392 = vmatpush.bf16.msra.mxu0 0
  %393 = vmatpush.bf16.msra.mxu0 0
  %394 = vmatpush.bf16.msra.mxu0 0
  %395 = vmatpush.bf16.msra.mxu0 0
  %396 = vmatpush.bf16.msra.mxu0 0
  %397 = vmatpush.bf16.msra.mxu0 0
  %398 = vmatpush.bf16.msra.mxu0 %v316
  %399 = vmatpush.bf16.msra.mxu0 %v315
  %400 = vmatmul.bf16.gmra.mxu0 %v349
  %v401 = vpop.f32.mrf.mxu0
  %v402 = vadd.f32 %v383, %v401
  %v403 = vpop.f32.mrf.mxu0
  %v404 = vadd.f32 %v385, %v403
  %405 = vmatmul.bf16.gmra.mxu0 %v352
  %v406 = vpop.f32.mrf.mxu0
  %v407 = vadd.f32 %v388, %v406
  %v408 = vpop.f32.mrf.mxu0
  %v409 = vadd.f32 %v390, %v408
  %410 = vdwg.mxu0
  %v411 = vmax.f32 %v402, 0.0
  %v412 = vmax.f32 %v404, 0.0
  %v413 = vmax.f32 %v407, 0.0
  %v414 = vmax.f32 %v409, 0.0
  %v415 = vld [vmem:[%s4] sm:$0xf]
  %v416 = vld [vmem:[%s4 + $0x4] sm:$0xf]
  %v417 = vld [vmem:[%s4 + $0x8] sm:$0xf]
  %v418 = vld [vmem:[%s4 + $0xc] sm:$0xf]
  %v419 = vpack.c.bf16 %v412, %v411
  %v420 = vpack.c.bf16 %v414, %v413
  %v425 = vunpack.c.l.b16 %v415
  %v426 = vunpack.c.l.b16 %v416
  %v427 = vunpack.c.l.b16 %v417
  %v428 = vunpack.c.l.b16 %v418
  %v429 = vpack.c.b16 %v426, %v425
  %v430 = vpack.c.b16 %v428, %v427
  %v432 = vsel %vm347, %v429, 0
  %v435 = vsel %vm347, %v430, 0
  %437 = vmatpush.bf16.msra.mxu0 0
  %438 = vmatpush.bf16.msra.mxu0 0
  %439 = vmatpush.bf16.msra.mxu0 0
  %440 = vmatpush.bf16.msra.mxu0 0
  %441 = vmatpush.bf16.msra.mxu0 0
  %442 = vmatpush.bf16.msra.mxu0 0
  %443 = vmatpush.bf16.msra.mxu0 %v420
  %444 = vmatpush.bf16.msra.mxu0 %v419
  %445 = vmatmul.bf16.gmra.mxu0 %v432
  %v446 = vpop.f32.mrf.mxu0
  %v447 = vadd.f32 0.0, %v446
  %v448 = vpop.f32.mrf.mxu0
  %v449 = vadd.f32 0.0, %v448
  %450 = vmatmul.bf16.gmra.mxu0 %v435
  %v451 = vpop.f32.mrf.mxu0
  %v452 = vadd.f32 0.0, %v451
  %v453 = vpop.f32.mrf.mxu0
  %v454 = vadd.f32 0.0, %v453
  %455 = vdwg.mxu0
  %v456 = vadd.f32 %v159, %v447
  %v457 = vadd.f32 %v160, %v449
  %v458 = vadd.f32 %v161, %v452
  %v459 = vadd.f32 %v162, %v454
  %s460 = scalar_lea.vmem %s3, 48
  %v461 = vld [vmem:[%s460] sm:$0xff]
  %v462 = vld [vmem:[%s460 + $0x8] sm:$0xf]
  %v463 = vld [vmem:[%s460 + $0xc] sm:$0xff]
  %v464 = vld [vmem:[%s460 + $0x14] sm:$0xf]
  %v465 = vld [vmem:[%s460 + $0x18] sm:$0xff]
  %v466 = vld [vmem:[%s460 + $0x20] sm:$0xf]
  %v467 = vld [vmem:[%s460 + $0x24] sm:$0xff]
  %v468 = vld [vmem:[%s460 + $0x2c] sm:$0xf]
  %469 = vrot.lane.b32.xlu0 %v456, 9
  %v470 = vpop.permute.xlu0 %469
  %471 = vrot.lane.b32.xlu0 %v457, 9
  %v472 = vpop.permute.xlu0 %471
  %473 = vrot.lane.b32.xlu0 %v458, 9
  %v474 = vpop.permute.xlu0 %473
  %475 = vrot.lane.b32.xlu0 %v459, 9
  %v476 = vpop.permute.xlu0 %475
  %v477 = vmul.f32 %v470, %v179
  %v478 = vmul.f32 %v472, %v180
  %v479 = vmul.f32 %v474, %v181
  %v480 = vmul.f32 %v476, %v182
  %481 = vrot.lane.b32.xlu0 %v456, 8
  %v482 = vpop.permute.xlu0 %481
  %483 = vrot.lane.b32.xlu0 %v457, 8
  %v484 = vpop.permute.xlu0 %483
  %485 = vrot.lane.b32.xlu0 %v458, 8
  %v486 = vpop.permute.xlu0 %485
  %487 = vrot.lane.b32.xlu0 %v459, 8
  %v488 = vpop.permute.xlu0 %487
  %v489 = vmul.f32 %v482, %v195
  %v490 = vmul.f32 %v484, %v196
  %v491 = vmul.f32 %v486, %v197
  %v492 = vmul.f32 %v488, %v198
  %493 = vrot.lane.b32.xlu0 %v456, 7
  %v494 = vpop.permute.xlu0 %493
  %495 = vrot.lane.b32.xlu0 %v457, 7
  %v496 = vpop.permute.xlu0 %495
  %497 = vrot.lane.b32.xlu0 %v458, 7
  %v498 = vpop.permute.xlu0 %497
  %499 = vrot.lane.b32.xlu0 %v459, 7
  %v500 = vpop.permute.xlu0 %499
  %v501 = vmul.f32 %v494, %v211
  %v502 = vmul.f32 %v496, %v212
  %v503 = vmul.f32 %v498, %v213
  %v504 = vmul.f32 %v500, %v214
  %505 = vrot.lane.b32.xlu0 %v456, 1
  %v506 = vpop.permute.xlu0 %505
  %507 = vrot.lane.b32.xlu0 %v457, 1
  %v508 = vpop.permute.xlu0 %507
  %509 = vrot.lane.b32.xlu0 %v458, 1
  %v510 = vpop.permute.xlu0 %509
  %511 = vrot.lane.b32.xlu0 %v459, 1
  %v512 = vpop.permute.xlu0 %511
  %v513 = vmul.f32 %v506, %v227
  %v514 = vmul.f32 %v508, %v228
  %v515 = vmul.f32 %v510, %v229
  %v516 = vmul.f32 %v512, %v230
  %517 = vrot.lane.b32.xlu0 %v456, 127
  %v518 = vpop.permute.xlu0 %517
  %519 = vrot.lane.b32.xlu0 %v457, 127
  %v520 = vpop.permute.xlu0 %519
  %521 = vrot.lane.b32.xlu0 %v458, 127
  %v522 = vpop.permute.xlu0 %521
  %523 = vrot.lane.b32.xlu0 %v459, 127
  %v524 = vpop.permute.xlu0 %523
  %v525 = vmul.f32 %v518, %v243
  %v526 = vmul.f32 %v520, %v244
  %v527 = vmul.f32 %v522, %v245
  %v528 = vmul.f32 %v524, %v246
  %529 = vrot.lane.b32.xlu0 %v456, 121
  %v530 = vpop.permute.xlu0 %529
  %531 = vrot.lane.b32.xlu0 %v457, 121
  %v532 = vpop.permute.xlu0 %531
  %533 = vrot.lane.b32.xlu0 %v458, 121
  %v534 = vpop.permute.xlu0 %533
  %535 = vrot.lane.b32.xlu0 %v459, 121
  %v536 = vpop.permute.xlu0 %535
  %v537 = vmul.f32 %v530, %v259
  %v538 = vmul.f32 %v532, %v260
  %v539 = vmul.f32 %v534, %v261
  %v540 = vmul.f32 %v536, %v262
  %541 = vrot.lane.b32.xlu0 %v456, 120
  %v542 = vpop.permute.xlu0 %541
  %543 = vrot.lane.b32.xlu0 %v457, 120
  %v544 = vpop.permute.xlu0 %543
  %545 = vrot.lane.b32.xlu0 %v458, 120
  %v546 = vpop.permute.xlu0 %545
  %547 = vrot.lane.b32.xlu0 %v459, 120
  %v548 = vpop.permute.xlu0 %547
  %v549 = vmul.f32 %v542, %v275
  %v550 = vmul.f32 %v544, %v276
  %v551 = vmul.f32 %v546, %v277
  %v552 = vmul.f32 %v548, %v278
  %553 = vrot.lane.b32.xlu0 %v456, 119
  %v554 = vpop.permute.xlu0 %553
  %555 = vrot.lane.b32.xlu0 %v457, 119
  %v556 = vpop.permute.xlu0 %555
  %557 = vrot.lane.b32.xlu0 %v458, 119
  %v558 = vpop.permute.xlu0 %557
  %559 = vrot.lane.b32.xlu0 %v459, 119
  %v560 = vpop.permute.xlu0 %559
  %v561 = vmul.f32 %v554, %v291
  %v562 = vmul.f32 %v556, %v292
  %v563 = vmul.f32 %v558, %v293
  %v564 = vmul.f32 %v560, %v294
  %v565 = vpack.c.bf16 %v478, %v477
  %v566 = vpack.c.bf16 %v480, %v479
  %v567 = vpack.c.bf16 %v490, %v489
  %v568 = vpack.c.bf16 %v492, %v491
  %v569 = vpack.c.bf16 %v502, %v501
  %v570 = vpack.c.bf16 %v504, %v503
  %v571 = vpack.c.bf16 %v514, %v513
  %v572 = vpack.c.bf16 %v516, %v515
  %v573 = vpack.c.bf16 %v457, %v456
  %v574 = vpack.c.bf16 %v459, %v458
  %v575 = vpack.c.bf16 %v526, %v525
  %v576 = vpack.c.bf16 %v528, %v527
  %v577 = vpack.c.bf16 %v538, %v537
  %v578 = vpack.c.bf16 %v540, %v539
  %v579 = vpack.c.bf16 %v550, %v549
  %v580 = vpack.c.bf16 %v552, %v551
  %v581 = vpack.c.bf16 %v562, %v561
  %v582 = vpack.c.bf16 %v564, %v563
  %v591 = vunpack.c.l.b16 %v461
  %v592 = vunpack.c.h.b16 %v461
  %v593 = vunpack.c.l.b16 %v462
  %v594 = vunpack.c.l.b16 %v463
  %v595 = vunpack.c.h.b16 %v463
  %v596 = vunpack.c.l.b16 %v464
  %v597 = vunpack.c.l.b16 %v465
  %v598 = vunpack.c.h.b16 %v465
  %v599 = vunpack.c.l.b16 %v466
  %v600 = vunpack.c.l.b16 %v467
  %v601 = vunpack.c.h.b16 %v467
  %v602 = vunpack.c.l.b16 %v468
  %v603 = vpack.c.b16 %v594, %v591
  %v604 = vpack.c.b16 %v595, %v592
  %v605 = vpack.c.b16 %v596, %v593
  %v606 = vpack.c.b16 %v600, %v597
  %v607 = vpack.c.b16 %v601, %v598
  %v608 = vpack.c.b16 %v602, %v599
  %v614 = vsel %vm347, %v605, 0
  %v617 = vsel %vm347, %v608, 0
  %619 = vmatpush.bf16.msra.mxu0 %v572
  %620 = vmatpush.bf16.msra.mxu0 %v571
  %621 = vmatpush.bf16.msra.mxu0 %v570
  %622 = vmatpush.bf16.msra.mxu0 %v569
  %623 = vmatpush.bf16.msra.mxu0 %v568
  %624 = vmatpush.bf16.msra.mxu0 %v567
  %625 = vmatpush.bf16.msra.mxu0 %v566
  %626 = vmatpush.bf16.msra.mxu0 %v565
  %627 = vmatmul.bf16.gmra.mxu0 %v603
  %v628 = vpop.f32.mrf.mxu0
  %v629 = vadd.f32 0.0, %v628
  %v630 = vpop.f32.mrf.mxu0
  %v631 = vadd.f32 0.0, %v630
  %632 = vmatmul.bf16.gmra.mxu0 %v606
  %v633 = vpop.f32.mrf.mxu0
  %v634 = vadd.f32 0.0, %v633
  %v635 = vpop.f32.mrf.mxu0
  %v636 = vadd.f32 0.0, %v635
  %637 = vdwg.mxu0
  %638 = vmatpush.bf16.msra.mxu0 %v580
  %639 = vmatpush.bf16.msra.mxu0 %v579
  %640 = vmatpush.bf16.msra.mxu0 %v578
  %641 = vmatpush.bf16.msra.mxu0 %v577
  %642 = vmatpush.bf16.msra.mxu0 %v576
  %643 = vmatpush.bf16.msra.mxu0 %v575
  %644 = vmatpush.bf16.msra.mxu0 %v574
  %645 = vmatpush.bf16.msra.mxu0 %v573
  %646 = vmatmul.bf16.gmra.mxu0 %v604
  %v647 = vpop.f32.mrf.mxu0
  %v648 = vadd.f32 %v629, %v647
  %v649 = vpop.f32.mrf.mxu0
  %v650 = vadd.f32 %v631, %v649
  %651 = vmatmul.bf16.gmra.mxu0 %v607
  %v652 = vpop.f32.mrf.mxu0
  %v653 = vadd.f32 %v634, %v652
  %v654 = vpop.f32.mrf.mxu0
  %v655 = vadd.f32 %v636, %v654
  %656 = vdwg.mxu0
  %657 = vmatpush.bf16.msra.mxu0 0
  %658 = vmatpush.bf16.msra.mxu0 0
  %659 = vmatpush.bf16.msra.mxu0 0
  %660 = vmatpush.bf16.msra.mxu0 0
  %661 = vmatpush.bf16.msra.mxu0 0
  %662 = vmatpush.bf16.msra.mxu0 0
  %663 = vmatpush.bf16.msra.mxu0 %v582
  %664 = vmatpush.bf16.msra.mxu0 %v581
  %665 = vmatmul.bf16.gmra.mxu0 %v614
  %v666 = vpop.f32.mrf.mxu0
  %v667 = vadd.f32 %v648, %v666
  %v668 = vpop.f32.mrf.mxu0
  %v669 = vadd.f32 %v650, %v668
  %670 = vmatmul.bf16.gmra.mxu0 %v617
  %v671 = vpop.f32.mrf.mxu0
  %v672 = vadd.f32 %v653, %v671
  %v673 = vpop.f32.mrf.mxu0
  %v674 = vadd.f32 %v655, %v673
  %675 = vdwg.mxu0
  %v676 = vmax.f32 %v667, 0.0
  %v677 = vmax.f32 %v669, 0.0
  %v678 = vmax.f32 %v672, 0.0
  %v679 = vmax.f32 %v674, 0.0
  %s680 = scalar_lea.vmem %s4, 16
  %v681 = vld [vmem:[%s680] sm:$0xf]
  %v682 = vld [vmem:[%s680 + $0x4] sm:$0xf]
  %v683 = vld [vmem:[%s680 + $0x8] sm:$0xf]
  %v684 = vld [vmem:[%s680 + $0xc] sm:$0xf]
  %v685 = vpack.c.bf16 %v677, %v676
  %v686 = vpack.c.bf16 %v679, %v678
  %v691 = vunpack.c.l.b16 %v681
  %v692 = vunpack.c.l.b16 %v682
  %v693 = vunpack.c.l.b16 %v683
  %v694 = vunpack.c.l.b16 %v684
  %v695 = vpack.c.b16 %v692, %v691
  %v696 = vpack.c.b16 %v694, %v693
  %v698 = vsel %vm347, %v695, 0
  %v701 = vsel %vm347, %v696, 0
  %703 = vmatpush.bf16.msra.mxu0 0
  %704 = vmatpush.bf16.msra.mxu0 0
  %705 = vmatpush.bf16.msra.mxu0 0
  %706 = vmatpush.bf16.msra.mxu0 0
  %707 = vmatpush.bf16.msra.mxu0 0
  %708 = vmatpush.bf16.msra.mxu0 0
  %709 = vmatpush.bf16.msra.mxu0 %v686
  %710 = vmatpush.bf16.msra.mxu0 %v685
  %711 = vmatmul.bf16.gmra.mxu0 %v698
  %v712 = vpop.f32.mrf.mxu0
  %v713 = vadd.f32 0.0, %v712
  %v714 = vpop.f32.mrf.mxu0
  %v715 = vadd.f32 0.0, %v714
  %716 = vmatmul.bf16.gmra.mxu0 %v701
  %v717 = vpop.f32.mrf.mxu0
  %v718 = vadd.f32 0.0, %v717
  %v719 = vpop.f32.mrf.mxu0
  %v720 = vadd.f32 0.0, %v719
  %721 = vdwg.mxu0
  %v722 = vadd.f32 %v456, %v713
  %v723 = vadd.f32 %v457, %v715
  %v724 = vadd.f32 %v458, %v718
  %v725 = vadd.f32 %v459, %v720
  %s726 = scalar_lea.vmem %s3, 96
  %v727 = vld [vmem:[%s726] sm:$0xff]
  %v728 = vld [vmem:[%s726 + $0x8] sm:$0xf]
  %v729 = vld [vmem:[%s726 + $0xc] sm:$0xff]
  %v730 = vld [vmem:[%s726 + $0x14] sm:$0xf]
  %v731 = vld [vmem:[%s726 + $0x18] sm:$0xff]
  %v732 = vld [vmem:[%s726 + $0x20] sm:$0xf]
  %v733 = vld [vmem:[%s726 + $0x24] sm:$0xff]
  %v734 = vld [vmem:[%s726 + $0x2c] sm:$0xf]
  %735 = vrot.lane.b32.xlu0 %v722, 9
  %v736 = vpop.permute.xlu0 %735
  %737 = vrot.lane.b32.xlu0 %v723, 9
  %v738 = vpop.permute.xlu0 %737
  %739 = vrot.lane.b32.xlu0 %v724, 9
  %v740 = vpop.permute.xlu0 %739
  %741 = vrot.lane.b32.xlu0 %v725, 9
  %v742 = vpop.permute.xlu0 %741
  %v743 = vmul.f32 %v736, %v179
  %v744 = vmul.f32 %v738, %v180
  %v745 = vmul.f32 %v740, %v181
  %v746 = vmul.f32 %v742, %v182
  %747 = vrot.lane.b32.xlu0 %v722, 8
  %v748 = vpop.permute.xlu0 %747
  %749 = vrot.lane.b32.xlu0 %v723, 8
  %v750 = vpop.permute.xlu0 %749
  %751 = vrot.lane.b32.xlu0 %v724, 8
  %v752 = vpop.permute.xlu0 %751
  %753 = vrot.lane.b32.xlu0 %v725, 8
  %v754 = vpop.permute.xlu0 %753
  %v755 = vmul.f32 %v748, %v195
  %v756 = vmul.f32 %v750, %v196
  %v757 = vmul.f32 %v752, %v197
  %v758 = vmul.f32 %v754, %v198
  %759 = vrot.lane.b32.xlu0 %v722, 7
  %v760 = vpop.permute.xlu0 %759
  %761 = vrot.lane.b32.xlu0 %v723, 7
  %v762 = vpop.permute.xlu0 %761
  %763 = vrot.lane.b32.xlu0 %v724, 7
  %v764 = vpop.permute.xlu0 %763
  %765 = vrot.lane.b32.xlu0 %v725, 7
  %v766 = vpop.permute.xlu0 %765
  %v767 = vmul.f32 %v760, %v211
  %v768 = vmul.f32 %v762, %v212
  %v769 = vmul.f32 %v764, %v213
  %v770 = vmul.f32 %v766, %v214
  %771 = vrot.lane.b32.xlu0 %v722, 1
  %v772 = vpop.permute.xlu0 %771
  %773 = vrot.lane.b32.xlu0 %v723, 1
  %v774 = vpop.permute.xlu0 %773
  %775 = vrot.lane.b32.xlu0 %v724, 1
  %v776 = vpop.permute.xlu0 %775
  %777 = vrot.lane.b32.xlu0 %v725, 1
  %v778 = vpop.permute.xlu0 %777
  %v779 = vmul.f32 %v772, %v227
  %v780 = vmul.f32 %v774, %v228
  %v781 = vmul.f32 %v776, %v229
  %v782 = vmul.f32 %v778, %v230
  %783 = vrot.lane.b32.xlu0 %v722, 127
  %v784 = vpop.permute.xlu0 %783
  %785 = vrot.lane.b32.xlu0 %v723, 127
  %v786 = vpop.permute.xlu0 %785
  %787 = vrot.lane.b32.xlu0 %v724, 127
  %v788 = vpop.permute.xlu0 %787
  %789 = vrot.lane.b32.xlu0 %v725, 127
  %v790 = vpop.permute.xlu0 %789
  %v791 = vmul.f32 %v784, %v243
  %v792 = vmul.f32 %v786, %v244
  %v793 = vmul.f32 %v788, %v245
  %v794 = vmul.f32 %v790, %v246
  %795 = vrot.lane.b32.xlu0 %v722, 121
  %v796 = vpop.permute.xlu0 %795
  %797 = vrot.lane.b32.xlu0 %v723, 121
  %v798 = vpop.permute.xlu0 %797
  %799 = vrot.lane.b32.xlu0 %v724, 121
  %v800 = vpop.permute.xlu0 %799
  %801 = vrot.lane.b32.xlu0 %v725, 121
  %v802 = vpop.permute.xlu0 %801
  %v803 = vmul.f32 %v796, %v259
  %v804 = vmul.f32 %v798, %v260
  %v805 = vmul.f32 %v800, %v261
  %v806 = vmul.f32 %v802, %v262
  %807 = vrot.lane.b32.xlu0 %v722, 120
  %v808 = vpop.permute.xlu0 %807
  %809 = vrot.lane.b32.xlu0 %v723, 120
  %v810 = vpop.permute.xlu0 %809
  %811 = vrot.lane.b32.xlu0 %v724, 120
  %v812 = vpop.permute.xlu0 %811
  %813 = vrot.lane.b32.xlu0 %v725, 120
  %v814 = vpop.permute.xlu0 %813
  %v815 = vmul.f32 %v808, %v275
  %v816 = vmul.f32 %v810, %v276
  %v817 = vmul.f32 %v812, %v277
  %v818 = vmul.f32 %v814, %v278
  %819 = vrot.lane.b32.xlu0 %v722, 119
  %v820 = vpop.permute.xlu0 %819
  %821 = vrot.lane.b32.xlu0 %v723, 119
  %v822 = vpop.permute.xlu0 %821
  %823 = vrot.lane.b32.xlu0 %v724, 119
  %v824 = vpop.permute.xlu0 %823
  %825 = vrot.lane.b32.xlu0 %v725, 119
  %v826 = vpop.permute.xlu0 %825
  %v827 = vmul.f32 %v820, %v291
  %v828 = vmul.f32 %v822, %v292
  %v829 = vmul.f32 %v824, %v293
  %v830 = vmul.f32 %v826, %v294
  %v831 = vpack.c.bf16 %v744, %v743
  %v832 = vpack.c.bf16 %v746, %v745
  %v833 = vpack.c.bf16 %v756, %v755
  %v834 = vpack.c.bf16 %v758, %v757
  %v835 = vpack.c.bf16 %v768, %v767
  %v836 = vpack.c.bf16 %v770, %v769
  %v837 = vpack.c.bf16 %v780, %v779
  %v838 = vpack.c.bf16 %v782, %v781
  %v839 = vpack.c.bf16 %v723, %v722
  %v840 = vpack.c.bf16 %v725, %v724
  %v841 = vpack.c.bf16 %v792, %v791
  %v842 = vpack.c.bf16 %v794, %v793
  %v843 = vpack.c.bf16 %v804, %v803
  %v844 = vpack.c.bf16 %v806, %v805
  %v845 = vpack.c.bf16 %v816, %v815
  %v846 = vpack.c.bf16 %v818, %v817
  %v847 = vpack.c.bf16 %v828, %v827
  %v848 = vpack.c.bf16 %v830, %v829
  %v857 = vunpack.c.l.b16 %v727
  %v858 = vunpack.c.h.b16 %v727
  %v859 = vunpack.c.l.b16 %v728
  %v860 = vunpack.c.l.b16 %v729
  %v861 = vunpack.c.h.b16 %v729
  %v862 = vunpack.c.l.b16 %v730
  %v863 = vunpack.c.l.b16 %v731
  %v864 = vunpack.c.h.b16 %v731
  %v865 = vunpack.c.l.b16 %v732
  %v866 = vunpack.c.l.b16 %v733
  %v867 = vunpack.c.h.b16 %v733
  %v868 = vunpack.c.l.b16 %v734
  %v869 = vpack.c.b16 %v860, %v857
  %v870 = vpack.c.b16 %v861, %v858
  %v871 = vpack.c.b16 %v862, %v859
  %v872 = vpack.c.b16 %v866, %v863
  %v873 = vpack.c.b16 %v867, %v864
  %v874 = vpack.c.b16 %v868, %v865
  %v880 = vsel %vm347, %v871, 0
  %v883 = vsel %vm347, %v874, 0
  %885 = vmatpush.bf16.msra.mxu0 %v838
  %886 = vmatpush.bf16.msra.mxu0 %v837
  %887 = vmatpush.bf16.msra.mxu0 %v836
  %888 = vmatpush.bf16.msra.mxu0 %v835
  %889 = vmatpush.bf16.msra.mxu0 %v834
  %890 = vmatpush.bf16.msra.mxu0 %v833
  %891 = vmatpush.bf16.msra.mxu0 %v832
  %892 = vmatpush.bf16.msra.mxu0 %v831
  %893 = vmatmul.bf16.gmra.mxu0 %v869
  %v894 = vpop.f32.mrf.mxu0
  %v895 = vadd.f32 0.0, %v894
  %v896 = vpop.f32.mrf.mxu0
  %v897 = vadd.f32 0.0, %v896
  %898 = vmatmul.bf16.gmra.mxu0 %v872
  %v899 = vpop.f32.mrf.mxu0
  %v900 = vadd.f32 0.0, %v899
  %v901 = vpop.f32.mrf.mxu0
  %v902 = vadd.f32 0.0, %v901
  %903 = vdwg.mxu0
  %904 = vmatpush.bf16.msra.mxu0 %v846
  %905 = vmatpush.bf16.msra.mxu0 %v845
  %906 = vmatpush.bf16.msra.mxu0 %v844
  %907 = vmatpush.bf16.msra.mxu0 %v843
  %908 = vmatpush.bf16.msra.mxu0 %v842
  %909 = vmatpush.bf16.msra.mxu0 %v841
  %910 = vmatpush.bf16.msra.mxu0 %v840
  %911 = vmatpush.bf16.msra.mxu0 %v839
  %912 = vmatmul.bf16.gmra.mxu0 %v870
  %v913 = vpop.f32.mrf.mxu0
  %v914 = vadd.f32 %v895, %v913
  %v915 = vpop.f32.mrf.mxu0
  %v916 = vadd.f32 %v897, %v915
  %917 = vmatmul.bf16.gmra.mxu0 %v873
  %v918 = vpop.f32.mrf.mxu0
  %v919 = vadd.f32 %v900, %v918
  %v920 = vpop.f32.mrf.mxu0
  %v921 = vadd.f32 %v902, %v920
  %922 = vdwg.mxu0
  %923 = vmatpush.bf16.msra.mxu0 0
  %924 = vmatpush.bf16.msra.mxu0 0
  %925 = vmatpush.bf16.msra.mxu0 0
  %926 = vmatpush.bf16.msra.mxu0 0
  %927 = vmatpush.bf16.msra.mxu0 0
  %928 = vmatpush.bf16.msra.mxu0 0
  %929 = vmatpush.bf16.msra.mxu0 %v848
  %930 = vmatpush.bf16.msra.mxu0 %v847
  %931 = vmatmul.bf16.gmra.mxu0 %v880
  %v932 = vpop.f32.mrf.mxu0
  %v933 = vadd.f32 %v914, %v932
  %v934 = vpop.f32.mrf.mxu0
  %v935 = vadd.f32 %v916, %v934
  %936 = vmatmul.bf16.gmra.mxu0 %v883
  %v937 = vpop.f32.mrf.mxu0
  %v938 = vadd.f32 %v919, %v937
  %v939 = vpop.f32.mrf.mxu0
  %v940 = vadd.f32 %v921, %v939
  %941 = vdwg.mxu0
  %v942 = vmax.f32 %v933, 0.0
  %v943 = vmax.f32 %v935, 0.0
  %v944 = vmax.f32 %v938, 0.0
  %v945 = vmax.f32 %v940, 0.0
  %s946 = scalar_lea.vmem %s4, 32
  %v947 = vld [vmem:[%s946] sm:$0xf]
  %v948 = vld [vmem:[%s946 + $0x4] sm:$0xf]
  %v949 = vld [vmem:[%s946 + $0x8] sm:$0xf]
  %v950 = vld [vmem:[%s946 + $0xc] sm:$0xf]
  %v951 = vpack.c.bf16 %v943, %v942
  %v952 = vpack.c.bf16 %v945, %v944
  %v957 = vunpack.c.l.b16 %v947
  %v958 = vunpack.c.l.b16 %v948
  %v959 = vunpack.c.l.b16 %v949
  %v960 = vunpack.c.l.b16 %v950
  %v961 = vpack.c.b16 %v958, %v957
  %v962 = vpack.c.b16 %v960, %v959
  %v964 = vsel %vm347, %v961, 0
  %v967 = vsel %vm347, %v962, 0
  %969 = vmatpush.bf16.msra.mxu0 0
  %970 = vmatpush.bf16.msra.mxu0 0
  %971 = vmatpush.bf16.msra.mxu0 0
  %972 = vmatpush.bf16.msra.mxu0 0
  %973 = vmatpush.bf16.msra.mxu0 0
  %974 = vmatpush.bf16.msra.mxu0 0
  %975 = vmatpush.bf16.msra.mxu0 %v952
  %976 = vmatpush.bf16.msra.mxu0 %v951
  %977 = vmatmul.bf16.gmra.mxu0 %v964
  %v978 = vpop.f32.mrf.mxu0
  %v979 = vadd.f32 0.0, %v978
  %v980 = vpop.f32.mrf.mxu0
  %v981 = vadd.f32 0.0, %v980
  %982 = vmatmul.bf16.gmra.mxu0 %v967
  %v983 = vpop.f32.mrf.mxu0
  %v984 = vadd.f32 0.0, %v983
  %v985 = vpop.f32.mrf.mxu0
  %v986 = vadd.f32 0.0, %v985
  %987 = vdwg.mxu0
  %v988 = vadd.f32 %v722, %v979
  %v989 = vadd.f32 %v723, %v981
  %v990 = vadd.f32 %v724, %v984
  %v991 = vadd.f32 %v725, %v986
  %s992 = scalar_lea.vmem %s3, 144
  %v993 = vld [vmem:[%s992] sm:$0xff]
  %v994 = vld [vmem:[%s992 + $0x8] sm:$0xf]
  %v995 = vld [vmem:[%s992 + $0xc] sm:$0xff]
  %v996 = vld [vmem:[%s992 + $0x14] sm:$0xf]
  %v997 = vld [vmem:[%s992 + $0x18] sm:$0xff]
  %v998 = vld [vmem:[%s992 + $0x20] sm:$0xf]
  %v999 = vld [vmem:[%s992 + $0x24] sm:$0xff]
  %v1000 = vld [vmem:[%s992 + $0x2c] sm:$0xf]
  %1001 = vrot.lane.b32.xlu0 %v988, 9
  %v1002 = vpop.permute.xlu0 %1001
  %1003 = vrot.lane.b32.xlu0 %v989, 9
  %v1004 = vpop.permute.xlu0 %1003
  %1005 = vrot.lane.b32.xlu0 %v990, 9
  %v1006 = vpop.permute.xlu0 %1005
  %1007 = vrot.lane.b32.xlu0 %v991, 9
  %v1008 = vpop.permute.xlu0 %1007
  %v1009 = vmul.f32 %v1002, %v179
  %v1010 = vmul.f32 %v1004, %v180
  %v1011 = vmul.f32 %v1006, %v181
  %v1012 = vmul.f32 %v1008, %v182
  %1013 = vrot.lane.b32.xlu0 %v988, 8
  %v1014 = vpop.permute.xlu0 %1013
  %1015 = vrot.lane.b32.xlu0 %v989, 8
  %v1016 = vpop.permute.xlu0 %1015
  %1017 = vrot.lane.b32.xlu0 %v990, 8
  %v1018 = vpop.permute.xlu0 %1017
  %1019 = vrot.lane.b32.xlu0 %v991, 8
  %v1020 = vpop.permute.xlu0 %1019
  %v1021 = vmul.f32 %v1014, %v195
  %v1022 = vmul.f32 %v1016, %v196
  %v1023 = vmul.f32 %v1018, %v197
  %v1024 = vmul.f32 %v1020, %v198
  %1025 = vrot.lane.b32.xlu0 %v988, 7
  %v1026 = vpop.permute.xlu0 %1025
  %1027 = vrot.lane.b32.xlu0 %v989, 7
  %v1028 = vpop.permute.xlu0 %1027
  %1029 = vrot.lane.b32.xlu0 %v990, 7
  %v1030 = vpop.permute.xlu0 %1029
  %1031 = vrot.lane.b32.xlu0 %v991, 7
  %v1032 = vpop.permute.xlu0 %1031
  %v1033 = vmul.f32 %v1026, %v211
  %v1034 = vmul.f32 %v1028, %v212
  %v1035 = vmul.f32 %v1030, %v213
  %v1036 = vmul.f32 %v1032, %v214
  %1037 = vrot.lane.b32.xlu0 %v988, 1
  %v1038 = vpop.permute.xlu0 %1037
  %1039 = vrot.lane.b32.xlu0 %v989, 1
  %v1040 = vpop.permute.xlu0 %1039
  %1041 = vrot.lane.b32.xlu0 %v990, 1
  %v1042 = vpop.permute.xlu0 %1041
  %1043 = vrot.lane.b32.xlu0 %v991, 1
  %v1044 = vpop.permute.xlu0 %1043
  %v1045 = vmul.f32 %v1038, %v227
  %v1046 = vmul.f32 %v1040, %v228
  %v1047 = vmul.f32 %v1042, %v229
  %v1048 = vmul.f32 %v1044, %v230
  %1049 = vrot.lane.b32.xlu0 %v988, 127
  %v1050 = vpop.permute.xlu0 %1049
  %1051 = vrot.lane.b32.xlu0 %v989, 127
  %v1052 = vpop.permute.xlu0 %1051
  %1053 = vrot.lane.b32.xlu0 %v990, 127
  %v1054 = vpop.permute.xlu0 %1053
  %1055 = vrot.lane.b32.xlu0 %v991, 127
  %v1056 = vpop.permute.xlu0 %1055
  %v1057 = vmul.f32 %v1050, %v243
  %v1058 = vmul.f32 %v1052, %v244
  %v1059 = vmul.f32 %v1054, %v245
  %v1060 = vmul.f32 %v1056, %v246
  %1061 = vrot.lane.b32.xlu0 %v988, 121
  %v1062 = vpop.permute.xlu0 %1061
  %1063 = vrot.lane.b32.xlu0 %v989, 121
  %v1064 = vpop.permute.xlu0 %1063
  %1065 = vrot.lane.b32.xlu0 %v990, 121
  %v1066 = vpop.permute.xlu0 %1065
  %1067 = vrot.lane.b32.xlu0 %v991, 121
  %v1068 = vpop.permute.xlu0 %1067
  %v1069 = vmul.f32 %v1062, %v259
  %v1070 = vmul.f32 %v1064, %v260
  %v1071 = vmul.f32 %v1066, %v261
  %v1072 = vmul.f32 %v1068, %v262
  %1073 = vrot.lane.b32.xlu0 %v988, 120
  %v1074 = vpop.permute.xlu0 %1073
  %1075 = vrot.lane.b32.xlu0 %v989, 120
  %v1076 = vpop.permute.xlu0 %1075
  %1077 = vrot.lane.b32.xlu0 %v990, 120
  %v1078 = vpop.permute.xlu0 %1077
  %1079 = vrot.lane.b32.xlu0 %v991, 120
  %v1080 = vpop.permute.xlu0 %1079
  %v1081 = vmul.f32 %v1074, %v275
  %v1082 = vmul.f32 %v1076, %v276
  %v1083 = vmul.f32 %v1078, %v277
  %v1084 = vmul.f32 %v1080, %v278
  %1085 = vrot.lane.b32.xlu0 %v988, 119
  %v1086 = vpop.permute.xlu0 %1085
  %1087 = vrot.lane.b32.xlu0 %v989, 119
  %v1088 = vpop.permute.xlu0 %1087
  %1089 = vrot.lane.b32.xlu0 %v990, 119
  %v1090 = vpop.permute.xlu0 %1089
  %1091 = vrot.lane.b32.xlu0 %v991, 119
  %v1092 = vpop.permute.xlu0 %1091
  %v1093 = vmul.f32 %v1086, %v291
  %v1094 = vmul.f32 %v1088, %v292
  %v1095 = vmul.f32 %v1090, %v293
  %v1096 = vmul.f32 %v1092, %v294
  %v1097 = vpack.c.bf16 %v1010, %v1009
  %v1098 = vpack.c.bf16 %v1012, %v1011
  %v1099 = vpack.c.bf16 %v1022, %v1021
  %v1100 = vpack.c.bf16 %v1024, %v1023
  %v1101 = vpack.c.bf16 %v1034, %v1033
  %v1102 = vpack.c.bf16 %v1036, %v1035
  %v1103 = vpack.c.bf16 %v1046, %v1045
  %v1104 = vpack.c.bf16 %v1048, %v1047
  %v1105 = vpack.c.bf16 %v989, %v988
  %v1106 = vpack.c.bf16 %v991, %v990
  %v1107 = vpack.c.bf16 %v1058, %v1057
  %v1108 = vpack.c.bf16 %v1060, %v1059
  %v1109 = vpack.c.bf16 %v1070, %v1069
  %v1110 = vpack.c.bf16 %v1072, %v1071
  %v1111 = vpack.c.bf16 %v1082, %v1081
  %v1112 = vpack.c.bf16 %v1084, %v1083
  %v1113 = vpack.c.bf16 %v1094, %v1093
  %v1114 = vpack.c.bf16 %v1096, %v1095
  %v1123 = vunpack.c.l.b16 %v993
  %v1124 = vunpack.c.h.b16 %v993
  %v1125 = vunpack.c.l.b16 %v994
  %v1126 = vunpack.c.l.b16 %v995
  %v1127 = vunpack.c.h.b16 %v995
  %v1128 = vunpack.c.l.b16 %v996
  %v1129 = vunpack.c.l.b16 %v997
  %v1130 = vunpack.c.h.b16 %v997
  %v1131 = vunpack.c.l.b16 %v998
  %v1132 = vunpack.c.l.b16 %v999
  %v1133 = vunpack.c.h.b16 %v999
  %v1134 = vunpack.c.l.b16 %v1000
  %v1135 = vpack.c.b16 %v1126, %v1123
  %v1136 = vpack.c.b16 %v1127, %v1124
  %v1137 = vpack.c.b16 %v1128, %v1125
  %v1138 = vpack.c.b16 %v1132, %v1129
  %v1139 = vpack.c.b16 %v1133, %v1130
  %v1140 = vpack.c.b16 %v1134, %v1131
  %v1146 = vsel %vm347, %v1137, 0
  %v1149 = vsel %vm347, %v1140, 0
  %1151 = vmatpush.bf16.msra.mxu0 %v1104
  %1152 = vmatpush.bf16.msra.mxu0 %v1103
  %1153 = vmatpush.bf16.msra.mxu0 %v1102
  %1154 = vmatpush.bf16.msra.mxu0 %v1101
  %1155 = vmatpush.bf16.msra.mxu0 %v1100
  %1156 = vmatpush.bf16.msra.mxu0 %v1099
  %1157 = vmatpush.bf16.msra.mxu0 %v1098
  %1158 = vmatpush.bf16.msra.mxu0 %v1097
  %1159 = vmatmul.bf16.gmra.mxu0 %v1135
  %v1160 = vpop.f32.mrf.mxu0
  %v1161 = vadd.f32 0.0, %v1160
  %v1162 = vpop.f32.mrf.mxu0
  %v1163 = vadd.f32 0.0, %v1162
  %1164 = vmatmul.bf16.gmra.mxu0 %v1138
  %v1165 = vpop.f32.mrf.mxu0
  %v1166 = vadd.f32 0.0, %v1165
  %v1167 = vpop.f32.mrf.mxu0
  %v1168 = vadd.f32 0.0, %v1167
  %1169 = vdwg.mxu0
  %1170 = vmatpush.bf16.msra.mxu0 %v1112
  %1171 = vmatpush.bf16.msra.mxu0 %v1111
  %1172 = vmatpush.bf16.msra.mxu0 %v1110
  %1173 = vmatpush.bf16.msra.mxu0 %v1109
  %1174 = vmatpush.bf16.msra.mxu0 %v1108
  %1175 = vmatpush.bf16.msra.mxu0 %v1107
  %1176 = vmatpush.bf16.msra.mxu0 %v1106
  %1177 = vmatpush.bf16.msra.mxu0 %v1105
  %1178 = vmatmul.bf16.gmra.mxu0 %v1136
  %v1179 = vpop.f32.mrf.mxu0
  %v1180 = vadd.f32 %v1161, %v1179
  %v1181 = vpop.f32.mrf.mxu0
  %v1182 = vadd.f32 %v1163, %v1181
  %1183 = vmatmul.bf16.gmra.mxu0 %v1139
  %v1184 = vpop.f32.mrf.mxu0
  %v1185 = vadd.f32 %v1166, %v1184
  %v1186 = vpop.f32.mrf.mxu0
  %v1187 = vadd.f32 %v1168, %v1186
  %1188 = vdwg.mxu0
  %1189 = vmatpush.bf16.msra.mxu0 0
  %1190 = vmatpush.bf16.msra.mxu0 0
  %1191 = vmatpush.bf16.msra.mxu0 0
  %1192 = vmatpush.bf16.msra.mxu0 0
  %1193 = vmatpush.bf16.msra.mxu0 0
  %1194 = vmatpush.bf16.msra.mxu0 0
  %1195 = vmatpush.bf16.msra.mxu0 %v1114
  %1196 = vmatpush.bf16.msra.mxu0 %v1113
  %1197 = vmatmul.bf16.gmra.mxu0 %v1146
  %v1198 = vpop.f32.mrf.mxu0
  %v1199 = vadd.f32 %v1180, %v1198
  %v1200 = vpop.f32.mrf.mxu0
  %v1201 = vadd.f32 %v1182, %v1200
  %1202 = vmatmul.bf16.gmra.mxu0 %v1149
  %v1203 = vpop.f32.mrf.mxu0
  %v1204 = vadd.f32 %v1185, %v1203
  %v1205 = vpop.f32.mrf.mxu0
  %v1206 = vadd.f32 %v1187, %v1205
  %1207 = vdwg.mxu0
  %v1208 = vmax.f32 %v1199, 0.0
  %v1209 = vmax.f32 %v1201, 0.0
  %v1210 = vmax.f32 %v1204, 0.0
  %v1211 = vmax.f32 %v1206, 0.0
  %s1212 = scalar_lea.vmem %s4, 48
  %v1213 = vld [vmem:[%s1212] sm:$0xf]
  %v1214 = vld [vmem:[%s1212 + $0x4] sm:$0xf]
  %v1215 = vld [vmem:[%s1212 + $0x8] sm:$0xf]
  %v1216 = vld [vmem:[%s1212 + $0xc] sm:$0xf]
  %v1217 = vpack.c.bf16 %v1209, %v1208
  %v1218 = vpack.c.bf16 %v1211, %v1210
  %v1223 = vunpack.c.l.b16 %v1213
  %v1224 = vunpack.c.l.b16 %v1214
  %v1225 = vunpack.c.l.b16 %v1215
  %v1226 = vunpack.c.l.b16 %v1216
  %v1227 = vpack.c.b16 %v1224, %v1223
  %v1228 = vpack.c.b16 %v1226, %v1225
  %v1230 = vsel %vm347, %v1227, 0
  %v1233 = vsel %vm347, %v1228, 0
  %1235 = vmatpush.bf16.msra.mxu0 0
  %1236 = vmatpush.bf16.msra.mxu0 0
  %1237 = vmatpush.bf16.msra.mxu0 0
  %1238 = vmatpush.bf16.msra.mxu0 0
  %1239 = vmatpush.bf16.msra.mxu0 0
  %1240 = vmatpush.bf16.msra.mxu0 0
  %1241 = vmatpush.bf16.msra.mxu0 %v1218
  %1242 = vmatpush.bf16.msra.mxu0 %v1217
  %1243 = vmatmul.bf16.gmra.mxu0 %v1230
  %v1244 = vpop.f32.mrf.mxu0
  %v1245 = vadd.f32 0.0, %v1244
  %v1246 = vpop.f32.mrf.mxu0
  %v1247 = vadd.f32 0.0, %v1246
  %1248 = vmatmul.bf16.gmra.mxu0 %v1233
  %v1249 = vpop.f32.mrf.mxu0
  %v1250 = vadd.f32 0.0, %v1249
  %v1251 = vpop.f32.mrf.mxu0
  %v1252 = vadd.f32 0.0, %v1251
  %1253 = vdwg.mxu0
  %v1254 = vadd.f32 %v988, %v1245
  %v1255 = vadd.f32 %v989, %v1247
  %v1256 = vadd.f32 %v990, %v1250
  %v1257 = vadd.f32 %v991, %v1252
  %s1258 = scalar_lea.vmem %s3, 192
  %v1259 = vld [vmem:[%s1258] sm:$0xff]
  %v1260 = vld [vmem:[%s1258 + $0x8] sm:$0xf]
  %v1261 = vld [vmem:[%s1258 + $0xc] sm:$0xff]
  %v1262 = vld [vmem:[%s1258 + $0x14] sm:$0xf]
  %v1263 = vld [vmem:[%s1258 + $0x18] sm:$0xff]
  %v1264 = vld [vmem:[%s1258 + $0x20] sm:$0xf]
  %v1265 = vld [vmem:[%s1258 + $0x24] sm:$0xff]
  %v1266 = vld [vmem:[%s1258 + $0x2c] sm:$0xf]
  %1267 = vrot.lane.b32.xlu0 %v1254, 9
  %v1268 = vpop.permute.xlu0 %1267
  %1269 = vrot.lane.b32.xlu0 %v1255, 9
  %v1270 = vpop.permute.xlu0 %1269
  %1271 = vrot.lane.b32.xlu0 %v1256, 9
  %v1272 = vpop.permute.xlu0 %1271
  %1273 = vrot.lane.b32.xlu0 %v1257, 9
  %v1274 = vpop.permute.xlu0 %1273
  %v1275 = vmul.f32 %v1268, %v179
  %v1276 = vmul.f32 %v1270, %v180
  %v1277 = vmul.f32 %v1272, %v181
  %v1278 = vmul.f32 %v1274, %v182
  %1279 = vrot.lane.b32.xlu0 %v1254, 8
  %v1280 = vpop.permute.xlu0 %1279
  %1281 = vrot.lane.b32.xlu0 %v1255, 8
  %v1282 = vpop.permute.xlu0 %1281
  %1283 = vrot.lane.b32.xlu0 %v1256, 8
  %v1284 = vpop.permute.xlu0 %1283
  %1285 = vrot.lane.b32.xlu0 %v1257, 8
  %v1286 = vpop.permute.xlu0 %1285
  %v1287 = vmul.f32 %v1280, %v195
  %v1288 = vmul.f32 %v1282, %v196
  %v1289 = vmul.f32 %v1284, %v197
  %v1290 = vmul.f32 %v1286, %v198
  %1291 = vrot.lane.b32.xlu0 %v1254, 7
  %v1292 = vpop.permute.xlu0 %1291
  %1293 = vrot.lane.b32.xlu0 %v1255, 7
  %v1294 = vpop.permute.xlu0 %1293
  %1295 = vrot.lane.b32.xlu0 %v1256, 7
  %v1296 = vpop.permute.xlu0 %1295
  %1297 = vrot.lane.b32.xlu0 %v1257, 7
  %v1298 = vpop.permute.xlu0 %1297
  %v1299 = vmul.f32 %v1292, %v211
  %v1300 = vmul.f32 %v1294, %v212
  %v1301 = vmul.f32 %v1296, %v213
  %v1302 = vmul.f32 %v1298, %v214
  %1303 = vrot.lane.b32.xlu0 %v1254, 1
  %v1304 = vpop.permute.xlu0 %1303
  %1305 = vrot.lane.b32.xlu0 %v1255, 1
  %v1306 = vpop.permute.xlu0 %1305
  %1307 = vrot.lane.b32.xlu0 %v1256, 1
  %v1308 = vpop.permute.xlu0 %1307
  %1309 = vrot.lane.b32.xlu0 %v1257, 1
  %v1310 = vpop.permute.xlu0 %1309
  %v1311 = vmul.f32 %v1304, %v227
  %v1312 = vmul.f32 %v1306, %v228
  %v1313 = vmul.f32 %v1308, %v229
  %v1314 = vmul.f32 %v1310, %v230
  %1315 = vrot.lane.b32.xlu0 %v1254, 127
  %v1316 = vpop.permute.xlu0 %1315
  %1317 = vrot.lane.b32.xlu0 %v1255, 127
  %v1318 = vpop.permute.xlu0 %1317
  %1319 = vrot.lane.b32.xlu0 %v1256, 127
  %v1320 = vpop.permute.xlu0 %1319
  %1321 = vrot.lane.b32.xlu0 %v1257, 127
  %v1322 = vpop.permute.xlu0 %1321
  %v1323 = vmul.f32 %v1316, %v243
  %v1324 = vmul.f32 %v1318, %v244
  %v1325 = vmul.f32 %v1320, %v245
  %v1326 = vmul.f32 %v1322, %v246
  %1327 = vrot.lane.b32.xlu0 %v1254, 121
  %v1328 = vpop.permute.xlu0 %1327
  %1329 = vrot.lane.b32.xlu0 %v1255, 121
  %v1330 = vpop.permute.xlu0 %1329
  %1331 = vrot.lane.b32.xlu0 %v1256, 121
  %v1332 = vpop.permute.xlu0 %1331
  %1333 = vrot.lane.b32.xlu0 %v1257, 121
  %v1334 = vpop.permute.xlu0 %1333
  %v1335 = vmul.f32 %v1328, %v259
  %v1336 = vmul.f32 %v1330, %v260
  %v1337 = vmul.f32 %v1332, %v261
  %v1338 = vmul.f32 %v1334, %v262
  %1339 = vrot.lane.b32.xlu0 %v1254, 120
  %v1340 = vpop.permute.xlu0 %1339
  %1341 = vrot.lane.b32.xlu0 %v1255, 120
  %v1342 = vpop.permute.xlu0 %1341
  %1343 = vrot.lane.b32.xlu0 %v1256, 120
  %v1344 = vpop.permute.xlu0 %1343
  %1345 = vrot.lane.b32.xlu0 %v1257, 120
  %v1346 = vpop.permute.xlu0 %1345
  %v1347 = vmul.f32 %v1340, %v275
  %v1348 = vmul.f32 %v1342, %v276
  %v1349 = vmul.f32 %v1344, %v277
  %v1350 = vmul.f32 %v1346, %v278
  %1351 = vrot.lane.b32.xlu0 %v1254, 119
  %v1352 = vpop.permute.xlu0 %1351
  %1353 = vrot.lane.b32.xlu0 %v1255, 119
  %v1354 = vpop.permute.xlu0 %1353
  %1355 = vrot.lane.b32.xlu0 %v1256, 119
  %v1356 = vpop.permute.xlu0 %1355
  %1357 = vrot.lane.b32.xlu0 %v1257, 119
  %v1358 = vpop.permute.xlu0 %1357
  %v1359 = vmul.f32 %v1352, %v291
  %v1360 = vmul.f32 %v1354, %v292
  %v1361 = vmul.f32 %v1356, %v293
  %v1362 = vmul.f32 %v1358, %v294
  %v1363 = vpack.c.bf16 %v1276, %v1275
  %v1364 = vpack.c.bf16 %v1278, %v1277
  %v1365 = vpack.c.bf16 %v1288, %v1287
  %v1366 = vpack.c.bf16 %v1290, %v1289
  %v1367 = vpack.c.bf16 %v1300, %v1299
  %v1368 = vpack.c.bf16 %v1302, %v1301
  %v1369 = vpack.c.bf16 %v1312, %v1311
  %v1370 = vpack.c.bf16 %v1314, %v1313
  %v1371 = vpack.c.bf16 %v1255, %v1254
  %v1372 = vpack.c.bf16 %v1257, %v1256
  %v1373 = vpack.c.bf16 %v1324, %v1323
  %v1374 = vpack.c.bf16 %v1326, %v1325
  %v1375 = vpack.c.bf16 %v1336, %v1335
  %v1376 = vpack.c.bf16 %v1338, %v1337
  %v1377 = vpack.c.bf16 %v1348, %v1347
  %v1378 = vpack.c.bf16 %v1350, %v1349
  %v1379 = vpack.c.bf16 %v1360, %v1359
  %v1380 = vpack.c.bf16 %v1362, %v1361
  %v1389 = vunpack.c.l.b16 %v1259
  %v1390 = vunpack.c.h.b16 %v1259
  %v1391 = vunpack.c.l.b16 %v1260
  %v1392 = vunpack.c.l.b16 %v1261
  %v1393 = vunpack.c.h.b16 %v1261
  %v1394 = vunpack.c.l.b16 %v1262
  %v1395 = vunpack.c.l.b16 %v1263
  %v1396 = vunpack.c.h.b16 %v1263
  %v1397 = vunpack.c.l.b16 %v1264
  %v1398 = vunpack.c.l.b16 %v1265
  %v1399 = vunpack.c.h.b16 %v1265
  %v1400 = vunpack.c.l.b16 %v1266
  %v1401 = vpack.c.b16 %v1392, %v1389
  %v1402 = vpack.c.b16 %v1393, %v1390
  %v1403 = vpack.c.b16 %v1394, %v1391
  %v1404 = vpack.c.b16 %v1398, %v1395
  %v1405 = vpack.c.b16 %v1399, %v1396
  %v1406 = vpack.c.b16 %v1400, %v1397
  %v1412 = vsel %vm347, %v1403, 0
  %v1415 = vsel %vm347, %v1406, 0
  %1417 = vmatpush.bf16.msra.mxu0 %v1370
  %1418 = vmatpush.bf16.msra.mxu0 %v1369
  %1419 = vmatpush.bf16.msra.mxu0 %v1368
  %1420 = vmatpush.bf16.msra.mxu0 %v1367
  %1421 = vmatpush.bf16.msra.mxu0 %v1366
  %1422 = vmatpush.bf16.msra.mxu0 %v1365
  %1423 = vmatpush.bf16.msra.mxu0 %v1364
  %1424 = vmatpush.bf16.msra.mxu0 %v1363
  %1425 = vmatmul.bf16.gmra.mxu0 %v1401
  %v1426 = vpop.f32.mrf.mxu0
  %v1427 = vadd.f32 0.0, %v1426
  %v1428 = vpop.f32.mrf.mxu0
  %v1429 = vadd.f32 0.0, %v1428
  %1430 = vmatmul.bf16.gmra.mxu0 %v1404
  %v1431 = vpop.f32.mrf.mxu0
  %v1432 = vadd.f32 0.0, %v1431
  %v1433 = vpop.f32.mrf.mxu0
  %v1434 = vadd.f32 0.0, %v1433
  %1435 = vdwg.mxu0
  %1436 = vmatpush.bf16.msra.mxu0 %v1378
  %1437 = vmatpush.bf16.msra.mxu0 %v1377
  %1438 = vmatpush.bf16.msra.mxu0 %v1376
  %1439 = vmatpush.bf16.msra.mxu0 %v1375
  %1440 = vmatpush.bf16.msra.mxu0 %v1374
  %1441 = vmatpush.bf16.msra.mxu0 %v1373
  %1442 = vmatpush.bf16.msra.mxu0 %v1372
  %1443 = vmatpush.bf16.msra.mxu0 %v1371
  %1444 = vmatmul.bf16.gmra.mxu0 %v1402
  %v1445 = vpop.f32.mrf.mxu0
  %v1446 = vadd.f32 %v1427, %v1445
  %v1447 = vpop.f32.mrf.mxu0
  %v1448 = vadd.f32 %v1429, %v1447
  %1449 = vmatmul.bf16.gmra.mxu0 %v1405
  %v1450 = vpop.f32.mrf.mxu0
  %v1451 = vadd.f32 %v1432, %v1450
  %v1452 = vpop.f32.mrf.mxu0
  %v1453 = vadd.f32 %v1434, %v1452
  %1454 = vdwg.mxu0
  %1455 = vmatpush.bf16.msra.mxu0 0
  %1456 = vmatpush.bf16.msra.mxu0 0
  %1457 = vmatpush.bf16.msra.mxu0 0
  %1458 = vmatpush.bf16.msra.mxu0 0
  %1459 = vmatpush.bf16.msra.mxu0 0
  %1460 = vmatpush.bf16.msra.mxu0 0
  %1461 = vmatpush.bf16.msra.mxu0 %v1380
  %1462 = vmatpush.bf16.msra.mxu0 %v1379
  %1463 = vmatmul.bf16.gmra.mxu0 %v1412
  %v1464 = vpop.f32.mrf.mxu0
  %v1465 = vadd.f32 %v1446, %v1464
  %v1466 = vpop.f32.mrf.mxu0
  %v1467 = vadd.f32 %v1448, %v1466
  %1468 = vmatmul.bf16.gmra.mxu0 %v1415
  %v1469 = vpop.f32.mrf.mxu0
  %v1470 = vadd.f32 %v1451, %v1469
  %v1471 = vpop.f32.mrf.mxu0
  %v1472 = vadd.f32 %v1453, %v1471
  %1473 = vdwg.mxu0
  %v1474 = vmax.f32 %v1465, 0.0
  %v1475 = vmax.f32 %v1467, 0.0
  %v1476 = vmax.f32 %v1470, 0.0
  %v1477 = vmax.f32 %v1472, 0.0
  %s1478 = scalar_lea.vmem %s4, 64
  %v1479 = vld [vmem:[%s1478] sm:$0xf]
  %v1480 = vld [vmem:[%s1478 + $0x4] sm:$0xf]
  %v1481 = vld [vmem:[%s1478 + $0x8] sm:$0xf]
  %v1482 = vld [vmem:[%s1478 + $0xc] sm:$0xf]
  %v1483 = vpack.c.bf16 %v1475, %v1474
  %v1484 = vpack.c.bf16 %v1477, %v1476
  %v1489 = vunpack.c.l.b16 %v1479
  %v1490 = vunpack.c.l.b16 %v1480
  %v1491 = vunpack.c.l.b16 %v1481
  %v1492 = vunpack.c.l.b16 %v1482
  %v1493 = vpack.c.b16 %v1490, %v1489
  %v1494 = vpack.c.b16 %v1492, %v1491
  %v1496 = vsel %vm347, %v1493, 0
  %v1499 = vsel %vm347, %v1494, 0
  %1501 = vmatpush.bf16.msra.mxu0 0
  %1502 = vmatpush.bf16.msra.mxu0 0
  %1503 = vmatpush.bf16.msra.mxu0 0
  %1504 = vmatpush.bf16.msra.mxu0 0
  %1505 = vmatpush.bf16.msra.mxu0 0
  %1506 = vmatpush.bf16.msra.mxu0 0
  %1507 = vmatpush.bf16.msra.mxu0 %v1484
  %1508 = vmatpush.bf16.msra.mxu0 %v1483
  %1509 = vmatmul.bf16.gmra.mxu0 %v1496
  %v1510 = vpop.f32.mrf.mxu0
  %v1511 = vadd.f32 0.0, %v1510
  %v1512 = vpop.f32.mrf.mxu0
  %v1513 = vadd.f32 0.0, %v1512
  %1514 = vmatmul.bf16.gmra.mxu0 %v1499
  %v1515 = vpop.f32.mrf.mxu0
  %v1516 = vadd.f32 0.0, %v1515
  %v1517 = vpop.f32.mrf.mxu0
  %v1518 = vadd.f32 0.0, %v1517
  %1519 = vdwg.mxu0
  %v1520 = vadd.f32 %v1254, %v1511
  %v1521 = vadd.f32 %v1255, %v1513
  %v1522 = vadd.f32 %v1256, %v1516
  %v1523 = vadd.f32 %v1257, %v1518
  %s1524 = scalar_lea.vmem %s3, 240
  %v1525 = vld [vmem:[%s1524] sm:$0xff]
  %v1526 = vld [vmem:[%s1524 + $0x8] sm:$0xf]
  %v1527 = vld [vmem:[%s1524 + $0xc] sm:$0xff]
  %v1528 = vld [vmem:[%s1524 + $0x14] sm:$0xf]
  %v1529 = vld [vmem:[%s1524 + $0x18] sm:$0xff]
  %v1530 = vld [vmem:[%s1524 + $0x20] sm:$0xf]
  %v1531 = vld [vmem:[%s1524 + $0x24] sm:$0xff]
  %v1532 = vld [vmem:[%s1524 + $0x2c] sm:$0xf]
  %1533 = vrot.lane.b32.xlu0 %v1520, 9
  %v1534 = vpop.permute.xlu0 %1533
  %1535 = vrot.lane.b32.xlu0 %v1521, 9
  %v1536 = vpop.permute.xlu0 %1535
  %1537 = vrot.lane.b32.xlu0 %v1522, 9
  %v1538 = vpop.permute.xlu0 %1537
  %1539 = vrot.lane.b32.xlu0 %v1523, 9
  %v1540 = vpop.permute.xlu0 %1539
  %v1541 = vmul.f32 %v1534, %v179
  %v1542 = vmul.f32 %v1536, %v180
  %v1543 = vmul.f32 %v1538, %v181
  %v1544 = vmul.f32 %v1540, %v182
  %1545 = vrot.lane.b32.xlu0 %v1520, 8
  %v1546 = vpop.permute.xlu0 %1545
  %1547 = vrot.lane.b32.xlu0 %v1521, 8
  %v1548 = vpop.permute.xlu0 %1547
  %1549 = vrot.lane.b32.xlu0 %v1522, 8
  %v1550 = vpop.permute.xlu0 %1549
  %1551 = vrot.lane.b32.xlu0 %v1523, 8
  %v1552 = vpop.permute.xlu0 %1551
  %v1553 = vmul.f32 %v1546, %v195
  %v1554 = vmul.f32 %v1548, %v196
  %v1555 = vmul.f32 %v1550, %v197
  %v1556 = vmul.f32 %v1552, %v198
  %1557 = vrot.lane.b32.xlu0 %v1520, 7
  %v1558 = vpop.permute.xlu0 %1557
  %1559 = vrot.lane.b32.xlu0 %v1521, 7
  %v1560 = vpop.permute.xlu0 %1559
  %1561 = vrot.lane.b32.xlu0 %v1522, 7
  %v1562 = vpop.permute.xlu0 %1561
  %1563 = vrot.lane.b32.xlu0 %v1523, 7
  %v1564 = vpop.permute.xlu0 %1563
  %v1565 = vmul.f32 %v1558, %v211
  %v1566 = vmul.f32 %v1560, %v212
  %v1567 = vmul.f32 %v1562, %v213
  %v1568 = vmul.f32 %v1564, %v214
  %1569 = vrot.lane.b32.xlu0 %v1520, 1
  %v1570 = vpop.permute.xlu0 %1569
  %1571 = vrot.lane.b32.xlu0 %v1521, 1
  %v1572 = vpop.permute.xlu0 %1571
  %1573 = vrot.lane.b32.xlu0 %v1522, 1
  %v1574 = vpop.permute.xlu0 %1573
  %1575 = vrot.lane.b32.xlu0 %v1523, 1
  %v1576 = vpop.permute.xlu0 %1575
  %v1577 = vmul.f32 %v1570, %v227
  %v1578 = vmul.f32 %v1572, %v228
  %v1579 = vmul.f32 %v1574, %v229
  %v1580 = vmul.f32 %v1576, %v230
  %1581 = vrot.lane.b32.xlu0 %v1520, 127
  %v1582 = vpop.permute.xlu0 %1581
  %1583 = vrot.lane.b32.xlu0 %v1521, 127
  %v1584 = vpop.permute.xlu0 %1583
  %1585 = vrot.lane.b32.xlu0 %v1522, 127
  %v1586 = vpop.permute.xlu0 %1585
  %1587 = vrot.lane.b32.xlu0 %v1523, 127
  %v1588 = vpop.permute.xlu0 %1587
  %v1589 = vmul.f32 %v1582, %v243
  %v1590 = vmul.f32 %v1584, %v244
  %v1591 = vmul.f32 %v1586, %v245
  %v1592 = vmul.f32 %v1588, %v246
  %1593 = vrot.lane.b32.xlu0 %v1520, 121
  %v1594 = vpop.permute.xlu0 %1593
  %1595 = vrot.lane.b32.xlu0 %v1521, 121
  %v1596 = vpop.permute.xlu0 %1595
  %1597 = vrot.lane.b32.xlu0 %v1522, 121
  %v1598 = vpop.permute.xlu0 %1597
  %1599 = vrot.lane.b32.xlu0 %v1523, 121
  %v1600 = vpop.permute.xlu0 %1599
  %v1601 = vmul.f32 %v1594, %v259
  %v1602 = vmul.f32 %v1596, %v260
  %v1603 = vmul.f32 %v1598, %v261
  %v1604 = vmul.f32 %v1600, %v262
  %1605 = vrot.lane.b32.xlu0 %v1520, 120
  %v1606 = vpop.permute.xlu0 %1605
  %1607 = vrot.lane.b32.xlu0 %v1521, 120
  %v1608 = vpop.permute.xlu0 %1607
  %1609 = vrot.lane.b32.xlu0 %v1522, 120
  %v1610 = vpop.permute.xlu0 %1609
  %1611 = vrot.lane.b32.xlu0 %v1523, 120
  %v1612 = vpop.permute.xlu0 %1611
  %v1613 = vmul.f32 %v1606, %v275
  %v1614 = vmul.f32 %v1608, %v276
  %v1615 = vmul.f32 %v1610, %v277
  %v1616 = vmul.f32 %v1612, %v278
  %1617 = vrot.lane.b32.xlu0 %v1520, 119
  %v1618 = vpop.permute.xlu0 %1617
  %1619 = vrot.lane.b32.xlu0 %v1521, 119
  %v1620 = vpop.permute.xlu0 %1619
  %1621 = vrot.lane.b32.xlu0 %v1522, 119
  %v1622 = vpop.permute.xlu0 %1621
  %1623 = vrot.lane.b32.xlu0 %v1523, 119
  %v1624 = vpop.permute.xlu0 %1623
  %v1625 = vmul.f32 %v1618, %v291
  %v1626 = vmul.f32 %v1620, %v292
  %v1627 = vmul.f32 %v1622, %v293
  %v1628 = vmul.f32 %v1624, %v294
  %v1629 = vpack.c.bf16 %v1542, %v1541
  %v1630 = vpack.c.bf16 %v1544, %v1543
  %v1631 = vpack.c.bf16 %v1554, %v1553
  %v1632 = vpack.c.bf16 %v1556, %v1555
  %v1633 = vpack.c.bf16 %v1566, %v1565
  %v1634 = vpack.c.bf16 %v1568, %v1567
  %v1635 = vpack.c.bf16 %v1578, %v1577
  %v1636 = vpack.c.bf16 %v1580, %v1579
  %v1637 = vpack.c.bf16 %v1521, %v1520
  %v1638 = vpack.c.bf16 %v1523, %v1522
  %v1639 = vpack.c.bf16 %v1590, %v1589
  %v1640 = vpack.c.bf16 %v1592, %v1591
  %v1641 = vpack.c.bf16 %v1602, %v1601
  %v1642 = vpack.c.bf16 %v1604, %v1603
  %v1643 = vpack.c.bf16 %v1614, %v1613
  %v1644 = vpack.c.bf16 %v1616, %v1615
  %v1645 = vpack.c.bf16 %v1626, %v1625
  %v1646 = vpack.c.bf16 %v1628, %v1627
  %v1655 = vunpack.c.l.b16 %v1525
  %v1656 = vunpack.c.h.b16 %v1525
  %v1657 = vunpack.c.l.b16 %v1526
  %v1658 = vunpack.c.l.b16 %v1527
  %v1659 = vunpack.c.h.b16 %v1527
  %v1660 = vunpack.c.l.b16 %v1528
  %v1661 = vunpack.c.l.b16 %v1529
  %v1662 = vunpack.c.h.b16 %v1529
  %v1663 = vunpack.c.l.b16 %v1530
  %v1664 = vunpack.c.l.b16 %v1531
  %v1665 = vunpack.c.h.b16 %v1531
  %v1666 = vunpack.c.l.b16 %v1532
  %v1667 = vpack.c.b16 %v1658, %v1655
  %v1668 = vpack.c.b16 %v1659, %v1656
  %v1669 = vpack.c.b16 %v1660, %v1657
  %v1670 = vpack.c.b16 %v1664, %v1661
  %v1671 = vpack.c.b16 %v1665, %v1662
  %v1672 = vpack.c.b16 %v1666, %v1663
  %v1678 = vsel %vm347, %v1669, 0
  %v1681 = vsel %vm347, %v1672, 0
  %1683 = vmatpush.bf16.msra.mxu0 %v1636
  %1684 = vmatpush.bf16.msra.mxu0 %v1635
  %1685 = vmatpush.bf16.msra.mxu0 %v1634
  %1686 = vmatpush.bf16.msra.mxu0 %v1633
  %1687 = vmatpush.bf16.msra.mxu0 %v1632
  %1688 = vmatpush.bf16.msra.mxu0 %v1631
  %1689 = vmatpush.bf16.msra.mxu0 %v1630
  %1690 = vmatpush.bf16.msra.mxu0 %v1629
  %1691 = vmatmul.bf16.gmra.mxu0 %v1667
  %v1692 = vpop.f32.mrf.mxu0
  %v1693 = vadd.f32 0.0, %v1692
  %v1694 = vpop.f32.mrf.mxu0
  %v1695 = vadd.f32 0.0, %v1694
  %1696 = vmatmul.bf16.gmra.mxu0 %v1670
  %v1697 = vpop.f32.mrf.mxu0
  %v1698 = vadd.f32 0.0, %v1697
  %v1699 = vpop.f32.mrf.mxu0
  %v1700 = vadd.f32 0.0, %v1699
  %1701 = vdwg.mxu0
  %1702 = vmatpush.bf16.msra.mxu0 %v1644
  %1703 = vmatpush.bf16.msra.mxu0 %v1643
  %1704 = vmatpush.bf16.msra.mxu0 %v1642
  %1705 = vmatpush.bf16.msra.mxu0 %v1641
  %1706 = vmatpush.bf16.msra.mxu0 %v1640
  %1707 = vmatpush.bf16.msra.mxu0 %v1639
  %1708 = vmatpush.bf16.msra.mxu0 %v1638
  %1709 = vmatpush.bf16.msra.mxu0 %v1637
  %1710 = vmatmul.bf16.gmra.mxu0 %v1668
  %v1711 = vpop.f32.mrf.mxu0
  %v1712 = vadd.f32 %v1693, %v1711
  %v1713 = vpop.f32.mrf.mxu0
  %v1714 = vadd.f32 %v1695, %v1713
  %1715 = vmatmul.bf16.gmra.mxu0 %v1671
  %v1716 = vpop.f32.mrf.mxu0
  %v1717 = vadd.f32 %v1698, %v1716
  %v1718 = vpop.f32.mrf.mxu0
  %v1719 = vadd.f32 %v1700, %v1718
  %1720 = vdwg.mxu0
  %1721 = vmatpush.bf16.msra.mxu0 0
  %1722 = vmatpush.bf16.msra.mxu0 0
  %1723 = vmatpush.bf16.msra.mxu0 0
  %1724 = vmatpush.bf16.msra.mxu0 0
  %1725 = vmatpush.bf16.msra.mxu0 0
  %1726 = vmatpush.bf16.msra.mxu0 0
  %1727 = vmatpush.bf16.msra.mxu0 %v1646
  %1728 = vmatpush.bf16.msra.mxu0 %v1645
  %1729 = vmatmul.bf16.gmra.mxu0 %v1678
  %v1730 = vpop.f32.mrf.mxu0
  %v1731 = vadd.f32 %v1712, %v1730
  %v1732 = vpop.f32.mrf.mxu0
  %v1733 = vadd.f32 %v1714, %v1732
  %1734 = vmatmul.bf16.gmra.mxu0 %v1681
  %v1735 = vpop.f32.mrf.mxu0
  %v1736 = vadd.f32 %v1717, %v1735
  %v1737 = vpop.f32.mrf.mxu0
  %v1738 = vadd.f32 %v1719, %v1737
  %1739 = vdwg.mxu0
  %v1740 = vmax.f32 %v1731, 0.0
  %v1741 = vmax.f32 %v1733, 0.0
  %v1742 = vmax.f32 %v1736, 0.0
  %v1743 = vmax.f32 %v1738, 0.0
  %s1744 = scalar_lea.vmem %s4, 80
  %v1745 = vld [vmem:[%s1744] sm:$0xf]
  %v1746 = vld [vmem:[%s1744 + $0x4] sm:$0xf]
  %v1747 = vld [vmem:[%s1744 + $0x8] sm:$0xf]
  %v1748 = vld [vmem:[%s1744 + $0xc] sm:$0xf]
  %v1749 = vpack.c.bf16 %v1741, %v1740
  %v1750 = vpack.c.bf16 %v1743, %v1742
  %v1755 = vunpack.c.l.b16 %v1745
  %v1756 = vunpack.c.l.b16 %v1746
  %v1757 = vunpack.c.l.b16 %v1747
  %v1758 = vunpack.c.l.b16 %v1748
  %v1759 = vpack.c.b16 %v1756, %v1755
  %v1760 = vpack.c.b16 %v1758, %v1757
  %v1762 = vsel %vm347, %v1759, 0
  %v1765 = vsel %vm347, %v1760, 0
  %1767 = vmatpush.bf16.msra.mxu0 0
  %1768 = vmatpush.bf16.msra.mxu0 0
  %1769 = vmatpush.bf16.msra.mxu0 0
  %1770 = vmatpush.bf16.msra.mxu0 0
  %1771 = vmatpush.bf16.msra.mxu0 0
  %1772 = vmatpush.bf16.msra.mxu0 0
  %1773 = vmatpush.bf16.msra.mxu0 %v1750
  %1774 = vmatpush.bf16.msra.mxu0 %v1749
  %1775 = vmatmul.bf16.gmra.mxu0 %v1762
  %v1776 = vpop.f32.mrf.mxu0
  %v1777 = vadd.f32 0.0, %v1776
  %v1778 = vpop.f32.mrf.mxu0
  %v1779 = vadd.f32 0.0, %v1778
  %1780 = vmatmul.bf16.gmra.mxu0 %v1765
  %v1781 = vpop.f32.mrf.mxu0
  %v1782 = vadd.f32 0.0, %v1781
  %v1783 = vpop.f32.mrf.mxu0
  %v1784 = vadd.f32 0.0, %v1783
  %1785 = vdwg.mxu0
  %v1786 = vadd.f32 %v1520, %v1777
  %v1787 = vadd.f32 %v1521, %v1779
  %v1788 = vadd.f32 %v1522, %v1782
  %v1789 = vadd.f32 %v1523, %v1784
  %v1790 = vmul.f32 %v1786, 0.01
  %v1791 = vmul.f32 %v1787, 0.01
  %v1792 = vmul.f32 %v1788, 0.01
  %v1793 = vmul.f32 %v1789, 0.01
  %v1794 = vmax.f32 %v1786, %v1790
  %v1795 = vmax.f32 %v1787, %v1791
  %v1796 = vmax.f32 %v1788, %v1792
  %v1797 = vmax.f32 %v1789, %v1793
  %v1798 = vld [vmem:[%s5] sm:$0xff]
  %v1799 = vld [vmem:[%s5 + $0x8] sm:$0xf]
  %v1800 = vld [vmem:[%s5 + $0xc] sm:$0xff]
  %v1801 = vld [vmem:[%s5 + $0x14] sm:$0xf]
  %v1802 = vld [vmem:[%s5 + $0x18] sm:$0xff]
  %v1803 = vld [vmem:[%s5 + $0x20] sm:$0xf]
  %v1804 = vld [vmem:[%s5 + $0x24] sm:$0xff]
  %v1805 = vld [vmem:[%s5 + $0x2c] sm:$0xf]
  %v1806 = vld [vmem:[%s5 + $0x30] sm:$0xff]
  %v1807 = vld [vmem:[%s5 + $0x38] sm:$0xf]
  %v1808 = vld [vmem:[%s5 + $0x3c] sm:$0xff]
  %v1809 = vld [vmem:[%s5 + $0x44] sm:$0xf]
  %v1810 = vld [vmem:[%s5 + $0x48] sm:$0xff]
  %v1811 = vld [vmem:[%s5 + $0x50] sm:$0xf]
  %v1812 = vld [vmem:[%s5 + $0x54] sm:$0xff]
  %v1813 = vld [vmem:[%s5 + $0x5c] sm:$0xf]
  %v1814 = vld [vmem:[%s6] sm:$0xff]
  %v1815 = vld [vmem:[%s6 + $0x8] sm:$0xff]
  %v1816 = vld [vmem:[%s6 + $0x10] sm:$0xff]
  %v1817 = vld [vmem:[%s6 + $0x18] sm:$0xff]
  %v1818 = vld [vmem:[%s6 + $0x20] sm:$0xff]
  %v1819 = vld [vmem:[%s6 + $0x28] sm:$0xff]
  %v1820 = vld [vmem:[%s6 + $0x30] sm:$0xff]
  %v1821 = vld [vmem:[%s6 + $0x38] sm:$0xff]
  %1822 = vrot.lane.b32.xlu0 %v1794, 9
  %v1823 = vpop.permute.xlu0 %1822
  %1824 = vrot.lane.b32.xlu0 %v1795, 9
  %v1825 = vpop.permute.xlu0 %1824
  %1826 = vrot.lane.b32.xlu0 %v1796, 9
  %v1827 = vpop.permute.xlu0 %1826
  %1828 = vrot.lane.b32.xlu0 %v1797, 9
  %v1829 = vpop.permute.xlu0 %1828
  %v1830 = vmul.f32 %v1823, %v179
  %v1831 = vmul.f32 %v1825, %v180
  %v1832 = vmul.f32 %v1827, %v181
  %v1833 = vmul.f32 %v1829, %v182
  %1834 = vrot.lane.b32.xlu0 %v1794, 8
  %v1835 = vpop.permute.xlu0 %1834
  %1836 = vrot.lane.b32.xlu0 %v1795, 8
  %v1837 = vpop.permute.xlu0 %1836
  %1838 = vrot.lane.b32.xlu0 %v1796, 8
  %v1839 = vpop.permute.xlu0 %1838
  %1840 = vrot.lane.b32.xlu0 %v1797, 8
  %v1841 = vpop.permute.xlu0 %1840
  %v1842 = vmul.f32 %v1835, %v195
  %v1843 = vmul.f32 %v1837, %v196
  %v1844 = vmul.f32 %v1839, %v197
  %v1845 = vmul.f32 %v1841, %v198
  %1846 = vrot.lane.b32.xlu0 %v1794, 7
  %v1847 = vpop.permute.xlu0 %1846
  %1848 = vrot.lane.b32.xlu0 %v1795, 7
  %v1849 = vpop.permute.xlu0 %1848
  %1850 = vrot.lane.b32.xlu0 %v1796, 7
  %v1851 = vpop.permute.xlu0 %1850
  %1852 = vrot.lane.b32.xlu0 %v1797, 7
  %v1853 = vpop.permute.xlu0 %1852
  %v1854 = vmul.f32 %v1847, %v211
  %v1855 = vmul.f32 %v1849, %v212
  %v1856 = vmul.f32 %v1851, %v213
  %v1857 = vmul.f32 %v1853, %v214
  %1858 = vrot.lane.b32.xlu0 %v1794, 1
  %v1859 = vpop.permute.xlu0 %1858
  %1860 = vrot.lane.b32.xlu0 %v1795, 1
  %v1861 = vpop.permute.xlu0 %1860
  %1862 = vrot.lane.b32.xlu0 %v1796, 1
  %v1863 = vpop.permute.xlu0 %1862
  %1864 = vrot.lane.b32.xlu0 %v1797, 1
  %v1865 = vpop.permute.xlu0 %1864
  %v1866 = vmul.f32 %v1859, %v227
  %v1867 = vmul.f32 %v1861, %v228
  %v1868 = vmul.f32 %v1863, %v229
  %v1869 = vmul.f32 %v1865, %v230
  %1870 = vrot.lane.b32.xlu0 %v1794, 127
  %v1871 = vpop.permute.xlu0 %1870
  %1872 = vrot.lane.b32.xlu0 %v1795, 127
  %v1873 = vpop.permute.xlu0 %1872
  %1874 = vrot.lane.b32.xlu0 %v1796, 127
  %v1875 = vpop.permute.xlu0 %1874
  %1876 = vrot.lane.b32.xlu0 %v1797, 127
  %v1877 = vpop.permute.xlu0 %1876
  %v1878 = vmul.f32 %v1871, %v243
  %v1879 = vmul.f32 %v1873, %v244
  %v1880 = vmul.f32 %v1875, %v245
  %v1881 = vmul.f32 %v1877, %v246
  %1882 = vrot.lane.b32.xlu0 %v1794, 121
  %v1883 = vpop.permute.xlu0 %1882
  %1884 = vrot.lane.b32.xlu0 %v1795, 121
  %v1885 = vpop.permute.xlu0 %1884
  %1886 = vrot.lane.b32.xlu0 %v1796, 121
  %v1887 = vpop.permute.xlu0 %1886
  %1888 = vrot.lane.b32.xlu0 %v1797, 121
  %v1889 = vpop.permute.xlu0 %1888
  %v1890 = vmul.f32 %v1883, %v259
  %v1891 = vmul.f32 %v1885, %v260
  %v1892 = vmul.f32 %v1887, %v261
  %v1893 = vmul.f32 %v1889, %v262
  %1894 = vrot.lane.b32.xlu0 %v1794, 120
  %v1895 = vpop.permute.xlu0 %1894
  %1896 = vrot.lane.b32.xlu0 %v1795, 120
  %v1897 = vpop.permute.xlu0 %1896
  %1898 = vrot.lane.b32.xlu0 %v1796, 120
  %v1899 = vpop.permute.xlu0 %1898
  %1900 = vrot.lane.b32.xlu0 %v1797, 120
  %v1901 = vpop.permute.xlu0 %1900
  %v1902 = vmul.f32 %v1895, %v275
  %v1903 = vmul.f32 %v1897, %v276
  %v1904 = vmul.f32 %v1899, %v277
  %v1905 = vmul.f32 %v1901, %v278
  %1906 = vrot.lane.b32.xlu0 %v1794, 119
  %v1907 = vpop.permute.xlu0 %1906
  %1908 = vrot.lane.b32.xlu0 %v1795, 119
  %v1909 = vpop.permute.xlu0 %1908
  %1910 = vrot.lane.b32.xlu0 %v1796, 119
  %v1911 = vpop.permute.xlu0 %1910
  %1912 = vrot.lane.b32.xlu0 %v1797, 119
  %v1913 = vpop.permute.xlu0 %1912
  %v1914 = vmul.f32 %v1907, %v291
  %v1915 = vmul.f32 %v1909, %v292
  %v1916 = vmul.f32 %v1911, %v293
  %v1917 = vmul.f32 %v1913, %v294
  %v1918 = vpack.c.bf16 %v1831, %v1830
  %v1919 = vpack.c.bf16 %v1833, %v1832
  %v1920 = vpack.c.bf16 %v1843, %v1842
  %v1921 = vpack.c.bf16 %v1845, %v1844
  %v1922 = vpack.c.bf16 %v1855, %v1854
  %v1923 = vpack.c.bf16 %v1857, %v1856
  %v1924 = vpack.c.bf16 %v1867, %v1866
  %v1925 = vpack.c.bf16 %v1869, %v1868
  %v1926 = vpack.c.bf16 %v1795, %v1794
  %v1927 = vpack.c.bf16 %v1797, %v1796
  %v1928 = vpack.c.bf16 %v1879, %v1878
  %v1929 = vpack.c.bf16 %v1881, %v1880
  %v1930 = vpack.c.bf16 %v1891, %v1890
  %v1931 = vpack.c.bf16 %v1893, %v1892
  %v1932 = vpack.c.bf16 %v1903, %v1902
  %v1933 = vpack.c.bf16 %v1905, %v1904
  %v1934 = vpack.c.bf16 %v1915, %v1914
  %v1935 = vpack.c.bf16 %v1917, %v1916
  %1937 = vset.pattern.permute.xlu0 0
  %1938 = vperm.xlu0 %1937, %v1814
  %v1939 = vpop.permute.xlu0 %1938
  %1942 = vset.pattern.permute.xlu0 0
  %1943 = vperm.xlu0 %1942, %v1815
  %v1944 = vpop.permute.xlu0 %1943
  %1947 = vset.pattern.permute.xlu0 0
  %1948 = vperm.xlu0 %1947, %v1816
  %v1949 = vpop.permute.xlu0 %1948
  %1952 = vset.pattern.permute.xlu0 0
  %1953 = vperm.xlu0 %1952, %v1817
  %v1954 = vpop.permute.xlu0 %1953
  %1957 = vset.pattern.permute.xlu0 0
  %1958 = vperm.xlu0 %1957, %v1818
  %v1959 = vpop.permute.xlu0 %1958
  %1962 = vset.pattern.permute.xlu0 0
  %1963 = vperm.xlu0 %1962, %v1819
  %v1964 = vpop.permute.xlu0 %1963
  %1967 = vset.pattern.permute.xlu0 0
  %1968 = vperm.xlu0 %1967, %v1820
  %v1969 = vpop.permute.xlu0 %1968
  %1972 = vset.pattern.permute.xlu0 0
  %1973 = vperm.xlu0 %1972, %v1821
  %v1974 = vpop.permute.xlu0 %1973
  %v1992 = vunpack.c.l.b16 %v1798
  %v1993 = vunpack.c.h.b16 %v1798
  %v1994 = vunpack.c.l.b16 %v1799
  %v1995 = vunpack.c.l.b16 %v1800
  %v1996 = vunpack.c.h.b16 %v1800
  %v1997 = vunpack.c.l.b16 %v1801
  %v1998 = vunpack.c.l.b16 %v1802
  %v1999 = vunpack.c.h.b16 %v1802
  %v2000 = vunpack.c.l.b16 %v1803
  %v2001 = vunpack.c.l.b16 %v1804
  %v2002 = vunpack.c.h.b16 %v1804
  %v2003 = vunpack.c.l.b16 %v1805
  %v2004 = vunpack.c.l.b16 %v1806
  %v2005 = vunpack.c.h.b16 %v1806
  %v2006 = vunpack.c.l.b16 %v1807
  %v2007 = vunpack.c.l.b16 %v1808
  %v2008 = vunpack.c.h.b16 %v1808
  %v2009 = vunpack.c.l.b16 %v1809
  %v2010 = vunpack.c.l.b16 %v1810
  %v2011 = vunpack.c.h.b16 %v1810
  %v2012 = vunpack.c.l.b16 %v1811
  %v2013 = vunpack.c.l.b16 %v1812
  %v2014 = vunpack.c.h.b16 %v1812
  %v2015 = vunpack.c.l.b16 %v1813
  %v2016 = vpack.c.b16 %v1995, %v1992
  %v2017 = vpack.c.b16 %v1996, %v1993
  %v2018 = vpack.c.b16 %v1997, %v1994
  %v2019 = vpack.c.b16 %v2001, %v1998
  %v2020 = vpack.c.b16 %v2002, %v1999
  %v2021 = vpack.c.b16 %v2003, %v2000
  %v2022 = vpack.c.b16 %v2007, %v2004
  %v2023 = vpack.c.b16 %v2008, %v2005
  %v2024 = vpack.c.b16 %v2009, %v2006
  %v2025 = vpack.c.b16 %v2013, %v2010
  %v2026 = vpack.c.b16 %v2014, %v2011
  %v2027 = vpack.c.b16 %v2015, %v2012
  %v2037 = vsel %vm347, %v2018, 0
  %v2040 = vsel %vm347, %v2021, 0
  %v2043 = vsel %vm347, %v2024, 0
  %v2046 = vsel %vm347, %v2027, 0
  %2048 = vmatpush.bf16.msra.mxu0 %v1925
  %2049 = vmatpush.bf16.msra.mxu0 %v1924
  %2050 = vmatpush.bf16.msra.mxu0 %v1923
  %2051 = vmatpush.bf16.msra.mxu0 %v1922
  %2052 = vmatpush.bf16.msra.mxu0 %v1921
  %2053 = vmatpush.bf16.msra.mxu0 %v1920
  %2054 = vmatpush.bf16.msra.mxu0 %v1919
  %2055 = vmatpush.bf16.msra.mxu0 %v1918
  %2056 = vmatmul.bf16.gmra.mxu0 %v2016
  %v2057 = vpop.f32.mrf.mxu0
  %v2058 = vadd.f32 %v1939, %v2057
  %v2059 = vpop.f32.mrf.mxu0
  %v2060 = vadd.f32 %v1944, %v2059
  %2061 = vmatmul.bf16.gmra.mxu0 %v2019
  %v2062 = vpop.f32.mrf.mxu0
  %v2063 = vadd.f32 %v1949, %v2062
  %v2064 = vpop.f32.mrf.mxu0
  %v2065 = vadd.f32 %v1954, %v2064
  %2066 = vmatmul.bf16.gmra.mxu0 %v2022
  %v2067 = vpop.f32.mrf.mxu0
  %v2068 = vadd.f32 %v1959, %v2067
  %v2069 = vpop.f32.mrf.mxu0
  %v2070 = vadd.f32 %v1964, %v2069
  %2071 = vmatmul.bf16.gmra.mxu0 %v2025
  %v2072 = vpop.f32.mrf.mxu0
  %v2073 = vadd.f32 %v1969, %v2072
  %v2074 = vpop.f32.mrf.mxu0
  %v2075 = vadd.f32 %v1974, %v2074
  %2076 = vdwg.mxu0
  %2077 = vmatpush.bf16.msra.mxu0 %v1933
  %2078 = vmatpush.bf16.msra.mxu0 %v1932
  %2079 = vmatpush.bf16.msra.mxu0 %v1931
  %2080 = vmatpush.bf16.msra.mxu0 %v1930
  %2081 = vmatpush.bf16.msra.mxu0 %v1929
  %2082 = vmatpush.bf16.msra.mxu0 %v1928
  %2083 = vmatpush.bf16.msra.mxu0 %v1927
  %2084 = vmatpush.bf16.msra.mxu0 %v1926
  %2085 = vmatmul.bf16.gmra.mxu0 %v2017
  %v2086 = vpop.f32.mrf.mxu0
  %v2087 = vadd.f32 %v2058, %v2086
  %v2088 = vpop.f32.mrf.mxu0
  %v2089 = vadd.f32 %v2060, %v2088
  %2090 = vmatmul.bf16.gmra.mxu0 %v2020
  %v2091 = vpop.f32.mrf.mxu0
  %v2092 = vadd.f32 %v2063, %v2091
  %v2093 = vpop.f32.mrf.mxu0
  %v2094 = vadd.f32 %v2065, %v2093
  %2095 = vmatmul.bf16.gmra.mxu0 %v2023
  %v2096 = vpop.f32.mrf.mxu0
  %v2097 = vadd.f32 %v2068, %v2096
  %v2098 = vpop.f32.mrf.mxu0
  %v2099 = vadd.f32 %v2070, %v2098
  %2100 = vmatmul.bf16.gmra.mxu0 %v2026
  %v2101 = vpop.f32.mrf.mxu0
  %v2102 = vadd.f32 %v2073, %v2101
  %v2103 = vpop.f32.mrf.mxu0
  %v2104 = vadd.f32 %v2075, %v2103
  %2105 = vdwg.mxu0
  %2106 = vmatpush.bf16.msra.mxu0 0
  %2107 = vmatpush.bf16.msra.mxu0 0
  %2108 = vmatpush.bf16.msra.mxu0 0
  %2109 = vmatpush.bf16.msra.mxu0 0
  %2110 = vmatpush.bf16.msra.mxu0 0
  %2111 = vmatpush.bf16.msra.mxu0 0
  %2112 = vmatpush.bf16.msra.mxu0 %v1935
  %2113 = vmatpush.bf16.msra.mxu0 %v1934
  %2114 = vmatmul.bf16.gmra.mxu0 %v2037
  %v2115 = vpop.f32.mrf.mxu0
  %v2116 = vadd.f32 %v2087, %v2115
  %v2117 = vpop.f32.mrf.mxu0
  %v2118 = vadd.f32 %v2089, %v2117
  %2119 = vmatmul.bf16.gmra.mxu0 %v2040
  %v2120 = vpop.f32.mrf.mxu0
  %v2121 = vadd.f32 %v2092, %v2120
  %v2122 = vpop.f32.mrf.mxu0
  %v2123 = vadd.f32 %v2094, %v2122
  %2124 = vmatmul.bf16.gmra.mxu0 %v2043
  %v2125 = vpop.f32.mrf.mxu0
  %v2126 = vadd.f32 %v2097, %v2125
  %v2127 = vpop.f32.mrf.mxu0
  %v2128 = vadd.f32 %v2099, %v2127
  %2129 = vmatmul.bf16.gmra.mxu0 %v2046
  %v2130 = vpop.f32.mrf.mxu0
  %v2131 = vadd.f32 %v2102, %v2130
  %v2132 = vpop.f32.mrf.mxu0
  %v2133 = vadd.f32 %v2104, %v2132
  %2134 = vdwg.mxu0
  %v2135 = vmul.f32 %v2116, 0.01
  %v2136 = vmul.f32 %v2118, 0.01
  %v2137 = vmul.f32 %v2121, 0.01
  %v2138 = vmul.f32 %v2123, 0.01
  %v2139 = vmul.f32 %v2126, 0.01
  %v2140 = vmul.f32 %v2128, 0.01
  %v2141 = vmul.f32 %v2131, 0.01
  %v2142 = vmul.f32 %v2133, 0.01
  %v2143 = vmax.f32 %v2116, %v2135
  %v2144 = vmax.f32 %v2118, %v2136
  %v2145 = vmax.f32 %v2121, %v2137
  %v2146 = vmax.f32 %v2123, %v2138
  %v2147 = vmax.f32 %v2126, %v2139
  %v2148 = vmax.f32 %v2128, %v2140
  %v2149 = vmax.f32 %v2131, %v2141
  %v2150 = vmax.f32 %v2133, %v2142
  %v2151 = vld [vmem:[%s7] sm:$0xff]
  %v2152 = vld [vmem:[%s7 + $0x8] sm:$0xff]
  %v2153 = vld [vmem:[%s7 + $0x10] sm:$0xff]
  %v2154 = vld [vmem:[%s7 + $0x18] sm:$0xff]
  %v2155 = vld [vmem:[%s7 + $0x20] sm:$0xff]
  %v2156 = vld [vmem:[%s7 + $0x28] sm:$0xff]
  %v2157 = vld [vmem:[%s7 + $0x30] sm:$0xff]
  %v2158 = vld [vmem:[%s7 + $0x38] sm:$0xff]
  %v2159 = vld [vmem:[%s7 + $0x40] sm:$0xff]
  %v2160 = vld [vmem:[%s7 + $0x48] sm:$0xff]
  %v2161 = vld [vmem:[%s7 + $0x50] sm:$0xff]
  %v2162 = vld [vmem:[%s7 + $0x58] sm:$0xff]
  %v2163 = vld [vmem:[%s7 + $0x60] sm:$0xff]
  %v2164 = vld [vmem:[%s7 + $0x68] sm:$0xff]
  %v2165 = vld [vmem:[%s7 + $0x70] sm:$0xff]
  %v2166 = vld [vmem:[%s7 + $0x78] sm:$0xff]
  %v2167 = vld [vmem:[%s7 + $0x80] sm:$0xff]
  %v2168 = vld [vmem:[%s7 + $0x88] sm:$0xff]
  %v2169 = vld [vmem:[%s7 + $0x90] sm:$0xff]
  %v2170 = vld [vmem:[%s7 + $0x98] sm:$0xff]
  %v2171 = vld [vmem:[%s7 + $0xa0] sm:$0xff]
  %v2172 = vld [vmem:[%s7 + $0xa8] sm:$0xff]
  %v2173 = vld [vmem:[%s7 + $0xb0] sm:$0xff]
  %v2174 = vld [vmem:[%s7 + $0xb8] sm:$0xff]
  %v2175 = vld [vmem:[%s7 + $0xc0] sm:$0xff]
  %v2176 = vld [vmem:[%s7 + $0xc8] sm:$0xff]
  %v2177 = vld [vmem:[%s7 + $0xd0] sm:$0xff]
  %v2178 = vld [vmem:[%s7 + $0xd8] sm:$0xff]
  %v2179 = vld [vmem:[%s7 + $0xe0] sm:$0xff]
  %v2180 = vld [vmem:[%s7 + $0xe8] sm:$0xff]
  %v2181 = vld [vmem:[%s7 + $0xf0] sm:$0xff]
  %v2182 = vld [vmem:[%s7 + $0xf8] sm:$0xff]
  %v2183 = vld [vmem:[%s7 + $0x100] sm:$0xff]
  %v2184 = vld [vmem:[%s7 + $0x108] sm:$0xff]
  %v2185 = vld [vmem:[%s7 + $0x110] sm:$0xff]
  %v2186 = vld [vmem:[%s7 + $0x118] sm:$0xff]
  %v2187 = vld [vmem:[%s7 + $0x120] sm:$0xff]
  %v2188 = vld [vmem:[%s7 + $0x128] sm:$0xff]
  %v2189 = vld [vmem:[%s7 + $0x130] sm:$0xff]
  %v2190 = vld [vmem:[%s7 + $0x138] sm:$0xff]
  %v2191 = vld [vmem:[%s7 + $0x140] sm:$0xff]
  %v2192 = vld [vmem:[%s7 + $0x148] sm:$0xff]
  %v2193 = vld [vmem:[%s7 + $0x150] sm:$0xff]
  %v2194 = vld [vmem:[%s7 + $0x158] sm:$0xff]
  %v2195 = vld [vmem:[%s7 + $0x160] sm:$0xff]
  %v2196 = vld [vmem:[%s7 + $0x168] sm:$0xff]
  %v2197 = vld [vmem:[%s7 + $0x170] sm:$0xff]
  %v2198 = vld [vmem:[%s7 + $0x178] sm:$0xff]
  %v2199 = vld [vmem:[%s7 + $0x180] sm:$0xff]
  %v2200 = vld [vmem:[%s7 + $0x188] sm:$0xff]
  %v2201 = vld [vmem:[%s7 + $0x190] sm:$0xff]
  %v2202 = vld [vmem:[%s7 + $0x198] sm:$0xff]
  %v2203 = vld [vmem:[%s7 + $0x1a0] sm:$0xff]
  %v2204 = vld [vmem:[%s7 + $0x1a8] sm:$0xff]
  %v2205 = vld [vmem:[%s7 + $0x1b0] sm:$0xff]
  %v2206 = vld [vmem:[%s7 + $0x1b8] sm:$0xff]
  %v2207 = vld [vmem:[%s7 + $0x1c0] sm:$0xff]
  %v2208 = vld [vmem:[%s7 + $0x1c8] sm:$0xff]
  %v2209 = vld [vmem:[%s7 + $0x1d0] sm:$0xff]
  %v2210 = vld [vmem:[%s7 + $0x1d8] sm:$0xff]
  %v2211 = vld [vmem:[%s7 + $0x1e0] sm:$0xff]
  %v2212 = vld [vmem:[%s7 + $0x1e8] sm:$0xff]
  %v2213 = vld [vmem:[%s7 + $0x1f0] sm:$0xff]
  %v2214 = vld [vmem:[%s7 + $0x1f8] sm:$0xff]
  %s2215 = scalar_lea.vmem %s7, 512
  %v2216 = vld [vmem:[%s2215] sm:$0xff]
  %v2217 = vld [vmem:[%s2215 + $0x8] sm:$0xff]
  %v2218 = vld [vmem:[%s2215 + $0x10] sm:$0xff]
  %v2219 = vld [vmem:[%s2215 + $0x18] sm:$0xff]
  %v2220 = vld [vmem:[%s2215 + $0x20] sm:$0xff]
  %v2221 = vld [vmem:[%s2215 + $0x28] sm:$0xff]
  %v2222 = vld [vmem:[%s2215 + $0x30] sm:$0xff]
  %v2223 = vld [vmem:[%s2215 + $0x38] sm:$0xff]
  %v2224 = vld [vmem:[%s2215 + $0x40] sm:$0xff]
  %v2225 = vld [vmem:[%s2215 + $0x48] sm:$0xff]
  %v2226 = vld [vmem:[%s2215 + $0x50] sm:$0xff]
  %v2227 = vld [vmem:[%s2215 + $0x58] sm:$0xff]
  %v2228 = vld [vmem:[%s2215 + $0x60] sm:$0xff]
  %v2229 = vld [vmem:[%s2215 + $0x68] sm:$0xff]
  %v2230 = vld [vmem:[%s2215 + $0x70] sm:$0xff]
  %v2231 = vld [vmem:[%s2215 + $0x78] sm:$0xff]
  %v2232 = vld [vmem:[%s2215 + $0x80] sm:$0xff]
  %v2233 = vld [vmem:[%s2215 + $0x88] sm:$0xff]
  %v2234 = vld [vmem:[%s2215 + $0x90] sm:$0xff]
  %v2235 = vld [vmem:[%s2215 + $0x98] sm:$0xff]
  %v2236 = vld [vmem:[%s2215 + $0xa0] sm:$0xff]
  %v2237 = vld [vmem:[%s2215 + $0xa8] sm:$0xff]
  %v2238 = vld [vmem:[%s2215 + $0xb0] sm:$0xff]
  %v2239 = vld [vmem:[%s2215 + $0xb8] sm:$0xff]
  %v2240 = vld [vmem:[%s2215 + $0xc0] sm:$0xff]
  %v2241 = vld [vmem:[%s2215 + $0xc8] sm:$0xff]
  %v2242 = vld [vmem:[%s2215 + $0xd0] sm:$0xff]
  %v2243 = vld [vmem:[%s2215 + $0xd8] sm:$0xff]
  %v2244 = vld [vmem:[%s2215 + $0xe0] sm:$0xff]
  %v2245 = vld [vmem:[%s2215 + $0xe8] sm:$0xff]
  %v2246 = vld [vmem:[%s2215 + $0xf0] sm:$0xff]
  %v2247 = vld [vmem:[%s2215 + $0xf8] sm:$0xff]
  %v2248 = vld [vmem:[%s2215 + $0x100] sm:$0xff]
  %v2249 = vld [vmem:[%s2215 + $0x108] sm:$0xff]
  %v2250 = vld [vmem:[%s2215 + $0x110] sm:$0xff]
  %v2251 = vld [vmem:[%s2215 + $0x118] sm:$0xff]
  %v2252 = vld [vmem:[%s2215 + $0x120] sm:$0xff]
  %v2253 = vld [vmem:[%s2215 + $0x128] sm:$0xff]
  %v2254 = vld [vmem:[%s2215 + $0x130] sm:$0xff]
  %v2255 = vld [vmem:[%s2215 + $0x138] sm:$0xff]
  %v2256 = vld [vmem:[%s2215 + $0x140] sm:$0xff]
  %v2257 = vld [vmem:[%s2215 + $0x148] sm:$0xff]
  %v2258 = vld [vmem:[%s2215 + $0x150] sm:$0xff]
  %v2259 = vld [vmem:[%s2215 + $0x158] sm:$0xff]
  %v2260 = vld [vmem:[%s2215 + $0x160] sm:$0xff]
  %v2261 = vld [vmem:[%s2215 + $0x168] sm:$0xff]
  %v2262 = vld [vmem:[%s2215 + $0x170] sm:$0xff]
  %v2263 = vld [vmem:[%s2215 + $0x178] sm:$0xff]
  %v2264 = vld [vmem:[%s2215 + $0x180] sm:$0xff]
  %v2265 = vld [vmem:[%s2215 + $0x188] sm:$0xff]
  %v2266 = vld [vmem:[%s2215 + $0x190] sm:$0xff]
  %v2267 = vld [vmem:[%s2215 + $0x198] sm:$0xff]
  %v2268 = vld [vmem:[%s2215 + $0x1a0] sm:$0xff]
  %v2269 = vld [vmem:[%s2215 + $0x1a8] sm:$0xff]
  %v2270 = vld [vmem:[%s2215 + $0x1b0] sm:$0xff]
  %v2271 = vld [vmem:[%s2215 + $0x1b8] sm:$0xff]
  %v2272 = vld [vmem:[%s2215 + $0x1c0] sm:$0xff]
  %v2273 = vld [vmem:[%s2215 + $0x1c8] sm:$0xff]
  %v2274 = vld [vmem:[%s2215 + $0x1d0] sm:$0xff]
  %v2275 = vld [vmem:[%s2215 + $0x1d8] sm:$0xff]
  %v2276 = vld [vmem:[%s2215 + $0x1e0] sm:$0xff]
  %v2277 = vld [vmem:[%s2215 + $0x1e8] sm:$0xff]
  %v2278 = vld [vmem:[%s2215 + $0x1f0] sm:$0xff]
  %v2279 = vld [vmem:[%s2215 + $0x1f8] sm:$0xff]
  %2280 = vmatpush.msra.mxu0 %v2276
  %2281 = vmatpush.msra.mxu0 %v2272
  %2282 = vmatpush.msra.mxu0 %v2268
  %2283 = vmatpush.msra.mxu0 %v2264
  %2284 = vmatpush.msra.mxu0 %v2260
  %2285 = vmatpush.msra.mxu0 %v2256
  %2286 = vmatpush.msra.mxu0 %v2252
  %2287 = vmatpush.msra.mxu0 %v2248
  %2288 = vmatpush.msra.mxu0 %v2244
  %2289 = vmatpush.msra.mxu0 %v2240
  %2290 = vmatpush.msra.mxu0 %v2236
  %2291 = vmatpush.msra.mxu0 %v2232
  %2292 = vmatpush.msra.mxu0 %v2228
  %2293 = vmatpush.msra.mxu0 %v2224
  %2294 = vmatpush.msra.mxu0 %v2220
  %2295 = vmatpush.msra.mxu0 %v2216
  %2296 = vmatmul.f32.gmra.mxu0 %v2145
  %v2297 = vpop.f32.mrf.mxu0
  %v2298 = vadd.f32 0.0, %v2297
  %2299 = vmatmul.f32.gmra.mxu0 %v2146
  %v2300 = vpop.f32.mrf.mxu0
  %v2301 = vadd.f32 0.0, %v2300
  %2302 = vdwg.mxu0
  %2303 = vmatpush.msra.mxu0 %v2277
  %2304 = vmatpush.msra.mxu0 %v2273
  %2305 = vmatpush.msra.mxu0 %v2269
  %2306 = vmatpush.msra.mxu0 %v2265
  %2307 = vmatpush.msra.mxu0 %v2261
  %2308 = vmatpush.msra.mxu0 %v2257
  %2309 = vmatpush.msra.mxu0 %v2253
  %2310 = vmatpush.msra.mxu0 %v2249
  %2311 = vmatpush.msra.mxu0 %v2245
  %2312 = vmatpush.msra.mxu0 %v2241
  %2313 = vmatpush.msra.mxu0 %v2237
  %2314 = vmatpush.msra.mxu0 %v2233
  %2315 = vmatpush.msra.mxu0 %v2229
  %2316 = vmatpush.msra.mxu0 %v2225
  %2317 = vmatpush.msra.mxu0 %v2221
  %2318 = vmatpush.msra.mxu0 %v2217
  %2319 = vmatmul.f32.gmra.mxu0 %v2145
  %v2320 = vpop.f32.mrf.mxu0
  %v2321 = vadd.f32 0.0, %v2320
  %2322 = vmatmul.f32.gmra.mxu0 %v2146
  %v2323 = vpop.f32.mrf.mxu0
  %v2324 = vadd.f32 0.0, %v2323
  %2325 = vdwg.mxu0
  %2326 = vmatpush.msra.mxu0 %v2278
  %2327 = vmatpush.msra.mxu0 %v2274
  %2328 = vmatpush.msra.mxu0 %v2270
  %2329 = vmatpush.msra.mxu0 %v2266
  %2330 = vmatpush.msra.mxu0 %v2262
  %2331 = vmatpush.msra.mxu0 %v2258
  %2332 = vmatpush.msra.mxu0 %v2254
  %2333 = vmatpush.msra.mxu0 %v2250
  %2334 = vmatpush.msra.mxu0 %v2246
  %2335 = vmatpush.msra.mxu0 %v2242
  %2336 = vmatpush.msra.mxu0 %v2238
  %2337 = vmatpush.msra.mxu0 %v2234
  %2338 = vmatpush.msra.mxu0 %v2230
  %2339 = vmatpush.msra.mxu0 %v2226
  %2340 = vmatpush.msra.mxu0 %v2222
  %2341 = vmatpush.msra.mxu0 %v2218
  %2342 = vmatmul.f32.gmra.mxu0 %v2145
  %v2343 = vpop.f32.mrf.mxu0
  %v2344 = vadd.f32 0.0, %v2343
  %2345 = vmatmul.f32.gmra.mxu0 %v2146
  %v2346 = vpop.f32.mrf.mxu0
  %v2347 = vadd.f32 0.0, %v2346
  %2348 = vdwg.mxu0
  %2349 = vmatpush.msra.mxu0 %v2279
  %2350 = vmatpush.msra.mxu0 %v2275
  %2351 = vmatpush.msra.mxu0 %v2271
  %2352 = vmatpush.msra.mxu0 %v2267
  %2353 = vmatpush.msra.mxu0 %v2263
  %2354 = vmatpush.msra.mxu0 %v2259
  %2355 = vmatpush.msra.mxu0 %v2255
  %2356 = vmatpush.msra.mxu0 %v2251
  %2357 = vmatpush.msra.mxu0 %v2247
  %2358 = vmatpush.msra.mxu0 %v2243
  %2359 = vmatpush.msra.mxu0 %v2239
  %2360 = vmatpush.msra.mxu0 %v2235
  %2361 = vmatpush.msra.mxu0 %v2231
  %2362 = vmatpush.msra.mxu0 %v2227
  %2363 = vmatpush.msra.mxu0 %v2223
  %2364 = vmatpush.msra.mxu0 %v2219
  %2365 = vmatmul.f32.gmra.mxu0 %v2145
  %v2366 = vpop.f32.mrf.mxu0
  %v2367 = vadd.f32 0.0, %v2366
  %2368 = vmatmul.f32.gmra.mxu0 %v2146
  %v2369 = vpop.f32.mrf.mxu0
  %v2370 = vadd.f32 0.0, %v2369
  %2371 = vdwg.mxu0
  %2372 = vmatpush.msra.mxu0 %v2211
  %2373 = vmatpush.msra.mxu0 %v2207
  %2374 = vmatpush.msra.mxu0 %v2203
  %2375 = vmatpush.msra.mxu0 %v2199
  %2376 = vmatpush.msra.mxu0 %v2195
  %2377 = vmatpush.msra.mxu0 %v2191
  %2378 = vmatpush.msra.mxu0 %v2187
  %2379 = vmatpush.msra.mxu0 %v2183
  %2380 = vmatpush.msra.mxu0 %v2179
  %2381 = vmatpush.msra.mxu0 %v2175
  %2382 = vmatpush.msra.mxu0 %v2171
  %2383 = vmatpush.msra.mxu0 %v2167
  %2384 = vmatpush.msra.mxu0 %v2163
  %2385 = vmatpush.msra.mxu0 %v2159
  %2386 = vmatpush.msra.mxu0 %v2155
  %2387 = vmatpush.msra.mxu0 %v2151
  %2388 = vmatmul.f32.gmra.mxu0 %v2143
  %v2389 = vpop.f32.mrf.mxu0
  %v2390 = vadd.f32 %v2298, %v2389
  %2391 = vmatmul.f32.gmra.mxu0 %v2144
  %v2392 = vpop.f32.mrf.mxu0
  %v2393 = vadd.f32 %v2301, %v2392
  %2394 = vdwg.mxu0
  %2395 = vmatpush.msra.mxu0 %v2212
  %2396 = vmatpush.msra.mxu0 %v2208
  %2397 = vmatpush.msra.mxu0 %v2204
  %2398 = vmatpush.msra.mxu0 %v2200
  %2399 = vmatpush.msra.mxu0 %v2196
  %2400 = vmatpush.msra.mxu0 %v2192
  %2401 = vmatpush.msra.mxu0 %v2188
  %2402 = vmatpush.msra.mxu0 %v2184
  %2403 = vmatpush.msra.mxu0 %v2180
  %2404 = vmatpush.msra.mxu0 %v2176
  %2405 = vmatpush.msra.mxu0 %v2172
  %2406 = vmatpush.msra.mxu0 %v2168
  %2407 = vmatpush.msra.mxu0 %v2164
  %2408 = vmatpush.msra.mxu0 %v2160
  %2409 = vmatpush.msra.mxu0 %v2156
  %2410 = vmatpush.msra.mxu0 %v2152
  %2411 = vmatmul.f32.gmra.mxu0 %v2143
  %v2412 = vpop.f32.mrf.mxu0
  %v2413 = vadd.f32 %v2321, %v2412
  %2414 = vmatmul.f32.gmra.mxu0 %v2144
  %v2415 = vpop.f32.mrf.mxu0
  %v2416 = vadd.f32 %v2324, %v2415
  %2417 = vdwg.mxu0
  %2418 = vmatpush.msra.mxu0 %v2213
  %2419 = vmatpush.msra.mxu0 %v2209
  %2420 = vmatpush.msra.mxu0 %v2205
  %2421 = vmatpush.msra.mxu0 %v2201
  %2422 = vmatpush.msra.mxu0 %v2197
  %2423 = vmatpush.msra.mxu0 %v2193
  %2424 = vmatpush.msra.mxu0 %v2189
  %2425 = vmatpush.msra.mxu0 %v2185
  %2426 = vmatpush.msra.mxu0 %v2181
  %2427 = vmatpush.msra.mxu0 %v2177
  %2428 = vmatpush.msra.mxu0 %v2173
  %2429 = vmatpush.msra.mxu0 %v2169
  %2430 = vmatpush.msra.mxu0 %v2165
  %2431 = vmatpush.msra.mxu0 %v2161
  %2432 = vmatpush.msra.mxu0 %v2157
  %2433 = vmatpush.msra.mxu0 %v2153
  %2434 = vmatmul.f32.gmra.mxu0 %v2143
  %v2435 = vpop.f32.mrf.mxu0
  %v2436 = vadd.f32 %v2344, %v2435
  %2437 = vmatmul.f32.gmra.mxu0 %v2144
  %v2438 = vpop.f32.mrf.mxu0
  %v2439 = vadd.f32 %v2347, %v2438
  %2440 = vdwg.mxu0
  %2441 = vmatpush.msra.mxu0 %v2214
  %2442 = vmatpush.msra.mxu0 %v2210
  %2443 = vmatpush.msra.mxu0 %v2206
  %2444 = vmatpush.msra.mxu0 %v2202
  %2445 = vmatpush.msra.mxu0 %v2198
  %2446 = vmatpush.msra.mxu0 %v2194
  %2447 = vmatpush.msra.mxu0 %v2190
  %2448 = vmatpush.msra.mxu0 %v2186
  %2449 = vmatpush.msra.mxu0 %v2182
  %2450 = vmatpush.msra.mxu0 %v2178
  %2451 = vmatpush.msra.mxu0 %v2174
  %2452 = vmatpush.msra.mxu0 %v2170
  %2453 = vmatpush.msra.mxu0 %v2166
  %2454 = vmatpush.msra.mxu0 %v2162
  %2455 = vmatpush.msra.mxu0 %v2158
  %2456 = vmatpush.msra.mxu0 %v2154
  %2457 = vmatmul.f32.gmra.mxu0 %v2143
  %v2458 = vpop.f32.mrf.mxu0
  %v2459 = vadd.f32 %v2367, %v2458
  %2460 = vmatmul.f32.gmra.mxu0 %v2144
  %v2461 = vpop.f32.mrf.mxu0
  %v2462 = vadd.f32 %v2370, %v2461
  %2463 = vdwg.mxu0
  %s2464 = scalar_lea.vmem %s7, 1024
  %v2465 = vld [vmem:[%s2464] sm:$0xff]
  %v2466 = vld [vmem:[%s2464 + $0x8] sm:$0xff]
  %v2467 = vld [vmem:[%s2464 + $0x10] sm:$0xff]
  %v2468 = vld [vmem:[%s2464 + $0x18] sm:$0xff]
  %v2469 = vld [vmem:[%s2464 + $0x20] sm:$0xff]
  %v2470 = vld [vmem:[%s2464 + $0x28] sm:$0xff]
  %v2471 = vld [vmem:[%s2464 + $0x30] sm:$0xff]
  %v2472 = vld [vmem:[%s2464 + $0x38] sm:$0xff]
  %v2473 = vld [vmem:[%s2464 + $0x40] sm:$0xff]
  %v2474 = vld [vmem:[%s2464 + $0x48] sm:$0xff]
  %v2475 = vld [vmem:[%s2464 + $0x50] sm:$0xff]
  %v2476 = vld [vmem:[%s2464 + $0x58] sm:$0xff]
  %v2477 = vld [vmem:[%s2464 + $0x60] sm:$0xff]
  %v2478 = vld [vmem:[%s2464 + $0x68] sm:$0xff]
  %v2479 = vld [vmem:[%s2464 + $0x70] sm:$0xff]
  %v2480 = vld [vmem:[%s2464 + $0x78] sm:$0xff]
  %v2481 = vld [vmem:[%s2464 + $0x80] sm:$0xff]
  %v2482 = vld [vmem:[%s2464 + $0x88] sm:$0xff]
  %v2483 = vld [vmem:[%s2464 + $0x90] sm:$0xff]
  %v2484 = vld [vmem:[%s2464 + $0x98] sm:$0xff]
  %v2485 = vld [vmem:[%s2464 + $0xa0] sm:$0xff]
  %v2486 = vld [vmem:[%s2464 + $0xa8] sm:$0xff]
  %v2487 = vld [vmem:[%s2464 + $0xb0] sm:$0xff]
  %v2488 = vld [vmem:[%s2464 + $0xb8] sm:$0xff]
  %v2489 = vld [vmem:[%s2464 + $0xc0] sm:$0xff]
  %v2490 = vld [vmem:[%s2464 + $0xc8] sm:$0xff]
  %v2491 = vld [vmem:[%s2464 + $0xd0] sm:$0xff]
  %v2492 = vld [vmem:[%s2464 + $0xd8] sm:$0xff]
  %v2493 = vld [vmem:[%s2464 + $0xe0] sm:$0xff]
  %v2494 = vld [vmem:[%s2464 + $0xe8] sm:$0xff]
  %v2495 = vld [vmem:[%s2464 + $0xf0] sm:$0xff]
  %v2496 = vld [vmem:[%s2464 + $0xf8] sm:$0xff]
  %v2497 = vld [vmem:[%s2464 + $0x100] sm:$0xff]
  %v2498 = vld [vmem:[%s2464 + $0x108] sm:$0xff]
  %v2499 = vld [vmem:[%s2464 + $0x110] sm:$0xff]
  %v2500 = vld [vmem:[%s2464 + $0x118] sm:$0xff]
  %v2501 = vld [vmem:[%s2464 + $0x120] sm:$0xff]
  %v2502 = vld [vmem:[%s2464 + $0x128] sm:$0xff]
  %v2503 = vld [vmem:[%s2464 + $0x130] sm:$0xff]
  %v2504 = vld [vmem:[%s2464 + $0x138] sm:$0xff]
  %v2505 = vld [vmem:[%s2464 + $0x140] sm:$0xff]
  %v2506 = vld [vmem:[%s2464 + $0x148] sm:$0xff]
  %v2507 = vld [vmem:[%s2464 + $0x150] sm:$0xff]
  %v2508 = vld [vmem:[%s2464 + $0x158] sm:$0xff]
  %v2509 = vld [vmem:[%s2464 + $0x160] sm:$0xff]
  %v2510 = vld [vmem:[%s2464 + $0x168] sm:$0xff]
  %v2511 = vld [vmem:[%s2464 + $0x170] sm:$0xff]
  %v2512 = vld [vmem:[%s2464 + $0x178] sm:$0xff]
  %v2513 = vld [vmem:[%s2464 + $0x180] sm:$0xff]
  %v2514 = vld [vmem:[%s2464 + $0x188] sm:$0xff]
  %v2515 = vld [vmem:[%s2464 + $0x190] sm:$0xff]
  %v2516 = vld [vmem:[%s2464 + $0x198] sm:$0xff]
  %v2517 = vld [vmem:[%s2464 + $0x1a0] sm:$0xff]
  %v2518 = vld [vmem:[%s2464 + $0x1a8] sm:$0xff]
  %v2519 = vld [vmem:[%s2464 + $0x1b0] sm:$0xff]
  %v2520 = vld [vmem:[%s2464 + $0x1b8] sm:$0xff]
  %v2521 = vld [vmem:[%s2464 + $0x1c0] sm:$0xff]
  %v2522 = vld [vmem:[%s2464 + $0x1c8] sm:$0xff]
  %v2523 = vld [vmem:[%s2464 + $0x1d0] sm:$0xff]
  %v2524 = vld [vmem:[%s2464 + $0x1d8] sm:$0xff]
  %v2525 = vld [vmem:[%s2464 + $0x1e0] sm:$0xff]
  %v2526 = vld [vmem:[%s2464 + $0x1e8] sm:$0xff]
  %v2527 = vld [vmem:[%s2464 + $0x1f0] sm:$0xff]
  %v2528 = vld [vmem:[%s2464 + $0x1f8] sm:$0xff]
  %2529 = vmatpush.msra.mxu0 %v2525
  %2530 = vmatpush.msra.mxu0 %v2521
  %2531 = vmatpush.msra.mxu0 %v2517
  %2532 = vmatpush.msra.mxu0 %v2513
  %2533 = vmatpush.msra.mxu0 %v2509
  %2534 = vmatpush.msra.mxu0 %v2505
  %2535 = vmatpush.msra.mxu0 %v2501
  %2536 = vmatpush.msra.mxu0 %v2497
  %2537 = vmatpush.msra.mxu0 %v2493
  %2538 = vmatpush.msra.mxu0 %v2489
  %2539 = vmatpush.msra.mxu0 %v2485
  %2540 = vmatpush.msra.mxu0 %v2481
  %2541 = vmatpush.msra.mxu0 %v2477
  %2542 = vmatpush.msra.mxu0 %v2473
  %2543 = vmatpush.msra.mxu0 %v2469
  %2544 = vmatpush.msra.mxu0 %v2465
  %2545 = vmatmul.f32.gmra.mxu0 %v2147
  %v2546 = vpop.f32.mrf.mxu0
  %v2547 = vadd.f32 0.0, %v2546
  %2548 = vmatmul.f32.gmra.mxu0 %v2148
  %v2549 = vpop.f32.mrf.mxu0
  %v2550 = vadd.f32 0.0, %v2549
  %2551 = vdwg.mxu0
  %2552 = vmatpush.msra.mxu0 %v2526
  %2553 = vmatpush.msra.mxu0 %v2522
  %2554 = vmatpush.msra.mxu0 %v2518
  %2555 = vmatpush.msra.mxu0 %v2514
  %2556 = vmatpush.msra.mxu0 %v2510
  %2557 = vmatpush.msra.mxu0 %v2506
  %2558 = vmatpush.msra.mxu0 %v2502
  %2559 = vmatpush.msra.mxu0 %v2498
  %2560 = vmatpush.msra.mxu0 %v2494
  %2561 = vmatpush.msra.mxu0 %v2490
  %2562 = vmatpush.msra.mxu0 %v2486
  %2563 = vmatpush.msra.mxu0 %v2482
  %2564 = vmatpush.msra.mxu0 %v2478
  %2565 = vmatpush.msra.mxu0 %v2474
  %2566 = vmatpush.msra.mxu0 %v2470
  %2567 = vmatpush.msra.mxu0 %v2466
  %2568 = vmatmul.f32.gmra.mxu0 %v2147
  %v2569 = vpop.f32.mrf.mxu0
  %v2570 = vadd.f32 0.0, %v2569
  %2571 = vmatmul.f32.gmra.mxu0 %v2148
  %v2572 = vpop.f32.mrf.mxu0
  %v2573 = vadd.f32 0.0, %v2572
  %2574 = vdwg.mxu0
  %2575 = vmatpush.msra.mxu0 %v2527
  %2576 = vmatpush.msra.mxu0 %v2523
  %2577 = vmatpush.msra.mxu0 %v2519
  %2578 = vmatpush.msra.mxu0 %v2515
  %2579 = vmatpush.msra.mxu0 %v2511
  %2580 = vmatpush.msra.mxu0 %v2507
  %2581 = vmatpush.msra.mxu0 %v2503
  %2582 = vmatpush.msra.mxu0 %v2499
  %2583 = vmatpush.msra.mxu0 %v2495
  %2584 = vmatpush.msra.mxu0 %v2491
  %2585 = vmatpush.msra.mxu0 %v2487
  %2586 = vmatpush.msra.mxu0 %v2483
  %2587 = vmatpush.msra.mxu0 %v2479
  %2588 = vmatpush.msra.mxu0 %v2475
  %2589 = vmatpush.msra.mxu0 %v2471
  %2590 = vmatpush.msra.mxu0 %v2467
  %2591 = vmatmul.f32.gmra.mxu0 %v2147
  %v2592 = vpop.f32.mrf.mxu0
  %v2593 = vadd.f32 0.0, %v2592
  %2594 = vmatmul.f32.gmra.mxu0 %v2148
  %v2595 = vpop.f32.mrf.mxu0
  %v2596 = vadd.f32 0.0, %v2595
  %2597 = vdwg.mxu0
  %2598 = vmatpush.msra.mxu0 %v2528
  %2599 = vmatpush.msra.mxu0 %v2524
  %2600 = vmatpush.msra.mxu0 %v2520
  %2601 = vmatpush.msra.mxu0 %v2516
  %2602 = vmatpush.msra.mxu0 %v2512
  %2603 = vmatpush.msra.mxu0 %v2508
  %2604 = vmatpush.msra.mxu0 %v2504
  %2605 = vmatpush.msra.mxu0 %v2500
  %2606 = vmatpush.msra.mxu0 %v2496
  %2607 = vmatpush.msra.mxu0 %v2492
  %2608 = vmatpush.msra.mxu0 %v2488
  %2609 = vmatpush.msra.mxu0 %v2484
  %2610 = vmatpush.msra.mxu0 %v2480
  %2611 = vmatpush.msra.mxu0 %v2476
  %2612 = vmatpush.msra.mxu0 %v2472
  %2613 = vmatpush.msra.mxu0 %v2468
  %2614 = vmatmul.f32.gmra.mxu0 %v2147
  %v2615 = vpop.f32.mrf.mxu0
  %v2616 = vadd.f32 0.0, %v2615
  %2617 = vmatmul.f32.gmra.mxu0 %v2148
  %v2618 = vpop.f32.mrf.mxu0
  %v2619 = vadd.f32 0.0, %v2618
  %2620 = vdwg.mxu0
  %v2621 = vadd.f32 %v2390, %v2547
  %v2622 = vadd.f32 %v2413, %v2570
  %v2623 = vadd.f32 %v2436, %v2593
  %v2624 = vadd.f32 %v2459, %v2616
  %v2625 = vadd.f32 %v2393, %v2550
  %v2626 = vadd.f32 %v2416, %v2573
  %v2627 = vadd.f32 %v2439, %v2596
  %v2628 = vadd.f32 %v2462, %v2619
  %s2629 = scalar_lea.vmem %s7, 1536
  %v2630 = vld [vmem:[%s2629] sm:$0xff]
  %v2631 = vld [vmem:[%s2629 + $0x8] sm:$0xff]
  %v2632 = vld [vmem:[%s2629 + $0x10] sm:$0xff]
  %v2633 = vld [vmem:[%s2629 + $0x18] sm:$0xff]
  %v2634 = vld [vmem:[%s2629 + $0x20] sm:$0xff]
  %v2635 = vld [vmem:[%s2629 + $0x28] sm:$0xff]
  %v2636 = vld [vmem:[%s2629 + $0x30] sm:$0xff]
  %v2637 = vld [vmem:[%s2629 + $0x38] sm:$0xff]
  %v2638 = vld [vmem:[%s2629 + $0x40] sm:$0xff]
  %v2639 = vld [vmem:[%s2629 + $0x48] sm:$0xff]
  %v2640 = vld [vmem:[%s2629 + $0x50] sm:$0xff]
  %v2641 = vld [vmem:[%s2629 + $0x58] sm:$0xff]
  %v2642 = vld [vmem:[%s2629 + $0x60] sm:$0xff]
  %v2643 = vld [vmem:[%s2629 + $0x68] sm:$0xff]
  %v2644 = vld [vmem:[%s2629 + $0x70] sm:$0xff]
  %v2645 = vld [vmem:[%s2629 + $0x78] sm:$0xff]
  %v2646 = vld [vmem:[%s2629 + $0x80] sm:$0xff]
  %v2647 = vld [vmem:[%s2629 + $0x88] sm:$0xff]
  %v2648 = vld [vmem:[%s2629 + $0x90] sm:$0xff]
  %v2649 = vld [vmem:[%s2629 + $0x98] sm:$0xff]
  %v2650 = vld [vmem:[%s2629 + $0xa0] sm:$0xff]
  %v2651 = vld [vmem:[%s2629 + $0xa8] sm:$0xff]
  %v2652 = vld [vmem:[%s2629 + $0xb0] sm:$0xff]
  %v2653 = vld [vmem:[%s2629 + $0xb8] sm:$0xff]
  %v2654 = vld [vmem:[%s2629 + $0xc0] sm:$0xff]
  %v2655 = vld [vmem:[%s2629 + $0xc8] sm:$0xff]
  %v2656 = vld [vmem:[%s2629 + $0xd0] sm:$0xff]
  %v2657 = vld [vmem:[%s2629 + $0xd8] sm:$0xff]
  %v2658 = vld [vmem:[%s2629 + $0xe0] sm:$0xff]
  %v2659 = vld [vmem:[%s2629 + $0xe8] sm:$0xff]
  %v2660 = vld [vmem:[%s2629 + $0xf0] sm:$0xff]
  %v2661 = vld [vmem:[%s2629 + $0xf8] sm:$0xff]
  %v2662 = vld [vmem:[%s2629 + $0x100] sm:$0xff]
  %v2663 = vld [vmem:[%s2629 + $0x108] sm:$0xff]
  %v2664 = vld [vmem:[%s2629 + $0x110] sm:$0xff]
  %v2665 = vld [vmem:[%s2629 + $0x118] sm:$0xff]
  %v2666 = vld [vmem:[%s2629 + $0x120] sm:$0xff]
  %v2667 = vld [vmem:[%s2629 + $0x128] sm:$0xff]
  %v2668 = vld [vmem:[%s2629 + $0x130] sm:$0xff]
  %v2669 = vld [vmem:[%s2629 + $0x138] sm:$0xff]
  %v2670 = vld [vmem:[%s2629 + $0x140] sm:$0xff]
  %v2671 = vld [vmem:[%s2629 + $0x148] sm:$0xff]
  %v2672 = vld [vmem:[%s2629 + $0x150] sm:$0xff]
  %v2673 = vld [vmem:[%s2629 + $0x158] sm:$0xff]
  %v2674 = vld [vmem:[%s2629 + $0x160] sm:$0xff]
  %v2675 = vld [vmem:[%s2629 + $0x168] sm:$0xff]
  %v2676 = vld [vmem:[%s2629 + $0x170] sm:$0xff]
  %v2677 = vld [vmem:[%s2629 + $0x178] sm:$0xff]
  %v2678 = vld [vmem:[%s2629 + $0x180] sm:$0xff]
  %v2679 = vld [vmem:[%s2629 + $0x188] sm:$0xff]
  %v2680 = vld [vmem:[%s2629 + $0x190] sm:$0xff]
  %v2681 = vld [vmem:[%s2629 + $0x198] sm:$0xff]
  %v2682 = vld [vmem:[%s2629 + $0x1a0] sm:$0xff]
  %v2683 = vld [vmem:[%s2629 + $0x1a8] sm:$0xff]
  %v2684 = vld [vmem:[%s2629 + $0x1b0] sm:$0xff]
  %v2685 = vld [vmem:[%s2629 + $0x1b8] sm:$0xff]
  %v2686 = vld [vmem:[%s2629 + $0x1c0] sm:$0xff]
  %v2687 = vld [vmem:[%s2629 + $0x1c8] sm:$0xff]
  %v2688 = vld [vmem:[%s2629 + $0x1d0] sm:$0xff]
  %v2689 = vld [vmem:[%s2629 + $0x1d8] sm:$0xff]
  %v2690 = vld [vmem:[%s2629 + $0x1e0] sm:$0xff]
  %v2691 = vld [vmem:[%s2629 + $0x1e8] sm:$0xff]
  %v2692 = vld [vmem:[%s2629 + $0x1f0] sm:$0xff]
  %v2693 = vld [vmem:[%s2629 + $0x1f8] sm:$0xff]
  %2694 = vmatpush.msra.mxu0 %v2690
  %2695 = vmatpush.msra.mxu0 %v2686
  %2696 = vmatpush.msra.mxu0 %v2682
  %2697 = vmatpush.msra.mxu0 %v2678
  %2698 = vmatpush.msra.mxu0 %v2674
  %2699 = vmatpush.msra.mxu0 %v2670
  %2700 = vmatpush.msra.mxu0 %v2666
  %2701 = vmatpush.msra.mxu0 %v2662
  %2702 = vmatpush.msra.mxu0 %v2658
  %2703 = vmatpush.msra.mxu0 %v2654
  %2704 = vmatpush.msra.mxu0 %v2650
  %2705 = vmatpush.msra.mxu0 %v2646
  %2706 = vmatpush.msra.mxu0 %v2642
  %2707 = vmatpush.msra.mxu0 %v2638
  %2708 = vmatpush.msra.mxu0 %v2634
  %2709 = vmatpush.msra.mxu0 %v2630
  %2710 = vmatmul.f32.gmra.mxu0 %v2149
  %v2711 = vpop.f32.mrf.mxu0
  %v2712 = vadd.f32 0.0, %v2711
  %2713 = vmatmul.f32.gmra.mxu0 %v2150
  %v2714 = vpop.f32.mrf.mxu0
  %v2715 = vadd.f32 0.0, %v2714
  %2716 = vdwg.mxu0
  %2717 = vmatpush.msra.mxu0 %v2691
  %2718 = vmatpush.msra.mxu0 %v2687
  %2719 = vmatpush.msra.mxu0 %v2683
  %2720 = vmatpush.msra.mxu0 %v2679
  %2721 = vmatpush.msra.mxu0 %v2675
  %2722 = vmatpush.msra.mxu0 %v2671
  %2723 = vmatpush.msra.mxu0 %v2667
  %2724 = vmatpush.msra.mxu0 %v2663
  %2725 = vmatpush.msra.mxu0 %v2659
  %2726 = vmatpush.msra.mxu0 %v2655
  %2727 = vmatpush.msra.mxu0 %v2651
  %2728 = vmatpush.msra.mxu0 %v2647
  %2729 = vmatpush.msra.mxu0 %v2643
  %2730 = vmatpush.msra.mxu0 %v2639
  %2731 = vmatpush.msra.mxu0 %v2635
  %2732 = vmatpush.msra.mxu0 %v2631
  %2733 = vmatmul.f32.gmra.mxu0 %v2149
  %v2734 = vpop.f32.mrf.mxu0
  %v2735 = vadd.f32 0.0, %v2734
  %2736 = vmatmul.f32.gmra.mxu0 %v2150
  %v2737 = vpop.f32.mrf.mxu0
  %v2738 = vadd.f32 0.0, %v2737
  %2739 = vdwg.mxu0
  %2740 = vmatpush.msra.mxu0 %v2692
  %2741 = vmatpush.msra.mxu0 %v2688
  %2742 = vmatpush.msra.mxu0 %v2684
  %2743 = vmatpush.msra.mxu0 %v2680
  %2744 = vmatpush.msra.mxu0 %v2676
  %2745 = vmatpush.msra.mxu0 %v2672
  %2746 = vmatpush.msra.mxu0 %v2668
  %2747 = vmatpush.msra.mxu0 %v2664
  %2748 = vmatpush.msra.mxu0 %v2660
  %2749 = vmatpush.msra.mxu0 %v2656
  %2750 = vmatpush.msra.mxu0 %v2652
  %2751 = vmatpush.msra.mxu0 %v2648
  %2752 = vmatpush.msra.mxu0 %v2644
  %2753 = vmatpush.msra.mxu0 %v2640
  %2754 = vmatpush.msra.mxu0 %v2636
  %2755 = vmatpush.msra.mxu0 %v2632
  %2756 = vmatmul.f32.gmra.mxu0 %v2149
  %v2757 = vpop.f32.mrf.mxu0
  %v2758 = vadd.f32 0.0, %v2757
  %2759 = vmatmul.f32.gmra.mxu0 %v2150
  %v2760 = vpop.f32.mrf.mxu0
  %v2761 = vadd.f32 0.0, %v2760
  %2762 = vdwg.mxu0
  %2763 = vmatpush.msra.mxu0 %v2693
  %2764 = vmatpush.msra.mxu0 %v2689
  %2765 = vmatpush.msra.mxu0 %v2685
  %2766 = vmatpush.msra.mxu0 %v2681
  %2767 = vmatpush.msra.mxu0 %v2677
  %2768 = vmatpush.msra.mxu0 %v2673
  %2769 = vmatpush.msra.mxu0 %v2669
  %2770 = vmatpush.msra.mxu0 %v2665
  %2771 = vmatpush.msra.mxu0 %v2661
  %2772 = vmatpush.msra.mxu0 %v2657
  %2773 = vmatpush.msra.mxu0 %v2653
  %2774 = vmatpush.msra.mxu0 %v2649
  %2775 = vmatpush.msra.mxu0 %v2645
  %2776 = vmatpush.msra.mxu0 %v2641
  %2777 = vmatpush.msra.mxu0 %v2637
  %2778 = vmatpush.msra.mxu0 %v2633
  %2779 = vmatmul.f32.gmra.mxu0 %v2149
  %v2780 = vpop.f32.mrf.mxu0
  %v2781 = vadd.f32 0.0, %v2780
  %2782 = vmatmul.f32.gmra.mxu0 %v2150
  %v2783 = vpop.f32.mrf.mxu0
  %v2784 = vadd.f32 0.0, %v2783
  %2785 = vdwg.mxu0
  %v2786 = vadd.f32 %v2621, %v2712
  %v2787 = vadd.f32 %v2622, %v2735
  %v2788 = vadd.f32 %v2623, %v2758
  %v2789 = vadd.f32 %v2624, %v2781
  %v2790 = vadd.f32 %v2625, %v2715
  %v2791 = vadd.f32 %v2626, %v2738
  %v2792 = vadd.f32 %v2627, %v2761
  %v2793 = vadd.f32 %v2628, %v2784
  %v2794 = vld [vmem:[%s8] sm:$0xff]
  %v2795 = vld [vmem:[%s8 + $0x8] sm:$0x33]
  %v2796 = vld [vmem:[%s9] sm:$0xff]
  %v2797 = vld [vmem:[%s9 + $0x8] sm:$0xf]
  %2798 = vrot.lane.b32.xlu0 %v2786, 17
  %v2799 = vpop.permute.xlu0 %2798
  %2800 = vrot.lane.b32.xlu0 %v2790, 17
  %v2801 = vpop.permute.xlu0 %2800
  %2802 = vrot.lane.b32.xlu0 %v2787, 17
  %v2803 = vpop.permute.xlu0 %2802
  %2804 = vrot.lane.b32.xlu0 %v2791, 17
  %v2805 = vpop.permute.xlu0 %2804
  %2806 = vrot.lane.b32.xlu0 %v2788, 17
  %v2807 = vpop.permute.xlu0 %2806
  %2808 = vrot.lane.b32.xlu0 %v2792, 17
  %v2809 = vpop.permute.xlu0 %2808
  %2810 = vrot.lane.b32.xlu0 %v2789, 17
  %v2811 = vpop.permute.xlu0 %2810
  %2812 = vrot.lane.b32.xlu0 %v2793, 17
  %v2813 = vpop.permute.xlu0 %2812
  %v2814 = vlaneseq
  %v2815 = vand.u32 %v2814, 127
  %vm2816 = vcmp.lt.s32.totalorder %v2815, 17
  %v2817 = vsel %vm2816, %v2807, %v2811
  %v2818 = vsel %vm2816, %v2809, %v2813
  %v2819 = vsel %vm2816, %v2803, %v2807
  %v2820 = vsel %vm2816, %v2805, %v2809
  %v2821 = vsel %vm2816, %v2799, %v2803
  %v2822 = vsel %vm2816, %v2801, %v2805
  %v2823 = vsel %vm2816, %v2811, %v2799
  %v2824 = vsel %vm2816, %v2813, %v2801
  %v2825 = vld [vmem:[%s11] sm:$0xff]
  %v2826 = vld [vmem:[%s11 + $0x8] sm:$0xff]
  %v2827 = vld [vmem:[%s11 + $0x10] sm:$0xff]
  %v2828 = vld [vmem:[%s11 + $0x18] sm:$0xff]
  %v2829 = vld [vmem:[%s11 + $0x20] sm:$0xff]
  %v2830 = vld [vmem:[%s11 + $0x28] sm:$0xff]
  %v2831 = vld [vmem:[%s11 + $0x30] sm:$0xff]
  %v2832 = vld [vmem:[%s11 + $0x38] sm:$0xff]
  %v2833 = vmul.f32 %v2823, %v2825
  %v2834 = vmul.f32 %v2821, %v2826
  %v2835 = vmul.f32 %v2819, %v2827
  %v2836 = vmul.f32 %v2817, %v2828
  %v2837 = vmul.f32 %v2824, %v2829
  %v2838 = vmul.f32 %v2822, %v2830
  %v2839 = vmul.f32 %v2820, %v2831
  %v2840 = vmul.f32 %v2818, %v2832
  %2841 = vrot.lane.b32.xlu0 %v2786, 16
  %v2842 = vpop.permute.xlu0 %2841
  %2843 = vrot.lane.b32.xlu0 %v2790, 16
  %v2844 = vpop.permute.xlu0 %2843
  %2845 = vrot.lane.b32.xlu0 %v2787, 16
  %v2846 = vpop.permute.xlu0 %2845
  %2847 = vrot.lane.b32.xlu0 %v2791, 16
  %v2848 = vpop.permute.xlu0 %2847
  %2849 = vrot.lane.b32.xlu0 %v2788, 16
  %v2850 = vpop.permute.xlu0 %2849
  %2851 = vrot.lane.b32.xlu0 %v2792, 16
  %v2852 = vpop.permute.xlu0 %2851
  %2853 = vrot.lane.b32.xlu0 %v2789, 16
  %v2854 = vpop.permute.xlu0 %2853
  %2855 = vrot.lane.b32.xlu0 %v2793, 16
  %v2856 = vpop.permute.xlu0 %2855
  %vm2857 = vcmp.lt.s32.totalorder %v2815, 16
  %v2858 = vsel %vm2857, %v2850, %v2854
  %v2859 = vsel %vm2857, %v2852, %v2856
  %v2860 = vsel %vm2857, %v2846, %v2850
  %v2861 = vsel %vm2857, %v2848, %v2852
  %v2862 = vsel %vm2857, %v2842, %v2846
  %v2863 = vsel %vm2857, %v2844, %v2848
  %v2864 = vsel %vm2857, %v2854, %v2842
  %v2865 = vsel %vm2857, %v2856, %v2844
  %s2866 = scalar_lea.vmem %s11, 64
  %v2867 = vld [vmem:[%s2866] sm:$0xff]
  %v2868 = vld [vmem:[%s2866 + $0x8] sm:$0xff]
  %v2869 = vld [vmem:[%s2866 + $0x10] sm:$0xff]
  %v2870 = vld [vmem:[%s2866 + $0x18] sm:$0xff]
  %v2871 = vld [vmem:[%s2866 + $0x20] sm:$0xff]
  %v2872 = vld [vmem:[%s2866 + $0x28] sm:$0xff]
  %v2873 = vld [vmem:[%s2866 + $0x30] sm:$0xff]
  %v2874 = vld [vmem:[%s2866 + $0x38] sm:$0xff]
  %v2875 = vmul.f32 %v2864, %v2867
  %v2876 = vmul.f32 %v2862, %v2868
  %v2877 = vmul.f32 %v2860, %v2869
  %v2878 = vmul.f32 %v2858, %v2870
  %v2879 = vmul.f32 %v2865, %v2871
  %v2880 = vmul.f32 %v2863, %v2872
  %v2881 = vmul.f32 %v2861, %v2873
  %v2882 = vmul.f32 %v2859, %v2874
  %2883 = vrot.lane.b32.xlu0 %v2786, 15
  %v2884 = vpop.permute.xlu0 %2883
  %2885 = vrot.lane.b32.xlu0 %v2790, 15
  %v2886 = vpop.permute.xlu0 %2885
  %2887 = vrot.lane.b32.xlu0 %v2787, 15
  %v2888 = vpop.permute.xlu0 %2887
  %2889 = vrot.lane.b32.xlu0 %v2791, 15
  %v2890 = vpop.permute.xlu0 %2889
  %2891 = vrot.lane.b32.xlu0 %v2788, 15
  %v2892 = vpop.permute.xlu0 %2891
  %2893 = vrot.lane.b32.xlu0 %v2792, 15
  %v2894 = vpop.permute.xlu0 %2893
  %2895 = vrot.lane.b32.xlu0 %v2789, 15
  %v2896 = vpop.permute.xlu0 %2895
  %2897 = vrot.lane.b32.xlu0 %v2793, 15
  %v2898 = vpop.permute.xlu0 %2897
  %vm2899 = vcmp.lt.s32.totalorder %v2815, 15
  %v2900 = vsel %vm2899, %v2892, %v2896
  %v2901 = vsel %vm2899, %v2894, %v2898
  %v2902 = vsel %vm2899, %v2888, %v2892
  %v2903 = vsel %vm2899, %v2890, %v2894
  %v2904 = vsel %vm2899, %v2884, %v2888
  %v2905 = vsel %vm2899, %v2886, %v2890
  %v2906 = vsel %vm2899, %v2896, %v2884
  %v2907 = vsel %vm2899, %v2898, %v2886
  %s2908 = scalar_lea.vmem %s11, 128
  %v2909 = vld [vmem:[%s2908] sm:$0xff]
  %v2910 = vld [vmem:[%s2908 + $0x8] sm:$0xff]
  %v2911 = vld [vmem:[%s2908 + $0x10] sm:$0xff]
  %v2912 = vld [vmem:[%s2908 + $0x18] sm:$0xff]
  %v2913 = vld [vmem:[%s2908 + $0x20] sm:$0xff]
  %v2914 = vld [vmem:[%s2908 + $0x28] sm:$0xff]
  %v2915 = vld [vmem:[%s2908 + $0x30] sm:$0xff]
  %v2916 = vld [vmem:[%s2908 + $0x38] sm:$0xff]
  %v2917 = vmul.f32 %v2906, %v2909
  %v2918 = vmul.f32 %v2904, %v2910
  %v2919 = vmul.f32 %v2902, %v2911
  %v2920 = vmul.f32 %v2900, %v2912
  %v2921 = vmul.f32 %v2907, %v2913
  %v2922 = vmul.f32 %v2905, %v2914
  %v2923 = vmul.f32 %v2903, %v2915
  %v2924 = vmul.f32 %v2901, %v2916
  %2925 = vrot.lane.b32.xlu0 %v2786, 1
  %v2926 = vpop.permute.xlu0 %2925
  %2927 = vrot.lane.b32.xlu0 %v2790, 1
  %v2928 = vpop.permute.xlu0 %2927
  %2929 = vrot.lane.b32.xlu0 %v2787, 1
  %v2930 = vpop.permute.xlu0 %2929
  %2931 = vrot.lane.b32.xlu0 %v2791, 1
  %v2932 = vpop.permute.xlu0 %2931
  %2933 = vrot.lane.b32.xlu0 %v2788, 1
  %v2934 = vpop.permute.xlu0 %2933
  %2935 = vrot.lane.b32.xlu0 %v2792, 1
  %v2936 = vpop.permute.xlu0 %2935
  %2937 = vrot.lane.b32.xlu0 %v2789, 1
  %v2938 = vpop.permute.xlu0 %2937
  %2939 = vrot.lane.b32.xlu0 %v2793, 1
  %v2940 = vpop.permute.xlu0 %2939
  %vm2941 = vcmp.lt.s32.totalorder %v2815, 1
  %v2942 = vsel %vm2941, %v2934, %v2938
  %v2943 = vsel %vm2941, %v2936, %v2940
  %v2944 = vsel %vm2941, %v2930, %v2934
  %v2945 = vsel %vm2941, %v2932, %v2936
  %v2946 = vsel %vm2941, %v2926, %v2930
  %v2947 = vsel %vm2941, %v2928, %v2932
  %v2948 = vsel %vm2941, %v2938, %v2926
  %v2949 = vsel %vm2941, %v2940, %v2928
  %s2950 = scalar_lea.vmem %s11, 192
  %v2951 = vld [vmem:[%s2950] sm:$0xff]
  %v2952 = vld [vmem:[%s2950 + $0x8] sm:$0xff]
  %v2953 = vld [vmem:[%s2950 + $0x10] sm:$0xff]
  %v2954 = vld [vmem:[%s2950 + $0x18] sm:$0xff]
  %v2955 = vld [vmem:[%s2950 + $0x20] sm:$0xff]
  %v2956 = vld [vmem:[%s2950 + $0x28] sm:$0xff]
  %v2957 = vld [vmem:[%s2950 + $0x30] sm:$0xff]
  %v2958 = vld [vmem:[%s2950 + $0x38] sm:$0xff]
  %v2959 = vmul.f32 %v2948, %v2951
  %v2960 = vmul.f32 %v2946, %v2952
  %v2961 = vmul.f32 %v2944, %v2953
  %v2962 = vmul.f32 %v2942, %v2954
  %v2963 = vmul.f32 %v2949, %v2955
  %v2964 = vmul.f32 %v2947, %v2956
  %v2965 = vmul.f32 %v2945, %v2957
  %v2966 = vmul.f32 %v2943, %v2958
  %2967 = vrot.lane.b32.xlu0 %v2786, 127
  %v2968 = vpop.permute.xlu0 %2967
  %2969 = vrot.lane.b32.xlu0 %v2790, 127
  %v2970 = vpop.permute.xlu0 %2969
  %2971 = vrot.lane.b32.xlu0 %v2787, 127
  %v2972 = vpop.permute.xlu0 %2971
  %2973 = vrot.lane.b32.xlu0 %v2791, 127
  %v2974 = vpop.permute.xlu0 %2973
  %2975 = vrot.lane.b32.xlu0 %v2788, 127
  %v2976 = vpop.permute.xlu0 %2975
  %2977 = vrot.lane.b32.xlu0 %v2792, 127
  %v2978 = vpop.permute.xlu0 %2977
  %2979 = vrot.lane.b32.xlu0 %v2789, 127
  %v2980 = vpop.permute.xlu0 %2979
  %2981 = vrot.lane.b32.xlu0 %v2793, 127
  %v2982 = vpop.permute.xlu0 %2981
  %vm2983 = vcmp.lt.s32.totalorder %v2815, 127
  %v2984 = vsel %vm2983, %v2976, %v2980
  %v2985 = vsel %vm2983, %v2978, %v2982
  %v2986 = vsel %vm2983, %v2972, %v2976
  %v2987 = vsel %vm2983, %v2974, %v2978
  %v2988 = vsel %vm2983, %v2968, %v2972
  %v2989 = vsel %vm2983, %v2970, %v2974
  %v2990 = vsel %vm2983, %v2980, %v2968
  %v2991 = vsel %vm2983, %v2982, %v2970
  %s2992 = scalar_lea.vmem %s11, 320
  %v2993 = vld [vmem:[%s2992] sm:$0xff]
  %v2994 = vld [vmem:[%s2992 + $0x8] sm:$0xff]
  %v2995 = vld [vmem:[%s2992 + $0x10] sm:$0xff]
  %v2996 = vld [vmem:[%s2992 + $0x18] sm:$0xff]
  %v2997 = vld [vmem:[%s2992 + $0x20] sm:$0xff]
  %v2998 = vld [vmem:[%s2992 + $0x28] sm:$0xff]
  %v2999 = vld [vmem:[%s2992 + $0x30] sm:$0xff]
  %v3000 = vld [vmem:[%s2992 + $0x38] sm:$0xff]
  %v3001 = vmul.f32 %v2988, %v2993
  %v3002 = vmul.f32 %v2986, %v2994
  %v3003 = vmul.f32 %v2984, %v2995
  %v3004 = vmul.f32 %v2990, %v2996
  %v3005 = vmul.f32 %v2989, %v2997
  %v3006 = vmul.f32 %v2987, %v2998
  %v3007 = vmul.f32 %v2985, %v2999
  %v3008 = vmul.f32 %v2991, %v3000
  %3009 = vrot.lane.b32.xlu0 %v2786, 113
  %v3010 = vpop.permute.xlu0 %3009
  %3011 = vrot.lane.b32.xlu0 %v2790, 113
  %v3012 = vpop.permute.xlu0 %3011
  %3013 = vrot.lane.b32.xlu0 %v2787, 113
  %v3014 = vpop.permute.xlu0 %3013
  %3015 = vrot.lane.b32.xlu0 %v2791, 113
  %v3016 = vpop.permute.xlu0 %3015
  %3017 = vrot.lane.b32.xlu0 %v2788, 113
  %v3018 = vpop.permute.xlu0 %3017
  %3019 = vrot.lane.b32.xlu0 %v2792, 113
  %v3020 = vpop.permute.xlu0 %3019
  %3021 = vrot.lane.b32.xlu0 %v2789, 113
  %v3022 = vpop.permute.xlu0 %3021
  %3023 = vrot.lane.b32.xlu0 %v2793, 113
  %v3024 = vpop.permute.xlu0 %3023
  %vm3025 = vcmp.lt.s32.totalorder %v2815, 113
  %v3026 = vsel %vm3025, %v3018, %v3022
  %v3027 = vsel %vm3025, %v3020, %v3024
  %v3028 = vsel %vm3025, %v3014, %v3018
  %v3029 = vsel %vm3025, %v3016, %v3020
  %v3030 = vsel %vm3025, %v3010, %v3014
  %v3031 = vsel %vm3025, %v3012, %v3016
  %v3032 = vsel %vm3025, %v3022, %v3010
  %v3033 = vsel %vm3025, %v3024, %v3012
  %s3034 = scalar_lea.vmem %s11, 384
  %v3035 = vld [vmem:[%s3034] sm:$0xff]
  %v3036 = vld [vmem:[%s3034 + $0x8] sm:$0xff]
  %v3037 = vld [vmem:[%s3034 + $0x10] sm:$0xff]
  %v3038 = vld [vmem:[%s3034 + $0x18] sm:$0xff]
  %v3039 = vld [vmem:[%s3034 + $0x20] sm:$0xff]
  %v3040 = vld [vmem:[%s3034 + $0x28] sm:$0xff]
  %v3041 = vld [vmem:[%s3034 + $0x30] sm:$0xff]
  %v3042 = vld [vmem:[%s3034 + $0x38] sm:$0xff]
  %v3043 = vmul.f32 %v3030, %v3035
  %v3044 = vmul.f32 %v3028, %v3036
  %v3045 = vmul.f32 %v3026, %v3037
  %v3046 = vmul.f32 %v3032, %v3038
  %v3047 = vmul.f32 %v3031, %v3039
  %v3048 = vmul.f32 %v3029, %v3040
  %v3049 = vmul.f32 %v3027, %v3041
  %v3050 = vmul.f32 %v3033, %v3042
  %3051 = vrot.lane.b32.xlu0 %v2786, 112
  %v3052 = vpop.permute.xlu0 %3051
  %3053 = vrot.lane.b32.xlu0 %v2790, 112
  %v3054 = vpop.permute.xlu0 %3053
  %3055 = vrot.lane.b32.xlu0 %v2787, 112
  %v3056 = vpop.permute.xlu0 %3055
  %3057 = vrot.lane.b32.xlu0 %v2791, 112
  %v3058 = vpop.permute.xlu0 %3057
  %3059 = vrot.lane.b32.xlu0 %v2788, 112
  %v3060 = vpop.permute.xlu0 %3059
  %3061 = vrot.lane.b32.xlu0 %v2792, 112
  %v3062 = vpop.permute.xlu0 %3061
  %3063 = vrot.lane.b32.xlu0 %v2789, 112
  %v3064 = vpop.permute.xlu0 %3063
  %3065 = vrot.lane.b32.xlu0 %v2793, 112
  %v3066 = vpop.permute.xlu0 %3065
  %vm3067 = vcmp.lt.s32.totalorder %v2815, 112
  %v3068 = vsel %vm3067, %v3060, %v3064
  %v3069 = vsel %vm3067, %v3062, %v3066
  %v3070 = vsel %vm3067, %v3056, %v3060
  %v3071 = vsel %vm3067, %v3058, %v3062
  %v3072 = vsel %vm3067, %v3052, %v3056
  %v3073 = vsel %vm3067, %v3054, %v3058
  %v3074 = vsel %vm3067, %v3064, %v3052
  %v3075 = vsel %vm3067, %v3066, %v3054
  %s3076 = scalar_lea.vmem %s11, 448
  %v3077 = vld [vmem:[%s3076] sm:$0xff]
  %v3078 = vld [vmem:[%s3076 + $0x8] sm:$0xff]
  %v3079 = vld [vmem:[%s3076 + $0x10] sm:$0xff]
  %v3080 = vld [vmem:[%s3076 + $0x18] sm:$0xff]
  %v3081 = vld [vmem:[%s3076 + $0x20] sm:$0xff]
  %v3082 = vld [vmem:[%s3076 + $0x28] sm:$0xff]
  %v3083 = vld [vmem:[%s3076 + $0x30] sm:$0xff]
  %v3084 = vld [vmem:[%s3076 + $0x38] sm:$0xff]
  %v3085 = vmul.f32 %v3072, %v3077
  %v3086 = vmul.f32 %v3070, %v3078
  %v3087 = vmul.f32 %v3068, %v3079
  %v3088 = vmul.f32 %v3074, %v3080
  %v3089 = vmul.f32 %v3073, %v3081
  %v3090 = vmul.f32 %v3071, %v3082
  %v3091 = vmul.f32 %v3069, %v3083
  %v3092 = vmul.f32 %v3075, %v3084
  %3093 = vrot.lane.b32.xlu0 %v2786, 111
  %v3094 = vpop.permute.xlu0 %3093
  %3095 = vrot.lane.b32.xlu0 %v2790, 111
  %v3096 = vpop.permute.xlu0 %3095
  %3097 = vrot.lane.b32.xlu0 %v2787, 111
  %v3098 = vpop.permute.xlu0 %3097
  %3099 = vrot.lane.b32.xlu0 %v2791, 111
  %v3100 = vpop.permute.xlu0 %3099
  %3101 = vrot.lane.b32.xlu0 %v2788, 111
  %v3102 = vpop.permute.xlu0 %3101
  %3103 = vrot.lane.b32.xlu0 %v2792, 111
  %v3104 = vpop.permute.xlu0 %3103
  %3105 = vrot.lane.b32.xlu0 %v2789, 111
  %v3106 = vpop.permute.xlu0 %3105
  %3107 = vrot.lane.b32.xlu0 %v2793, 111
  %v3108 = vpop.permute.xlu0 %3107
  %vm3109 = vcmp.lt.s32.totalorder %v2815, 111
  %v3110 = vsel %vm3109, %v3102, %v3106
  %v3111 = vsel %vm3109, %v3104, %v3108
  %v3112 = vsel %vm3109, %v3098, %v3102
  %v3113 = vsel %vm3109, %v3100, %v3104
  %v3114 = vsel %vm3109, %v3094, %v3098
  %v3115 = vsel %vm3109, %v3096, %v3100
  %v3116 = vsel %vm3109, %v3106, %v3094
  %v3117 = vsel %vm3109, %v3108, %v3096
  %s3118 = scalar_lea.vmem %s11, 512
  %v3119 = vld [vmem:[%s3118] sm:$0xff]
  %v3120 = vld [vmem:[%s3118 + $0x8] sm:$0xff]
  %v3121 = vld [vmem:[%s3118 + $0x10] sm:$0xff]
  %v3122 = vld [vmem:[%s3118 + $0x18] sm:$0xff]
  %v3123 = vld [vmem:[%s3118 + $0x20] sm:$0xff]
  %v3124 = vld [vmem:[%s3118 + $0x28] sm:$0xff]
  %v3125 = vld [vmem:[%s3118 + $0x30] sm:$0xff]
  %v3126 = vld [vmem:[%s3118 + $0x38] sm:$0xff]
  %v3127 = vmul.f32 %v3114, %v3119
  %v3128 = vmul.f32 %v3112, %v3120
  %v3129 = vmul.f32 %v3110, %v3121
  %v3130 = vmul.f32 %v3116, %v3122
  %v3131 = vmul.f32 %v3115, %v3123
  %v3132 = vmul.f32 %v3113, %v3124
  %v3133 = vmul.f32 %v3111, %v3125
  %v3134 = vmul.f32 %v3117, %v3126
  %v3135 = vpack.c.bf16 %v2837, %v2833
  %v3136 = vpack.c.bf16 %v2838, %v2834
  %v3137 = vpack.c.bf16 %v2839, %v2835
  %v3138 = vpack.c.bf16 %v2840, %v2836
  %v3139 = vpack.c.bf16 %v2879, %v2875
  %v3140 = vpack.c.bf16 %v2880, %v2876
  %v3141 = vpack.c.bf16 %v2881, %v2877
  %v3142 = vpack.c.bf16 %v2882, %v2878
  %v3143 = vpack.c.bf16 %v2921, %v2917
  %v3144 = vpack.c.bf16 %v2922, %v2918
  %v3145 = vpack.c.bf16 %v2923, %v2919
  %v3146 = vpack.c.bf16 %v2924, %v2920
  %v3147 = vpack.c.bf16 %v2963, %v2959
  %v3148 = vpack.c.bf16 %v2964, %v2960
  %v3149 = vpack.c.bf16 %v2965, %v2961
  %v3150 = vpack.c.bf16 %v2966, %v2962
  %v3151 = vpack.c.bf16 %v2790, %v2786
  %v3152 = vpack.c.bf16 %v2791, %v2787
  %v3153 = vpack.c.bf16 %v2792, %v2788
  %v3154 = vpack.c.bf16 %v2793, %v2789
  %v3155 = vpack.c.bf16 %v3005, %v3001
  %v3156 = vpack.c.bf16 %v3006, %v3002
  %v3157 = vpack.c.bf16 %v3007, %v3003
  %v3158 = vpack.c.bf16 %v3008, %v3004
  %v3159 = vpack.c.bf16 %v3047, %v3043
  %v3160 = vpack.c.bf16 %v3048, %v3044
  %v3161 = vpack.c.bf16 %v3049, %v3045
  %v3162 = vpack.c.bf16 %v3050, %v3046
  %v3163 = vpack.c.bf16 %v3089, %v3085
  %v3164 = vpack.c.bf16 %v3090, %v3086
  %v3165 = vpack.c.bf16 %v3091, %v3087
  %v3166 = vpack.c.bf16 %v3092, %v3088
  %v3167 = vpack.c.bf16 %v3131, %v3127
  %v3168 = vpack.c.bf16 %v3132, %v3128
  %v3169 = vpack.c.bf16 %v3133, %v3129
  %v3170 = vpack.c.bf16 %v3134, %v3130
  %3172 = vset.pattern.permute.xlu0 0
  %3173 = vperm.xlu0 %3172, %v2796
  %v3174 = vpop.permute.xlu0 %3173
  %3177 = vset.pattern.permute.xlu0 0
  %3178 = vperm.xlu0 %3177, %v2797
  %v3179 = vpop.permute.xlu0 %3178
  %v3183 = vunpack.c.l.b16 %v2794
  %v3184 = vunpack.c.h.b16 %v2794
  %v3185 = vunpack.c.l.b16 %v2795
  %v3186 = vunpack.c.h.b16 %v2795
  %v3187 = vpack.c.b16 %v3185, %v3183
  %v3188 = vpack.c.b16 %v3186, %v3184
  %vm3190 = vcmask 130048
  %v3192 = vsel %vm3190, %v3188, 0
  %3194 = vmatpush.bf16.msra.mxu0 %v3163
  %3195 = vmatpush.bf16.msra.mxu0 %v3159
  %3196 = vmatpush.bf16.msra.mxu0 %v3155
  %3197 = vmatpush.bf16.msra.mxu0 %v3151
  %3198 = vmatpush.bf16.msra.mxu0 %v3147
  %3199 = vmatpush.bf16.msra.mxu0 %v3143
  %3200 = vmatpush.bf16.msra.mxu0 %v3139
  %3201 = vmatpush.bf16.msra.mxu0 %v3135
  %3202 = vmatmul.bf16.gmra.mxu0 %v3187
  %v3203 = vpop.f32.mrf.mxu0
  %v3204 = vadd.f32 %v3174, %v3203
  %v3205 = vpop.f32.mrf.mxu0
  %v3206 = vadd.f32 %v3179, %v3205
  %3207 = vdwg.mxu0
  %3208 = vmatpush.bf16.msra.mxu0 0
  %3209 = vmatpush.bf16.msra.mxu0 0
  %3210 = vmatpush.bf16.msra.mxu0 0
  %3211 = vmatpush.bf16.msra.mxu0 0
  %3212 = vmatpush.bf16.msra.mxu0 0
  %3213 = vmatpush.bf16.msra.mxu0 0
  %3214 = vmatpush.bf16.msra.mxu0 0
  %3215 = vmatpush.bf16.msra.mxu0 %v3167
  %3216 = vmatmul.bf16.gmra.mxu0 %v3192
  %v3217 = vpop.f32.mrf.mxu0
  %v3218 = vadd.f32 %v3204, %v3217
  %v3219 = vpop.f32.mrf.mxu0
  %v3220 = vadd.f32 %v3206, %v3219
  %3221 = vdwg.mxu0
  %3222 = vmatpush.bf16.msra.mxu0 %v3164
  %3223 = vmatpush.bf16.msra.mxu0 %v3160
  %3224 = vmatpush.bf16.msra.mxu0 %v3156
  %3225 = vmatpush.bf16.msra.mxu0 %v3152
  %3226 = vmatpush.bf16.msra.mxu0 %v3148
  %3227 = vmatpush.bf16.msra.mxu0 %v3144
  %3228 = vmatpush.bf16.msra.mxu0 %v3140
  %3229 = vmatpush.bf16.msra.mxu0 %v3136
  %3230 = vmatmul.bf16.gmra.mxu0 %v3187
  %v3231 = vpop.f32.mrf.mxu0
  %v3232 = vadd.f32 %v3174, %v3231
  %v3233 = vpop.f32.mrf.mxu0
  %v3234 = vadd.f32 %v3179, %v3233
  %3235 = vdwg.mxu0
  %3236 = vmatpush.bf16.msra.mxu0 0
  %3237 = vmatpush.bf16.msra.mxu0 0
  %3238 = vmatpush.bf16.msra.mxu0 0
  %3239 = vmatpush.bf16.msra.mxu0 0
  %3240 = vmatpush.bf16.msra.mxu0 0
  %3241 = vmatpush.bf16.msra.mxu0 0
  %3242 = vmatpush.bf16.msra.mxu0 0
  %3243 = vmatpush.bf16.msra.mxu0 %v3168
  %3244 = vmatmul.bf16.gmra.mxu0 %v3192
  %v3245 = vpop.f32.mrf.mxu0
  %v3246 = vadd.f32 %v3232, %v3245
  %v3247 = vpop.f32.mrf.mxu0
  %v3248 = vadd.f32 %v3234, %v3247
  %3249 = vdwg.mxu0
  %3250 = vmatpush.bf16.msra.mxu0 %v3165
  %3251 = vmatpush.bf16.msra.mxu0 %v3161
  %3252 = vmatpush.bf16.msra.mxu0 %v3157
  %3253 = vmatpush.bf16.msra.mxu0 %v3153
  %3254 = vmatpush.bf16.msra.mxu0 %v3149
  %3255 = vmatpush.bf16.msra.mxu0 %v3145
  %3256 = vmatpush.bf16.msra.mxu0 %v3141
  %3257 = vmatpush.bf16.msra.mxu0 %v3137
  %3258 = vmatmul.bf16.gmra.mxu0 %v3187
  %v3259 = vpop.f32.mrf.mxu0
  %v3260 = vadd.f32 %v3174, %v3259
  %v3261 = vpop.f32.mrf.mxu0
  %v3262 = vadd.f32 %v3179, %v3261
  %3263 = vdwg.mxu0
  %3264 = vmatpush.bf16.msra.mxu0 0
  %3265 = vmatpush.bf16.msra.mxu0 0
  %3266 = vmatpush.bf16.msra.mxu0 0
  %3267 = vmatpush.bf16.msra.mxu0 0
  %3268 = vmatpush.bf16.msra.mxu0 0
  %3269 = vmatpush.bf16.msra.mxu0 0
  %3270 = vmatpush.bf16.msra.mxu0 0
  %3271 = vmatpush.bf16.msra.mxu0 %v3169
  %3272 = vmatmul.bf16.gmra.mxu0 %v3192
  %v3273 = vpop.f32.mrf.mxu0
  %v3274 = vadd.f32 %v3260, %v3273
  %v3275 = vpop.f32.mrf.mxu0
  %v3276 = vadd.f32 %v3262, %v3275
  %3277 = vdwg.mxu0
  %3278 = vmatpush.bf16.msra.mxu0 %v3166
  %3279 = vmatpush.bf16.msra.mxu0 %v3162
  %3280 = vmatpush.bf16.msra.mxu0 %v3158
  %3281 = vmatpush.bf16.msra.mxu0 %v3154
  %3282 = vmatpush.bf16.msra.mxu0 %v3150
  %3283 = vmatpush.bf16.msra.mxu0 %v3146
  %3284 = vmatpush.bf16.msra.mxu0 %v3142
  %3285 = vmatpush.bf16.msra.mxu0 %v3138
  %3286 = vmatmul.bf16.gmra.mxu0 %v3187
  %v3287 = vpop.f32.mrf.mxu0
  %v3288 = vadd.f32 %v3174, %v3287
  %v3289 = vpop.f32.mrf.mxu0
  %v3290 = vadd.f32 %v3179, %v3289
  %3291 = vdwg.mxu0
  %3292 = vmatpush.bf16.msra.mxu0 0
  %3293 = vmatpush.bf16.msra.mxu0 0
  %3294 = vmatpush.bf16.msra.mxu0 0
  %3295 = vmatpush.bf16.msra.mxu0 0
  %3296 = vmatpush.bf16.msra.mxu0 0
  %3297 = vmatpush.bf16.msra.mxu0 0
  %3298 = vmatpush.bf16.msra.mxu0 0
  %3299 = vmatpush.bf16.msra.mxu0 %v3170
  %3300 = vmatmul.bf16.gmra.mxu0 %v3192
  %v3301 = vpop.f32.mrf.mxu0
  %v3302 = vadd.f32 %v3288, %v3301
  %v3303 = vpop.f32.mrf.mxu0
  %v3304 = vadd.f32 %v3290, %v3303
  %3305 = vdwg.mxu0
  %v3306 = vtanh.pop %v3218
  %v3307 = vtanh.pop %v3246
  %v3308 = vtanh.pop %v3274
  %v3309 = vtanh.pop %v3302
  %v3310 = vtanh.pop %v3220
  %v3311 = vtanh.pop %v3248
  %v3312 = vtanh.pop %v3276
  %v3313 = vtanh.pop %v3304
  %3314 = vst [vmem:[%s12] sm:$0xff] %v3306
  %3315 = vst [vmem:[%s12 + $0x8] sm:$0xff] %v3307
  %3316 = vst [vmem:[%s12 + $0x10] sm:$0xff] %v3308
  %3317 = vst [vmem:[%s12 + $0x18] sm:$0xff] %v3309
  %3318 = vst [vmem:[%s12 + $0x20] sm:$0xf] %v3310
  %3319 = vst [vmem:[%s12 + $0x28] sm:$0xf] %v3311
  %3320 = vst [vmem:[%s12 + $0x30] sm:$0xf] %v3312
  %3321 = vst [vmem:[%s12 + $0x38] sm:$0xf] %v3313
  // Predicated region
  $region50: #{vqvae_forward.3} parent=0 // pred_check
    _
  $region51: #{vqvae_forward.3} parent=0 // pred_check_branch
    %3323 = sbr.rel (0) target = $region53
  $region52: #{vqvae_forward.3} parent=0 // pred_region
    _
  $region53: #{vqvae_forward.3} parent=0 // pred_fallthru
    _
  // Predicated region
  $region54: #{vqvae_forward.3} parent=0 // pred_check
    _
  $region55: #{vqvae_forward.3} parent=0 // pred_check_branch
    %3325 = sbr.rel (0) target = $region57
  $region56: #{vqvae_forward.3} parent=0 // pred_region
    _
  $region57: #{vqvae_forward.3} parent=0 // pred_fallthru
    _

</llo_original>
